<compile_context>
chip_gen: v7x
topology: tpu7x:2x2x1
jax: 0.10.0
libtpu: 0.0.40
codegen_flags: <defaults>
</compile_context>

<pallas_src>
import numpy as np
import jax
import jax.numpy as jnp
from jax.experimental import pallas as pl
from jax.experimental.pallas import tpu as pltpu

MATMUL_DTYPE = jnp.bfloat16   # bf16 operands / f32 accumulation on the MXU


def _pair_select(rows, cols):
    """0/1 matrices E, O with E[r, 2r] = 1 and O[r, 2r+1] = 1 (2x2 pool compaction)."""
    r = jax.lax.broadcasted_iota(jnp.int32, (rows, cols), 0)
    c = jax.lax.broadcasted_iota(jnp.int32, (rows, cols), 1)
    even = jnp.where(c == 2 * r, 1.0, 0.0).astype(jnp.float32)
    odd = jnp.where(c == 2 * r + 1, 1.0, 0.0).astype(jnp.float32)
    return even, odd


def _lenet_kernel(x_ref, w1_ref, b1_ref, w2_ref, b2_ref,
                  wf1_ref, bf1_ref, wf2_ref, bf2_ref, wf3_ref, bf3_ref,
                  out_ref):
    f32 = jnp.float32
    N = x_ref.shape[0]            # batch
    C1P = w1_ref.shape[1]         # conv1 out channels, padded to 8

    xv = x_ref[...]               # (N, 28, 28, 1): (n, y, x-window[sublane], lane)

    # ---------------- conv1: 5x5, 1 -> 6(+2 pad) channels, VALID ----------------
    # Build im2col in VMEM with static slices + concats only.
    #   Xall[n, y, ox, j]      = x[n, y,    ox + j]
    #   Ball[n, oy, ox, i*5+j] = x[n, oy+i, ox + j]
    Xall = jnp.concatenate([xv[:, :, j:j + 24, :] for j in range(5)], axis=3)    # (N, 28, 24, 5)
    Ball = jnp.concatenate([Xall[:, i:i + 24, :, :] for i in range(5)], axis=3)  # (N, 24, 24, 25)
    im2col1 = jnp.concatenate(
        [Ball[n, oy] for n in range(N) for oy in range(24)], axis=0)             # (N*576, 25)
    c1 = jnp.dot(im2col1.astype(w1_ref.dtype), w1_ref[...],
                 preferred_element_type=f32)                                     # (N*576, C1P)

    # ---------------- maxpool1 (2x2 / 2) + bias + ReLU ----------------
    # c1 row layout: (n*24 + oy)*24 + ox.
    rowmax1 = []
    for n in range(N):
        for y in range(12):
            a = c1[(n * 24 + 2 * y) * 24:(n * 24 + 2 * y) * 24 + 24, :]
            b = c1[(n * 24 + 2 * y + 1) * 24:(n * 24 + 2 * y + 1) * 24 + 24, :]
            rowmax1.append(jnp.maximum(a, b))                                    # (24, C1P)
    A1 = jnp.concatenate(rowmax1, axis=1)                                        # (24, N*12*C1P)
    e12, o12 = _pair_select(12, 24)
    pooled1 = jnp.maximum(jnp.dot(e12, A1, preferred_element_type=f32),
                          jnp.dot(o12, A1, preferred_element_type=f32))          # (12, N*12*C1P)
    b1_tiled = jnp.concatenate([b1_ref[...]] * (N * 12), axis=1)                 # (1, N*12*C1P)
    pooled1 = jnp.maximum(pooled1 + b1_tiled, 0.0)
    # p1[n][y]: (12, C1P) slab, rows = pooled x, lanes = channel.
    p1 = [[pooled1[:, (n * 12 + y) * C1P:(n * 12 + y) * C1P + C1P]
           for y in range(12)] for n in range(N)]

    # ---------------- conv2: 5x5, 6(+2 pad) -> 16 channels, VALID ----------------
    # Row-im2col; column order (i, j, ci) matches w2 = HWIO(pad).reshape(200, 16).
    yrows = [[jnp.concatenate([p1[n][y][j:j + 8, :] for j in range(5)], axis=1)  # (8, 5*C1P)
              for y in range(12)] for n in range(N)]
    blocks2 = [jnp.concatenate([yrows[n][oy + i] for i in range(5)], axis=1)     # (8, 25*C1P)
               for n in range(N) for oy in range(8)]
    im2col2 = jnp.concatenate(blocks2, axis=0)                                   # (N*64, 25*C1P)
    c2 = jnp.dot(im2col2.astype(w2_ref.dtype), w2_ref[...],
                 preferred_element_type=f32)                                     # (N*64, 16)

    # ---------------- maxpool2 (2x2 / 2) + bias + ReLU ----------------
    rowmax2 = []
    for n in range(N):
        for r in range(4):
            a = c2[(n * 8 + 2 * r) * 8:(n * 8 + 2 * r) * 8 + 8, :]
            b = c2[(n * 8 + 2 * r + 1) * 8:(n * 8 + 2 * r + 1) * 8 + 8, :]
            rowmax2.append(jnp.maximum(a, b))                                    # (8, 16)
    A2 = jnp.concatenate(rowmax2, axis=1)                                        # (8, N*4*16)
    e4, o4 = _pair_select(4, 8)
    pooled2 = jnp.maximum(jnp.dot(e4, A2, preferred_element_type=f32),
                          jnp.dot(o4, A2, preferred_element_type=f32))           # (4, N*4*16)
    b2_tiled = jnp.concatenate([b2_ref[...]] * (N * 4), axis=1)
    pooled2 = jnp.maximum(pooled2 + b2_tiled, 0.0)

    # ---------------- flatten in (r, t, co) order -> (N, 256) ----------------
    # The permutation back to PyTorch's (co, r, t) view order is folded into wf1.
    feats = []
    for n in range(N):
        pieces = []
        for r in range(4):
            blk = pooled2[:, (n * 4 + r) * 16:(n * 4 + r) * 16 + 16]             # (4, 16) = (t, co)
            for t in range(4):
                pieces.append(blk[t:t + 1, :])                                   # (1, 16)
        feats.append(jnp.concatenate(pieces, axis=1))                            # (1, 256)
    feats = jnp.concatenate(feats, axis=0)                                       # (N, 256)

    # ---------------- fc1 -> ReLU -> fc2 -> ReLU -> fc3 ----------------
    h = jnp.dot(feats.astype(wf1_ref.dtype), wf1_ref[...],
                preferred_element_type=f32) + bf1_ref[...]
    h = jnp.maximum(h, 0.0)
    h = jnp.dot(h.astype(wf2_ref.dtype), wf2_ref[...],
                preferred_element_type=f32) + bf2_ref[...]
    h = jnp.maximum(h, 0.0)
    out = jnp.dot(h.astype(wf3_ref.dtype), wf3_ref[...],
                  preferred_element_type=f32) + bf3_ref[...]
    out_ref[...] = out.astype(out_ref.dtype)


def prepare_params(params):
    """One-time conversion of PyTorch-layout params to the kernel layout."""
    # conv1: HWIO (5,5,1,6) -> Cout padded to 8 -> (25, 8) matmul matrix.
    w1 = jnp.pad(params["w1"], ((0, 0), (0, 0), (0, 0), (0, 2)))
    w1m = w1.reshape(25, 8).astype(MATMUL_DTYPE)
    b1 = jnp.pad(params["b1"], (0, 2)).reshape(1, 8).astype(jnp.float32)
    # conv2: HWIO (5,5,6,16) -> Cin padded to 8 -> (200, 16), row order (i, j, ci).
    w2 = jnp.pad(params["w2"], ((0, 0), (0, 0), (0, 2), (0, 0)))
    w2m = w2.reshape(5 * 5 * 8, 16).astype(MATMUL_DTYPE)
    # Fold PyTorch's (co, y, x) flatten order together with the kernel's
    # (y, x, co) feature order into fc1's rows (compile-time row permutation).
    perm = np.array([co * 16 + r * 4 + t
                     for r in range(4) for t in range(4) for co in range(16)])
    wf1 = params["wf1"][perm, :].astype(MATMUL_DTYPE)
    return dict(
        w1m=w1m, b1=b1,
        w2m=w2m, b2=params["b2"].reshape(1, 16).astype(jnp.float32),
        wf1=wf1, bf1=params["bf1"].reshape(1, 120).astype(jnp.float32),
        wf2=params["wf2"].astype(MATMUL_DTYPE),
        bf2=params["bf2"].reshape(1, 84).astype(jnp.float32),
        wf3=params["wf3"].astype(MATMUL_DTYPE),
        bf3=params["bf3"].reshape(1, 10).astype(jnp.float32),
    )


def net_forward(x_nchw, kp):
    """x_nchw: (N, 1, 28, 28) float32 -> logits (N, 10), single fused kernel."""
    N, C, H, W = x_nchw.shape
    assert (C, H, W) == (1, 28, 28), (C, H, W)
    x4 = x_nchw.reshape(N, H, W, 1)          # NCHW with C=1 -> NHWC (pure reshape)
    vmem = pl.BlockSpec(memory_space=pltpu.MemorySpace.VMEM)
    return pl.pallas_call(
        _lenet_kernel,
        out_shape=jax.ShapeDtypeStruct((N, 10), jnp.float32),
        in_specs=[vmem] * 11,
        out_specs=vmem,
    )(x4, kp["w1m"], kp["b1"], kp["w2m"], kp["b2"],
      kp["wf1"], kp["bf1"], kp["wf2"], kp["bf2"], kp["wf3"], kp["bf3"])


def net_forward_reference(x_nchw, params):
    """Pure-JAX (XLA, f32) reference matching the PyTorch module."""
    x = jnp.transpose(x_nchw, (0, 2, 3, 1))

    def conv_relu(x, w, b):
        y = jax.lax.conv_general_dilated(
            x, w, window_strides=(1, 1), padding="VALID",
            dimension_numbers=("NHWC", "HWIO", "NHWC"))
        return jax.nn.relu(y + b)

    def pool(x):
        return jax.lax.reduce_window(x, -jnp.inf, jax.lax.max,
                                     (1, 2, 2, 1), (1, 2, 2, 1), "VALID")

    x = pool(conv_relu(x, params["w1"], params["b1"]))
    x = pool(conv_relu(x, params["w2"], params["b2"]))
    x = jnp.transpose(x, (0, 3, 1, 2)).reshape(x.shape[0], -1)   # PyTorch view order
    x = jax.nn.relu(x @ params["wf1"] + params["bf1"])
    x = jax.nn.relu(x @ params["wf2"] + params["bf2"])
    return x @ params["wf3"] + params["bf3"]


if __name__ == "__main__":
    key = jax.random.PRNGKey(0)
    ks = jax.random.split(key, 11)

    def uinit(k, shape, fan_in):
        bound = 1.0 / (fan_in ** 0.5)
        return jax.random.uniform(k, shape, jnp.float32, -bound, bound)

    params = dict(
        # conv1: Conv2d(1, 6, 5)  -> HWIO (5,5,1,6)
        w1=uinit(ks[0], (5, 5, 1, 6), 1 * 5 * 5),
        b1=uinit(ks[1], (6,), 1 * 5 * 5),
        # conv2: Conv2d(6, 16, 5) -> HWIO (5,5,6,16)
        w2=uinit(ks[2], (5, 5, 6, 16), 6 * 5 * 5),
        b2=uinit(ks[3], (16,), 6 * 5 * 5),
        # fc layers stored as (in, out)
        wf1=uinit(ks[4], (256, 120), 256),
        bf1=uinit(ks[5], (120,), 256),
        wf2=uinit(ks[6], (120, 84), 120),
        bf2=uinit(ks[7], (84,), 120),
        wf3=uinit(ks[8], (84, 10), 84),
        bf3=uinit(ks[9], (10,), 84),
    )

    # 28x28 single-channel input so the flatten yields 16*4*4 = 256 features.
    x = jax.random.normal(ks[10], (2, 1, 28, 28), dtype=jnp.float32)

    kp = prepare_params(params)            # one-time layout prep, outside hot path
    fwd = jax.jit(net_forward)
    out = jax.block_until_ready(fwd(x, kp))

    assert out.shape == (2, 10), out.shape
    assert out.dtype == jnp.float32

    # Numerical check against the plain-XLA f32 reference (bf16-dot tolerance).
    ref = jax.block_until_ready(net_forward_reference(x, params))
    np.testing.assert_allclose(np.asarray(out), np.asarray(ref), rtol=5e-2, atol=5e-2)

    print("KERNEL_OK")
</pallas_src>

<mosaic_0001>
module attributes {stable_mosaic.version = 11 : i64} {
  func.func @_lenet_kernel(%arg0: memref<2x28x28x1xf32, #tpu.memory_space<vmem>>, %arg1: memref<25x8xbf16, #tpu.memory_space<vmem>>, %arg2: memref<1x8xf32, #tpu.memory_space<vmem>>, %arg3: memref<200x16xbf16, #tpu.memory_space<vmem>>, %arg4: memref<1x16xf32, #tpu.memory_space<vmem>>, %arg5: memref<256x120xbf16, #tpu.memory_space<vmem>>, %arg6: memref<1x120xf32, #tpu.memory_space<vmem>>, %arg7: memref<120x84xbf16, #tpu.memory_space<vmem>>, %arg8: memref<1x84xf32, #tpu.memory_space<vmem>>, %arg9: memref<84x10xbf16, #tpu.memory_space<vmem>>, %arg10: memref<1x10xf32, #tpu.memory_space<vmem>>, %arg11: memref<2x10xf32, #tpu.memory_space<vmem>>) attributes {dimension_semantics = [], scalar_prefetch = 0 : i64, scratch_operands = 0 : i64, tpu.core_type = #tpu.core_type<tc>} {
    %c0 = arith.constant 0 : index
    %c0_0 = arith.constant 0 : index
    %c0_1 = arith.constant 0 : index
    %c0_2 = arith.constant 0 : index
    %0 = vector.load %arg0[%c0, %c0_0, %c0_1, %c0_2] : memref<2x28x28x1xf32, #tpu.memory_space<vmem>>, vector<2x28x28x1xf32>
    %1 = vector.extract_strided_slice %0 {offsets = [0, 0, 0, 0], sizes = [2, 28, 24, 1], strides = [1, 1, 1, 1]} : vector<2x28x28x1xf32> to vector<2x28x24x1xf32>
    %2 = vector.extract_strided_slice %0 {offsets = [0, 0, 1, 0], sizes = [2, 28, 24, 1], strides = [1, 1, 1, 1]} : vector<2x28x28x1xf32> to vector<2x28x24x1xf32>
    %3 = vector.extract_strided_slice %0 {offsets = [0, 0, 2, 0], sizes = [2, 28, 24, 1], strides = [1, 1, 1, 1]} : vector<2x28x28x1xf32> to vector<2x28x24x1xf32>
    %4 = vector.extract_strided_slice %0 {offsets = [0, 0, 3, 0], sizes = [2, 28, 24, 1], strides = [1, 1, 1, 1]} : vector<2x28x28x1xf32> to vector<2x28x24x1xf32>
    %5 = vector.extract_strided_slice %0 {offsets = [0, 0, 4, 0], sizes = [2, 28, 24, 1], strides = [1, 1, 1, 1]} : vector<2x28x28x1xf32> to vector<2x28x24x1xf32>
    %6 = tpu.concatenate %1, %2, %3, %4, %5 in 3 : vector<2x28x24x1xf32>, vector<2x28x24x1xf32>, vector<2x28x24x1xf32>, vector<2x28x24x1xf32>, vector<2x28x24x1xf32> -> vector<2x28x24x5xf32>
    %7 = vector.extract_strided_slice %6 {offsets = [0, 0, 0, 0], sizes = [2, 24, 24, 5], strides = [1, 1, 1, 1]} : vector<2x28x24x5xf32> to vector<2x24x24x5xf32>
    %8 = vector.extract_strided_slice %6 {offsets = [0, 1, 0, 0], sizes = [2, 24, 24, 5], strides = [1, 1, 1, 1]} : vector<2x28x24x5xf32> to vector<2x24x24x5xf32>
    %9 = vector.extract_strided_slice %6 {offsets = [0, 2, 0, 0], sizes = [2, 24, 24, 5], strides = [1, 1, 1, 1]} : vector<2x28x24x5xf32> to vector<2x24x24x5xf32>
    %10 = vector.extract_strided_slice %6 {offsets = [0, 3, 0, 0], sizes = [2, 24, 24, 5], strides = [1, 1, 1, 1]} : vector<2x28x24x5xf32> to vector<2x24x24x5xf32>
    %11 = vector.extract_strided_slice %6 {offsets = [0, 4, 0, 0], sizes = [2, 24, 24, 5], strides = [1, 1, 1, 1]} : vector<2x28x24x5xf32> to vector<2x24x24x5xf32>
    %12 = tpu.concatenate %7, %8, %9, %10, %11 in 3 : vector<2x24x24x5xf32>, vector<2x24x24x5xf32>, vector<2x24x24x5xf32>, vector<2x24x24x5xf32>, vector<2x24x24x5xf32> -> vector<2x24x24x25xf32>
    %13 = vector.extract_strided_slice %12 {offsets = [0, 0, 0, 0], sizes = [1, 1, 24, 25], strides = [1, 1, 1, 1]} : vector<2x24x24x25xf32> to vector<1x1x24x25xf32>
    %14 = vector.shape_cast %13 : vector<1x1x24x25xf32> to vector<24x25xf32>
    %15 = vector.extract_strided_slice %12 {offsets = [0, 1, 0, 0], sizes = [1, 1, 24, 25], strides = [1, 1, 1, 1]} : vector<2x24x24x25xf32> to vector<1x1x24x25xf32>
    %16 = vector.shape_cast %15 : vector<1x1x24x25xf32> to vector<24x25xf32>
    %17 = vector.extract_strided_slice %12 {offsets = [0, 2, 0, 0], sizes = [1, 1, 24, 25], strides = [1, 1, 1, 1]} : vector<2x24x24x25xf32> to vector<1x1x24x25xf32>
    %18 = vector.shape_cast %17 : vector<1x1x24x25xf32> to vector<24x25xf32>
    %19 = vector.extract_strided_slice %12 {offsets = [0, 3, 0, 0], sizes = [1, 1, 24, 25], strides = [1, 1, 1, 1]} : vector<2x24x24x25xf32> to vector<1x1x24x25xf32>
    %20 = vector.shape_cast %19 : vector<1x1x24x25xf32> to vector<24x25xf32>
    %21 = vector.extract_strided_slice %12 {offsets = [0, 4, 0, 0], sizes = [1, 1, 24, 25], strides = [1, 1, 1, 1]} : vector<2x24x24x25xf32> to vector<1x1x24x25xf32>
    %22 = vector.shape_cast %21 : vector<1x1x24x25xf32> to vector<24x25xf32>
    %23 = vector.extract_strided_slice %12 {offsets = [0, 5, 0, 0], sizes = [1, 1, 24, 25], strides = [1, 1, 1, 1]} : vector<2x24x24x25xf32> to vector<1x1x24x25xf32>
    %24 = vector.shape_cast %23 : vector<1x1x24x25xf32> to vector<24x25xf32>
    %25 = vector.extract_strided_slice %12 {offsets = [0, 6, 0, 0], sizes = [1, 1, 24, 25], strides = [1, 1, 1, 1]} : vector<2x24x24x25xf32> to vector<1x1x24x25xf32>
    %26 = vector.shape_cast %25 : vector<1x1x24x25xf32> to vector<24x25xf32>
    %27 = vector.extract_strided_slice %12 {offsets = [0, 7, 0, 0], sizes = [1, 1, 24, 25], strides = [1, 1, 1, 1]} : vector<2x24x24x25xf32> to vector<1x1x24x25xf32>
    %28 = vector.shape_cast %27 : vector<1x1x24x25xf32> to vector<24x25xf32>
    %29 = vector.extract_strided_slice %12 {offsets = [0, 8, 0, 0], sizes = [1, 1, 24, 25], strides = [1, 1, 1, 1]} : vector<2x24x24x25xf32> to vector<1x1x24x25xf32>
    %30 = vector.shape_cast %29 : vector<1x1x24x25xf32> to vector<24x25xf32>
    %31 = vector.extract_strided_slice %12 {offsets = [0, 9, 0, 0], sizes = [1, 1, 24, 25], strides = [1, 1, 1, 1]} : vector<2x24x24x25xf32> to vector<1x1x24x25xf32>
    %32 = vector.shape_cast %31 : vector<1x1x24x25xf32> to vector<24x25xf32>
    %33 = vector.extract_strided_slice %12 {offsets = [0, 10, 0, 0], sizes = [1, 1, 24, 25], strides = [1, 1, 1, 1]} : vector<2x24x24x25xf32> to vector<1x1x24x25xf32>
    %34 = vector.shape_cast %33 : vector<1x1x24x25xf32> to vector<24x25xf32>
    %35 = vector.extract_strided_slice %12 {offsets = [0, 11, 0, 0], sizes = [1, 1, 24, 25], strides = [1, 1, 1, 1]} : vector<2x24x24x25xf32> to vector<1x1x24x25xf32>
    %36 = vector.shape_cast %35 : vector<1x1x24x25xf32> to vector<24x25xf32>
    %37 = vector.extract_strided_slice %12 {offsets = [0, 12, 0, 0], sizes = [1, 1, 24, 25], strides = [1, 1, 1, 1]} : vector<2x24x24x25xf32> to vector<1x1x24x25xf32>
    %38 = vector.shape_cast %37 : vector<1x1x24x25xf32> to vector<24x25xf32>
    %39 = vector.extract_strided_slice %12 {offsets = [0, 13, 0, 0], sizes = [1, 1, 24, 25], strides = [1, 1, 1, 1]} : vector<2x24x24x25xf32> to vector<1x1x24x25xf32>
    %40 = vector.shape_cast %39 : vector<1x1x24x25xf32> to vector<24x25xf32>
    %41 = vector.extract_strided_slice %12 {offsets = [0, 14, 0, 0], sizes = [1, 1, 24, 25], strides = [1, 1, 1, 1]} : vector<2x24x24x25xf32> to vector<1x1x24x25xf32>
    %42 = vector.shape_cast %41 : vector<1x1x24x25xf32> to vector<24x25xf32>
    %43 = vector.extract_strided_slice %12 {offsets = [0, 15, 0, 0], sizes = [1, 1, 24, 25], strides = [1, 1, 1, 1]} : vector<2x24x24x25xf32> to vector<1x1x24x25xf32>
    %44 = vector.shape_cast %43 : vector<1x1x24x25xf32> to vector<24x25xf32>
    %45 = vector.extract_strided_slice %12 {offsets = [0, 16, 0, 0], sizes = [1, 1, 24, 25], strides = [1, 1, 1, 1]} : vector<2x24x24x25xf32> to vector<1x1x24x25xf32>
    %46 = vector.shape_cast %45 : vector<1x1x24x25xf32> to vector<24x25xf32>
    %47 = vector.extract_strided_slice %12 {offsets = [0, 17, 0, 0], sizes = [1, 1, 24, 25], strides = [1, 1, 1, 1]} : vector<2x24x24x25xf32> to vector<1x1x24x25xf32>
    %48 = vector.shape_cast %47 : vector<1x1x24x25xf32> to vector<24x25xf32>
    %49 = vector.extract_strided_slice %12 {offsets = [0, 18, 0, 0], sizes = [1, 1, 24, 25], strides = [1, 1, 1, 1]} : vector<2x24x24x25xf32> to vector<1x1x24x25xf32>
    %50 = vector.shape_cast %49 : vector<1x1x24x25xf32> to vector<24x25xf32>
    %51 = vector.extract_strided_slice %12 {offsets = [0, 19, 0, 0], sizes = [1, 1, 24, 25], strides = [1, 1, 1, 1]} : vector<2x24x24x25xf32> to vector<1x1x24x25xf32>
    %52 = vector.shape_cast %51 : vector<1x1x24x25xf32> to vector<24x25xf32>
    %53 = vector.extract_strided_slice %12 {offsets = [0, 20, 0, 0], sizes = [1, 1, 24, 25], strides = [1, 1, 1, 1]} : vector<2x24x24x25xf32> to vector<1x1x24x25xf32>
    %54 = vector.shape_cast %53 : vector<1x1x24x25xf32> to vector<24x25xf32>
    %55 = vector.extract_strided_slice %12 {offsets = [0, 21, 0, 0], sizes = [1, 1, 24, 25], strides = [1, 1, 1, 1]} : vector<2x24x24x25xf32> to vector<1x1x24x25xf32>
    %56 = vector.shape_cast %55 : vector<1x1x24x25xf32> to vector<24x25xf32>
    %57 = vector.extract_strided_slice %12 {offsets = [0, 22, 0, 0], sizes = [1, 1, 24, 25], strides = [1, 1, 1, 1]} : vector<2x24x24x25xf32> to vector<1x1x24x25xf32>
    %58 = vector.shape_cast %57 : vector<1x1x24x25xf32> to vector<24x25xf32>
    %59 = vector.extract_strided_slice %12 {offsets = [0, 23, 0, 0], sizes = [1, 1, 24, 25], strides = [1, 1, 1, 1]} : vector<2x24x24x25xf32> to vector<1x1x24x25xf32>
    %60 = vector.shape_cast %59 : vector<1x1x24x25xf32> to vector<24x25xf32>
    %61 = vector.extract_strided_slice %12 {offsets = [1, 0, 0, 0], sizes = [1, 1, 24, 25], strides = [1, 1, 1, 1]} : vector<2x24x24x25xf32> to vector<1x1x24x25xf32>
    %62 = vector.shape_cast %61 : vector<1x1x24x25xf32> to vector<24x25xf32>
    %63 = vector.extract_strided_slice %12 {offsets = [1, 1, 0, 0], sizes = [1, 1, 24, 25], strides = [1, 1, 1, 1]} : vector<2x24x24x25xf32> to vector<1x1x24x25xf32>
    %64 = vector.shape_cast %63 : vector<1x1x24x25xf32> to vector<24x25xf32>
    %65 = vector.extract_strided_slice %12 {offsets = [1, 2, 0, 0], sizes = [1, 1, 24, 25], strides = [1, 1, 1, 1]} : vector<2x24x24x25xf32> to vector<1x1x24x25xf32>
    %66 = vector.shape_cast %65 : vector<1x1x24x25xf32> to vector<24x25xf32>
    %67 = vector.extract_strided_slice %12 {offsets = [1, 3, 0, 0], sizes = [1, 1, 24, 25], strides = [1, 1, 1, 1]} : vector<2x24x24x25xf32> to vector<1x1x24x25xf32>
    %68 = vector.shape_cast %67 : vector<1x1x24x25xf32> to vector<24x25xf32>
    %69 = vector.extract_strided_slice %12 {offsets = [1, 4, 0, 0], sizes = [1, 1, 24, 25], strides = [1, 1, 1, 1]} : vector<2x24x24x25xf32> to vector<1x1x24x25xf32>
    %70 = vector.shape_cast %69 : vector<1x1x24x25xf32> to vector<24x25xf32>
    %71 = vector.extract_strided_slice %12 {offsets = [1, 5, 0, 0], sizes = [1, 1, 24, 25], strides = [1, 1, 1, 1]} : vector<2x24x24x25xf32> to vector<1x1x24x25xf32>
    %72 = vector.shape_cast %71 : vector<1x1x24x25xf32> to vector<24x25xf32>
    %73 = vector.extract_strided_slice %12 {offsets = [1, 6, 0, 0], sizes = [1, 1, 24, 25], strides = [1, 1, 1, 1]} : vector<2x24x24x25xf32> to vector<1x1x24x25xf32>
    %74 = vector.shape_cast %73 : vector<1x1x24x25xf32> to vector<24x25xf32>
    %75 = vector.extract_strided_slice %12 {offsets = [1, 7, 0, 0], sizes = [1, 1, 24, 25], strides = [1, 1, 1, 1]} : vector<2x24x24x25xf32> to vector<1x1x24x25xf32>
    %76 = vector.shape_cast %75 : vector<1x1x24x25xf32> to vector<24x25xf32>
    %77 = vector.extract_strided_slice %12 {offsets = [1, 8, 0, 0], sizes = [1, 1, 24, 25], strides = [1, 1, 1, 1]} : vector<2x24x24x25xf32> to vector<1x1x24x25xf32>
    %78 = vector.shape_cast %77 : vector<1x1x24x25xf32> to vector<24x25xf32>
    %79 = vector.extract_strided_slice %12 {offsets = [1, 9, 0, 0], sizes = [1, 1, 24, 25], strides = [1, 1, 1, 1]} : vector<2x24x24x25xf32> to vector<1x1x24x25xf32>
    %80 = vector.shape_cast %79 : vector<1x1x24x25xf32> to vector<24x25xf32>
    %81 = vector.extract_strided_slice %12 {offsets = [1, 10, 0, 0], sizes = [1, 1, 24, 25], strides = [1, 1, 1, 1]} : vector<2x24x24x25xf32> to vector<1x1x24x25xf32>
    %82 = vector.shape_cast %81 : vector<1x1x24x25xf32> to vector<24x25xf32>
    %83 = vector.extract_strided_slice %12 {offsets = [1, 11, 0, 0], sizes = [1, 1, 24, 25], strides = [1, 1, 1, 1]} : vector<2x24x24x25xf32> to vector<1x1x24x25xf32>
    %84 = vector.shape_cast %83 : vector<1x1x24x25xf32> to vector<24x25xf32>
    %85 = vector.extract_strided_slice %12 {offsets = [1, 12, 0, 0], sizes = [1, 1, 24, 25], strides = [1, 1, 1, 1]} : vector<2x24x24x25xf32> to vector<1x1x24x25xf32>
    %86 = vector.shape_cast %85 : vector<1x1x24x25xf32> to vector<24x25xf32>
    %87 = vector.extract_strided_slice %12 {offsets = [1, 13, 0, 0], sizes = [1, 1, 24, 25], strides = [1, 1, 1, 1]} : vector<2x24x24x25xf32> to vector<1x1x24x25xf32>
    %88 = vector.shape_cast %87 : vector<1x1x24x25xf32> to vector<24x25xf32>
    %89 = vector.extract_strided_slice %12 {offsets = [1, 14, 0, 0], sizes = [1, 1, 24, 25], strides = [1, 1, 1, 1]} : vector<2x24x24x25xf32> to vector<1x1x24x25xf32>
    %90 = vector.shape_cast %89 : vector<1x1x24x25xf32> to vector<24x25xf32>
    %91 = vector.extract_strided_slice %12 {offsets = [1, 15, 0, 0], sizes = [1, 1, 24, 25], strides = [1, 1, 1, 1]} : vector<2x24x24x25xf32> to vector<1x1x24x25xf32>
    %92 = vector.shape_cast %91 : vector<1x1x24x25xf32> to vector<24x25xf32>
    %93 = vector.extract_strided_slice %12 {offsets = [1, 16, 0, 0], sizes = [1, 1, 24, 25], strides = [1, 1, 1, 1]} : vector<2x24x24x25xf32> to vector<1x1x24x25xf32>
    %94 = vector.shape_cast %93 : vector<1x1x24x25xf32> to vector<24x25xf32>
    %95 = vector.extract_strided_slice %12 {offsets = [1, 17, 0, 0], sizes = [1, 1, 24, 25], strides = [1, 1, 1, 1]} : vector<2x24x24x25xf32> to vector<1x1x24x25xf32>
    %96 = vector.shape_cast %95 : vector<1x1x24x25xf32> to vector<24x25xf32>
    %97 = vector.extract_strided_slice %12 {offsets = [1, 18, 0, 0], sizes = [1, 1, 24, 25], strides = [1, 1, 1, 1]} : vector<2x24x24x25xf32> to vector<1x1x24x25xf32>
    %98 = vector.shape_cast %97 : vector<1x1x24x25xf32> to vector<24x25xf32>
    %99 = vector.extract_strided_slice %12 {offsets = [1, 19, 0, 0], sizes = [1, 1, 24, 25], strides = [1, 1, 1, 1]} : vector<2x24x24x25xf32> to vector<1x1x24x25xf32>
    %100 = vector.shape_cast %99 : vector<1x1x24x25xf32> to vector<24x25xf32>
    %101 = vector.extract_strided_slice %12 {offsets = [1, 20, 0, 0], sizes = [1, 1, 24, 25], strides = [1, 1, 1, 1]} : vector<2x24x24x25xf32> to vector<1x1x24x25xf32>
    %102 = vector.shape_cast %101 : vector<1x1x24x25xf32> to vector<24x25xf32>
    %103 = vector.extract_strided_slice %12 {offsets = [1, 21, 0, 0], sizes = [1, 1, 24, 25], strides = [1, 1, 1, 1]} : vector<2x24x24x25xf32> to vector<1x1x24x25xf32>
    %104 = vector.shape_cast %103 : vector<1x1x24x25xf32> to vector<24x25xf32>
    %105 = vector.extract_strided_slice %12 {offsets = [1, 22, 0, 0], sizes = [1, 1, 24, 25], strides = [1, 1, 1, 1]} : vector<2x24x24x25xf32> to vector<1x1x24x25xf32>
    %106 = vector.shape_cast %105 : vector<1x1x24x25xf32> to vector<24x25xf32>
    %107 = vector.extract_strided_slice %12 {offsets = [1, 23, 0, 0], sizes = [1, 1, 24, 25], strides = [1, 1, 1, 1]} : vector<2x24x24x25xf32> to vector<1x1x24x25xf32>
    %108 = vector.shape_cast %107 : vector<1x1x24x25xf32> to vector<24x25xf32>
    %109 = tpu.concatenate %14, %16, %18, %20, %22, %24, %26, %28, %30, %32, %34, %36, %38, %40, %42, %44 in 0 : vector<24x25xf32>, vector<24x25xf32>, vector<24x25xf32>, vector<24x25xf32>, vector<24x25xf32>, vector<24x25xf32>, vector<24x25xf32>, vector<24x25xf32>, vector<24x25xf32>, vector<24x25xf32>, vector<24x25xf32>, vector<24x25xf32>, vector<24x25xf32>, vector<24x25xf32>, vector<24x25xf32>, vector<24x25xf32> -> vector<384x25xf32>
    %110 = tpu.concatenate %46, %48, %50, %52, %54, %56, %58, %60, %62, %64, %66, %68, %70, %72, %74, %76 in 0 : vector<24x25xf32>, vector<24x25xf32>, vector<24x25xf32>, vector<24x25xf32>, vector<24x25xf32>, vector<24x25xf32>, vector<24x25xf32>, vector<24x25xf32>, vector<24x25xf32>, vector<24x25xf32>, vector<24x25xf32>, vector<24x25xf32>, vector<24x25xf32>, vector<24x25xf32>, vector<24x25xf32>, vector<24x25xf32> -> vector<384x25xf32>
    %111 = tpu.concatenate %78, %80, %82, %84, %86, %88, %90, %92, %94, %96, %98, %100, %102, %104, %106, %108 in 0 : vector<24x25xf32>, vector<24x25xf32>, vector<24x25xf32>, vector<24x25xf32>, vector<24x25xf32>, vector<24x25xf32>, vector<24x25xf32>, vector<24x25xf32>, vector<24x25xf32>, vector<24x25xf32>, vector<24x25xf32>, vector<24x25xf32>, vector<24x25xf32>, vector<24x25xf32>, vector<24x25xf32>, vector<24x25xf32> -> vector<384x25xf32>
    %112 = tpu.concatenate %109, %110, %111 in 0 : vector<384x25xf32>, vector<384x25xf32>, vector<384x25xf32> -> vector<1152x25xf32>
    %113 = arith.truncf %112 : vector<1152x25xf32> to vector<1152x25xbf16>
    %c0_3 = arith.constant 0 : index
    %c0_4 = arith.constant 0 : index
    %114 = vector.load %arg1[%c0_3, %c0_4] : memref<25x8xbf16, #tpu.memory_space<vmem>>, vector<25x8xbf16>
    %cst = arith.constant dense<0.000000e+00> : vector<1152x8xf32>
    %115 = tpu.matmul %113, %114, %cst {dimension_numbers = #tpu.dot_dimension_numbers<[1], [0], [0], [1], [0, 0, 1, 1], [], []>} : vector<1152x25xbf16>, vector<25x8xbf16>, vector<1152x8xf32> -> vector<1152x8xf32>
    %116 = vector.extract_strided_slice %115 {offsets = [0, 0], sizes = [24, 8], strides = [1, 1]} : vector<1152x8xf32> to vector<24x8xf32>
    %117 = vector.extract_strided_slice %115 {offsets = [24, 0], sizes = [24, 8], strides = [1, 1]} : vector<1152x8xf32> to vector<24x8xf32>
    %118 = arith.maximumf %116, %117 : vector<24x8xf32>
    %119 = vector.extract_strided_slice %115 {offsets = [48, 0], sizes = [24, 8], strides = [1, 1]} : vector<1152x8xf32> to vector<24x8xf32>
    %120 = vector.extract_strided_slice %115 {offsets = [72, 0], sizes = [24, 8], strides = [1, 1]} : vector<1152x8xf32> to vector<24x8xf32>
    %121 = arith.maximumf %119, %120 : vector<24x8xf32>
    %122 = vector.extract_strided_slice %115 {offsets = [96, 0], sizes = [24, 8], strides = [1, 1]} : vector<1152x8xf32> to vector<24x8xf32>
    %123 = vector.extract_strided_slice %115 {offsets = [120, 0], sizes = [24, 8], strides = [1, 1]} : vector<1152x8xf32> to vector<24x8xf32>
    %124 = arith.maximumf %122, %123 : vector<24x8xf32>
    %125 = vector.extract_strided_slice %115 {offsets = [144, 0], sizes = [24, 8], strides = [1, 1]} : vector<1152x8xf32> to vector<24x8xf32>
    %126 = vector.extract_strided_slice %115 {offsets = [168, 0], sizes = [24, 8], strides = [1, 1]} : vector<1152x8xf32> to vector<24x8xf32>
    %127 = arith.maximumf %125, %126 : vector<24x8xf32>
    %128 = vector.extract_strided_slice %115 {offsets = [192, 0], sizes = [24, 8], strides = [1, 1]} : vector<1152x8xf32> to vector<24x8xf32>
    %129 = vector.extract_strided_slice %115 {offsets = [216, 0], sizes = [24, 8], strides = [1, 1]} : vector<1152x8xf32> to vector<24x8xf32>
    %130 = arith.maximumf %128, %129 : vector<24x8xf32>
    %131 = vector.extract_strided_slice %115 {offsets = [240, 0], sizes = [24, 8], strides = [1, 1]} : vector<1152x8xf32> to vector<24x8xf32>
    %132 = vector.extract_strided_slice %115 {offsets = [264, 0], sizes = [24, 8], strides = [1, 1]} : vector<1152x8xf32> to vector<24x8xf32>
    %133 = arith.maximumf %131, %132 : vector<24x8xf32>
    %134 = vector.extract_strided_slice %115 {offsets = [288, 0], sizes = [24, 8], strides = [1, 1]} : vector<1152x8xf32> to vector<24x8xf32>
    %135 = vector.extract_strided_slice %115 {offsets = [312, 0], sizes = [24, 8], strides = [1, 1]} : vector<1152x8xf32> to vector<24x8xf32>
    %136 = arith.maximumf %134, %135 : vector<24x8xf32>
    %137 = vector.extract_strided_slice %115 {offsets = [336, 0], sizes = [24, 8], strides = [1, 1]} : vector<1152x8xf32> to vector<24x8xf32>
    %138 = vector.extract_strided_slice %115 {offsets = [360, 0], sizes = [24, 8], strides = [1, 1]} : vector<1152x8xf32> to vector<24x8xf32>
    %139 = arith.maximumf %137, %138 : vector<24x8xf32>
    %140 = vector.extract_strided_slice %115 {offsets = [384, 0], sizes = [24, 8], strides = [1, 1]} : vector<1152x8xf32> to vector<24x8xf32>
    %141 = vector.extract_strided_slice %115 {offsets = [408, 0], sizes = [24, 8], strides = [1, 1]} : vector<1152x8xf32> to vector<24x8xf32>
    %142 = arith.maximumf %140, %141 : vector<24x8xf32>
    %143 = vector.extract_strided_slice %115 {offsets = [432, 0], sizes = [24, 8], strides = [1, 1]} : vector<1152x8xf32> to vector<24x8xf32>
    %144 = vector.extract_strided_slice %115 {offsets = [456, 0], sizes = [24, 8], strides = [1, 1]} : vector<1152x8xf32> to vector<24x8xf32>
    %145 = arith.maximumf %143, %144 : vector<24x8xf32>
    %146 = vector.extract_strided_slice %115 {offsets = [480, 0], sizes = [24, 8], strides = [1, 1]} : vector<1152x8xf32> to vector<24x8xf32>
    %147 = vector.extract_strided_slice %115 {offsets = [504, 0], sizes = [24, 8], strides = [1, 1]} : vector<1152x8xf32> to vector<24x8xf32>
    %148 = arith.maximumf %146, %147 : vector<24x8xf32>
    %149 = vector.extract_strided_slice %115 {offsets = [528, 0], sizes = [24, 8], strides = [1, 1]} : vector<1152x8xf32> to vector<24x8xf32>
    %150 = vector.extract_strided_slice %115 {offsets = [552, 0], sizes = [24, 8], strides = [1, 1]} : vector<1152x8xf32> to vector<24x8xf32>
    %151 = arith.maximumf %149, %150 : vector<24x8xf32>
    %152 = vector.extract_strided_slice %115 {offsets = [576, 0], sizes = [24, 8], strides = [1, 1]} : vector<1152x8xf32> to vector<24x8xf32>
    %153 = vector.extract_strided_slice %115 {offsets = [600, 0], sizes = [24, 8], strides = [1, 1]} : vector<1152x8xf32> to vector<24x8xf32>
    %154 = arith.maximumf %152, %153 : vector<24x8xf32>
    %155 = vector.extract_strided_slice %115 {offsets = [624, 0], sizes = [24, 8], strides = [1, 1]} : vector<1152x8xf32> to vector<24x8xf32>
    %156 = vector.extract_strided_slice %115 {offsets = [648, 0], sizes = [24, 8], strides = [1, 1]} : vector<1152x8xf32> to vector<24x8xf32>
    %157 = arith.maximumf %155, %156 : vector<24x8xf32>
    %158 = vector.extract_strided_slice %115 {offsets = [672, 0], sizes = [24, 8], strides = [1, 1]} : vector<1152x8xf32> to vector<24x8xf32>
    %159 = vector.extract_strided_slice %115 {offsets = [696, 0], sizes = [24, 8], strides = [1, 1]} : vector<1152x8xf32> to vector<24x8xf32>
    %160 = arith.maximumf %158, %159 : vector<24x8xf32>
    %161 = vector.extract_strided_slice %115 {offsets = [720, 0], sizes = [24, 8], strides = [1, 1]} : vector<1152x8xf32> to vector<24x8xf32>
    %162 = vector.extract_strided_slice %115 {offsets = [744, 0], sizes = [24, 8], strides = [1, 1]} : vector<1152x8xf32> to vector<24x8xf32>
    %163 = arith.maximumf %161, %162 : vector<24x8xf32>
    %164 = vector.extract_strided_slice %115 {offsets = [768, 0], sizes = [24, 8], strides = [1, 1]} : vector<1152x8xf32> to vector<24x8xf32>
    %165 = vector.extract_strided_slice %115 {offsets = [792, 0], sizes = [24, 8], strides = [1, 1]} : vector<1152x8xf32> to vector<24x8xf32>
    %166 = arith.maximumf %164, %165 : vector<24x8xf32>
    %167 = vector.extract_strided_slice %115 {offsets = [816, 0], sizes = [24, 8], strides = [1, 1]} : vector<1152x8xf32> to vector<24x8xf32>
    %168 = vector.extract_strided_slice %115 {offsets = [840, 0], sizes = [24, 8], strides = [1, 1]} : vector<1152x8xf32> to vector<24x8xf32>
    %169 = arith.maximumf %167, %168 : vector<24x8xf32>
    %170 = vector.extract_strided_slice %115 {offsets = [864, 0], sizes = [24, 8], strides = [1, 1]} : vector<1152x8xf32> to vector<24x8xf32>
    %171 = vector.extract_strided_slice %115 {offsets = [888, 0], sizes = [24, 8], strides = [1, 1]} : vector<1152x8xf32> to vector<24x8xf32>
    %172 = arith.maximumf %170, %171 : vector<24x8xf32>
    %173 = vector.extract_strided_slice %115 {offsets = [912, 0], sizes = [24, 8], strides = [1, 1]} : vector<1152x8xf32> to vector<24x8xf32>
    %174 = vector.extract_strided_slice %115 {offsets = [936, 0], sizes = [24, 8], strides = [1, 1]} : vector<1152x8xf32> to vector<24x8xf32>
    %175 = arith.maximumf %173, %174 : vector<24x8xf32>
    %176 = vector.extract_strided_slice %115 {offsets = [960, 0], sizes = [24, 8], strides = [1, 1]} : vector<1152x8xf32> to vector<24x8xf32>
    %177 = vector.extract_strided_slice %115 {offsets = [984, 0], sizes = [24, 8], strides = [1, 1]} : vector<1152x8xf32> to vector<24x8xf32>
    %178 = arith.maximumf %176, %177 : vector<24x8xf32>
    %179 = vector.extract_strided_slice %115 {offsets = [1008, 0], sizes = [24, 8], strides = [1, 1]} : vector<1152x8xf32> to vector<24x8xf32>
    %180 = vector.extract_strided_slice %115 {offsets = [1032, 0], sizes = [24, 8], strides = [1, 1]} : vector<1152x8xf32> to vector<24x8xf32>
    %181 = arith.maximumf %179, %180 : vector<24x8xf32>
    %182 = vector.extract_strided_slice %115 {offsets = [1056, 0], sizes = [24, 8], strides = [1, 1]} : vector<1152x8xf32> to vector<24x8xf32>
    %183 = vector.extract_strided_slice %115 {offsets = [1080, 0], sizes = [24, 8], strides = [1, 1]} : vector<1152x8xf32> to vector<24x8xf32>
    %184 = arith.maximumf %182, %183 : vector<24x8xf32>
    %185 = vector.extract_strided_slice %115 {offsets = [1104, 0], sizes = [24, 8], strides = [1, 1]} : vector<1152x8xf32> to vector<24x8xf32>
    %186 = vector.extract_strided_slice %115 {offsets = [1128, 0], sizes = [24, 8], strides = [1, 1]} : vector<1152x8xf32> to vector<24x8xf32>
    %187 = arith.maximumf %185, %186 : vector<24x8xf32>
    %188 = tpu.concatenate %118, %121, %124, %127, %130, %133, %136, %139, %142, %145, %148, %151, %154, %157, %160, %163 in 1 : vector<24x8xf32>, vector<24x8xf32>, vector<24x8xf32>, vector<24x8xf32>, vector<24x8xf32>, vector<24x8xf32>, vector<24x8xf32>, vector<24x8xf32>, vector<24x8xf32>, vector<24x8xf32>, vector<24x8xf32>, vector<24x8xf32>, vector<24x8xf32>, vector<24x8xf32>, vector<24x8xf32>, vector<24x8xf32> -> vector<24x128xf32>
    %189 = tpu.concatenate %166, %169, %172, %175, %178, %181, %184, %187 in 1 : vector<24x8xf32>, vector<24x8xf32>, vector<24x8xf32>, vector<24x8xf32>, vector<24x8xf32>, vector<24x8xf32>, vector<24x8xf32>, vector<24x8xf32> -> vector<24x64xf32>
    %190 = tpu.concatenate %188, %189 in 1 : vector<24x128xf32>, vector<24x64xf32> -> vector<24x192xf32>
    %191 = tpu.iota {dimensions = array<i32: 0>} : vector<12x24xi32>
    %192 = tpu.iota {dimensions = array<i32: 1>} : vector<12x24xi32>
    %c2_i32 = arith.constant 2 : i32
    %193 = vector.broadcast %c2_i32 : i32 to vector<12x24xi32>
    %194 = arith.muli %193, %191 : vector<12x24xi32>
    %195 = arith.cmpi eq, %192, %194 : vector<12x24xi32>
    %cst_5 = arith.constant 1.000000e+00 : f32
    %cst_6 = arith.constant 0.000000e+00 : f32
    %196 = vector.broadcast %cst_5 : f32 to vector<12x24xf32>
    %197 = vector.broadcast %cst_6 : f32 to vector<12x24xf32>
    %198 = arith.select %195, %196, %197 : vector<12x24xi1>, vector<12x24xf32>
    %c2_i32_7 = arith.constant 2 : i32
    %199 = vector.broadcast %c2_i32_7 : i32 to vector<12x24xi32>
    %200 = arith.muli %199, %191 : vector<12x24xi32>
    %c1_i32 = arith.constant 1 : i32
    %201 = vector.broadcast %c1_i32 : i32 to vector<12x24xi32>
    %202 = arith.addi %200, %201 : vector<12x24xi32>
    %203 = arith.cmpi eq, %192, %202 : vector<12x24xi32>
    %cst_8 = arith.constant 1.000000e+00 : f32
    %cst_9 = arith.constant 0.000000e+00 : f32
    %204 = vector.broadcast %cst_8 : f32 to vector<12x24xf32>
    %205 = vector.broadcast %cst_9 : f32 to vector<12x24xf32>
    %206 = arith.select %203, %204, %205 : vector<12x24xi1>, vector<12x24xf32>
    %cst_10 = arith.constant dense<0.000000e+00> : vector<12x192xf32>
    %207 = tpu.matmul %198, %190, %cst_10 {dimension_numbers = #tpu.dot_dimension_numbers<[1], [0], [0], [1], [0, 0, 1, 1], [], []>} : vector<12x24xf32>, vector<24x192xf32>, vector<12x192xf32> -> vector<12x192xf32>
    %cst_11 = arith.constant dense<0.000000e+00> : vector<12x192xf32>
    %208 = tpu.matmul %206, %190, %cst_11 {dimension_numbers = #tpu.dot_dimension_numbers<[1], [0], [0], [1], [0, 0, 1, 1], [], []>} : vector<12x24xf32>, vector<24x192xf32>, vector<12x192xf32> -> vector<12x192xf32>
    %209 = arith.maximumf %207, %208 : vector<12x192xf32>
    %c0_12 = arith.constant 0 : index
    %c0_13 = arith.constant 0 : index
    %210 = vector.load %arg2[%c0_12, %c0_13] : memref<1x8xf32, #tpu.memory_space<vmem>>, vector<1x8xf32>
    %211 = tpu.concatenate %210, %210, %210, %210, %210, %210, %210, %210, %210, %210, %210, %210, %210, %210, %210, %210 in 1 : vector<1x8xf32>, vector<1x8xf32>, vector<1x8xf32>, vector<1x8xf32>, vector<1x8xf32>, vector<1x8xf32>, vector<1x8xf32>, vector<1x8xf32>, vector<1x8xf32>, vector<1x8xf32>, vector<1x8xf32>, vector<1x8xf32>, vector<1x8xf32>, vector<1x8xf32>, vector<1x8xf32>, vector<1x8xf32> -> vector<1x128xf32>
    %212 = tpu.concatenate %210, %210, %210, %210, %210, %210, %210, %210 in 1 : vector<1x8xf32>, vector<1x8xf32>, vector<1x8xf32>, vector<1x8xf32>, vector<1x8xf32>, vector<1x8xf32>, vector<1x8xf32>, vector<1x8xf32> -> vector<1x64xf32>
    %213 = tpu.concatenate %211, %212 in 1 : vector<1x128xf32>, vector<1x64xf32> -> vector<1x192xf32>
    %214 = vector.broadcast %213 : vector<1x192xf32> to vector<12x192xf32>
    %215 = arith.addf %209, %214 : vector<12x192xf32>
    %cst_14 = arith.constant 0.000000e+00 : f32
    %216 = vector.broadcast %cst_14 : f32 to vector<12x192xf32>
    %217 = arith.maximumf %215, %216 : vector<12x192xf32>
    %218 = vector.extract_strided_slice %217 {offsets = [0, 0], sizes = [12, 8], strides = [1, 1]} : vector<12x192xf32> to vector<12x8xf32>
    %219 = vector.extract_strided_slice %217 {offsets = [0, 8], sizes = [12, 8], strides = [1, 1]} : vector<12x192xf32> to vector<12x8xf32>
    %220 = vector.extract_strided_slice %217 {offsets = [0, 16], sizes = [12, 8], strides = [1, 1]} : vector<12x192xf32> to vector<12x8xf32>
    %221 = vector.extract_strided_slice %217 {offsets = [0, 24], sizes = [12, 8], strides = [1, 1]} : vector<12x192xf32> to vector<12x8xf32>
    %222 = vector.extract_strided_slice %217 {offsets = [0, 32], sizes = [12, 8], strides = [1, 1]} : vector<12x192xf32> to vector<12x8xf32>
    %223 = vector.extract_strided_slice %217 {offsets = [0, 40], sizes = [12, 8], strides = [1, 1]} : vector<12x192xf32> to vector<12x8xf32>
    %224 = vector.extract_strided_slice %217 {offsets = [0, 48], sizes = [12, 8], strides = [1, 1]} : vector<12x192xf32> to vector<12x8xf32>
    %225 = vector.extract_strided_slice %217 {offsets = [0, 56], sizes = [12, 8], strides = [1, 1]} : vector<12x192xf32> to vector<12x8xf32>
    %226 = vector.extract_strided_slice %217 {offsets = [0, 64], sizes = [12, 8], strides = [1, 1]} : vector<12x192xf32> to vector<12x8xf32>
    %227 = vector.extract_strided_slice %217 {offsets = [0, 72], sizes = [12, 8], strides = [1, 1]} : vector<12x192xf32> to vector<12x8xf32>
    %228 = vector.extract_strided_slice %217 {offsets = [0, 80], sizes = [12, 8], strides = [1, 1]} : vector<12x192xf32> to vector<12x8xf32>
    %229 = vector.extract_strided_slice %217 {offsets = [0, 88], sizes = [12, 8], strides = [1, 1]} : vector<12x192xf32> to vector<12x8xf32>
    %230 = vector.extract_strided_slice %217 {offsets = [0, 96], sizes = [12, 8], strides = [1, 1]} : vector<12x192xf32> to vector<12x8xf32>
    %231 = vector.extract_strided_slice %217 {offsets = [0, 104], sizes = [12, 8], strides = [1, 1]} : vector<12x192xf32> to vector<12x8xf32>
    %232 = vector.extract_strided_slice %217 {offsets = [0, 112], sizes = [12, 8], strides = [1, 1]} : vector<12x192xf32> to vector<12x8xf32>
    %233 = vector.extract_strided_slice %217 {offsets = [0, 120], sizes = [12, 8], strides = [1, 1]} : vector<12x192xf32> to vector<12x8xf32>
    %234 = vector.extract_strided_slice %217 {offsets = [0, 128], sizes = [12, 8], strides = [1, 1]} : vector<12x192xf32> to vector<12x8xf32>
    %235 = vector.extract_strided_slice %217 {offsets = [0, 136], sizes = [12, 8], strides = [1, 1]} : vector<12x192xf32> to vector<12x8xf32>
    %236 = vector.extract_strided_slice %217 {offsets = [0, 144], sizes = [12, 8], strides = [1, 1]} : vector<12x192xf32> to vector<12x8xf32>
    %237 = vector.extract_strided_slice %217 {offsets = [0, 152], sizes = [12, 8], strides = [1, 1]} : vector<12x192xf32> to vector<12x8xf32>
    %238 = vector.extract_strided_slice %217 {offsets = [0, 160], sizes = [12, 8], strides = [1, 1]} : vector<12x192xf32> to vector<12x8xf32>
    %239 = vector.extract_strided_slice %217 {offsets = [0, 168], sizes = [12, 8], strides = [1, 1]} : vector<12x192xf32> to vector<12x8xf32>
    %240 = vector.extract_strided_slice %217 {offsets = [0, 176], sizes = [12, 8], strides = [1, 1]} : vector<12x192xf32> to vector<12x8xf32>
    %241 = vector.extract_strided_slice %217 {offsets = [0, 184], sizes = [12, 8], strides = [1, 1]} : vector<12x192xf32> to vector<12x8xf32>
    %242 = vector.extract_strided_slice %218 {offsets = [0, 0], sizes = [8, 8], strides = [1, 1]} : vector<12x8xf32> to vector<8x8xf32>
    %243 = vector.extract_strided_slice %218 {offsets = [1, 0], sizes = [8, 8], strides = [1, 1]} : vector<12x8xf32> to vector<8x8xf32>
    %244 = vector.extract_strided_slice %218 {offsets = [2, 0], sizes = [8, 8], strides = [1, 1]} : vector<12x8xf32> to vector<8x8xf32>
    %245 = vector.extract_strided_slice %218 {offsets = [3, 0], sizes = [8, 8], strides = [1, 1]} : vector<12x8xf32> to vector<8x8xf32>
    %246 = vector.extract_strided_slice %218 {offsets = [4, 0], sizes = [8, 8], strides = [1, 1]} : vector<12x8xf32> to vector<8x8xf32>
    %247 = tpu.concatenate %242, %243, %244, %245, %246 in 1 : vector<8x8xf32>, vector<8x8xf32>, vector<8x8xf32>, vector<8x8xf32>, vector<8x8xf32> -> vector<8x40xf32>
    %248 = vector.extract_strided_slice %219 {offsets = [0, 0], sizes = [8, 8], strides = [1, 1]} : vector<12x8xf32> to vector<8x8xf32>
    %249 = vector.extract_strided_slice %219 {offsets = [1, 0], sizes = [8, 8], strides = [1, 1]} : vector<12x8xf32> to vector<8x8xf32>
    %250 = vector.extract_strided_slice %219 {offsets = [2, 0], sizes = [8, 8], strides = [1, 1]} : vector<12x8xf32> to vector<8x8xf32>
    %251 = vector.extract_strided_slice %219 {offsets = [3, 0], sizes = [8, 8], strides = [1, 1]} : vector<12x8xf32> to vector<8x8xf32>
    %252 = vector.extract_strided_slice %219 {offsets = [4, 0], sizes = [8, 8], strides = [1, 1]} : vector<12x8xf32> to vector<8x8xf32>
    %253 = tpu.concatenate %248, %249, %250, %251, %252 in 1 : vector<8x8xf32>, vector<8x8xf32>, vector<8x8xf32>, vector<8x8xf32>, vector<8x8xf32> -> vector<8x40xf32>
    %254 = vector.extract_strided_slice %220 {offsets = [0, 0], sizes = [8, 8], strides = [1, 1]} : vector<12x8xf32> to vector<8x8xf32>
    %255 = vector.extract_strided_slice %220 {offsets = [1, 0], sizes = [8, 8], strides = [1, 1]} : vector<12x8xf32> to vector<8x8xf32>
    %256 = vector.extract_strided_slice %220 {offsets = [2, 0], sizes = [8, 8], strides = [1, 1]} : vector<12x8xf32> to vector<8x8xf32>
    %257 = vector.extract_strided_slice %220 {offsets = [3, 0], sizes = [8, 8], strides = [1, 1]} : vector<12x8xf32> to vector<8x8xf32>
    %258 = vector.extract_strided_slice %220 {offsets = [4, 0], sizes = [8, 8], strides = [1, 1]} : vector<12x8xf32> to vector<8x8xf32>
    %259 = tpu.concatenate %254, %255, %256, %257, %258 in 1 : vector<8x8xf32>, vector<8x8xf32>, vector<8x8xf32>, vector<8x8xf32>, vector<8x8xf32> -> vector<8x40xf32>
    %260 = vector.extract_strided_slice %221 {offsets = [0, 0], sizes = [8, 8], strides = [1, 1]} : vector<12x8xf32> to vector<8x8xf32>
    %261 = vector.extract_strided_slice %221 {offsets = [1, 0], sizes = [8, 8], strides = [1, 1]} : vector<12x8xf32> to vector<8x8xf32>
    %262 = vector.extract_strided_slice %221 {offsets = [2, 0], sizes = [8, 8], strides = [1, 1]} : vector<12x8xf32> to vector<8x8xf32>
    %263 = vector.extract_strided_slice %221 {offsets = [3, 0], sizes = [8, 8], strides = [1, 1]} : vector<12x8xf32> to vector<8x8xf32>
    %264 = vector.extract_strided_slice %221 {offsets = [4, 0], sizes = [8, 8], strides = [1, 1]} : vector<12x8xf32> to vector<8x8xf32>
    %265 = tpu.concatenate %260, %261, %262, %263, %264 in 1 : vector<8x8xf32>, vector<8x8xf32>, vector<8x8xf32>, vector<8x8xf32>, vector<8x8xf32> -> vector<8x40xf32>
    %266 = vector.extract_strided_slice %222 {offsets = [0, 0], sizes = [8, 8], strides = [1, 1]} : vector<12x8xf32> to vector<8x8xf32>
    %267 = vector.extract_strided_slice %222 {offsets = [1, 0], sizes = [8, 8], strides = [1, 1]} : vector<12x8xf32> to vector<8x8xf32>
    %268 = vector.extract_strided_slice %222 {offsets = [2, 0], sizes = [8, 8], strides = [1, 1]} : vector<12x8xf32> to vector<8x8xf32>
    %269 = vector.extract_strided_slice %222 {offsets = [3, 0], sizes = [8, 8], strides = [1, 1]} : vector<12x8xf32> to vector<8x8xf32>
    %270 = vector.extract_strided_slice %222 {offsets = [4, 0], sizes = [8, 8], strides = [1, 1]} : vector<12x8xf32> to vector<8x8xf32>
    %271 = tpu.concatenate %266, %267, %268, %269, %270 in 1 : vector<8x8xf32>, vector<8x8xf32>, vector<8x8xf32>, vector<8x8xf32>, vector<8x8xf32> -> vector<8x40xf32>
    %272 = vector.extract_strided_slice %223 {offsets = [0, 0], sizes = [8, 8], strides = [1, 1]} : vector<12x8xf32> to vector<8x8xf32>
    %273 = vector.extract_strided_slice %223 {offsets = [1, 0], sizes = [8, 8], strides = [1, 1]} : vector<12x8xf32> to vector<8x8xf32>
    %274 = vector.extract_strided_slice %223 {offsets = [2, 0], sizes = [8, 8], strides = [1, 1]} : vector<12x8xf32> to vector<8x8xf32>
    %275 = vector.extract_strided_slice %223 {offsets = [3, 0], sizes = [8, 8], strides = [1, 1]} : vector<12x8xf32> to vector<8x8xf32>
    %276 = vector.extract_strided_slice %223 {offsets = [4, 0], sizes = [8, 8], strides = [1, 1]} : vector<12x8xf32> to vector<8x8xf32>
    %277 = tpu.concatenate %272, %273, %274, %275, %276 in 1 : vector<8x8xf32>, vector<8x8xf32>, vector<8x8xf32>, vector<8x8xf32>, vector<8x8xf32> -> vector<8x40xf32>
    %278 = vector.extract_strided_slice %224 {offsets = [0, 0], sizes = [8, 8], strides = [1, 1]} : vector<12x8xf32> to vector<8x8xf32>
    %279 = vector.extract_strided_slice %224 {offsets = [1, 0], sizes = [8, 8], strides = [1, 1]} : vector<12x8xf32> to vector<8x8xf32>
    %280 = vector.extract_strided_slice %224 {offsets = [2, 0], sizes = [8, 8], strides = [1, 1]} : vector<12x8xf32> to vector<8x8xf32>
    %281 = vector.extract_strided_slice %224 {offsets = [3, 0], sizes = [8, 8], strides = [1, 1]} : vector<12x8xf32> to vector<8x8xf32>
    %282 = vector.extract_strided_slice %224 {offsets = [4, 0], sizes = [8, 8], strides = [1, 1]} : vector<12x8xf32> to vector<8x8xf32>
    %283 = tpu.concatenate %278, %279, %280, %281, %282 in 1 : vector<8x8xf32>, vector<8x8xf32>, vector<8x8xf32>, vector<8x8xf32>, vector<8x8xf32> -> vector<8x40xf32>
    %284 = vector.extract_strided_slice %225 {offsets = [0, 0], sizes = [8, 8], strides = [1, 1]} : vector<12x8xf32> to vector<8x8xf32>
    %285 = vector.extract_strided_slice %225 {offsets = [1, 0], sizes = [8, 8], strides = [1, 1]} : vector<12x8xf32> to vector<8x8xf32>
    %286 = vector.extract_strided_slice %225 {offsets = [2, 0], sizes = [8, 8], strides = [1, 1]} : vector<12x8xf32> to vector<8x8xf32>
    %287 = vector.extract_strided_slice %225 {offsets = [3, 0], sizes = [8, 8], strides = [1, 1]} : vector<12x8xf32> to vector<8x8xf32>
    %288 = vector.extract_strided_slice %225 {offsets = [4, 0], sizes = [8, 8], strides = [1, 1]} : vector<12x8xf32> to vector<8x8xf32>
    %289 = tpu.concatenate %284, %285, %286, %287, %288 in 1 : vector<8x8xf32>, vector<8x8xf32>, vector<8x8xf32>, vector<8x8xf32>, vector<8x8xf32> -> vector<8x40xf32>
    %290 = vector.extract_strided_slice %226 {offsets = [0, 0], sizes = [8, 8], strides = [1, 1]} : vector<12x8xf32> to vector<8x8xf32>
    %291 = vector.extract_strided_slice %226 {offsets = [1, 0], sizes = [8, 8], strides = [1, 1]} : vector<12x8xf32> to vector<8x8xf32>
    %292 = vector.extract_strided_slice %226 {offsets = [2, 0], sizes = [8, 8], strides = [1, 1]} : vector<12x8xf32> to vector<8x8xf32>
    %293 = vector.extract_strided_slice %226 {offsets = [3, 0], sizes = [8, 8], strides = [1, 1]} : vector<12x8xf32> to vector<8x8xf32>
    %294 = vector.extract_strided_slice %226 {offsets = [4, 0], sizes = [8, 8], strides = [1, 1]} : vector<12x8xf32> to vector<8x8xf32>
    %295 = tpu.concatenate %290, %291, %292, %293, %294 in 1 : vector<8x8xf32>, vector<8x8xf32>, vector<8x8xf32>, vector<8x8xf32>, vector<8x8xf32> -> vector<8x40xf32>
    %296 = vector.extract_strided_slice %227 {offsets = [0, 0], sizes = [8, 8], strides = [1, 1]} : vector<12x8xf32> to vector<8x8xf32>
    %297 = vector.extract_strided_slice %227 {offsets = [1, 0], sizes = [8, 8], strides = [1, 1]} : vector<12x8xf32> to vector<8x8xf32>
    %298 = vector.extract_strided_slice %227 {offsets = [2, 0], sizes = [8, 8], strides = [1, 1]} : vector<12x8xf32> to vector<8x8xf32>
    %299 = vector.extract_strided_slice %227 {offsets = [3, 0], sizes = [8, 8], strides = [1, 1]} : vector<12x8xf32> to vector<8x8xf32>
    %300 = vector.extract_strided_slice %227 {offsets = [4, 0], sizes = [8, 8], strides = [1, 1]} : vector<12x8xf32> to vector<8x8xf32>
    %301 = tpu.concatenate %296, %297, %298, %299, %300 in 1 : vector<8x8xf32>, vector<8x8xf32>, vector<8x8xf32>, vector<8x8xf32>, vector<8x8xf32> -> vector<8x40xf32>
    %302 = vector.extract_strided_slice %228 {offsets = [0, 0], sizes = [8, 8], strides = [1, 1]} : vector<12x8xf32> to vector<8x8xf32>
    %303 = vector.extract_strided_slice %228 {offsets = [1, 0], sizes = [8, 8], strides = [1, 1]} : vector<12x8xf32> to vector<8x8xf32>
    %304 = vector.extract_strided_slice %228 {offsets = [2, 0], sizes = [8, 8], strides = [1, 1]} : vector<12x8xf32> to vector<8x8xf32>
    %305 = vector.extract_strided_slice %228 {offsets = [3, 0], sizes = [8, 8], strides = [1, 1]} : vector<12x8xf32> to vector<8x8xf32>
    %306 = vector.extract_strided_slice %228 {offsets = [4, 0], sizes = [8, 8], strides = [1, 1]} : vector<12x8xf32> to vector<8x8xf32>
    %307 = tpu.concatenate %302, %303, %304, %305, %306 in 1 : vector<8x8xf32>, vector<8x8xf32>, vector<8x8xf32>, vector<8x8xf32>, vector<8x8xf32> -> vector<8x40xf32>
    %308 = vector.extract_strided_slice %229 {offsets = [0, 0], sizes = [8, 8], strides = [1, 1]} : vector<12x8xf32> to vector<8x8xf32>
    %309 = vector.extract_strided_slice %229 {offsets = [1, 0], sizes = [8, 8], strides = [1, 1]} : vector<12x8xf32> to vector<8x8xf32>
    %310 = vector.extract_strided_slice %229 {offsets = [2, 0], sizes = [8, 8], strides = [1, 1]} : vector<12x8xf32> to vector<8x8xf32>
    %311 = vector.extract_strided_slice %229 {offsets = [3, 0], sizes = [8, 8], strides = [1, 1]} : vector<12x8xf32> to vector<8x8xf32>
    %312 = vector.extract_strided_slice %229 {offsets = [4, 0], sizes = [8, 8], strides = [1, 1]} : vector<12x8xf32> to vector<8x8xf32>
    %313 = tpu.concatenate %308, %309, %310, %311, %312 in 1 : vector<8x8xf32>, vector<8x8xf32>, vector<8x8xf32>, vector<8x8xf32>, vector<8x8xf32> -> vector<8x40xf32>
    %314 = vector.extract_strided_slice %230 {offsets = [0, 0], sizes = [8, 8], strides = [1, 1]} : vector<12x8xf32> to vector<8x8xf32>
    %315 = vector.extract_strided_slice %230 {offsets = [1, 0], sizes = [8, 8], strides = [1, 1]} : vector<12x8xf32> to vector<8x8xf32>
    %316 = vector.extract_strided_slice %230 {offsets = [2, 0], sizes = [8, 8], strides = [1, 1]} : vector<12x8xf32> to vector<8x8xf32>
    %317 = vector.extract_strided_slice %230 {offsets = [3, 0], sizes = [8, 8], strides = [1, 1]} : vector<12x8xf32> to vector<8x8xf32>
    %318 = vector.extract_strided_slice %230 {offsets = [4, 0], sizes = [8, 8], strides = [1, 1]} : vector<12x8xf32> to vector<8x8xf32>
    %319 = tpu.concatenate %314, %315, %316, %317, %318 in 1 : vector<8x8xf32>, vector<8x8xf32>, vector<8x8xf32>, vector<8x8xf32>, vector<8x8xf32> -> vector<8x40xf32>
    %320 = vector.extract_strided_slice %231 {offsets = [0, 0], sizes = [8, 8], strides = [1, 1]} : vector<12x8xf32> to vector<8x8xf32>
    %321 = vector.extract_strided_slice %231 {offsets = [1, 0], sizes = [8, 8], strides = [1, 1]} : vector<12x8xf32> to vector<8x8xf32>
    %322 = vector.extract_strided_slice %231 {offsets = [2, 0], sizes = [8, 8], strides = [1, 1]} : vector<12x8xf32> to vector<8x8xf32>
    %323 = vector.extract_strided_slice %231 {offsets = [3, 0], sizes = [8, 8], strides = [1, 1]} : vector<12x8xf32> to vector<8x8xf32>
    %324 = vector.extract_strided_slice %231 {offsets = [4, 0], sizes = [8, 8], strides = [1, 1]} : vector<12x8xf32> to vector<8x8xf32>
    %325 = tpu.concatenate %320, %321, %322, %323, %324 in 1 : vector<8x8xf32>, vector<8x8xf32>, vector<8x8xf32>, vector<8x8xf32>, vector<8x8xf32> -> vector<8x40xf32>
    %326 = vector.extract_strided_slice %232 {offsets = [0, 0], sizes = [8, 8], strides = [1, 1]} : vector<12x8xf32> to vector<8x8xf32>
    %327 = vector.extract_strided_slice %232 {offsets = [1, 0], sizes = [8, 8], strides = [1, 1]} : vector<12x8xf32> to vector<8x8xf32>
    %328 = vector.extract_strided_slice %232 {offsets = [2, 0], sizes = [8, 8], strides = [1, 1]} : vector<12x8xf32> to vector<8x8xf32>
    %329 = vector.extract_strided_slice %232 {offsets = [3, 0], sizes = [8, 8], strides = [1, 1]} : vector<12x8xf32> to vector<8x8xf32>
    %330 = vector.extract_strided_slice %232 {offsets = [4, 0], sizes = [8, 8], strides = [1, 1]} : vector<12x8xf32> to vector<8x8xf32>
    %331 = tpu.concatenate %326, %327, %328, %329, %330 in 1 : vector<8x8xf32>, vector<8x8xf32>, vector<8x8xf32>, vector<8x8xf32>, vector<8x8xf32> -> vector<8x40xf32>
    %332 = vector.extract_strided_slice %233 {offsets = [0, 0], sizes = [8, 8], strides = [1, 1]} : vector<12x8xf32> to vector<8x8xf32>
    %333 = vector.extract_strided_slice %233 {offsets = [1, 0], sizes = [8, 8], strides = [1, 1]} : vector<12x8xf32> to vector<8x8xf32>
    %334 = vector.extract_strided_slice %233 {offsets = [2, 0], sizes = [8, 8], strides = [1, 1]} : vector<12x8xf32> to vector<8x8xf32>
    %335 = vector.extract_strided_slice %233 {offsets = [3, 0], sizes = [8, 8], strides = [1, 1]} : vector<12x8xf32> to vector<8x8xf32>
    %336 = vector.extract_strided_slice %233 {offsets = [4, 0], sizes = [8, 8], strides = [1, 1]} : vector<12x8xf32> to vector<8x8xf32>
    %337 = tpu.concatenate %332, %333, %334, %335, %336 in 1 : vector<8x8xf32>, vector<8x8xf32>, vector<8x8xf32>, vector<8x8xf32>, vector<8x8xf32> -> vector<8x40xf32>
    %338 = vector.extract_strided_slice %234 {offsets = [0, 0], sizes = [8, 8], strides = [1, 1]} : vector<12x8xf32> to vector<8x8xf32>
    %339 = vector.extract_strided_slice %234 {offsets = [1, 0], sizes = [8, 8], strides = [1, 1]} : vector<12x8xf32> to vector<8x8xf32>
    %340 = vector.extract_strided_slice %234 {offsets = [2, 0], sizes = [8, 8], strides = [1, 1]} : vector<12x8xf32> to vector<8x8xf32>
    %341 = vector.extract_strided_slice %234 {offsets = [3, 0], sizes = [8, 8], strides = [1, 1]} : vector<12x8xf32> to vector<8x8xf32>
    %342 = vector.extract_strided_slice %234 {offsets = [4, 0], sizes = [8, 8], strides = [1, 1]} : vector<12x8xf32> to vector<8x8xf32>
    %343 = tpu.concatenate %338, %339, %340, %341, %342 in 1 : vector<8x8xf32>, vector<8x8xf32>, vector<8x8xf32>, vector<8x8xf32>, vector<8x8xf32> -> vector<8x40xf32>
    %344 = vector.extract_strided_slice %235 {offsets = [0, 0], sizes = [8, 8], strides = [1, 1]} : vector<12x8xf32> to vector<8x8xf32>
    %345 = vector.extract_strided_slice %235 {offsets = [1, 0], sizes = [8, 8], strides = [1, 1]} : vector<12x8xf32> to vector<8x8xf32>
    %346 = vector.extract_strided_slice %235 {offsets = [2, 0], sizes = [8, 8], strides = [1, 1]} : vector<12x8xf32> to vector<8x8xf32>
    %347 = vector.extract_strided_slice %235 {offsets = [3, 0], sizes = [8, 8], strides = [1, 1]} : vector<12x8xf32> to vector<8x8xf32>
    %348 = vector.extract_strided_slice %235 {offsets = [4, 0], sizes = [8, 8], strides = [1, 1]} : vector<12x8xf32> to vector<8x8xf32>
    %349 = tpu.concatenate %344, %345, %346, %347, %348 in 1 : vector<8x8xf32>, vector<8x8xf32>, vector<8x8xf32>, vector<8x8xf32>, vector<8x8xf32> -> vector<8x40xf32>
    %350 = vector.extract_strided_slice %236 {offsets = [0, 0], sizes = [8, 8], strides = [1, 1]} : vector<12x8xf32> to vector<8x8xf32>
    %351 = vector.extract_strided_slice %236 {offsets = [1, 0], sizes = [8, 8], strides = [1, 1]} : vector<12x8xf32> to vector<8x8xf32>
    %352 = vector.extract_strided_slice %236 {offsets = [2, 0], sizes = [8, 8], strides = [1, 1]} : vector<12x8xf32> to vector<8x8xf32>
    %353 = vector.extract_strided_slice %236 {offsets = [3, 0], sizes = [8, 8], strides = [1, 1]} : vector<12x8xf32> to vector<8x8xf32>
    %354 = vector.extract_strided_slice %236 {offsets = [4, 0], sizes = [8, 8], strides = [1, 1]} : vector<12x8xf32> to vector<8x8xf32>
    %355 = tpu.concatenate %350, %351, %352, %353, %354 in 1 : vector<8x8xf32>, vector<8x8xf32>, vector<8x8xf32>, vector<8x8xf32>, vector<8x8xf32> -> vector<8x40xf32>
    %356 = vector.extract_strided_slice %237 {offsets = [0, 0], sizes = [8, 8], strides = [1, 1]} : vector<12x8xf32> to vector<8x8xf32>
    %357 = vector.extract_strided_slice %237 {offsets = [1, 0], sizes = [8, 8], strides = [1, 1]} : vector<12x8xf32> to vector<8x8xf32>
    %358 = vector.extract_strided_slice %237 {offsets = [2, 0], sizes = [8, 8], strides = [1, 1]} : vector<12x8xf32> to vector<8x8xf32>
    %359 = vector.extract_strided_slice %237 {offsets = [3, 0], sizes = [8, 8], strides = [1, 1]} : vector<12x8xf32> to vector<8x8xf32>
    %360 = vector.extract_strided_slice %237 {offsets = [4, 0], sizes = [8, 8], strides = [1, 1]} : vector<12x8xf32> to vector<8x8xf32>
    %361 = tpu.concatenate %356, %357, %358, %359, %360 in 1 : vector<8x8xf32>, vector<8x8xf32>, vector<8x8xf32>, vector<8x8xf32>, vector<8x8xf32> -> vector<8x40xf32>
    %362 = vector.extract_strided_slice %238 {offsets = [0, 0], sizes = [8, 8], strides = [1, 1]} : vector<12x8xf32> to vector<8x8xf32>
    %363 = vector.extract_strided_slice %238 {offsets = [1, 0], sizes = [8, 8], strides = [1, 1]} : vector<12x8xf32> to vector<8x8xf32>
    %364 = vector.extract_strided_slice %238 {offsets = [2, 0], sizes = [8, 8], strides = [1, 1]} : vector<12x8xf32> to vector<8x8xf32>
    %365 = vector.extract_strided_slice %238 {offsets = [3, 0], sizes = [8, 8], strides = [1, 1]} : vector<12x8xf32> to vector<8x8xf32>
    %366 = vector.extract_strided_slice %238 {offsets = [4, 0], sizes = [8, 8], strides = [1, 1]} : vector<12x8xf32> to vector<8x8xf32>
    %367 = tpu.concatenate %362, %363, %364, %365, %366 in 1 : vector<8x8xf32>, vector<8x8xf32>, vector<8x8xf32>, vector<8x8xf32>, vector<8x8xf32> -> vector<8x40xf32>
    %368 = vector.extract_strided_slice %239 {offsets = [0, 0], sizes = [8, 8], strides = [1, 1]} : vector<12x8xf32> to vector<8x8xf32>
    %369 = vector.extract_strided_slice %239 {offsets = [1, 0], sizes = [8, 8], strides = [1, 1]} : vector<12x8xf32> to vector<8x8xf32>
    %370 = vector.extract_strided_slice %239 {offsets = [2, 0], sizes = [8, 8], strides = [1, 1]} : vector<12x8xf32> to vector<8x8xf32>
    %371 = vector.extract_strided_slice %239 {offsets = [3, 0], sizes = [8, 8], strides = [1, 1]} : vector<12x8xf32> to vector<8x8xf32>
    %372 = vector.extract_strided_slice %239 {offsets = [4, 0], sizes = [8, 8], strides = [1, 1]} : vector<12x8xf32> to vector<8x8xf32>
    %373 = tpu.concatenate %368, %369, %370, %371, %372 in 1 : vector<8x8xf32>, vector<8x8xf32>, vector<8x8xf32>, vector<8x8xf32>, vector<8x8xf32> -> vector<8x40xf32>
    %374 = vector.extract_strided_slice %240 {offsets = [0, 0], sizes = [8, 8], strides = [1, 1]} : vector<12x8xf32> to vector<8x8xf32>
    %375 = vector.extract_strided_slice %240 {offsets = [1, 0], sizes = [8, 8], strides = [1, 1]} : vector<12x8xf32> to vector<8x8xf32>
    %376 = vector.extract_strided_slice %240 {offsets = [2, 0], sizes = [8, 8], strides = [1, 1]} : vector<12x8xf32> to vector<8x8xf32>
    %377 = vector.extract_strided_slice %240 {offsets = [3, 0], sizes = [8, 8], strides = [1, 1]} : vector<12x8xf32> to vector<8x8xf32>
    %378 = vector.extract_strided_slice %240 {offsets = [4, 0], sizes = [8, 8], strides = [1, 1]} : vector<12x8xf32> to vector<8x8xf32>
    %379 = tpu.concatenate %374, %375, %376, %377, %378 in 1 : vector<8x8xf32>, vector<8x8xf32>, vector<8x8xf32>, vector<8x8xf32>, vector<8x8xf32> -> vector<8x40xf32>
    %380 = vector.extract_strided_slice %241 {offsets = [0, 0], sizes = [8, 8], strides = [1, 1]} : vector<12x8xf32> to vector<8x8xf32>
    %381 = vector.extract_strided_slice %241 {offsets = [1, 0], sizes = [8, 8], strides = [1, 1]} : vector<12x8xf32> to vector<8x8xf32>
    %382 = vector.extract_strided_slice %241 {offsets = [2, 0], sizes = [8, 8], strides = [1, 1]} : vector<12x8xf32> to vector<8x8xf32>
    %383 = vector.extract_strided_slice %241 {offsets = [3, 0], sizes = [8, 8], strides = [1, 1]} : vector<12x8xf32> to vector<8x8xf32>
    %384 = vector.extract_strided_slice %241 {offsets = [4, 0], sizes = [8, 8], strides = [1, 1]} : vector<12x8xf32> to vector<8x8xf32>
    %385 = tpu.concatenate %380, %381, %382, %383, %384 in 1 : vector<8x8xf32>, vector<8x8xf32>, vector<8x8xf32>, vector<8x8xf32>, vector<8x8xf32> -> vector<8x40xf32>
    %386 = tpu.concatenate %247, %253, %259, %265, %271 in 1 : vector<8x40xf32>, vector<8x40xf32>, vector<8x40xf32>, vector<8x40xf32>, vector<8x40xf32> -> vector<8x200xf32>
    %387 = tpu.concatenate %253, %259, %265, %271, %277 in 1 : vector<8x40xf32>, vector<8x40xf32>, vector<8x40xf32>, vector<8x40xf32>, vector<8x40xf32> -> vector<8x200xf32>
    %388 = tpu.concatenate %259, %265, %271, %277, %283 in 1 : vector<8x40xf32>, vector<8x40xf32>, vector<8x40xf32>, vector<8x40xf32>, vector<8x40xf32> -> vector<8x200xf32>
    %389 = tpu.concatenate %265, %271, %277, %283, %289 in 1 : vector<8x40xf32>, vector<8x40xf32>, vector<8x40xf32>, vector<8x40xf32>, vector<8x40xf32> -> vector<8x200xf32>
    %390 = tpu.concatenate %271, %277, %283, %289, %295 in 1 : vector<8x40xf32>, vector<8x40xf32>, vector<8x40xf32>, vector<8x40xf32>, vector<8x40xf32> -> vector<8x200xf32>
    %391 = tpu.concatenate %277, %283, %289, %295, %301 in 1 : vector<8x40xf32>, vector<8x40xf32>, vector<8x40xf32>, vector<8x40xf32>, vector<8x40xf32> -> vector<8x200xf32>
    %392 = tpu.concatenate %283, %289, %295, %301, %307 in 1 : vector<8x40xf32>, vector<8x40xf32>, vector<8x40xf32>, vector<8x40xf32>, vector<8x40xf32> -> vector<8x200xf32>
    %393 = tpu.concatenate %289, %295, %301, %307, %313 in 1 : vector<8x40xf32>, vector<8x40xf32>, vector<8x40xf32>, vector<8x40xf32>, vector<8x40xf32> -> vector<8x200xf32>
    %394 = tpu.concatenate %319, %325, %331, %337, %343 in 1 : vector<8x40xf32>, vector<8x40xf32>, vector<8x40xf32>, vector<8x40xf32>, vector<8x40xf32> -> vector<8x200xf32>
    %395 = tpu.concatenate %325, %331, %337, %343, %349 in 1 : vector<8x40xf32>, vector<8x40xf32>, vector<8x40xf32>, vector<8x40xf32>, vector<8x40xf32> -> vector<8x200xf32>
    %396 = tpu.concatenate %331, %337, %343, %349, %355 in 1 : vector<8x40xf32>, vector<8x40xf32>, vector<8x40xf32>, vector<8x40xf32>, vector<8x40xf32> -> vector<8x200xf32>
    %397 = tpu.concatenate %337, %343, %349, %355, %361 in 1 : vector<8x40xf32>, vector<8x40xf32>, vector<8x40xf32>, vector<8x40xf32>, vector<8x40xf32> -> vector<8x200xf32>
    %398 = tpu.concatenate %343, %349, %355, %361, %367 in 1 : vector<8x40xf32>, vector<8x40xf32>, vector<8x40xf32>, vector<8x40xf32>, vector<8x40xf32> -> vector<8x200xf32>
    %399 = tpu.concatenate %349, %355, %361, %367, %373 in 1 : vector<8x40xf32>, vector<8x40xf32>, vector<8x40xf32>, vector<8x40xf32>, vector<8x40xf32> -> vector<8x200xf32>
    %400 = tpu.concatenate %355, %361, %367, %373, %379 in 1 : vector<8x40xf32>, vector<8x40xf32>, vector<8x40xf32>, vector<8x40xf32>, vector<8x40xf32> -> vector<8x200xf32>
    %401 = tpu.concatenate %361, %367, %373, %379, %385 in 1 : vector<8x40xf32>, vector<8x40xf32>, vector<8x40xf32>, vector<8x40xf32>, vector<8x40xf32> -> vector<8x200xf32>
    %402 = tpu.concatenate %386, %387, %388, %389, %390, %391, %392, %393, %394, %395, %396, %397, %398, %399, %400, %401 in 0 : vector<8x200xf32>, vector<8x200xf32>, vector<8x200xf32>, vector<8x200xf32>, vector<8x200xf32>, vector<8x200xf32>, vector<8x200xf32>, vector<8x200xf32>, vector<8x200xf32>, vector<8x200xf32>, vector<8x200xf32>, vector<8x200xf32>, vector<8x200xf32>, vector<8x200xf32>, vector<8x200xf32>, vector<8x200xf32> -> vector<128x200xf32>
    %403 = arith.truncf %402 : vector<128x200xf32> to vector<128x200xbf16>
    %c0_15 = arith.constant 0 : index
    %c0_16 = arith.constant 0 : index
    %404 = vector.load %arg3[%c0_15, %c0_16] : memref<200x16xbf16, #tpu.memory_space<vmem>>, vector<200x16xbf16>
    %cst_17 = arith.constant dense<0.000000e+00> : vector<128x16xf32>
    %405 = tpu.matmul %403, %404, %cst_17 {dimension_numbers = #tpu.dot_dimension_numbers<[1], [0], [0], [1], [0, 0, 1, 1], [], []>} : vector<128x200xbf16>, vector<200x16xbf16>, vector<128x16xf32> -> vector<128x16xf32>
    %406 = vector.extract_strided_slice %405 {offsets = [0, 0], sizes = [8, 16], strides = [1, 1]} : vector<128x16xf32> to vector<8x16xf32>
    %407 = vector.extract_strided_slice %405 {offsets = [8, 0], sizes = [8, 16], strides = [1, 1]} : vector<128x16xf32> to vector<8x16xf32>
    %408 = arith.maximumf %406, %407 : vector<8x16xf32>
    %409 = vector.extract_strided_slice %405 {offsets = [16, 0], sizes = [8, 16], strides = [1, 1]} : vector<128x16xf32> to vector<8x16xf32>
    %410 = vector.extract_strided_slice %405 {offsets = [24, 0], sizes = [8, 16], strides = [1, 1]} : vector<128x16xf32> to vector<8x16xf32>
    %411 = arith.maximumf %409, %410 : vector<8x16xf32>
    %412 = vector.extract_strided_slice %405 {offsets = [32, 0], sizes = [8, 16], strides = [1, 1]} : vector<128x16xf32> to vector<8x16xf32>
    %413 = vector.extract_strided_slice %405 {offsets = [40, 0], sizes = [8, 16], strides = [1, 1]} : vector<128x16xf32> to vector<8x16xf32>
    %414 = arith.maximumf %412, %413 : vector<8x16xf32>
    %415 = vector.extract_strided_slice %405 {offsets = [48, 0], sizes = [8, 16], strides = [1, 1]} : vector<128x16xf32> to vector<8x16xf32>
    %416 = vector.extract_strided_slice %405 {offsets = [56, 0], sizes = [8, 16], strides = [1, 1]} : vector<128x16xf32> to vector<8x16xf32>
    %417 = arith.maximumf %415, %416 : vector<8x16xf32>
    %418 = vector.extract_strided_slice %405 {offsets = [64, 0], sizes = [8, 16], strides = [1, 1]} : vector<128x16xf32> to vector<8x16xf32>
    %419 = vector.extract_strided_slice %405 {offsets = [72, 0], sizes = [8, 16], strides = [1, 1]} : vector<128x16xf32> to vector<8x16xf32>
    %420 = arith.maximumf %418, %419 : vector<8x16xf32>
    %421 = vector.extract_strided_slice %405 {offsets = [80, 0], sizes = [8, 16], strides = [1, 1]} : vector<128x16xf32> to vector<8x16xf32>
    %422 = vector.extract_strided_slice %405 {offsets = [88, 0], sizes = [8, 16], strides = [1, 1]} : vector<128x16xf32> to vector<8x16xf32>
    %423 = arith.maximumf %421, %422 : vector<8x16xf32>
    %424 = vector.extract_strided_slice %405 {offsets = [96, 0], sizes = [8, 16], strides = [1, 1]} : vector<128x16xf32> to vector<8x16xf32>
    %425 = vector.extract_strided_slice %405 {offsets = [104, 0], sizes = [8, 16], strides = [1, 1]} : vector<128x16xf32> to vector<8x16xf32>
    %426 = arith.maximumf %424, %425 : vector<8x16xf32>
    %427 = vector.extract_strided_slice %405 {offsets = [112, 0], sizes = [8, 16], strides = [1, 1]} : vector<128x16xf32> to vector<8x16xf32>
    %428 = vector.extract_strided_slice %405 {offsets = [120, 0], sizes = [8, 16], strides = [1, 1]} : vector<128x16xf32> to vector<8x16xf32>
    %429 = arith.maximumf %427, %428 : vector<8x16xf32>
    %430 = tpu.concatenate %408, %411, %414, %417, %420, %423, %426, %429 in 1 : vector<8x16xf32>, vector<8x16xf32>, vector<8x16xf32>, vector<8x16xf32>, vector<8x16xf32>, vector<8x16xf32>, vector<8x16xf32>, vector<8x16xf32> -> vector<8x128xf32>
    %431 = tpu.iota {dimensions = array<i32: 0>} : vector<4x8xi32>
    %432 = tpu.iota {dimensions = array<i32: 1>} : vector<4x8xi32>
    %c2_i32_18 = arith.constant 2 : i32
    %433 = vector.broadcast %c2_i32_18 : i32 to vector<4x8xi32>
    %434 = arith.muli %433, %431 : vector<4x8xi32>
    %435 = arith.cmpi eq, %432, %434 : vector<4x8xi32>
    %cst_19 = arith.constant 1.000000e+00 : f32
    %cst_20 = arith.constant 0.000000e+00 : f32
    %436 = vector.broadcast %cst_19 : f32 to vector<4x8xf32>
    %437 = vector.broadcast %cst_20 : f32 to vector<4x8xf32>
    %438 = arith.select %435, %436, %437 : vector<4x8xi1>, vector<4x8xf32>
    %c2_i32_21 = arith.constant 2 : i32
    %439 = vector.broadcast %c2_i32_21 : i32 to vector<4x8xi32>
    %440 = arith.muli %439, %431 : vector<4x8xi32>
    %c1_i32_22 = arith.constant 1 : i32
    %441 = vector.broadcast %c1_i32_22 : i32 to vector<4x8xi32>
    %442 = arith.addi %440, %441 : vector<4x8xi32>
    %443 = arith.cmpi eq, %432, %442 : vector<4x8xi32>
    %cst_23 = arith.constant 1.000000e+00 : f32
    %cst_24 = arith.constant 0.000000e+00 : f32
    %444 = vector.broadcast %cst_23 : f32 to vector<4x8xf32>
    %445 = vector.broadcast %cst_24 : f32 to vector<4x8xf32>
    %446 = arith.select %443, %444, %445 : vector<4x8xi1>, vector<4x8xf32>
    %cst_25 = arith.constant dense<0.000000e+00> : vector<4x128xf32>
    %447 = tpu.matmul %438, %430, %cst_25 {dimension_numbers = #tpu.dot_dimension_numbers<[1], [0], [0], [1], [0, 0, 1, 1], [], []>} : vector<4x8xf32>, vector<8x128xf32>, vector<4x128xf32> -> vector<4x128xf32>
    %cst_26 = arith.constant dense<0.000000e+00> : vector<4x128xf32>
    %448 = tpu.matmul %446, %430, %cst_26 {dimension_numbers = #tpu.dot_dimension_numbers<[1], [0], [0], [1], [0, 0, 1, 1], [], []>} : vector<4x8xf32>, vector<8x128xf32>, vector<4x128xf32> -> vector<4x128xf32>
    %449 = arith.maximumf %447, %448 : vector<4x128xf32>
    %c0_27 = arith.constant 0 : index
    %c0_28 = arith.constant 0 : index
    %450 = vector.load %arg4[%c0_27, %c0_28] : memref<1x16xf32, #tpu.memory_space<vmem>>, vector<1x16xf32>
    %451 = tpu.concatenate %450, %450, %450, %450, %450, %450, %450, %450 in 1 : vector<1x16xf32>, vector<1x16xf32>, vector<1x16xf32>, vector<1x16xf32>, vector<1x16xf32>, vector<1x16xf32>, vector<1x16xf32>, vector<1x16xf32> -> vector<1x128xf32>
    %452 = vector.broadcast %451 : vector<1x128xf32> to vector<4x128xf32>
    %453 = arith.addf %449, %452 : vector<4x128xf32>
    %cst_29 = arith.constant 0.000000e+00 : f32
    %454 = vector.broadcast %cst_29 : f32 to vector<4x128xf32>
    %455 = arith.maximumf %453, %454 : vector<4x128xf32>
    %456 = vector.extract_strided_slice %455 {offsets = [0, 0], sizes = [4, 16], strides = [1, 1]} : vector<4x128xf32> to vector<4x16xf32>
    %457 = vector.extract_strided_slice %456 {offsets = [0, 0], sizes = [1, 16], strides = [1, 1]} : vector<4x16xf32> to vector<1x16xf32>
    %458 = vector.extract_strided_slice %456 {offsets = [1, 0], sizes = [1, 16], strides = [1, 1]} : vector<4x16xf32> to vector<1x16xf32>
    %459 = vector.extract_strided_slice %456 {offsets = [2, 0], sizes = [1, 16], strides = [1, 1]} : vector<4x16xf32> to vector<1x16xf32>
    %460 = vector.extract_strided_slice %456 {offsets = [3, 0], sizes = [1, 16], strides = [1, 1]} : vector<4x16xf32> to vector<1x16xf32>
    %461 = vector.extract_strided_slice %455 {offsets = [0, 16], sizes = [4, 16], strides = [1, 1]} : vector<4x128xf32> to vector<4x16xf32>
    %462 = vector.extract_strided_slice %461 {offsets = [0, 0], sizes = [1, 16], strides = [1, 1]} : vector<4x16xf32> to vector<1x16xf32>
    %463 = vector.extract_strided_slice %461 {offsets = [1, 0], sizes = [1, 16], strides = [1, 1]} : vector<4x16xf32> to vector<1x16xf32>
    %464 = vector.extract_strided_slice %461 {offsets = [2, 0], sizes = [1, 16], strides = [1, 1]} : vector<4x16xf32> to vector<1x16xf32>
    %465 = vector.extract_strided_slice %461 {offsets = [3, 0], sizes = [1, 16], strides = [1, 1]} : vector<4x16xf32> to vector<1x16xf32>
    %466 = vector.extract_strided_slice %455 {offsets = [0, 32], sizes = [4, 16], strides = [1, 1]} : vector<4x128xf32> to vector<4x16xf32>
    %467 = vector.extract_strided_slice %466 {offsets = [0, 0], sizes = [1, 16], strides = [1, 1]} : vector<4x16xf32> to vector<1x16xf32>
    %468 = vector.extract_strided_slice %466 {offsets = [1, 0], sizes = [1, 16], strides = [1, 1]} : vector<4x16xf32> to vector<1x16xf32>
    %469 = vector.extract_strided_slice %466 {offsets = [2, 0], sizes = [1, 16], strides = [1, 1]} : vector<4x16xf32> to vector<1x16xf32>
    %470 = vector.extract_strided_slice %466 {offsets = [3, 0], sizes = [1, 16], strides = [1, 1]} : vector<4x16xf32> to vector<1x16xf32>
    %471 = vector.extract_strided_slice %455 {offsets = [0, 48], sizes = [4, 16], strides = [1, 1]} : vector<4x128xf32> to vector<4x16xf32>
    %472 = vector.extract_strided_slice %471 {offsets = [0, 0], sizes = [1, 16], strides = [1, 1]} : vector<4x16xf32> to vector<1x16xf32>
    %473 = vector.extract_strided_slice %471 {offsets = [1, 0], sizes = [1, 16], strides = [1, 1]} : vector<4x16xf32> to vector<1x16xf32>
    %474 = vector.extract_strided_slice %471 {offsets = [2, 0], sizes = [1, 16], strides = [1, 1]} : vector<4x16xf32> to vector<1x16xf32>
    %475 = vector.extract_strided_slice %471 {offsets = [3, 0], sizes = [1, 16], strides = [1, 1]} : vector<4x16xf32> to vector<1x16xf32>
    %476 = tpu.concatenate %457, %458, %459, %460, %462, %463, %464, %465, %467, %468, %469, %470, %472, %473, %474, %475 in 1 : vector<1x16xf32>, vector<1x16xf32>, vector<1x16xf32>, vector<1x16xf32>, vector<1x16xf32>, vector<1x16xf32>, vector<1x16xf32>, vector<1x16xf32>, vector<1x16xf32>, vector<1x16xf32>, vector<1x16xf32>, vector<1x16xf32>, vector<1x16xf32>, vector<1x16xf32>, vector<1x16xf32>, vector<1x16xf32> -> vector<1x256xf32>
    %477 = vector.extract_strided_slice %455 {offsets = [0, 64], sizes = [4, 16], strides = [1, 1]} : vector<4x128xf32> to vector<4x16xf32>
    %478 = vector.extract_strided_slice %477 {offsets = [0, 0], sizes = [1, 16], strides = [1, 1]} : vector<4x16xf32> to vector<1x16xf32>
    %479 = vector.extract_strided_slice %477 {offsets = [1, 0], sizes = [1, 16], strides = [1, 1]} : vector<4x16xf32> to vector<1x16xf32>
    %480 = vector.extract_strided_slice %477 {offsets = [2, 0], sizes = [1, 16], strides = [1, 1]} : vector<4x16xf32> to vector<1x16xf32>
    %481 = vector.extract_strided_slice %477 {offsets = [3, 0], sizes = [1, 16], strides = [1, 1]} : vector<4x16xf32> to vector<1x16xf32>
    %482 = vector.extract_strided_slice %455 {offsets = [0, 80], sizes = [4, 16], strides = [1, 1]} : vector<4x128xf32> to vector<4x16xf32>
    %483 = vector.extract_strided_slice %482 {offsets = [0, 0], sizes = [1, 16], strides = [1, 1]} : vector<4x16xf32> to vector<1x16xf32>
    %484 = vector.extract_strided_slice %482 {offsets = [1, 0], sizes = [1, 16], strides = [1, 1]} : vector<4x16xf32> to vector<1x16xf32>
    %485 = vector.extract_strided_slice %482 {offsets = [2, 0], sizes = [1, 16], strides = [1, 1]} : vector<4x16xf32> to vector<1x16xf32>
    %486 = vector.extract_strided_slice %482 {offsets = [3, 0], sizes = [1, 16], strides = [1, 1]} : vector<4x16xf32> to vector<1x16xf32>
    %487 = vector.extract_strided_slice %455 {offsets = [0, 96], sizes = [4, 16], strides = [1, 1]} : vector<4x128xf32> to vector<4x16xf32>
    %488 = vector.extract_strided_slice %487 {offsets = [0, 0], sizes = [1, 16], strides = [1, 1]} : vector<4x16xf32> to vector<1x16xf32>
    %489 = vector.extract_strided_slice %487 {offsets = [1, 0], sizes = [1, 16], strides = [1, 1]} : vector<4x16xf32> to vector<1x16xf32>
    %490 = vector.extract_strided_slice %487 {offsets = [2, 0], sizes = [1, 16], strides = [1, 1]} : vector<4x16xf32> to vector<1x16xf32>
    %491 = vector.extract_strided_slice %487 {offsets = [3, 0], sizes = [1, 16], strides = [1, 1]} : vector<4x16xf32> to vector<1x16xf32>
    %492 = vector.extract_strided_slice %455 {offsets = [0, 112], sizes = [4, 16], strides = [1, 1]} : vector<4x128xf32> to vector<4x16xf32>
    %493 = vector.extract_strided_slice %492 {offsets = [0, 0], sizes = [1, 16], strides = [1, 1]} : vector<4x16xf32> to vector<1x16xf32>
    %494 = vector.extract_strided_slice %492 {offsets = [1, 0], sizes = [1, 16], strides = [1, 1]} : vector<4x16xf32> to vector<1x16xf32>
    %495 = vector.extract_strided_slice %492 {offsets = [2, 0], sizes = [1, 16], strides = [1, 1]} : vector<4x16xf32> to vector<1x16xf32>
    %496 = vector.extract_strided_slice %492 {offsets = [3, 0], sizes = [1, 16], strides = [1, 1]} : vector<4x16xf32> to vector<1x16xf32>
    %497 = tpu.concatenate %478, %479, %480, %481, %483, %484, %485, %486, %488, %489, %490, %491, %493, %494, %495, %496 in 1 : vector<1x16xf32>, vector<1x16xf32>, vector<1x16xf32>, vector<1x16xf32>, vector<1x16xf32>, vector<1x16xf32>, vector<1x16xf32>, vector<1x16xf32>, vector<1x16xf32>, vector<1x16xf32>, vector<1x16xf32>, vector<1x16xf32>, vector<1x16xf32>, vector<1x16xf32>, vector<1x16xf32>, vector<1x16xf32> -> vector<1x256xf32>
    %498 = tpu.concatenate %476, %497 in 0 : vector<1x256xf32>, vector<1x256xf32> -> vector<2x256xf32>
    %499 = arith.truncf %498 : vector<2x256xf32> to vector<2x256xbf16>
    %c0_30 = arith.constant 0 : index
    %c0_31 = arith.constant 0 : index
    %500 = vector.load %arg5[%c0_30, %c0_31] : memref<256x120xbf16, #tpu.memory_space<vmem>>, vector<256x120xbf16>
    %cst_32 = arith.constant dense<0.000000e+00> : vector<2x120xf32>
    %501 = tpu.matmul %499, %500, %cst_32 {dimension_numbers = #tpu.dot_dimension_numbers<[1], [0], [0], [1], [0, 0, 1, 1], [], []>} : vector<2x256xbf16>, vector<256x120xbf16>, vector<2x120xf32> -> vector<2x120xf32>
    %c0_33 = arith.constant 0 : index
    %c0_34 = arith.constant 0 : index
    %502 = vector.load %arg6[%c0_33, %c0_34] : memref<1x120xf32, #tpu.memory_space<vmem>>, vector<1x120xf32>
    %503 = vector.broadcast %502 : vector<1x120xf32> to vector<2x120xf32>
    %504 = arith.addf %501, %503 : vector<2x120xf32>
    %cst_35 = arith.constant 0.000000e+00 : f32
    %505 = vector.broadcast %cst_35 : f32 to vector<2x120xf32>
    %506 = arith.maximumf %504, %505 : vector<2x120xf32>
    %507 = arith.truncf %506 : vector<2x120xf32> to vector<2x120xbf16>
    %c0_36 = arith.constant 0 : index
    %c0_37 = arith.constant 0 : index
    %508 = vector.load %arg7[%c0_36, %c0_37] : memref<120x84xbf16, #tpu.memory_space<vmem>>, vector<120x84xbf16>
    %cst_38 = arith.constant dense<0.000000e+00> : vector<2x84xf32>
    %509 = tpu.matmul %507, %508, %cst_38 {dimension_numbers = #tpu.dot_dimension_numbers<[1], [0], [0], [1], [0, 0, 1, 1], [], []>} : vector<2x120xbf16>, vector<120x84xbf16>, vector<2x84xf32> -> vector<2x84xf32>
    %c0_39 = arith.constant 0 : index
    %c0_40 = arith.constant 0 : index
    %510 = vector.load %arg8[%c0_39, %c0_40] : memref<1x84xf32, #tpu.memory_space<vmem>>, vector<1x84xf32>
    %511 = vector.broadcast %510 : vector<1x84xf32> to vector<2x84xf32>
    %512 = arith.addf %509, %511 : vector<2x84xf32>
    %cst_41 = arith.constant 0.000000e+00 : f32
    %513 = vector.broadcast %cst_41 : f32 to vector<2x84xf32>
    %514 = arith.maximumf %512, %513 : vector<2x84xf32>
    %515 = arith.truncf %514 : vector<2x84xf32> to vector<2x84xbf16>
    %c0_42 = arith.constant 0 : index
    %c0_43 = arith.constant 0 : index
    %516 = vector.load %arg9[%c0_42, %c0_43] : memref<84x10xbf16, #tpu.memory_space<vmem>>, vector<84x10xbf16>
    %cst_44 = arith.constant dense<0.000000e+00> : vector<2x10xf32>
    %517 = tpu.matmul %515, %516, %cst_44 {dimension_numbers = #tpu.dot_dimension_numbers<[1], [0], [0], [1], [0, 0, 1, 1], [], []>} : vector<2x84xbf16>, vector<84x10xbf16>, vector<2x10xf32> -> vector<2x10xf32>
    %c0_45 = arith.constant 0 : index
    %c0_46 = arith.constant 0 : index
    %518 = vector.load %arg10[%c0_45, %c0_46] : memref<1x10xf32, #tpu.memory_space<vmem>>, vector<1x10xf32>
    %519 = vector.broadcast %518 : vector<1x10xf32> to vector<2x10xf32>
    %520 = arith.addf %517, %519 : vector<2x10xf32>
    %c0_47 = arith.constant 0 : index
    %c0_48 = arith.constant 0 : index
    %521 = vector.load %arg11[%c0_47, %c0_48] : memref<2x10xf32, #tpu.memory_space<vmem>>, vector<2x10xf32>
    tpu.vector_store %arg11[%c0_47, %c0_48], %520 {strides = array<i32>} : memref<2x10xf32, #tpu.memory_space<vmem>>, vector<2x10xf32>,
    return
  }
}

</mosaic_0001>

<llo_original>
// kernel: net_forward.1
$region0: #{net_forward.1}
  #allocation0 [shape = 'u32[]', space=smem, size = 0x4, offset = 0x4, fixed_abs, tag = 'smem constant byte address 0x4 - core index']
  #allocation1 [shape = 'u32[144,128]{1,0:T(1,128)}', space=vmem, size = 0x12000, scoped, tag = 'internal scratch']
  %s0 = inlined_call_operand.vmem [shape: f32[2,28,28,1], index: 0, kind: input, shape index: {}]
  %s1 = inlined_call_operand.vmem [shape: bf16[25,8], index: 1, kind: input, shape index: {}]
  %s2 = inlined_call_operand.vmem [shape: f32[1,8], index: 2, kind: input, shape index: {}]
  %s3 = inlined_call_operand.vmem [shape: bf16[200,16], index: 3, kind: input, shape index: {}]
  %s4 = inlined_call_operand.vmem [shape: f32[1,16], index: 4, kind: input, shape index: {}]
  %s5 = inlined_call_operand.vmem [shape: bf16[256,120], index: 5, kind: input, shape index: {}]
  %s6 = inlined_call_operand.vmem [shape: f32[1,120], index: 6, kind: input, shape index: {}]
  %s7 = inlined_call_operand.vmem [shape: bf16[120,84], index: 7, kind: input, shape index: {}]
  %s8 = inlined_call_operand.vmem [shape: f32[1,84], index: 8, kind: input, shape index: {}]
  %s9 = inlined_call_operand.vmem [shape: bf16[84,10], index: 9, kind: input, shape index: {}]
  %s10 = inlined_call_operand.vmem [shape: f32[1,10], index: 10, kind: input, shape index: {}]
  %s11 = inlined_call_operand.hbm [shape: f32[2,10], index: 11, kind: output, shape index: {}]
  %s12 = sld [smem:[#allocation0]]
  $region54: #{net_forward.1} parent=0
    _
  %s14 = ssub.s32 1, %s12
  %s15 = scalar_select 0, %s14, %s12
  $region1: #{net_forward.1} parent=0
    #allocation2 [shape = 'u8[1024]{0}', space=vmem, size = 0x400, scoped, tag = 'output window, operand 0, single buffered']
    #allocation3 [shape = 's32[1]{0}', space=sflag, size = 0x4, scoped, tag = 'scoped memory for net_forward.1']
    %16 = vsyncpa [#allocation3], 0
    // Predicated region
    $region2: #{net_forward.1} parent=1 // pred_check
      _
    $region3: #{net_forward.1} parent=1 // pred_check_branch
      %18 = sbr.rel (0) target = $region5
    $region4: #{net_forward.1} parent=1 // pred_region
      _
    $region5: #{net_forward.1} parent=1 // pred_fallthru
      _
    // Predicated region
    $region6: #{net_forward.1} parent=1 // pred_check
      _
    $region7: #{net_forward.1} parent=1 // pred_check_branch
      %20 = sbr.rel (0) target = $region9
    $region8: #{net_forward.1} parent=1 // pred_region
      _
    $region9: #{net_forward.1} parent=1 // pred_fallthru
      _
    // Predicated region
    $region10: #{net_forward.1} parent=1 // pred_check
      _
    $region11: #{net_forward.1} parent=1 // pred_check_branch
      %22 = sbr.rel (0) target = $region13
    $region12: #{net_forward.1} parent=1 // pred_region
      _
    $region13: #{net_forward.1} parent=1 // pred_fallthru
      _
    // Predicated region
    $region14: #{net_forward.1} parent=1 // pred_check
      _
    $region15: #{net_forward.1} parent=1 // pred_check_branch
      %24 = sbr.rel (0) target = $region17
    $region16: #{net_forward.1} parent=1 // pred_region
      _
    $region17: #{net_forward.1} parent=1 // pred_fallthru
      _
    // Predicated region
    $region18: #{net_forward.1} parent=1 // pred_check
      _
    $region19: #{net_forward.1} parent=1 // pred_check_branch
      %26 = sbr.rel (0) target = $region21
    $region20: #{net_forward.1} parent=1 // pred_region
      _
    $region21: #{net_forward.1} parent=1 // pred_fallthru
      _
    // Predicated region
    $region22: #{net_forward.1} parent=1 // pred_check
      _
    $region23: #{net_forward.1} parent=1 // pred_check_branch
      %28 = sbr.rel (0) target = $region25
    $region24: #{net_forward.1} parent=1 // pred_region
      _
    $region25: #{net_forward.1} parent=1 // pred_fallthru
      _
    // Predicated region
    $region26: #{net_forward.1} parent=1 // pred_check
      _
    $region27: #{net_forward.1} parent=1 // pred_check_branch
      %30 = sbr.rel (0) target = $region29
    $region28: #{net_forward.1} parent=1 // pred_region
      _
    $region29: #{net_forward.1} parent=1 // pred_fallthru
      _
    // Predicated region
    $region30: #{net_forward.1} parent=1 // pred_check
      _
    $region31: #{net_forward.1} parent=1 // pred_check_branch
      %32 = sbr.rel (0) target = $region33
    $region32: #{net_forward.1} parent=1 // pred_region
      _
    $region33: #{net_forward.1} parent=1 // pred_fallthru
      _
    // Predicated region
    $region34: #{net_forward.1} parent=1 // pred_check
      _
    $region35: #{net_forward.1} parent=1 // pred_check_branch
      %34 = sbr.rel (0) target = $region37
    $region36: #{net_forward.1} parent=1 // pred_region
      _
    $region37: #{net_forward.1} parent=1 // pred_fallthru
      _
    // Predicated region
    $region38: #{net_forward.1} parent=1 // pred_check
      _
    $region39: #{net_forward.1} parent=1 // pred_check_branch
      %36 = sbr.rel (0) target = $region41
    $region40: #{net_forward.1} parent=1 // pred_region
      _
    $region41: #{net_forward.1} parent=1 // pred_fallthru
      _
    // Predicated region
    $region42: #{net_forward.1} parent=1 // pred_check
      _
    $region43: #{net_forward.1} parent=1 // pred_check_branch
      %38 = sbr.rel (0) target = $region45
    $region44: #{net_forward.1} parent=1 // pred_region
      _
    $region45: #{net_forward.1} parent=1 // pred_fallthru
      _
    %v40 = vld [vmem:[%s0] sm:$0xff]
    %v41 = vld [vmem:[%s0 + $0x8] sm:$0xff]
    %v42 = vld [vmem:[%s0 + $0x10] sm:$0xff]
    %v43 = vld [vmem:[%s0 + $0x18] sm:$0xf]
    %v44 = vld [vmem:[%s0 + $0x20] sm:$0xff]
    %v45 = vld [vmem:[%s0 + $0x28] sm:$0xff]
    %v46 = vld [vmem:[%s0 + $0x30] sm:$0xff]
    %v47 = vld [vmem:[%s0 + $0x38] sm:$0xf]
    %v48 = vld [vmem:[%s0 + $0x40] sm:$0xff]
    %v49 = vld [vmem:[%s0 + $0x48] sm:$0xff]
    %v50 = vld [vmem:[%s0 + $0x50] sm:$0xff]
    %v51 = vld [vmem:[%s0 + $0x58] sm:$0xf]
    %v52 = vld [vmem:[%s0 + $0x60] sm:$0xff]
    %v53 = vld [vmem:[%s0 + $0x68] sm:$0xff]
    %v54 = vld [vmem:[%s0 + $0x70] sm:$0xff]
    %v55 = vld [vmem:[%s0 + $0x78] sm:$0xf]
    %v56 = vld [vmem:[%s0 + $0x80] sm:$0xff]
    %v57 = vld [vmem:[%s0 + $0x88] sm:$0xff]
    %v58 = vld [vmem:[%s0 + $0x90] sm:$0xff]
    %v59 = vld [vmem:[%s0 + $0x98] sm:$0xf]
    %v60 = vld [vmem:[%s0 + $0xa0] sm:$0xff]
    %v61 = vld [vmem:[%s0 + $0xa8] sm:$0xff]
    %v62 = vld [vmem:[%s0 + $0xb0] sm:$0xff]
    %v63 = vld [vmem:[%s0 + $0xb8] sm:$0xf]
    %v64 = vld [vmem:[%s0 + $0xc0] sm:$0xff]
    %v65 = vld [vmem:[%s0 + $0xc8] sm:$0xff]
    %v66 = vld [vmem:[%s0 + $0xd0] sm:$0xff]
    %v67 = vld [vmem:[%s0 + $0xd8] sm:$0xf]
    %v68 = vld [vmem:[%s0 + $0xe0] sm:$0xff]
    %v69 = vld [vmem:[%s0 + $0xe8] sm:$0xff]
    %v70 = vld [vmem:[%s0 + $0xf0] sm:$0xff]
    %v71 = vld [vmem:[%s0 + $0xf8] sm:$0xf]
    %v72 = vld [vmem:[%s0 + $0x100] sm:$0xff]
    %v73 = vld [vmem:[%s0 + $0x108] sm:$0xff]
    %v74 = vld [vmem:[%s0 + $0x110] sm:$0xff]
    %v75 = vld [vmem:[%s0 + $0x118] sm:$0xf]
    %v76 = vld [vmem:[%s0 + $0x120] sm:$0xff]
    %v77 = vld [vmem:[%s0 + $0x128] sm:$0xff]
    %v78 = vld [vmem:[%s0 + $0x130] sm:$0xff]
    %v79 = vld [vmem:[%s0 + $0x138] sm:$0xf]
    %v80 = vld [vmem:[%s0 + $0x140] sm:$0xff]
    %v81 = vld [vmem:[%s0 + $0x148] sm:$0xff]
    %v82 = vld [vmem:[%s0 + $0x150] sm:$0xff]
    %v83 = vld [vmem:[%s0 + $0x158] sm:$0xf]
    %v84 = vld [vmem:[%s0 + $0x160] sm:$0xff]
    %v85 = vld [vmem:[%s0 + $0x168] sm:$0xff]
    %v86 = vld [vmem:[%s0 + $0x170] sm:$0xff]
    %v87 = vld [vmem:[%s0 + $0x178] sm:$0xf]
    %v88 = vld [vmem:[%s0 + $0x180] sm:$0xff]
    %v89 = vld [vmem:[%s0 + $0x188] sm:$0xff]
    %v90 = vld [vmem:[%s0 + $0x190] sm:$0xff]
    %v91 = vld [vmem:[%s0 + $0x198] sm:$0xf]
    %v92 = vld [vmem:[%s0 + $0x1a0] sm:$0xff]
    %v93 = vld [vmem:[%s0 + $0x1a8] sm:$0xff]
    %v94 = vld [vmem:[%s0 + $0x1b0] sm:$0xff]
    %v95 = vld [vmem:[%s0 + $0x1b8] sm:$0xf]
    %v96 = vld [vmem:[%s0 + $0x1c0] sm:$0xff]
    %v97 = vld [vmem:[%s0 + $0x1c8] sm:$0xff]
    %v98 = vld [vmem:[%s0 + $0x1d0] sm:$0xff]
    %v99 = vld [vmem:[%s0 + $0x1d8] sm:$0xf]
    %v100 = vld [vmem:[%s0 + $0x1e0] sm:$0xff]
    %v101 = vld [vmem:[%s0 + $0x1e8] sm:$0xff]
    %v102 = vld [vmem:[%s0 + $0x1f0] sm:$0xff]
    %v103 = vld [vmem:[%s0 + $0x1f8] sm:$0xf]
    %v104 = vld [vmem:[%s0 + $0x200] sm:$0xff]
    %v105 = vld [vmem:[%s0 + $0x208] sm:$0xff]
    %v106 = vld [vmem:[%s0 + $0x210] sm:$0xff]
    %v107 = vld [vmem:[%s0 + $0x218] sm:$0xf]
    %v108 = vld [vmem:[%s0 + $0x220] sm:$0xff]
    %v109 = vld [vmem:[%s0 + $0x228] sm:$0xff]
    %v110 = vld [vmem:[%s0 + $0x230] sm:$0xff]
    %v111 = vld [vmem:[%s0 + $0x238] sm:$0xf]
    %v112 = vld [vmem:[%s0 + $0x240] sm:$0xff]
    %v113 = vld [vmem:[%s0 + $0x248] sm:$0xff]
    %v114 = vld [vmem:[%s0 + $0x250] sm:$0xff]
    %v115 = vld [vmem:[%s0 + $0x258] sm:$0xf]
    %v116 = vld [vmem:[%s0 + $0x260] sm:$0xff]
    %v117 = vld [vmem:[%s0 + $0x268] sm:$0xff]
    %v118 = vld [vmem:[%s0 + $0x270] sm:$0xff]
    %v119 = vld [vmem:[%s0 + $0x278] sm:$0xf]
    %v120 = vld [vmem:[%s0 + $0x280] sm:$0xff]
    %v121 = vld [vmem:[%s0 + $0x288] sm:$0xff]
    %v122 = vld [vmem:[%s0 + $0x290] sm:$0xff]
    %v123 = vld [vmem:[%s0 + $0x298] sm:$0xf]
    %v124 = vld [vmem:[%s0 + $0x2a0] sm:$0xff]
    %v125 = vld [vmem:[%s0 + $0x2a8] sm:$0xff]
    %v126 = vld [vmem:[%s0 + $0x2b0] sm:$0xff]
    %v127 = vld [vmem:[%s0 + $0x2b8] sm:$0xf]
    %v128 = vld [vmem:[%s0 + $0x2c0] sm:$0xff]
    %v129 = vld [vmem:[%s0 + $0x2c8] sm:$0xff]
    %v130 = vld [vmem:[%s0 + $0x2d0] sm:$0xff]
    %v131 = vld [vmem:[%s0 + $0x2d8] sm:$0xf]
    %v132 = vld [vmem:[%s0 + $0x2e0] sm:$0xff]
    %v133 = vld [vmem:[%s0 + $0x2e8] sm:$0xff]
    %v134 = vld [vmem:[%s0 + $0x2f0] sm:$0xff]
    %v135 = vld [vmem:[%s0 + $0x2f8] sm:$0xf]
    %v136 = vld [vmem:[%s0 + $0x300] sm:$0xff]
    %v137 = vld [vmem:[%s0 + $0x308] sm:$0xff]
    %v138 = vld [vmem:[%s0 + $0x310] sm:$0xff]
    %v139 = vld [vmem:[%s0 + $0x318] sm:$0xf]
    %v140 = vld [vmem:[%s0 + $0x320] sm:$0xff]
    %v141 = vld [vmem:[%s0 + $0x328] sm:$0xff]
    %v142 = vld [vmem:[%s0 + $0x330] sm:$0xff]
    %v143 = vld [vmem:[%s0 + $0x338] sm:$0xf]
    %v144 = vld [vmem:[%s0 + $0x340] sm:$0xff]
    %v145 = vld [vmem:[%s0 + $0x348] sm:$0xff]
    %v146 = vld [vmem:[%s0 + $0x350] sm:$0xff]
    %v147 = vld [vmem:[%s0 + $0x358] sm:$0xf]
    %v148 = vld [vmem:[%s0 + $0x360] sm:$0xff]
    %v149 = vld [vmem:[%s0 + $0x368] sm:$0xff]
    %v150 = vld [vmem:[%s0 + $0x370] sm:$0xff]
    %v151 = vld [vmem:[%s0 + $0x378] sm:$0xf]
    %v152 = vld [vmem:[%s0 + $0x380] sm:$0xff]
    %v153 = vld [vmem:[%s0 + $0x388] sm:$0xff]
    %v154 = vld [vmem:[%s0 + $0x390] sm:$0xff]
    %v155 = vld [vmem:[%s0 + $0x398] sm:$0xf]
    %v156 = vld [vmem:[%s0 + $0x3a0] sm:$0xff]
    %v157 = vld [vmem:[%s0 + $0x3a8] sm:$0xff]
    %v158 = vld [vmem:[%s0 + $0x3b0] sm:$0xff]
    %v159 = vld [vmem:[%s0 + $0x3b8] sm:$0xf]
    %v160 = vld [vmem:[%s0 + $0x3c0] sm:$0xff]
    %v161 = vld [vmem:[%s0 + $0x3c8] sm:$0xff]
    %v162 = vld [vmem:[%s0 + $0x3d0] sm:$0xff]
    %v163 = vld [vmem:[%s0 + $0x3d8] sm:$0xf]
    %v164 = vld [vmem:[%s0 + $0x3e0] sm:$0xff]
    %v165 = vld [vmem:[%s0 + $0x3e8] sm:$0xff]
    %v166 = vld [vmem:[%s0 + $0x3f0] sm:$0xff]
    %v167 = vld [vmem:[%s0 + $0x3f8] sm:$0xf]
    %v168 = vld [vmem:[%s0 + $0x400] sm:$0xff]
    %v169 = vld [vmem:[%s0 + $0x408] sm:$0xff]
    %v170 = vld [vmem:[%s0 + $0x410] sm:$0xff]
    %v171 = vld [vmem:[%s0 + $0x418] sm:$0xf]
    %v172 = vld [vmem:[%s0 + $0x420] sm:$0xff]
    %v173 = vld [vmem:[%s0 + $0x428] sm:$0xff]
    %v174 = vld [vmem:[%s0 + $0x430] sm:$0xff]
    %v175 = vld [vmem:[%s0 + $0x438] sm:$0xf]
    %v176 = vld [vmem:[%s0 + $0x440] sm:$0xff]
    %v177 = vld [vmem:[%s0 + $0x448] sm:$0xff]
    %v178 = vld [vmem:[%s0 + $0x450] sm:$0xff]
    %v179 = vld [vmem:[%s0 + $0x458] sm:$0xf]
    %v180 = vld [vmem:[%s0 + $0x460] sm:$0xff]
    %v181 = vld [vmem:[%s0 + $0x468] sm:$0xff]
    %v182 = vld [vmem:[%s0 + $0x470] sm:$0xff]
    %v183 = vld [vmem:[%s0 + $0x478] sm:$0xf]
    %v184 = vld [vmem:[%s0 + $0x480] sm:$0xff]
    %v185 = vld [vmem:[%s0 + $0x488] sm:$0xff]
    %v186 = vld [vmem:[%s0 + $0x490] sm:$0xff]
    %v187 = vld [vmem:[%s0 + $0x498] sm:$0xf]
    %v188 = vld [vmem:[%s0 + $0x4a0] sm:$0xff]
    %v189 = vld [vmem:[%s0 + $0x4a8] sm:$0xff]
    %v190 = vld [vmem:[%s0 + $0x4b0] sm:$0xff]
    %v191 = vld [vmem:[%s0 + $0x4b8] sm:$0xf]
    %v192 = vld [vmem:[%s0 + $0x4c0] sm:$0xff]
    %v193 = vld [vmem:[%s0 + $0x4c8] sm:$0xff]
    %v194 = vld [vmem:[%s0 + $0x4d0] sm:$0xff]
    %v195 = vld [vmem:[%s0 + $0x4d8] sm:$0xf]
    %v196 = vld [vmem:[%s0 + $0x4e0] sm:$0xff]
    %v197 = vld [vmem:[%s0 + $0x4e8] sm:$0xff]
    %v198 = vld [vmem:[%s0 + $0x4f0] sm:$0xff]
    %v199 = vld [vmem:[%s0 + $0x4f8] sm:$0xf]
    %v200 = vld [vmem:[%s0 + $0x500] sm:$0xff]
    %v201 = vld [vmem:[%s0 + $0x508] sm:$0xff]
    %v202 = vld [vmem:[%s0 + $0x510] sm:$0xff]
    %v203 = vld [vmem:[%s0 + $0x518] sm:$0xf]
    %v204 = vld [vmem:[%s0 + $0x520] sm:$0xff]
    %v205 = vld [vmem:[%s0 + $0x528] sm:$0xff]
    %v206 = vld [vmem:[%s0 + $0x530] sm:$0xff]
    %v207 = vld [vmem:[%s0 + $0x538] sm:$0xf]
    %v208 = vld [vmem:[%s0 + $0x540] sm:$0xff]
    %v209 = vld [vmem:[%s0 + $0x548] sm:$0xff]
    %v210 = vld [vmem:[%s0 + $0x550] sm:$0xff]
    %v211 = vld [vmem:[%s0 + $0x558] sm:$0xf]
    %v212 = vld [vmem:[%s0 + $0x560] sm:$0xff]
    %v213 = vld [vmem:[%s0 + $0x568] sm:$0xff]
    %v214 = vld [vmem:[%s0 + $0x570] sm:$0xff]
    %v215 = vld [vmem:[%s0 + $0x578] sm:$0xf]
    %v216 = vld [vmem:[%s0 + $0x580] sm:$0xff]
    %v217 = vld [vmem:[%s0 + $0x588] sm:$0xff]
    %v218 = vld [vmem:[%s0 + $0x590] sm:$0xff]
    %v219 = vld [vmem:[%s0 + $0x598] sm:$0xf]
    %v220 = vld [vmem:[%s0 + $0x5a0] sm:$0xff]
    %v221 = vld [vmem:[%s0 + $0x5a8] sm:$0xff]
    %v222 = vld [vmem:[%s0 + $0x5b0] sm:$0xff]
    %v223 = vld [vmem:[%s0 + $0x5b8] sm:$0xf]
    %v224 = vld [vmem:[%s0 + $0x5c0] sm:$0xff]
    %v225 = vld [vmem:[%s0 + $0x5c8] sm:$0xff]
    %v226 = vld [vmem:[%s0 + $0x5d0] sm:$0xff]
    %v227 = vld [vmem:[%s0 + $0x5d8] sm:$0xf]
    %v228 = vld [vmem:[%s0 + $0x5e0] sm:$0xff]
    %v229 = vld [vmem:[%s0 + $0x5e8] sm:$0xff]
    %v230 = vld [vmem:[%s0 + $0x5f0] sm:$0xff]
    %v231 = vld [vmem:[%s0 + $0x5f8] sm:$0xf]
    %v232 = vld [vmem:[%s0 + $0x600] sm:$0xff]
    %v233 = vld [vmem:[%s0 + $0x608] sm:$0xff]
    %v234 = vld [vmem:[%s0 + $0x610] sm:$0xff]
    %v235 = vld [vmem:[%s0 + $0x618] sm:$0xf]
    %v236 = vld [vmem:[%s0 + $0x620] sm:$0xff]
    %v237 = vld [vmem:[%s0 + $0x628] sm:$0xff]
    %v238 = vld [vmem:[%s0 + $0x630] sm:$0xff]
    %v239 = vld [vmem:[%s0 + $0x638] sm:$0xf]
    %v240 = vld [vmem:[%s0 + $0x640] sm:$0xff]
    %v241 = vld [vmem:[%s0 + $0x648] sm:$0xff]
    %v242 = vld [vmem:[%s0 + $0x650] sm:$0xff]
    %v243 = vld [vmem:[%s0 + $0x658] sm:$0xf]
    %v244 = vld [vmem:[%s0 + $0x660] sm:$0xff]
    %v245 = vld [vmem:[%s0 + $0x668] sm:$0xff]
    %v246 = vld [vmem:[%s0 + $0x670] sm:$0xff]
    %v247 = vld [vmem:[%s0 + $0x678] sm:$0xf]
    %v248 = vld [vmem:[%s0 + $0x680] sm:$0xff]
    %v249 = vld [vmem:[%s0 + $0x688] sm:$0xff]
    %v250 = vld [vmem:[%s0 + $0x690] sm:$0xff]
    %v251 = vld [vmem:[%s0 + $0x698] sm:$0xf]
    %v252 = vld [vmem:[%s0 + $0x6a0] sm:$0xff]
    %v253 = vld [vmem:[%s0 + $0x6a8] sm:$0xff]
    %v254 = vld [vmem:[%s0 + $0x6b0] sm:$0xff]
    %v255 = vld [vmem:[%s0 + $0x6b8] sm:$0xf]
    %v256 = vld [vmem:[%s0 + $0x6c0] sm:$0xff]
    %v257 = vld [vmem:[%s0 + $0x6c8] sm:$0xff]
    %v258 = vld [vmem:[%s0 + $0x6d0] sm:$0xff]
    %v259 = vld [vmem:[%s0 + $0x6d8] sm:$0xf]
    %v260 = vld [vmem:[%s0 + $0x6e0] sm:$0xff]
    %v261 = vld [vmem:[%s0 + $0x6e8] sm:$0xff]
    %v262 = vld [vmem:[%s0 + $0x6f0] sm:$0xff]
    %v263 = vld [vmem:[%s0 + $0x6f8] sm:$0xf]
    %vm488 = vcmask 1046528
    %v489 = vrot.slane %v40, 1
    %v490 = vrot.slane %v41, 1
    %v491 = vsel %vm488, %v489, %v490
    %v492 = vrot.slane %v42, 1
    %v493 = vsel %vm488, %v490, %v492
    %v494 = vrot.slane %v43, 1
    %v495 = vsel %vm488, %v492, %v494
    %v496 = vrot.slane %v44, 1
    %v497 = vrot.slane %v45, 1
    %v498 = vsel %vm488, %v496, %v497
    %v499 = vrot.slane %v46, 1
    %v500 = vsel %vm488, %v497, %v499
    %v501 = vrot.slane %v47, 1
    %v502 = vsel %vm488, %v499, %v501
    %v503 = vrot.slane %v48, 1
    %v504 = vrot.slane %v49, 1
    %v505 = vsel %vm488, %v503, %v504
    %v506 = vrot.slane %v50, 1
    %v507 = vsel %vm488, %v504, %v506
    %v508 = vrot.slane %v51, 1
    %v509 = vsel %vm488, %v506, %v508
    %v510 = vrot.slane %v52, 1
    %v511 = vrot.slane %v53, 1
    %v512 = vsel %vm488, %v510, %v511
    %v513 = vrot.slane %v54, 1
    %v514 = vsel %vm488, %v511, %v513
    %v515 = vrot.slane %v55, 1
    %v516 = vsel %vm488, %v513, %v515
    %v517 = vrot.slane %v56, 1
    %v518 = vrot.slane %v57, 1
    %v519 = vsel %vm488, %v517, %v518
    %v520 = vrot.slane %v58, 1
    %v521 = vsel %vm488, %v518, %v520
    %v522 = vrot.slane %v59, 1
    %v523 = vsel %vm488, %v520, %v522
    %v524 = vrot.slane %v60, 1
    %v525 = vrot.slane %v61, 1
    %v526 = vsel %vm488, %v524, %v525
    %v527 = vrot.slane %v62, 1
    %v528 = vsel %vm488, %v525, %v527
    %v529 = vrot.slane %v63, 1
    %v530 = vsel %vm488, %v527, %v529
    %v531 = vrot.slane %v64, 1
    %v532 = vrot.slane %v65, 1
    %v533 = vsel %vm488, %v531, %v532
    %v534 = vrot.slane %v66, 1
    %v535 = vsel %vm488, %v532, %v534
    %v536 = vrot.slane %v67, 1
    %v537 = vsel %vm488, %v534, %v536
    %v538 = vrot.slane %v68, 1
    %v539 = vrot.slane %v69, 1
    %v540 = vsel %vm488, %v538, %v539
    %v541 = vrot.slane %v70, 1
    %v542 = vsel %vm488, %v539, %v541
    %v543 = vrot.slane %v71, 1
    %v544 = vsel %vm488, %v541, %v543
    %v545 = vrot.slane %v72, 1
    %v546 = vrot.slane %v73, 1
    %v547 = vsel %vm488, %v545, %v546
    %v548 = vrot.slane %v74, 1
    %v549 = vsel %vm488, %v546, %v548
    %v550 = vrot.slane %v75, 1
    %v551 = vsel %vm488, %v548, %v550
    %v552 = vrot.slane %v76, 1
    %v553 = vrot.slane %v77, 1
    %v554 = vsel %vm488, %v552, %v553
    %v555 = vrot.slane %v78, 1
    %v556 = vsel %vm488, %v553, %v555
    %v557 = vrot.slane %v79, 1
    %v558 = vsel %vm488, %v555, %v557
    %v559 = vrot.slane %v80, 1
    %v560 = vrot.slane %v81, 1
    %v561 = vsel %vm488, %v559, %v560
    %v562 = vrot.slane %v82, 1
    %v563 = vsel %vm488, %v560, %v562
    %v564 = vrot.slane %v83, 1
    %v565 = vsel %vm488, %v562, %v564
    %v566 = vrot.slane %v84, 1
    %v567 = vrot.slane %v85, 1
    %v568 = vsel %vm488, %v566, %v567
    %v569 = vrot.slane %v86, 1
    %v570 = vsel %vm488, %v567, %v569
    %v571 = vrot.slane %v87, 1
    %v572 = vsel %vm488, %v569, %v571
    %v573 = vrot.slane %v88, 1
    %v574 = vrot.slane %v89, 1
    %v575 = vsel %vm488, %v573, %v574
    %v576 = vrot.slane %v90, 1
    %v577 = vsel %vm488, %v574, %v576
    %v578 = vrot.slane %v91, 1
    %v579 = vsel %vm488, %v576, %v578
    %v580 = vrot.slane %v92, 1
    %v581 = vrot.slane %v93, 1
    %v582 = vsel %vm488, %v580, %v581
    %v583 = vrot.slane %v94, 1
    %v584 = vsel %vm488, %v581, %v583
    %v585 = vrot.slane %v95, 1
    %v586 = vsel %vm488, %v583, %v585
    %v587 = vrot.slane %v96, 1
    %v588 = vrot.slane %v97, 1
    %v589 = vsel %vm488, %v587, %v588
    %v590 = vrot.slane %v98, 1
    %v591 = vsel %vm488, %v588, %v590
    %v592 = vrot.slane %v99, 1
    %v593 = vsel %vm488, %v590, %v592
    %v594 = vrot.slane %v100, 1
    %v595 = vrot.slane %v101, 1
    %v596 = vsel %vm488, %v594, %v595
    %v597 = vrot.slane %v102, 1
    %v598 = vsel %vm488, %v595, %v597
    %v599 = vrot.slane %v103, 1
    %v600 = vsel %vm488, %v597, %v599
    %v601 = vrot.slane %v104, 1
    %v602 = vrot.slane %v105, 1
    %v603 = vsel %vm488, %v601, %v602
    %v604 = vrot.slane %v106, 1
    %v605 = vsel %vm488, %v602, %v604
    %v606 = vrot.slane %v107, 1
    %v607 = vsel %vm488, %v604, %v606
    %v608 = vrot.slane %v108, 1
    %v609 = vrot.slane %v109, 1
    %v610 = vsel %vm488, %v608, %v609
    %v611 = vrot.slane %v110, 1
    %v612 = vsel %vm488, %v609, %v611
    %v613 = vrot.slane %v111, 1
    %v614 = vsel %vm488, %v611, %v613
    %v615 = vrot.slane %v112, 1
    %v616 = vrot.slane %v113, 1
    %v617 = vsel %vm488, %v615, %v616
    %v618 = vrot.slane %v114, 1
    %v619 = vsel %vm488, %v616, %v618
    %v620 = vrot.slane %v115, 1
    %v621 = vsel %vm488, %v618, %v620
    %v622 = vrot.slane %v116, 1
    %v623 = vrot.slane %v117, 1
    %v624 = vsel %vm488, %v622, %v623
    %v625 = vrot.slane %v118, 1
    %v626 = vsel %vm488, %v623, %v625
    %v627 = vrot.slane %v119, 1
    %v628 = vsel %vm488, %v625, %v627
    %v629 = vrot.slane %v120, 1
    %v630 = vrot.slane %v121, 1
    %v631 = vsel %vm488, %v629, %v630
    %v632 = vrot.slane %v122, 1
    %v633 = vsel %vm488, %v630, %v632
    %v634 = vrot.slane %v123, 1
    %v635 = vsel %vm488, %v632, %v634
    %v636 = vrot.slane %v124, 1
    %v637 = vrot.slane %v125, 1
    %v638 = vsel %vm488, %v636, %v637
    %v639 = vrot.slane %v126, 1
    %v640 = vsel %vm488, %v637, %v639
    %v641 = vrot.slane %v127, 1
    %v642 = vsel %vm488, %v639, %v641
    %v643 = vrot.slane %v128, 1
    %v644 = vrot.slane %v129, 1
    %v645 = vsel %vm488, %v643, %v644
    %v646 = vrot.slane %v130, 1
    %v647 = vsel %vm488, %v644, %v646
    %v648 = vrot.slane %v131, 1
    %v649 = vsel %vm488, %v646, %v648
    %v650 = vrot.slane %v132, 1
    %v651 = vrot.slane %v133, 1
    %v652 = vsel %vm488, %v650, %v651
    %v653 = vrot.slane %v134, 1
    %v654 = vsel %vm488, %v651, %v653
    %v655 = vrot.slane %v135, 1
    %v656 = vsel %vm488, %v653, %v655
    %v657 = vrot.slane %v136, 1
    %v658 = vrot.slane %v137, 1
    %v659 = vsel %vm488, %v657, %v658
    %v660 = vrot.slane %v138, 1
    %v661 = vsel %vm488, %v658, %v660
    %v662 = vrot.slane %v139, 1
    %v663 = vsel %vm488, %v660, %v662
    %v664 = vrot.slane %v140, 1
    %v665 = vrot.slane %v141, 1
    %v666 = vsel %vm488, %v664, %v665
    %v667 = vrot.slane %v142, 1
    %v668 = vsel %vm488, %v665, %v667
    %v669 = vrot.slane %v143, 1
    %v670 = vsel %vm488, %v667, %v669
    %v671 = vrot.slane %v144, 1
    %v672 = vrot.slane %v145, 1
    %v673 = vsel %vm488, %v671, %v672
    %v674 = vrot.slane %v146, 1
    %v675 = vsel %vm488, %v672, %v674
    %v676 = vrot.slane %v147, 1
    %v677 = vsel %vm488, %v674, %v676
    %v678 = vrot.slane %v148, 1
    %v679 = vrot.slane %v149, 1
    %v680 = vsel %vm488, %v678, %v679
    %v681 = vrot.slane %v150, 1
    %v682 = vsel %vm488, %v679, %v681
    %v683 = vrot.slane %v151, 1
    %v684 = vsel %vm488, %v681, %v683
    %v685 = vrot.slane %v152, 1
    %v686 = vrot.slane %v153, 1
    %v687 = vsel %vm488, %v685, %v686
    %v688 = vrot.slane %v154, 1
    %v689 = vsel %vm488, %v686, %v688
    %v690 = vrot.slane %v155, 1
    %v691 = vsel %vm488, %v688, %v690
    %v692 = vrot.slane %v156, 1
    %v693 = vrot.slane %v157, 1
    %v694 = vsel %vm488, %v692, %v693
    %v695 = vrot.slane %v158, 1
    %v696 = vsel %vm488, %v693, %v695
    %v697 = vrot.slane %v159, 1
    %v698 = vsel %vm488, %v695, %v697
    %v699 = vrot.slane %v160, 1
    %v700 = vrot.slane %v161, 1
    %v701 = vsel %vm488, %v699, %v700
    %v702 = vrot.slane %v162, 1
    %v703 = vsel %vm488, %v700, %v702
    %v704 = vrot.slane %v163, 1
    %v705 = vsel %vm488, %v702, %v704
    %v706 = vrot.slane %v164, 1
    %v707 = vrot.slane %v165, 1
    %v708 = vsel %vm488, %v706, %v707
    %v709 = vrot.slane %v166, 1
    %v710 = vsel %vm488, %v707, %v709
    %v711 = vrot.slane %v167, 1
    %v712 = vsel %vm488, %v709, %v711
    %v713 = vrot.slane %v168, 1
    %v714 = vrot.slane %v169, 1
    %v715 = vsel %vm488, %v713, %v714
    %v716 = vrot.slane %v170, 1
    %v717 = vsel %vm488, %v714, %v716
    %v718 = vrot.slane %v171, 1
    %v719 = vsel %vm488, %v716, %v718
    %v720 = vrot.slane %v172, 1
    %v721 = vrot.slane %v173, 1
    %v722 = vsel %vm488, %v720, %v721
    %v723 = vrot.slane %v174, 1
    %v724 = vsel %vm488, %v721, %v723
    %v725 = vrot.slane %v175, 1
    %v726 = vsel %vm488, %v723, %v725
    %v727 = vrot.slane %v176, 1
    %v728 = vrot.slane %v177, 1
    %v729 = vsel %vm488, %v727, %v728
    %v730 = vrot.slane %v178, 1
    %v731 = vsel %vm488, %v728, %v730
    %v732 = vrot.slane %v179, 1
    %v733 = vsel %vm488, %v730, %v732
    %v734 = vrot.slane %v180, 1
    %v735 = vrot.slane %v181, 1
    %v736 = vsel %vm488, %v734, %v735
    %v737 = vrot.slane %v182, 1
    %v738 = vsel %vm488, %v735, %v737
    %v739 = vrot.slane %v183, 1
    %v740 = vsel %vm488, %v737, %v739
    %v741 = vrot.slane %v184, 1
    %v742 = vrot.slane %v185, 1
    %v743 = vsel %vm488, %v741, %v742
    %v744 = vrot.slane %v186, 1
    %v745 = vsel %vm488, %v742, %v744
    %v746 = vrot.slane %v187, 1
    %v747 = vsel %vm488, %v744, %v746
    %v748 = vrot.slane %v188, 1
    %v749 = vrot.slane %v189, 1
    %v750 = vsel %vm488, %v748, %v749
    %v751 = vrot.slane %v190, 1
    %v752 = vsel %vm488, %v749, %v751
    %v753 = vrot.slane %v191, 1
    %v754 = vsel %vm488, %v751, %v753
    %v755 = vrot.slane %v192, 1
    %v756 = vrot.slane %v193, 1
    %v757 = vsel %vm488, %v755, %v756
    %v758 = vrot.slane %v194, 1
    %v759 = vsel %vm488, %v756, %v758
    %v760 = vrot.slane %v195, 1
    %v761 = vsel %vm488, %v758, %v760
    %v762 = vrot.slane %v196, 1
    %v763 = vrot.slane %v197, 1
    %v764 = vsel %vm488, %v762, %v763
    %v765 = vrot.slane %v198, 1
    %v766 = vsel %vm488, %v763, %v765
    %v767 = vrot.slane %v199, 1
    %v768 = vsel %vm488, %v765, %v767
    %v769 = vrot.slane %v200, 1
    %v770 = vrot.slane %v201, 1
    %v771 = vsel %vm488, %v769, %v770
    %v772 = vrot.slane %v202, 1
    %v773 = vsel %vm488, %v770, %v772
    %v774 = vrot.slane %v203, 1
    %v775 = vsel %vm488, %v772, %v774
    %v776 = vrot.slane %v204, 1
    %v777 = vrot.slane %v205, 1
    %v778 = vsel %vm488, %v776, %v777
    %v779 = vrot.slane %v206, 1
    %v780 = vsel %vm488, %v777, %v779
    %v781 = vrot.slane %v207, 1
    %v782 = vsel %vm488, %v779, %v781
    %v783 = vrot.slane %v208, 1
    %v784 = vrot.slane %v209, 1
    %v785 = vsel %vm488, %v783, %v784
    %v786 = vrot.slane %v210, 1
    %v787 = vsel %vm488, %v784, %v786
    %v788 = vrot.slane %v211, 1
    %v789 = vsel %vm488, %v786, %v788
    %v790 = vrot.slane %v212, 1
    %v791 = vrot.slane %v213, 1
    %v792 = vsel %vm488, %v790, %v791
    %v793 = vrot.slane %v214, 1
    %v794 = vsel %vm488, %v791, %v793
    %v795 = vrot.slane %v215, 1
    %v796 = vsel %vm488, %v793, %v795
    %v797 = vrot.slane %v216, 1
    %v798 = vrot.slane %v217, 1
    %v799 = vsel %vm488, %v797, %v798
    %v800 = vrot.slane %v218, 1
    %v801 = vsel %vm488, %v798, %v800
    %v802 = vrot.slane %v219, 1
    %v803 = vsel %vm488, %v800, %v802
    %v804 = vrot.slane %v220, 1
    %v805 = vrot.slane %v221, 1
    %v806 = vsel %vm488, %v804, %v805
    %v807 = vrot.slane %v222, 1
    %v808 = vsel %vm488, %v805, %v807
    %v809 = vrot.slane %v223, 1
    %v810 = vsel %vm488, %v807, %v809
    %v811 = vrot.slane %v224, 1
    %v812 = vrot.slane %v225, 1
    %v813 = vsel %vm488, %v811, %v812
    %v814 = vrot.slane %v226, 1
    %v815 = vsel %vm488, %v812, %v814
    %v816 = vrot.slane %v227, 1
    %v817 = vsel %vm488, %v814, %v816
    %v818 = vrot.slane %v228, 1
    %v819 = vrot.slane %v229, 1
    %v820 = vsel %vm488, %v818, %v819
    %v821 = vrot.slane %v230, 1
    %v822 = vsel %vm488, %v819, %v821
    %v823 = vrot.slane %v231, 1
    %v824 = vsel %vm488, %v821, %v823
    %v825 = vrot.slane %v232, 1
    %v826 = vrot.slane %v233, 1
    %v827 = vsel %vm488, %v825, %v826
    %v828 = vrot.slane %v234, 1
    %v829 = vsel %vm488, %v826, %v828
    %v830 = vrot.slane %v235, 1
    %v831 = vsel %vm488, %v828, %v830
    %v832 = vrot.slane %v236, 1
    %v833 = vrot.slane %v237, 1
    %v834 = vsel %vm488, %v832, %v833
    %v835 = vrot.slane %v238, 1
    %v836 = vsel %vm488, %v833, %v835
    %v837 = vrot.slane %v239, 1
    %v838 = vsel %vm488, %v835, %v837
    %v839 = vrot.slane %v240, 1
    %v840 = vrot.slane %v241, 1
    %v841 = vsel %vm488, %v839, %v840
    %v842 = vrot.slane %v242, 1
    %v843 = vsel %vm488, %v840, %v842
    %v844 = vrot.slane %v243, 1
    %v845 = vsel %vm488, %v842, %v844
    %v846 = vrot.slane %v244, 1
    %v847 = vrot.slane %v245, 1
    %v848 = vsel %vm488, %v846, %v847
    %v849 = vrot.slane %v246, 1
    %v850 = vsel %vm488, %v847, %v849
    %v851 = vrot.slane %v247, 1
    %v852 = vsel %vm488, %v849, %v851
    %v853 = vrot.slane %v248, 1
    %v854 = vrot.slane %v249, 1
    %v855 = vsel %vm488, %v853, %v854
    %v856 = vrot.slane %v250, 1
    %v857 = vsel %vm488, %v854, %v856
    %v858 = vrot.slane %v251, 1
    %v859 = vsel %vm488, %v856, %v858
    %v860 = vrot.slane %v252, 1
    %v861 = vrot.slane %v253, 1
    %v862 = vsel %vm488, %v860, %v861
    %v863 = vrot.slane %v254, 1
    %v864 = vsel %vm488, %v861, %v863
    %v865 = vrot.slane %v255, 1
    %v866 = vsel %vm488, %v863, %v865
    %v867 = vrot.slane %v256, 1
    %v868 = vrot.slane %v257, 1
    %v869 = vsel %vm488, %v867, %v868
    %v870 = vrot.slane %v258, 1
    %v871 = vsel %vm488, %v868, %v870
    %v872 = vrot.slane %v259, 1
    %v873 = vsel %vm488, %v870, %v872
    %v874 = vrot.slane %v260, 1
    %v875 = vrot.slane %v261, 1
    %v876 = vsel %vm488, %v874, %v875
    %v877 = vrot.slane %v262, 1
    %v878 = vsel %vm488, %v875, %v877
    %v879 = vrot.slane %v263, 1
    %v880 = vsel %vm488, %v877, %v879
    %881 = vrot.lane.b32.xlu0 %v491, 1
    %v882 = vpop.permute.xlu0 %881
    %883 = vrot.lane.b32.xlu0 %v493, 1
    %v884 = vpop.permute.xlu0 %883
    %885 = vrot.lane.b32.xlu0 %v495, 1
    %v886 = vpop.permute.xlu0 %885
    %887 = vrot.lane.b32.xlu0 %v498, 1
    %v888 = vpop.permute.xlu0 %887
    %889 = vrot.lane.b32.xlu0 %v500, 1
    %v890 = vpop.permute.xlu0 %889
    %891 = vrot.lane.b32.xlu0 %v502, 1
    %v892 = vpop.permute.xlu0 %891
    %893 = vrot.lane.b32.xlu0 %v505, 1
    %v894 = vpop.permute.xlu0 %893
    %895 = vrot.lane.b32.xlu0 %v507, 1
    %v896 = vpop.permute.xlu0 %895
    %897 = vrot.lane.b32.xlu0 %v509, 1
    %v898 = vpop.permute.xlu0 %897
    %899 = vrot.lane.b32.xlu0 %v512, 1
    %v900 = vpop.permute.xlu0 %899
    %901 = vrot.lane.b32.xlu0 %v514, 1
    %v902 = vpop.permute.xlu0 %901
    %903 = vrot.lane.b32.xlu0 %v516, 1
    %v904 = vpop.permute.xlu0 %903
    %905 = vrot.lane.b32.xlu0 %v519, 1
    %v906 = vpop.permute.xlu0 %905
    %907 = vrot.lane.b32.xlu0 %v521, 1
    %v908 = vpop.permute.xlu0 %907
    %909 = vrot.lane.b32.xlu0 %v523, 1
    %v910 = vpop.permute.xlu0 %909
    %911 = vrot.lane.b32.xlu0 %v526, 1
    %v912 = vpop.permute.xlu0 %911
    %913 = vrot.lane.b32.xlu0 %v528, 1
    %v914 = vpop.permute.xlu0 %913
    %915 = vrot.lane.b32.xlu0 %v530, 1
    %v916 = vpop.permute.xlu0 %915
    %917 = vrot.lane.b32.xlu0 %v533, 1
    %v918 = vpop.permute.xlu0 %917
    %919 = vrot.lane.b32.xlu0 %v535, 1
    %v920 = vpop.permute.xlu0 %919
    %921 = vrot.lane.b32.xlu0 %v537, 1
    %v922 = vpop.permute.xlu0 %921
    %923 = vrot.lane.b32.xlu0 %v540, 1
    %v924 = vpop.permute.xlu0 %923
    %925 = vrot.lane.b32.xlu0 %v542, 1
    %v926 = vpop.permute.xlu0 %925
    %927 = vrot.lane.b32.xlu0 %v544, 1
    %v928 = vpop.permute.xlu0 %927
    %929 = vrot.lane.b32.xlu0 %v547, 1
    %v930 = vpop.permute.xlu0 %929
    %931 = vrot.lane.b32.xlu0 %v549, 1
    %v932 = vpop.permute.xlu0 %931
    %933 = vrot.lane.b32.xlu0 %v551, 1
    %v934 = vpop.permute.xlu0 %933
    %935 = vrot.lane.b32.xlu0 %v554, 1
    %v936 = vpop.permute.xlu0 %935
    %937 = vrot.lane.b32.xlu0 %v556, 1
    %v938 = vpop.permute.xlu0 %937
    %939 = vrot.lane.b32.xlu0 %v558, 1
    %v940 = vpop.permute.xlu0 %939
    %941 = vrot.lane.b32.xlu0 %v561, 1
    %v942 = vpop.permute.xlu0 %941
    %943 = vrot.lane.b32.xlu0 %v563, 1
    %v944 = vpop.permute.xlu0 %943
    %945 = vrot.lane.b32.xlu0 %v565, 1
    %v946 = vpop.permute.xlu0 %945
    %947 = vrot.lane.b32.xlu0 %v568, 1
    %v948 = vpop.permute.xlu0 %947
    %949 = vrot.lane.b32.xlu0 %v570, 1
    %v950 = vpop.permute.xlu0 %949
    %951 = vrot.lane.b32.xlu0 %v572, 1
    %v952 = vpop.permute.xlu0 %951
    %953 = vrot.lane.b32.xlu0 %v575, 1
    %v954 = vpop.permute.xlu0 %953
    %955 = vrot.lane.b32.xlu0 %v577, 1
    %v956 = vpop.permute.xlu0 %955
    %957 = vrot.lane.b32.xlu0 %v579, 1
    %v958 = vpop.permute.xlu0 %957
    %959 = vrot.lane.b32.xlu0 %v582, 1
    %v960 = vpop.permute.xlu0 %959
    %961 = vrot.lane.b32.xlu0 %v584, 1
    %v962 = vpop.permute.xlu0 %961
    %963 = vrot.lane.b32.xlu0 %v586, 1
    %v964 = vpop.permute.xlu0 %963
    %965 = vrot.lane.b32.xlu0 %v589, 1
    %v966 = vpop.permute.xlu0 %965
    %967 = vrot.lane.b32.xlu0 %v591, 1
    %v968 = vpop.permute.xlu0 %967
    %969 = vrot.lane.b32.xlu0 %v593, 1
    %v970 = vpop.permute.xlu0 %969
    %971 = vrot.lane.b32.xlu0 %v596, 1
    %v972 = vpop.permute.xlu0 %971
    %973 = vrot.lane.b32.xlu0 %v598, 1
    %v974 = vpop.permute.xlu0 %973
    %975 = vrot.lane.b32.xlu0 %v600, 1
    %v976 = vpop.permute.xlu0 %975
    %977 = vrot.lane.b32.xlu0 %v603, 1
    %v978 = vpop.permute.xlu0 %977
    %979 = vrot.lane.b32.xlu0 %v605, 1
    %v980 = vpop.permute.xlu0 %979
    %981 = vrot.lane.b32.xlu0 %v607, 1
    %v982 = vpop.permute.xlu0 %981
    %983 = vrot.lane.b32.xlu0 %v610, 1
    %v984 = vpop.permute.xlu0 %983
    %985 = vrot.lane.b32.xlu0 %v612, 1
    %v986 = vpop.permute.xlu0 %985
    %987 = vrot.lane.b32.xlu0 %v614, 1
    %v988 = vpop.permute.xlu0 %987
    %989 = vrot.lane.b32.xlu0 %v617, 1
    %v990 = vpop.permute.xlu0 %989
    %991 = vrot.lane.b32.xlu0 %v619, 1
    %v992 = vpop.permute.xlu0 %991
    %993 = vrot.lane.b32.xlu0 %v621, 1
    %v994 = vpop.permute.xlu0 %993
    %995 = vrot.lane.b32.xlu0 %v624, 1
    %v996 = vpop.permute.xlu0 %995
    %997 = vrot.lane.b32.xlu0 %v626, 1
    %v998 = vpop.permute.xlu0 %997
    %999 = vrot.lane.b32.xlu0 %v628, 1
    %v1000 = vpop.permute.xlu0 %999
    %1001 = vrot.lane.b32.xlu0 %v631, 1
    %v1002 = vpop.permute.xlu0 %1001
    %1003 = vrot.lane.b32.xlu0 %v633, 1
    %v1004 = vpop.permute.xlu0 %1003
    %1005 = vrot.lane.b32.xlu0 %v635, 1
    %v1006 = vpop.permute.xlu0 %1005
    %1007 = vrot.lane.b32.xlu0 %v638, 1
    %v1008 = vpop.permute.xlu0 %1007
    %1009 = vrot.lane.b32.xlu0 %v640, 1
    %v1010 = vpop.permute.xlu0 %1009
    %1011 = vrot.lane.b32.xlu0 %v642, 1
    %v1012 = vpop.permute.xlu0 %1011
    %1013 = vrot.lane.b32.xlu0 %v645, 1
    %v1014 = vpop.permute.xlu0 %1013
    %1015 = vrot.lane.b32.xlu0 %v647, 1
    %v1016 = vpop.permute.xlu0 %1015
    %1017 = vrot.lane.b32.xlu0 %v649, 1
    %v1018 = vpop.permute.xlu0 %1017
    %1019 = vrot.lane.b32.xlu0 %v652, 1
    %v1020 = vpop.permute.xlu0 %1019
    %1021 = vrot.lane.b32.xlu0 %v654, 1
    %v1022 = vpop.permute.xlu0 %1021
    %1023 = vrot.lane.b32.xlu0 %v656, 1
    %v1024 = vpop.permute.xlu0 %1023
    %1025 = vrot.lane.b32.xlu0 %v659, 1
    %v1026 = vpop.permute.xlu0 %1025
    %1027 = vrot.lane.b32.xlu0 %v661, 1
    %v1028 = vpop.permute.xlu0 %1027
    %1029 = vrot.lane.b32.xlu0 %v663, 1
    %v1030 = vpop.permute.xlu0 %1029
    %1031 = vrot.lane.b32.xlu0 %v666, 1
    %v1032 = vpop.permute.xlu0 %1031
    %1033 = vrot.lane.b32.xlu0 %v668, 1
    %v1034 = vpop.permute.xlu0 %1033
    %1035 = vrot.lane.b32.xlu0 %v670, 1
    %v1036 = vpop.permute.xlu0 %1035
    %1037 = vrot.lane.b32.xlu0 %v673, 1
    %v1038 = vpop.permute.xlu0 %1037
    %1039 = vrot.lane.b32.xlu0 %v675, 1
    %v1040 = vpop.permute.xlu0 %1039
    %1041 = vrot.lane.b32.xlu0 %v677, 1
    %v1042 = vpop.permute.xlu0 %1041
    %1043 = vrot.lane.b32.xlu0 %v680, 1
    %v1044 = vpop.permute.xlu0 %1043
    %1045 = vrot.lane.b32.xlu0 %v682, 1
    %v1046 = vpop.permute.xlu0 %1045
    %1047 = vrot.lane.b32.xlu0 %v684, 1
    %v1048 = vpop.permute.xlu0 %1047
    %1049 = vrot.lane.b32.xlu0 %v687, 1
    %v1050 = vpop.permute.xlu0 %1049
    %1051 = vrot.lane.b32.xlu0 %v689, 1
    %v1052 = vpop.permute.xlu0 %1051
    %1053 = vrot.lane.b32.xlu0 %v691, 1
    %v1054 = vpop.permute.xlu0 %1053
    %1055 = vrot.lane.b32.xlu0 %v694, 1
    %v1056 = vpop.permute.xlu0 %1055
    %1057 = vrot.lane.b32.xlu0 %v696, 1
    %v1058 = vpop.permute.xlu0 %1057
    %1059 = vrot.lane.b32.xlu0 %v698, 1
    %v1060 = vpop.permute.xlu0 %1059
    %1061 = vrot.lane.b32.xlu0 %v701, 1
    %v1062 = vpop.permute.xlu0 %1061
    %1063 = vrot.lane.b32.xlu0 %v703, 1
    %v1064 = vpop.permute.xlu0 %1063
    %1065 = vrot.lane.b32.xlu0 %v705, 1
    %v1066 = vpop.permute.xlu0 %1065
    %1067 = vrot.lane.b32.xlu0 %v708, 1
    %v1068 = vpop.permute.xlu0 %1067
    %1069 = vrot.lane.b32.xlu0 %v710, 1
    %v1070 = vpop.permute.xlu0 %1069
    %1071 = vrot.lane.b32.xlu0 %v712, 1
    %v1072 = vpop.permute.xlu0 %1071
    %1073 = vrot.lane.b32.xlu0 %v715, 1
    %v1074 = vpop.permute.xlu0 %1073
    %1075 = vrot.lane.b32.xlu0 %v717, 1
    %v1076 = vpop.permute.xlu0 %1075
    %1077 = vrot.lane.b32.xlu0 %v719, 1
    %v1078 = vpop.permute.xlu0 %1077
    %1079 = vrot.lane.b32.xlu0 %v722, 1
    %v1080 = vpop.permute.xlu0 %1079
    %1081 = vrot.lane.b32.xlu0 %v724, 1
    %v1082 = vpop.permute.xlu0 %1081
    %1083 = vrot.lane.b32.xlu0 %v726, 1
    %v1084 = vpop.permute.xlu0 %1083
    %1085 = vrot.lane.b32.xlu0 %v729, 1
    %v1086 = vpop.permute.xlu0 %1085
    %1087 = vrot.lane.b32.xlu0 %v731, 1
    %v1088 = vpop.permute.xlu0 %1087
    %1089 = vrot.lane.b32.xlu0 %v733, 1
    %v1090 = vpop.permute.xlu0 %1089
    %1091 = vrot.lane.b32.xlu0 %v736, 1
    %v1092 = vpop.permute.xlu0 %1091
    %1093 = vrot.lane.b32.xlu0 %v738, 1
    %v1094 = vpop.permute.xlu0 %1093
    %1095 = vrot.lane.b32.xlu0 %v740, 1
    %v1096 = vpop.permute.xlu0 %1095
    %1097 = vrot.lane.b32.xlu0 %v743, 1
    %v1098 = vpop.permute.xlu0 %1097
    %1099 = vrot.lane.b32.xlu0 %v745, 1
    %v1100 = vpop.permute.xlu0 %1099
    %1101 = vrot.lane.b32.xlu0 %v747, 1
    %v1102 = vpop.permute.xlu0 %1101
    %1103 = vrot.lane.b32.xlu0 %v750, 1
    %v1104 = vpop.permute.xlu0 %1103
    %1105 = vrot.lane.b32.xlu0 %v752, 1
    %v1106 = vpop.permute.xlu0 %1105
    %1107 = vrot.lane.b32.xlu0 %v754, 1
    %v1108 = vpop.permute.xlu0 %1107
    %1109 = vrot.lane.b32.xlu0 %v757, 1
    %v1110 = vpop.permute.xlu0 %1109
    %1111 = vrot.lane.b32.xlu0 %v759, 1
    %v1112 = vpop.permute.xlu0 %1111
    %1113 = vrot.lane.b32.xlu0 %v761, 1
    %v1114 = vpop.permute.xlu0 %1113
    %1115 = vrot.lane.b32.xlu0 %v764, 1
    %v1116 = vpop.permute.xlu0 %1115
    %1117 = vrot.lane.b32.xlu0 %v766, 1
    %v1118 = vpop.permute.xlu0 %1117
    %1119 = vrot.lane.b32.xlu0 %v768, 1
    %v1120 = vpop.permute.xlu0 %1119
    %1121 = vrot.lane.b32.xlu0 %v771, 1
    %v1122 = vpop.permute.xlu0 %1121
    %1123 = vrot.lane.b32.xlu0 %v773, 1
    %v1124 = vpop.permute.xlu0 %1123
    %1125 = vrot.lane.b32.xlu0 %v775, 1
    %v1126 = vpop.permute.xlu0 %1125
    %1127 = vrot.lane.b32.xlu0 %v778, 1
    %v1128 = vpop.permute.xlu0 %1127
    %1129 = vrot.lane.b32.xlu0 %v780, 1
    %v1130 = vpop.permute.xlu0 %1129
    %1131 = vrot.lane.b32.xlu0 %v782, 1
    %v1132 = vpop.permute.xlu0 %1131
    %1133 = vrot.lane.b32.xlu0 %v785, 1
    %v1134 = vpop.permute.xlu0 %1133
    %1135 = vrot.lane.b32.xlu0 %v787, 1
    %v1136 = vpop.permute.xlu0 %1135
    %1137 = vrot.lane.b32.xlu0 %v789, 1
    %v1138 = vpop.permute.xlu0 %1137
    %1139 = vrot.lane.b32.xlu0 %v792, 1
    %v1140 = vpop.permute.xlu0 %1139
    %1141 = vrot.lane.b32.xlu0 %v794, 1
    %v1142 = vpop.permute.xlu0 %1141
    %1143 = vrot.lane.b32.xlu0 %v796, 1
    %v1144 = vpop.permute.xlu0 %1143
    %1145 = vrot.lane.b32.xlu0 %v799, 1
    %v1146 = vpop.permute.xlu0 %1145
    %1147 = vrot.lane.b32.xlu0 %v801, 1
    %v1148 = vpop.permute.xlu0 %1147
    %1149 = vrot.lane.b32.xlu0 %v803, 1
    %v1150 = vpop.permute.xlu0 %1149
    %1151 = vrot.lane.b32.xlu0 %v806, 1
    %v1152 = vpop.permute.xlu0 %1151
    %1153 = vrot.lane.b32.xlu0 %v808, 1
    %v1154 = vpop.permute.xlu0 %1153
    %1155 = vrot.lane.b32.xlu0 %v810, 1
    %v1156 = vpop.permute.xlu0 %1155
    %1157 = vrot.lane.b32.xlu0 %v813, 1
    %v1158 = vpop.permute.xlu0 %1157
    %1159 = vrot.lane.b32.xlu0 %v815, 1
    %v1160 = vpop.permute.xlu0 %1159
    %1161 = vrot.lane.b32.xlu0 %v817, 1
    %v1162 = vpop.permute.xlu0 %1161
    %1163 = vrot.lane.b32.xlu0 %v820, 1
    %v1164 = vpop.permute.xlu0 %1163
    %1165 = vrot.lane.b32.xlu0 %v822, 1
    %v1166 = vpop.permute.xlu0 %1165
    %1167 = vrot.lane.b32.xlu0 %v824, 1
    %v1168 = vpop.permute.xlu0 %1167
    %1169 = vrot.lane.b32.xlu0 %v827, 1
    %v1170 = vpop.permute.xlu0 %1169
    %1171 = vrot.lane.b32.xlu0 %v829, 1
    %v1172 = vpop.permute.xlu0 %1171
    %1173 = vrot.lane.b32.xlu0 %v831, 1
    %v1174 = vpop.permute.xlu0 %1173
    %1175 = vrot.lane.b32.xlu0 %v834, 1
    %v1176 = vpop.permute.xlu0 %1175
    %1177 = vrot.lane.b32.xlu0 %v836, 1
    %v1178 = vpop.permute.xlu0 %1177
    %1179 = vrot.lane.b32.xlu0 %v838, 1
    %v1180 = vpop.permute.xlu0 %1179
    %1181 = vrot.lane.b32.xlu0 %v841, 1
    %v1182 = vpop.permute.xlu0 %1181
    %1183 = vrot.lane.b32.xlu0 %v843, 1
    %v1184 = vpop.permute.xlu0 %1183
    %1185 = vrot.lane.b32.xlu0 %v845, 1
    %v1186 = vpop.permute.xlu0 %1185
    %1187 = vrot.lane.b32.xlu0 %v848, 1
    %v1188 = vpop.permute.xlu0 %1187
    %1189 = vrot.lane.b32.xlu0 %v850, 1
    %v1190 = vpop.permute.xlu0 %1189
    %1191 = vrot.lane.b32.xlu0 %v852, 1
    %v1192 = vpop.permute.xlu0 %1191
    %1193 = vrot.lane.b32.xlu0 %v855, 1
    %v1194 = vpop.permute.xlu0 %1193
    %1195 = vrot.lane.b32.xlu0 %v857, 1
    %v1196 = vpop.permute.xlu0 %1195
    %1197 = vrot.lane.b32.xlu0 %v859, 1
    %v1198 = vpop.permute.xlu0 %1197
    %1199 = vrot.lane.b32.xlu0 %v862, 1
    %v1200 = vpop.permute.xlu0 %1199
    %1201 = vrot.lane.b32.xlu0 %v864, 1
    %v1202 = vpop.permute.xlu0 %1201
    %1203 = vrot.lane.b32.xlu0 %v866, 1
    %v1204 = vpop.permute.xlu0 %1203
    %1205 = vrot.lane.b32.xlu0 %v869, 1
    %v1206 = vpop.permute.xlu0 %1205
    %1207 = vrot.lane.b32.xlu0 %v871, 1
    %v1208 = vpop.permute.xlu0 %1207
    %1209 = vrot.lane.b32.xlu0 %v873, 1
    %v1210 = vpop.permute.xlu0 %1209
    %1211 = vrot.lane.b32.xlu0 %v876, 1
    %v1212 = vpop.permute.xlu0 %1211
    %1213 = vrot.lane.b32.xlu0 %v878, 1
    %v1214 = vpop.permute.xlu0 %1213
    %1215 = vrot.lane.b32.xlu0 %v880, 1
    %v1216 = vpop.permute.xlu0 %1215
    %vm1385 = vcmask 1045504
    %v1386 = vrot.slane %v40, 2
    %v1387 = vrot.slane %v41, 2
    %v1388 = vsel %vm1385, %v1386, %v1387
    %v1389 = vrot.slane %v42, 2
    %v1390 = vsel %vm1385, %v1387, %v1389
    %v1391 = vrot.slane %v43, 2
    %v1392 = vsel %vm1385, %v1389, %v1391
    %v1393 = vrot.slane %v44, 2
    %v1394 = vrot.slane %v45, 2
    %v1395 = vsel %vm1385, %v1393, %v1394
    %v1396 = vrot.slane %v46, 2
    %v1397 = vsel %vm1385, %v1394, %v1396
    %v1398 = vrot.slane %v47, 2
    %v1399 = vsel %vm1385, %v1396, %v1398
    %v1400 = vrot.slane %v48, 2
    %v1401 = vrot.slane %v49, 2
    %v1402 = vsel %vm1385, %v1400, %v1401
    %v1403 = vrot.slane %v50, 2
    %v1404 = vsel %vm1385, %v1401, %v1403
    %v1405 = vrot.slane %v51, 2
    %v1406 = vsel %vm1385, %v1403, %v1405
    %v1407 = vrot.slane %v52, 2
    %v1408 = vrot.slane %v53, 2
    %v1409 = vsel %vm1385, %v1407, %v1408
    %v1410 = vrot.slane %v54, 2
    %v1411 = vsel %vm1385, %v1408, %v1410
    %v1412 = vrot.slane %v55, 2
    %v1413 = vsel %vm1385, %v1410, %v1412
    %v1414 = vrot.slane %v56, 2
    %v1415 = vrot.slane %v57, 2
    %v1416 = vsel %vm1385, %v1414, %v1415
    %v1417 = vrot.slane %v58, 2
    %v1418 = vsel %vm1385, %v1415, %v1417
    %v1419 = vrot.slane %v59, 2
    %v1420 = vsel %vm1385, %v1417, %v1419
    %v1421 = vrot.slane %v60, 2
    %v1422 = vrot.slane %v61, 2
    %v1423 = vsel %vm1385, %v1421, %v1422
    %v1424 = vrot.slane %v62, 2
    %v1425 = vsel %vm1385, %v1422, %v1424
    %v1426 = vrot.slane %v63, 2
    %v1427 = vsel %vm1385, %v1424, %v1426
    %v1428 = vrot.slane %v64, 2
    %v1429 = vrot.slane %v65, 2
    %v1430 = vsel %vm1385, %v1428, %v1429
    %v1431 = vrot.slane %v66, 2
    %v1432 = vsel %vm1385, %v1429, %v1431
    %v1433 = vrot.slane %v67, 2
    %v1434 = vsel %vm1385, %v1431, %v1433
    %v1435 = vrot.slane %v68, 2
    %v1436 = vrot.slane %v69, 2
    %v1437 = vsel %vm1385, %v1435, %v1436
    %v1438 = vrot.slane %v70, 2
    %v1439 = vsel %vm1385, %v1436, %v1438
    %v1440 = vrot.slane %v71, 2
    %v1441 = vsel %vm1385, %v1438, %v1440
    %v1442 = vrot.slane %v72, 2
    %v1443 = vrot.slane %v73, 2
    %v1444 = vsel %vm1385, %v1442, %v1443
    %v1445 = vrot.slane %v74, 2
    %v1446 = vsel %vm1385, %v1443, %v1445
    %v1447 = vrot.slane %v75, 2
    %v1448 = vsel %vm1385, %v1445, %v1447
    %v1449 = vrot.slane %v76, 2
    %v1450 = vrot.slane %v77, 2
    %v1451 = vsel %vm1385, %v1449, %v1450
    %v1452 = vrot.slane %v78, 2
    %v1453 = vsel %vm1385, %v1450, %v1452
    %v1454 = vrot.slane %v79, 2
    %v1455 = vsel %vm1385, %v1452, %v1454
    %v1456 = vrot.slane %v80, 2
    %v1457 = vrot.slane %v81, 2
    %v1458 = vsel %vm1385, %v1456, %v1457
    %v1459 = vrot.slane %v82, 2
    %v1460 = vsel %vm1385, %v1457, %v1459
    %v1461 = vrot.slane %v83, 2
    %v1462 = vsel %vm1385, %v1459, %v1461
    %v1463 = vrot.slane %v84, 2
    %v1464 = vrot.slane %v85, 2
    %v1465 = vsel %vm1385, %v1463, %v1464
    %v1466 = vrot.slane %v86, 2
    %v1467 = vsel %vm1385, %v1464, %v1466
    %v1468 = vrot.slane %v87, 2
    %v1469 = vsel %vm1385, %v1466, %v1468
    %v1470 = vrot.slane %v88, 2
    %v1471 = vrot.slane %v89, 2
    %v1472 = vsel %vm1385, %v1470, %v1471
    %v1473 = vrot.slane %v90, 2
    %v1474 = vsel %vm1385, %v1471, %v1473
    %v1475 = vrot.slane %v91, 2
    %v1476 = vsel %vm1385, %v1473, %v1475
    %v1477 = vrot.slane %v92, 2
    %v1478 = vrot.slane %v93, 2
    %v1479 = vsel %vm1385, %v1477, %v1478
    %v1480 = vrot.slane %v94, 2
    %v1481 = vsel %vm1385, %v1478, %v1480
    %v1482 = vrot.slane %v95, 2
    %v1483 = vsel %vm1385, %v1480, %v1482
    %v1484 = vrot.slane %v96, 2
    %v1485 = vrot.slane %v97, 2
    %v1486 = vsel %vm1385, %v1484, %v1485
    %v1487 = vrot.slane %v98, 2
    %v1488 = vsel %vm1385, %v1485, %v1487
    %v1489 = vrot.slane %v99, 2
    %v1490 = vsel %vm1385, %v1487, %v1489
    %v1491 = vrot.slane %v100, 2
    %v1492 = vrot.slane %v101, 2
    %v1493 = vsel %vm1385, %v1491, %v1492
    %v1494 = vrot.slane %v102, 2
    %v1495 = vsel %vm1385, %v1492, %v1494
    %v1496 = vrot.slane %v103, 2
    %v1497 = vsel %vm1385, %v1494, %v1496
    %v1498 = vrot.slane %v104, 2
    %v1499 = vrot.slane %v105, 2
    %v1500 = vsel %vm1385, %v1498, %v1499
    %v1501 = vrot.slane %v106, 2
    %v1502 = vsel %vm1385, %v1499, %v1501
    %v1503 = vrot.slane %v107, 2
    %v1504 = vsel %vm1385, %v1501, %v1503
    %v1505 = vrot.slane %v108, 2
    %v1506 = vrot.slane %v109, 2
    %v1507 = vsel %vm1385, %v1505, %v1506
    %v1508 = vrot.slane %v110, 2
    %v1509 = vsel %vm1385, %v1506, %v1508
    %v1510 = vrot.slane %v111, 2
    %v1511 = vsel %vm1385, %v1508, %v1510
    %v1512 = vrot.slane %v112, 2
    %v1513 = vrot.slane %v113, 2
    %v1514 = vsel %vm1385, %v1512, %v1513
    %v1515 = vrot.slane %v114, 2
    %v1516 = vsel %vm1385, %v1513, %v1515
    %v1517 = vrot.slane %v115, 2
    %v1518 = vsel %vm1385, %v1515, %v1517
    %v1519 = vrot.slane %v116, 2
    %v1520 = vrot.slane %v117, 2
    %v1521 = vsel %vm1385, %v1519, %v1520
    %v1522 = vrot.slane %v118, 2
    %v1523 = vsel %vm1385, %v1520, %v1522
    %v1524 = vrot.slane %v119, 2
    %v1525 = vsel %vm1385, %v1522, %v1524
    %v1526 = vrot.slane %v120, 2
    %v1527 = vrot.slane %v121, 2
    %v1528 = vsel %vm1385, %v1526, %v1527
    %v1529 = vrot.slane %v122, 2
    %v1530 = vsel %vm1385, %v1527, %v1529
    %v1531 = vrot.slane %v123, 2
    %v1532 = vsel %vm1385, %v1529, %v1531
    %v1533 = vrot.slane %v124, 2
    %v1534 = vrot.slane %v125, 2
    %v1535 = vsel %vm1385, %v1533, %v1534
    %v1536 = vrot.slane %v126, 2
    %v1537 = vsel %vm1385, %v1534, %v1536
    %v1538 = vrot.slane %v127, 2
    %v1539 = vsel %vm1385, %v1536, %v1538
    %v1540 = vrot.slane %v128, 2
    %v1541 = vrot.slane %v129, 2
    %v1542 = vsel %vm1385, %v1540, %v1541
    %v1543 = vrot.slane %v130, 2
    %v1544 = vsel %vm1385, %v1541, %v1543
    %v1545 = vrot.slane %v131, 2
    %v1546 = vsel %vm1385, %v1543, %v1545
    %v1547 = vrot.slane %v132, 2
    %v1548 = vrot.slane %v133, 2
    %v1549 = vsel %vm1385, %v1547, %v1548
    %v1550 = vrot.slane %v134, 2
    %v1551 = vsel %vm1385, %v1548, %v1550
    %v1552 = vrot.slane %v135, 2
    %v1553 = vsel %vm1385, %v1550, %v1552
    %v1554 = vrot.slane %v136, 2
    %v1555 = vrot.slane %v137, 2
    %v1556 = vsel %vm1385, %v1554, %v1555
    %v1557 = vrot.slane %v138, 2
    %v1558 = vsel %vm1385, %v1555, %v1557
    %v1559 = vrot.slane %v139, 2
    %v1560 = vsel %vm1385, %v1557, %v1559
    %v1561 = vrot.slane %v140, 2
    %v1562 = vrot.slane %v141, 2
    %v1563 = vsel %vm1385, %v1561, %v1562
    %v1564 = vrot.slane %v142, 2
    %v1565 = vsel %vm1385, %v1562, %v1564
    %v1566 = vrot.slane %v143, 2
    %v1567 = vsel %vm1385, %v1564, %v1566
    %v1568 = vrot.slane %v144, 2
    %v1569 = vrot.slane %v145, 2
    %v1570 = vsel %vm1385, %v1568, %v1569
    %v1571 = vrot.slane %v146, 2
    %v1572 = vsel %vm1385, %v1569, %v1571
    %v1573 = vrot.slane %v147, 2
    %v1574 = vsel %vm1385, %v1571, %v1573
    %v1575 = vrot.slane %v148, 2
    %v1576 = vrot.slane %v149, 2
    %v1577 = vsel %vm1385, %v1575, %v1576
    %v1578 = vrot.slane %v150, 2
    %v1579 = vsel %vm1385, %v1576, %v1578
    %v1580 = vrot.slane %v151, 2
    %v1581 = vsel %vm1385, %v1578, %v1580
    %v1582 = vrot.slane %v152, 2
    %v1583 = vrot.slane %v153, 2
    %v1584 = vsel %vm1385, %v1582, %v1583
    %v1585 = vrot.slane %v154, 2
    %v1586 = vsel %vm1385, %v1583, %v1585
    %v1587 = vrot.slane %v155, 2
    %v1588 = vsel %vm1385, %v1585, %v1587
    %v1589 = vrot.slane %v156, 2
    %v1590 = vrot.slane %v157, 2
    %v1591 = vsel %vm1385, %v1589, %v1590
    %v1592 = vrot.slane %v158, 2
    %v1593 = vsel %vm1385, %v1590, %v1592
    %v1594 = vrot.slane %v159, 2
    %v1595 = vsel %vm1385, %v1592, %v1594
    %v1596 = vrot.slane %v160, 2
    %v1597 = vrot.slane %v161, 2
    %v1598 = vsel %vm1385, %v1596, %v1597
    %v1599 = vrot.slane %v162, 2
    %v1600 = vsel %vm1385, %v1597, %v1599
    %v1601 = vrot.slane %v163, 2
    %v1602 = vsel %vm1385, %v1599, %v1601
    %v1603 = vrot.slane %v164, 2
    %v1604 = vrot.slane %v165, 2
    %v1605 = vsel %vm1385, %v1603, %v1604
    %v1606 = vrot.slane %v166, 2
    %v1607 = vsel %vm1385, %v1604, %v1606
    %v1608 = vrot.slane %v167, 2
    %v1609 = vsel %vm1385, %v1606, %v1608
    %v1610 = vrot.slane %v168, 2
    %v1611 = vrot.slane %v169, 2
    %v1612 = vsel %vm1385, %v1610, %v1611
    %v1613 = vrot.slane %v170, 2
    %v1614 = vsel %vm1385, %v1611, %v1613
    %v1615 = vrot.slane %v171, 2
    %v1616 = vsel %vm1385, %v1613, %v1615
    %v1617 = vrot.slane %v172, 2
    %v1618 = vrot.slane %v173, 2
    %v1619 = vsel %vm1385, %v1617, %v1618
    %v1620 = vrot.slane %v174, 2
    %v1621 = vsel %vm1385, %v1618, %v1620
    %v1622 = vrot.slane %v175, 2
    %v1623 = vsel %vm1385, %v1620, %v1622
    %v1624 = vrot.slane %v176, 2
    %v1625 = vrot.slane %v177, 2
    %v1626 = vsel %vm1385, %v1624, %v1625
    %v1627 = vrot.slane %v178, 2
    %v1628 = vsel %vm1385, %v1625, %v1627
    %v1629 = vrot.slane %v179, 2
    %v1630 = vsel %vm1385, %v1627, %v1629
    %v1631 = vrot.slane %v180, 2
    %v1632 = vrot.slane %v181, 2
    %v1633 = vsel %vm1385, %v1631, %v1632
    %v1634 = vrot.slane %v182, 2
    %v1635 = vsel %vm1385, %v1632, %v1634
    %v1636 = vrot.slane %v183, 2
    %v1637 = vsel %vm1385, %v1634, %v1636
    %v1638 = vrot.slane %v184, 2
    %v1639 = vrot.slane %v185, 2
    %v1640 = vsel %vm1385, %v1638, %v1639
    %v1641 = vrot.slane %v186, 2
    %v1642 = vsel %vm1385, %v1639, %v1641
    %v1643 = vrot.slane %v187, 2
    %v1644 = vsel %vm1385, %v1641, %v1643
    %v1645 = vrot.slane %v188, 2
    %v1646 = vrot.slane %v189, 2
    %v1647 = vsel %vm1385, %v1645, %v1646
    %v1648 = vrot.slane %v190, 2
    %v1649 = vsel %vm1385, %v1646, %v1648
    %v1650 = vrot.slane %v191, 2
    %v1651 = vsel %vm1385, %v1648, %v1650
    %v1652 = vrot.slane %v192, 2
    %v1653 = vrot.slane %v193, 2
    %v1654 = vsel %vm1385, %v1652, %v1653
    %v1655 = vrot.slane %v194, 2
    %v1656 = vsel %vm1385, %v1653, %v1655
    %v1657 = vrot.slane %v195, 2
    %v1658 = vsel %vm1385, %v1655, %v1657
    %v1659 = vrot.slane %v196, 2
    %v1660 = vrot.slane %v197, 2
    %v1661 = vsel %vm1385, %v1659, %v1660
    %v1662 = vrot.slane %v198, 2
    %v1663 = vsel %vm1385, %v1660, %v1662
    %v1664 = vrot.slane %v199, 2
    %v1665 = vsel %vm1385, %v1662, %v1664
    %v1666 = vrot.slane %v200, 2
    %v1667 = vrot.slane %v201, 2
    %v1668 = vsel %vm1385, %v1666, %v1667
    %v1669 = vrot.slane %v202, 2
    %v1670 = vsel %vm1385, %v1667, %v1669
    %v1671 = vrot.slane %v203, 2
    %v1672 = vsel %vm1385, %v1669, %v1671
    %v1673 = vrot.slane %v204, 2
    %v1674 = vrot.slane %v205, 2
    %v1675 = vsel %vm1385, %v1673, %v1674
    %v1676 = vrot.slane %v206, 2
    %v1677 = vsel %vm1385, %v1674, %v1676
    %v1678 = vrot.slane %v207, 2
    %v1679 = vsel %vm1385, %v1676, %v1678
    %v1680 = vrot.slane %v208, 2
    %v1681 = vrot.slane %v209, 2
    %v1682 = vsel %vm1385, %v1680, %v1681
    %v1683 = vrot.slane %v210, 2
    %v1684 = vsel %vm1385, %v1681, %v1683
    %v1685 = vrot.slane %v211, 2
    %v1686 = vsel %vm1385, %v1683, %v1685
    %v1687 = vrot.slane %v212, 2
    %v1688 = vrot.slane %v213, 2
    %v1689 = vsel %vm1385, %v1687, %v1688
    %v1690 = vrot.slane %v214, 2
    %v1691 = vsel %vm1385, %v1688, %v1690
    %v1692 = vrot.slane %v215, 2
    %v1693 = vsel %vm1385, %v1690, %v1692
    %v1694 = vrot.slane %v216, 2
    %v1695 = vrot.slane %v217, 2
    %v1696 = vsel %vm1385, %v1694, %v1695
    %v1697 = vrot.slane %v218, 2
    %v1698 = vsel %vm1385, %v1695, %v1697
    %v1699 = vrot.slane %v219, 2
    %v1700 = vsel %vm1385, %v1697, %v1699
    %v1701 = vrot.slane %v220, 2
    %v1702 = vrot.slane %v221, 2
    %v1703 = vsel %vm1385, %v1701, %v1702
    %v1704 = vrot.slane %v222, 2
    %v1705 = vsel %vm1385, %v1702, %v1704
    %v1706 = vrot.slane %v223, 2
    %v1707 = vsel %vm1385, %v1704, %v1706
    %v1708 = vrot.slane %v224, 2
    %v1709 = vrot.slane %v225, 2
    %v1710 = vsel %vm1385, %v1708, %v1709
    %v1711 = vrot.slane %v226, 2
    %v1712 = vsel %vm1385, %v1709, %v1711
    %v1713 = vrot.slane %v227, 2
    %v1714 = vsel %vm1385, %v1711, %v1713
    %v1715 = vrot.slane %v228, 2
    %v1716 = vrot.slane %v229, 2
    %v1717 = vsel %vm1385, %v1715, %v1716
    %v1718 = vrot.slane %v230, 2
    %v1719 = vsel %vm1385, %v1716, %v1718
    %v1720 = vrot.slane %v231, 2
    %v1721 = vsel %vm1385, %v1718, %v1720
    %v1722 = vrot.slane %v232, 2
    %v1723 = vrot.slane %v233, 2
    %v1724 = vsel %vm1385, %v1722, %v1723
    %v1725 = vrot.slane %v234, 2
    %v1726 = vsel %vm1385, %v1723, %v1725
    %v1727 = vrot.slane %v235, 2
    %v1728 = vsel %vm1385, %v1725, %v1727
    %v1729 = vrot.slane %v236, 2
    %v1730 = vrot.slane %v237, 2
    %v1731 = vsel %vm1385, %v1729, %v1730
    %v1732 = vrot.slane %v238, 2
    %v1733 = vsel %vm1385, %v1730, %v1732
    %v1734 = vrot.slane %v239, 2
    %v1735 = vsel %vm1385, %v1732, %v1734
    %v1736 = vrot.slane %v240, 2
    %v1737 = vrot.slane %v241, 2
    %v1738 = vsel %vm1385, %v1736, %v1737
    %v1739 = vrot.slane %v242, 2
    %v1740 = vsel %vm1385, %v1737, %v1739
    %v1741 = vrot.slane %v243, 2
    %v1742 = vsel %vm1385, %v1739, %v1741
    %v1743 = vrot.slane %v244, 2
    %v1744 = vrot.slane %v245, 2
    %v1745 = vsel %vm1385, %v1743, %v1744
    %v1746 = vrot.slane %v246, 2
    %v1747 = vsel %vm1385, %v1744, %v1746
    %v1748 = vrot.slane %v247, 2
    %v1749 = vsel %vm1385, %v1746, %v1748
    %v1750 = vrot.slane %v248, 2
    %v1751 = vrot.slane %v249, 2
    %v1752 = vsel %vm1385, %v1750, %v1751
    %v1753 = vrot.slane %v250, 2
    %v1754 = vsel %vm1385, %v1751, %v1753
    %v1755 = vrot.slane %v251, 2
    %v1756 = vsel %vm1385, %v1753, %v1755
    %v1757 = vrot.slane %v252, 2
    %v1758 = vrot.slane %v253, 2
    %v1759 = vsel %vm1385, %v1757, %v1758
    %v1760 = vrot.slane %v254, 2
    %v1761 = vsel %vm1385, %v1758, %v1760
    %v1762 = vrot.slane %v255, 2
    %v1763 = vsel %vm1385, %v1760, %v1762
    %v1764 = vrot.slane %v256, 2
    %v1765 = vrot.slane %v257, 2
    %v1766 = vsel %vm1385, %v1764, %v1765
    %v1767 = vrot.slane %v258, 2
    %v1768 = vsel %vm1385, %v1765, %v1767
    %v1769 = vrot.slane %v259, 2
    %v1770 = vsel %vm1385, %v1767, %v1769
    %v1771 = vrot.slane %v260, 2
    %v1772 = vrot.slane %v261, 2
    %v1773 = vsel %vm1385, %v1771, %v1772
    %v1774 = vrot.slane %v262, 2
    %v1775 = vsel %vm1385, %v1772, %v1774
    %v1776 = vrot.slane %v263, 2
    %v1777 = vsel %vm1385, %v1774, %v1776
    %1778 = vrot.lane.b32.xlu0 %v1388, 2
    %v1779 = vpop.permute.xlu0 %1778
    %1780 = vrot.lane.b32.xlu0 %v1390, 2
    %v1781 = vpop.permute.xlu0 %1780
    %1782 = vrot.lane.b32.xlu0 %v1392, 2
    %v1783 = vpop.permute.xlu0 %1782
    %1784 = vrot.lane.b32.xlu0 %v1395, 2
    %v1785 = vpop.permute.xlu0 %1784
    %1786 = vrot.lane.b32.xlu0 %v1397, 2
    %v1787 = vpop.permute.xlu0 %1786
    %1788 = vrot.lane.b32.xlu0 %v1399, 2
    %v1789 = vpop.permute.xlu0 %1788
    %1790 = vrot.lane.b32.xlu0 %v1402, 2
    %v1791 = vpop.permute.xlu0 %1790
    %1792 = vrot.lane.b32.xlu0 %v1404, 2
    %v1793 = vpop.permute.xlu0 %1792
    %1794 = vrot.lane.b32.xlu0 %v1406, 2
    %v1795 = vpop.permute.xlu0 %1794
    %1796 = vrot.lane.b32.xlu0 %v1409, 2
    %v1797 = vpop.permute.xlu0 %1796
    %1798 = vrot.lane.b32.xlu0 %v1411, 2
    %v1799 = vpop.permute.xlu0 %1798
    %1800 = vrot.lane.b32.xlu0 %v1413, 2
    %v1801 = vpop.permute.xlu0 %1800
    %1802 = vrot.lane.b32.xlu0 %v1416, 2
    %v1803 = vpop.permute.xlu0 %1802
    %1804 = vrot.lane.b32.xlu0 %v1418, 2
    %v1805 = vpop.permute.xlu0 %1804
    %1806 = vrot.lane.b32.xlu0 %v1420, 2
    %v1807 = vpop.permute.xlu0 %1806
    %1808 = vrot.lane.b32.xlu0 %v1423, 2
    %v1809 = vpop.permute.xlu0 %1808
    %1810 = vrot.lane.b32.xlu0 %v1425, 2
    %v1811 = vpop.permute.xlu0 %1810
    %1812 = vrot.lane.b32.xlu0 %v1427, 2
    %v1813 = vpop.permute.xlu0 %1812
    %1814 = vrot.lane.b32.xlu0 %v1430, 2
    %v1815 = vpop.permute.xlu0 %1814
    %1816 = vrot.lane.b32.xlu0 %v1432, 2
    %v1817 = vpop.permute.xlu0 %1816
    %1818 = vrot.lane.b32.xlu0 %v1434, 2
    %v1819 = vpop.permute.xlu0 %1818
    %1820 = vrot.lane.b32.xlu0 %v1437, 2
    %v1821 = vpop.permute.xlu0 %1820
    %1822 = vrot.lane.b32.xlu0 %v1439, 2
    %v1823 = vpop.permute.xlu0 %1822
    %1824 = vrot.lane.b32.xlu0 %v1441, 2
    %v1825 = vpop.permute.xlu0 %1824
    %1826 = vrot.lane.b32.xlu0 %v1444, 2
    %v1827 = vpop.permute.xlu0 %1826
    %1828 = vrot.lane.b32.xlu0 %v1446, 2
    %v1829 = vpop.permute.xlu0 %1828
    %1830 = vrot.lane.b32.xlu0 %v1448, 2
    %v1831 = vpop.permute.xlu0 %1830
    %1832 = vrot.lane.b32.xlu0 %v1451, 2
    %v1833 = vpop.permute.xlu0 %1832
    %1834 = vrot.lane.b32.xlu0 %v1453, 2
    %v1835 = vpop.permute.xlu0 %1834
    %1836 = vrot.lane.b32.xlu0 %v1455, 2
    %v1837 = vpop.permute.xlu0 %1836
    %1838 = vrot.lane.b32.xlu0 %v1458, 2
    %v1839 = vpop.permute.xlu0 %1838
    %1840 = vrot.lane.b32.xlu0 %v1460, 2
    %v1841 = vpop.permute.xlu0 %1840
    %1842 = vrot.lane.b32.xlu0 %v1462, 2
    %v1843 = vpop.permute.xlu0 %1842
    %1844 = vrot.lane.b32.xlu0 %v1465, 2
    %v1845 = vpop.permute.xlu0 %1844
    %1846 = vrot.lane.b32.xlu0 %v1467, 2
    %v1847 = vpop.permute.xlu0 %1846
    %1848 = vrot.lane.b32.xlu0 %v1469, 2
    %v1849 = vpop.permute.xlu0 %1848
    %1850 = vrot.lane.b32.xlu0 %v1472, 2
    %v1851 = vpop.permute.xlu0 %1850
    %1852 = vrot.lane.b32.xlu0 %v1474, 2
    %v1853 = vpop.permute.xlu0 %1852
    %1854 = vrot.lane.b32.xlu0 %v1476, 2
    %v1855 = vpop.permute.xlu0 %1854
    %1856 = vrot.lane.b32.xlu0 %v1479, 2
    %v1857 = vpop.permute.xlu0 %1856
    %1858 = vrot.lane.b32.xlu0 %v1481, 2
    %v1859 = vpop.permute.xlu0 %1858
    %1860 = vrot.lane.b32.xlu0 %v1483, 2
    %v1861 = vpop.permute.xlu0 %1860
    %1862 = vrot.lane.b32.xlu0 %v1486, 2
    %v1863 = vpop.permute.xlu0 %1862
    %1864 = vrot.lane.b32.xlu0 %v1488, 2
    %v1865 = vpop.permute.xlu0 %1864
    %1866 = vrot.lane.b32.xlu0 %v1490, 2
    %v1867 = vpop.permute.xlu0 %1866
    %1868 = vrot.lane.b32.xlu0 %v1493, 2
    %v1869 = vpop.permute.xlu0 %1868
    %1870 = vrot.lane.b32.xlu0 %v1495, 2
    %v1871 = vpop.permute.xlu0 %1870
    %1872 = vrot.lane.b32.xlu0 %v1497, 2
    %v1873 = vpop.permute.xlu0 %1872
    %1874 = vrot.lane.b32.xlu0 %v1500, 2
    %v1875 = vpop.permute.xlu0 %1874
    %1876 = vrot.lane.b32.xlu0 %v1502, 2
    %v1877 = vpop.permute.xlu0 %1876
    %1878 = vrot.lane.b32.xlu0 %v1504, 2
    %v1879 = vpop.permute.xlu0 %1878
    %1880 = vrot.lane.b32.xlu0 %v1507, 2
    %v1881 = vpop.permute.xlu0 %1880
    %1882 = vrot.lane.b32.xlu0 %v1509, 2
    %v1883 = vpop.permute.xlu0 %1882
    %1884 = vrot.lane.b32.xlu0 %v1511, 2
    %v1885 = vpop.permute.xlu0 %1884
    %1886 = vrot.lane.b32.xlu0 %v1514, 2
    %v1887 = vpop.permute.xlu0 %1886
    %1888 = vrot.lane.b32.xlu0 %v1516, 2
    %v1889 = vpop.permute.xlu0 %1888
    %1890 = vrot.lane.b32.xlu0 %v1518, 2
    %v1891 = vpop.permute.xlu0 %1890
    %1892 = vrot.lane.b32.xlu0 %v1521, 2
    %v1893 = vpop.permute.xlu0 %1892
    %1894 = vrot.lane.b32.xlu0 %v1523, 2
    %v1895 = vpop.permute.xlu0 %1894
    %1896 = vrot.lane.b32.xlu0 %v1525, 2
    %v1897 = vpop.permute.xlu0 %1896
    %1898 = vrot.lane.b32.xlu0 %v1528, 2
    %v1899 = vpop.permute.xlu0 %1898
    %1900 = vrot.lane.b32.xlu0 %v1530, 2
    %v1901 = vpop.permute.xlu0 %1900
    %1902 = vrot.lane.b32.xlu0 %v1532, 2
    %v1903 = vpop.permute.xlu0 %1902
    %1904 = vrot.lane.b32.xlu0 %v1535, 2
    %v1905 = vpop.permute.xlu0 %1904
    %1906 = vrot.lane.b32.xlu0 %v1537, 2
    %v1907 = vpop.permute.xlu0 %1906
    %1908 = vrot.lane.b32.xlu0 %v1539, 2
    %v1909 = vpop.permute.xlu0 %1908
    %1910 = vrot.lane.b32.xlu0 %v1542, 2
    %v1911 = vpop.permute.xlu0 %1910
    %1912 = vrot.lane.b32.xlu0 %v1544, 2
    %v1913 = vpop.permute.xlu0 %1912
    %1914 = vrot.lane.b32.xlu0 %v1546, 2
    %v1915 = vpop.permute.xlu0 %1914
    %1916 = vrot.lane.b32.xlu0 %v1549, 2
    %v1917 = vpop.permute.xlu0 %1916
    %1918 = vrot.lane.b32.xlu0 %v1551, 2
    %v1919 = vpop.permute.xlu0 %1918
    %1920 = vrot.lane.b32.xlu0 %v1553, 2
    %v1921 = vpop.permute.xlu0 %1920
    %1922 = vrot.lane.b32.xlu0 %v1556, 2
    %v1923 = vpop.permute.xlu0 %1922
    %1924 = vrot.lane.b32.xlu0 %v1558, 2
    %v1925 = vpop.permute.xlu0 %1924
    %1926 = vrot.lane.b32.xlu0 %v1560, 2
    %v1927 = vpop.permute.xlu0 %1926
    %1928 = vrot.lane.b32.xlu0 %v1563, 2
    %v1929 = vpop.permute.xlu0 %1928
    %1930 = vrot.lane.b32.xlu0 %v1565, 2
    %v1931 = vpop.permute.xlu0 %1930
    %1932 = vrot.lane.b32.xlu0 %v1567, 2
    %v1933 = vpop.permute.xlu0 %1932
    %1934 = vrot.lane.b32.xlu0 %v1570, 2
    %v1935 = vpop.permute.xlu0 %1934
    %1936 = vrot.lane.b32.xlu0 %v1572, 2
    %v1937 = vpop.permute.xlu0 %1936
    %1938 = vrot.lane.b32.xlu0 %v1574, 2
    %v1939 = vpop.permute.xlu0 %1938
    %1940 = vrot.lane.b32.xlu0 %v1577, 2
    %v1941 = vpop.permute.xlu0 %1940
    %1942 = vrot.lane.b32.xlu0 %v1579, 2
    %v1943 = vpop.permute.xlu0 %1942
    %1944 = vrot.lane.b32.xlu0 %v1581, 2
    %v1945 = vpop.permute.xlu0 %1944
    %1946 = vrot.lane.b32.xlu0 %v1584, 2
    %v1947 = vpop.permute.xlu0 %1946
    %1948 = vrot.lane.b32.xlu0 %v1586, 2
    %v1949 = vpop.permute.xlu0 %1948
    %1950 = vrot.lane.b32.xlu0 %v1588, 2
    %v1951 = vpop.permute.xlu0 %1950
    %1952 = vrot.lane.b32.xlu0 %v1591, 2
    %v1953 = vpop.permute.xlu0 %1952
    %1954 = vrot.lane.b32.xlu0 %v1593, 2
    %v1955 = vpop.permute.xlu0 %1954
    %1956 = vrot.lane.b32.xlu0 %v1595, 2
    %v1957 = vpop.permute.xlu0 %1956
    %1958 = vrot.lane.b32.xlu0 %v1598, 2
    %v1959 = vpop.permute.xlu0 %1958
    %1960 = vrot.lane.b32.xlu0 %v1600, 2
    %v1961 = vpop.permute.xlu0 %1960
    %1962 = vrot.lane.b32.xlu0 %v1602, 2
    %v1963 = vpop.permute.xlu0 %1962
    %1964 = vrot.lane.b32.xlu0 %v1605, 2
    %v1965 = vpop.permute.xlu0 %1964
    %1966 = vrot.lane.b32.xlu0 %v1607, 2
    %v1967 = vpop.permute.xlu0 %1966
    %1968 = vrot.lane.b32.xlu0 %v1609, 2
    %v1969 = vpop.permute.xlu0 %1968
    %1970 = vrot.lane.b32.xlu0 %v1612, 2
    %v1971 = vpop.permute.xlu0 %1970
    %1972 = vrot.lane.b32.xlu0 %v1614, 2
    %v1973 = vpop.permute.xlu0 %1972
    %1974 = vrot.lane.b32.xlu0 %v1616, 2
    %v1975 = vpop.permute.xlu0 %1974
    %1976 = vrot.lane.b32.xlu0 %v1619, 2
    %v1977 = vpop.permute.xlu0 %1976
    %1978 = vrot.lane.b32.xlu0 %v1621, 2
    %v1979 = vpop.permute.xlu0 %1978
    %1980 = vrot.lane.b32.xlu0 %v1623, 2
    %v1981 = vpop.permute.xlu0 %1980
    %1982 = vrot.lane.b32.xlu0 %v1626, 2
    %v1983 = vpop.permute.xlu0 %1982
    %1984 = vrot.lane.b32.xlu0 %v1628, 2
    %v1985 = vpop.permute.xlu0 %1984
    %1986 = vrot.lane.b32.xlu0 %v1630, 2
    %v1987 = vpop.permute.xlu0 %1986
    %1988 = vrot.lane.b32.xlu0 %v1633, 2
    %v1989 = vpop.permute.xlu0 %1988
    %1990 = vrot.lane.b32.xlu0 %v1635, 2
    %v1991 = vpop.permute.xlu0 %1990
    %1992 = vrot.lane.b32.xlu0 %v1637, 2
    %v1993 = vpop.permute.xlu0 %1992
    %1994 = vrot.lane.b32.xlu0 %v1640, 2
    %v1995 = vpop.permute.xlu0 %1994
    %1996 = vrot.lane.b32.xlu0 %v1642, 2
    %v1997 = vpop.permute.xlu0 %1996
    %1998 = vrot.lane.b32.xlu0 %v1644, 2
    %v1999 = vpop.permute.xlu0 %1998
    %2000 = vrot.lane.b32.xlu0 %v1647, 2
    %v2001 = vpop.permute.xlu0 %2000
    %2002 = vrot.lane.b32.xlu0 %v1649, 2
    %v2003 = vpop.permute.xlu0 %2002
    %2004 = vrot.lane.b32.xlu0 %v1651, 2
    %v2005 = vpop.permute.xlu0 %2004
    %2006 = vrot.lane.b32.xlu0 %v1654, 2
    %v2007 = vpop.permute.xlu0 %2006
    %2008 = vrot.lane.b32.xlu0 %v1656, 2
    %v2009 = vpop.permute.xlu0 %2008
    %2010 = vrot.lane.b32.xlu0 %v1658, 2
    %v2011 = vpop.permute.xlu0 %2010
    %2012 = vrot.lane.b32.xlu0 %v1661, 2
    %v2013 = vpop.permute.xlu0 %2012
    %2014 = vrot.lane.b32.xlu0 %v1663, 2
    %v2015 = vpop.permute.xlu0 %2014
    %2016 = vrot.lane.b32.xlu0 %v1665, 2
    %v2017 = vpop.permute.xlu0 %2016
    %2018 = vrot.lane.b32.xlu0 %v1668, 2
    %v2019 = vpop.permute.xlu0 %2018
    %2020 = vrot.lane.b32.xlu0 %v1670, 2
    %v2021 = vpop.permute.xlu0 %2020
    %2022 = vrot.lane.b32.xlu0 %v1672, 2
    %v2023 = vpop.permute.xlu0 %2022
    %2024 = vrot.lane.b32.xlu0 %v1675, 2
    %v2025 = vpop.permute.xlu0 %2024
    %2026 = vrot.lane.b32.xlu0 %v1677, 2
    %v2027 = vpop.permute.xlu0 %2026
    %2028 = vrot.lane.b32.xlu0 %v1679, 2
    %v2029 = vpop.permute.xlu0 %2028
    %2030 = vrot.lane.b32.xlu0 %v1682, 2
    %v2031 = vpop.permute.xlu0 %2030
    %2032 = vrot.lane.b32.xlu0 %v1684, 2
    %v2033 = vpop.permute.xlu0 %2032
    %2034 = vrot.lane.b32.xlu0 %v1686, 2
    %v2035 = vpop.permute.xlu0 %2034
    %2036 = vrot.lane.b32.xlu0 %v1689, 2
    %v2037 = vpop.permute.xlu0 %2036
    %2038 = vrot.lane.b32.xlu0 %v1691, 2
    %v2039 = vpop.permute.xlu0 %2038
    %2040 = vrot.lane.b32.xlu0 %v1693, 2
    %v2041 = vpop.permute.xlu0 %2040
    %2042 = vrot.lane.b32.xlu0 %v1696, 2
    %v2043 = vpop.permute.xlu0 %2042
    %2044 = vrot.lane.b32.xlu0 %v1698, 2
    %v2045 = vpop.permute.xlu0 %2044
    %2046 = vrot.lane.b32.xlu0 %v1700, 2
    %v2047 = vpop.permute.xlu0 %2046
    %2048 = vrot.lane.b32.xlu0 %v1703, 2
    %v2049 = vpop.permute.xlu0 %2048
    %2050 = vrot.lane.b32.xlu0 %v1705, 2
    %v2051 = vpop.permute.xlu0 %2050
    %2052 = vrot.lane.b32.xlu0 %v1707, 2
    %v2053 = vpop.permute.xlu0 %2052
    %2054 = vrot.lane.b32.xlu0 %v1710, 2
    %v2055 = vpop.permute.xlu0 %2054
    %2056 = vrot.lane.b32.xlu0 %v1712, 2
    %v2057 = vpop.permute.xlu0 %2056
    %2058 = vrot.lane.b32.xlu0 %v1714, 2
    %v2059 = vpop.permute.xlu0 %2058
    %2060 = vrot.lane.b32.xlu0 %v1717, 2
    %v2061 = vpop.permute.xlu0 %2060
    %2062 = vrot.lane.b32.xlu0 %v1719, 2
    %v2063 = vpop.permute.xlu0 %2062
    %2064 = vrot.lane.b32.xlu0 %v1721, 2
    %v2065 = vpop.permute.xlu0 %2064
    %2066 = vrot.lane.b32.xlu0 %v1724, 2
    %v2067 = vpop.permute.xlu0 %2066
    %2068 = vrot.lane.b32.xlu0 %v1726, 2
    %v2069 = vpop.permute.xlu0 %2068
    %2070 = vrot.lane.b32.xlu0 %v1728, 2
    %v2071 = vpop.permute.xlu0 %2070
    %2072 = vrot.lane.b32.xlu0 %v1731, 2
    %v2073 = vpop.permute.xlu0 %2072
    %2074 = vrot.lane.b32.xlu0 %v1733, 2
    %v2075 = vpop.permute.xlu0 %2074
    %2076 = vrot.lane.b32.xlu0 %v1735, 2
    %v2077 = vpop.permute.xlu0 %2076
    %2078 = vrot.lane.b32.xlu0 %v1738, 2
    %v2079 = vpop.permute.xlu0 %2078
    %2080 = vrot.lane.b32.xlu0 %v1740, 2
    %v2081 = vpop.permute.xlu0 %2080
    %2082 = vrot.lane.b32.xlu0 %v1742, 2
    %v2083 = vpop.permute.xlu0 %2082
    %2084 = vrot.lane.b32.xlu0 %v1745, 2
    %v2085 = vpop.permute.xlu0 %2084
    %2086 = vrot.lane.b32.xlu0 %v1747, 2
    %v2087 = vpop.permute.xlu0 %2086
    %2088 = vrot.lane.b32.xlu0 %v1749, 2
    %v2089 = vpop.permute.xlu0 %2088
    %2090 = vrot.lane.b32.xlu0 %v1752, 2
    %v2091 = vpop.permute.xlu0 %2090
    %2092 = vrot.lane.b32.xlu0 %v1754, 2
    %v2093 = vpop.permute.xlu0 %2092
    %2094 = vrot.lane.b32.xlu0 %v1756, 2
    %v2095 = vpop.permute.xlu0 %2094
    %2096 = vrot.lane.b32.xlu0 %v1759, 2
    %v2097 = vpop.permute.xlu0 %2096
    %2098 = vrot.lane.b32.xlu0 %v1761, 2
    %v2099 = vpop.permute.xlu0 %2098
    %2100 = vrot.lane.b32.xlu0 %v1763, 2
    %v2101 = vpop.permute.xlu0 %2100
    %2102 = vrot.lane.b32.xlu0 %v1766, 2
    %v2103 = vpop.permute.xlu0 %2102
    %2104 = vrot.lane.b32.xlu0 %v1768, 2
    %v2105 = vpop.permute.xlu0 %2104
    %2106 = vrot.lane.b32.xlu0 %v1770, 2
    %v2107 = vpop.permute.xlu0 %2106
    %2108 = vrot.lane.b32.xlu0 %v1773, 2
    %v2109 = vpop.permute.xlu0 %2108
    %2110 = vrot.lane.b32.xlu0 %v1775, 2
    %v2111 = vpop.permute.xlu0 %2110
    %2112 = vrot.lane.b32.xlu0 %v1777, 2
    %v2113 = vpop.permute.xlu0 %2112
    %vm2282 = vcmask 1044480
    %v2283 = vrot.slane %v40, 3
    %v2284 = vrot.slane %v41, 3
    %v2285 = vsel %vm2282, %v2283, %v2284
    %v2286 = vrot.slane %v42, 3
    %v2287 = vsel %vm2282, %v2284, %v2286
    %v2288 = vrot.slane %v43, 3
    %v2289 = vsel %vm2282, %v2286, %v2288
    %v2290 = vrot.slane %v44, 3
    %v2291 = vrot.slane %v45, 3
    %v2292 = vsel %vm2282, %v2290, %v2291
    %v2293 = vrot.slane %v46, 3
    %v2294 = vsel %vm2282, %v2291, %v2293
    %v2295 = vrot.slane %v47, 3
    %v2296 = vsel %vm2282, %v2293, %v2295
    %v2297 = vrot.slane %v48, 3
    %v2298 = vrot.slane %v49, 3
    %v2299 = vsel %vm2282, %v2297, %v2298
    %v2300 = vrot.slane %v50, 3
    %v2301 = vsel %vm2282, %v2298, %v2300
    %v2302 = vrot.slane %v51, 3
    %v2303 = vsel %vm2282, %v2300, %v2302
    %v2304 = vrot.slane %v52, 3
    %v2305 = vrot.slane %v53, 3
    %v2306 = vsel %vm2282, %v2304, %v2305
    %v2307 = vrot.slane %v54, 3
    %v2308 = vsel %vm2282, %v2305, %v2307
    %v2309 = vrot.slane %v55, 3
    %v2310 = vsel %vm2282, %v2307, %v2309
    %v2311 = vrot.slane %v56, 3
    %v2312 = vrot.slane %v57, 3
    %v2313 = vsel %vm2282, %v2311, %v2312
    %v2314 = vrot.slane %v58, 3
    %v2315 = vsel %vm2282, %v2312, %v2314
    %v2316 = vrot.slane %v59, 3
    %v2317 = vsel %vm2282, %v2314, %v2316
    %v2318 = vrot.slane %v60, 3
    %v2319 = vrot.slane %v61, 3
    %v2320 = vsel %vm2282, %v2318, %v2319
    %v2321 = vrot.slane %v62, 3
    %v2322 = vsel %vm2282, %v2319, %v2321
    %v2323 = vrot.slane %v63, 3
    %v2324 = vsel %vm2282, %v2321, %v2323
    %v2325 = vrot.slane %v64, 3
    %v2326 = vrot.slane %v65, 3
    %v2327 = vsel %vm2282, %v2325, %v2326
    %v2328 = vrot.slane %v66, 3
    %v2329 = vsel %vm2282, %v2326, %v2328
    %v2330 = vrot.slane %v67, 3
    %v2331 = vsel %vm2282, %v2328, %v2330
    %v2332 = vrot.slane %v68, 3
    %v2333 = vrot.slane %v69, 3
    %v2334 = vsel %vm2282, %v2332, %v2333
    %v2335 = vrot.slane %v70, 3
    %v2336 = vsel %vm2282, %v2333, %v2335
    %v2337 = vrot.slane %v71, 3
    %v2338 = vsel %vm2282, %v2335, %v2337
    %v2339 = vrot.slane %v72, 3
    %v2340 = vrot.slane %v73, 3
    %v2341 = vsel %vm2282, %v2339, %v2340
    %v2342 = vrot.slane %v74, 3
    %v2343 = vsel %vm2282, %v2340, %v2342
    %v2344 = vrot.slane %v75, 3
    %v2345 = vsel %vm2282, %v2342, %v2344
    %v2346 = vrot.slane %v76, 3
    %v2347 = vrot.slane %v77, 3
    %v2348 = vsel %vm2282, %v2346, %v2347
    %v2349 = vrot.slane %v78, 3
    %v2350 = vsel %vm2282, %v2347, %v2349
    %v2351 = vrot.slane %v79, 3
    %v2352 = vsel %vm2282, %v2349, %v2351
    %v2353 = vrot.slane %v80, 3
    %v2354 = vrot.slane %v81, 3
    %v2355 = vsel %vm2282, %v2353, %v2354
    %v2356 = vrot.slane %v82, 3
    %v2357 = vsel %vm2282, %v2354, %v2356
    %v2358 = vrot.slane %v83, 3
    %v2359 = vsel %vm2282, %v2356, %v2358
    %v2360 = vrot.slane %v84, 3
    %v2361 = vrot.slane %v85, 3
    %v2362 = vsel %vm2282, %v2360, %v2361
    %v2363 = vrot.slane %v86, 3
    %v2364 = vsel %vm2282, %v2361, %v2363
    %v2365 = vrot.slane %v87, 3
    %v2366 = vsel %vm2282, %v2363, %v2365
    %v2367 = vrot.slane %v88, 3
    %v2368 = vrot.slane %v89, 3
    %v2369 = vsel %vm2282, %v2367, %v2368
    %v2370 = vrot.slane %v90, 3
    %v2371 = vsel %vm2282, %v2368, %v2370
    %v2372 = vrot.slane %v91, 3
    %v2373 = vsel %vm2282, %v2370, %v2372
    %v2374 = vrot.slane %v92, 3
    %v2375 = vrot.slane %v93, 3
    %v2376 = vsel %vm2282, %v2374, %v2375
    %v2377 = vrot.slane %v94, 3
    %v2378 = vsel %vm2282, %v2375, %v2377
    %v2379 = vrot.slane %v95, 3
    %v2380 = vsel %vm2282, %v2377, %v2379
    %v2381 = vrot.slane %v96, 3
    %v2382 = vrot.slane %v97, 3
    %v2383 = vsel %vm2282, %v2381, %v2382
    %v2384 = vrot.slane %v98, 3
    %v2385 = vsel %vm2282, %v2382, %v2384
    %v2386 = vrot.slane %v99, 3
    %v2387 = vsel %vm2282, %v2384, %v2386
    %v2388 = vrot.slane %v100, 3
    %v2389 = vrot.slane %v101, 3
    %v2390 = vsel %vm2282, %v2388, %v2389
    %v2391 = vrot.slane %v102, 3
    %v2392 = vsel %vm2282, %v2389, %v2391
    %v2393 = vrot.slane %v103, 3
    %v2394 = vsel %vm2282, %v2391, %v2393
    %v2395 = vrot.slane %v104, 3
    %v2396 = vrot.slane %v105, 3
    %v2397 = vsel %vm2282, %v2395, %v2396
    %v2398 = vrot.slane %v106, 3
    %v2399 = vsel %vm2282, %v2396, %v2398
    %v2400 = vrot.slane %v107, 3
    %v2401 = vsel %vm2282, %v2398, %v2400
    %v2402 = vrot.slane %v108, 3
    %v2403 = vrot.slane %v109, 3
    %v2404 = vsel %vm2282, %v2402, %v2403
    %v2405 = vrot.slane %v110, 3
    %v2406 = vsel %vm2282, %v2403, %v2405
    %v2407 = vrot.slane %v111, 3
    %v2408 = vsel %vm2282, %v2405, %v2407
    %v2409 = vrot.slane %v112, 3
    %v2410 = vrot.slane %v113, 3
    %v2411 = vsel %vm2282, %v2409, %v2410
    %v2412 = vrot.slane %v114, 3
    %v2413 = vsel %vm2282, %v2410, %v2412
    %v2414 = vrot.slane %v115, 3
    %v2415 = vsel %vm2282, %v2412, %v2414
    %v2416 = vrot.slane %v116, 3
    %v2417 = vrot.slane %v117, 3
    %v2418 = vsel %vm2282, %v2416, %v2417
    %v2419 = vrot.slane %v118, 3
    %v2420 = vsel %vm2282, %v2417, %v2419
    %v2421 = vrot.slane %v119, 3
    %v2422 = vsel %vm2282, %v2419, %v2421
    %v2423 = vrot.slane %v120, 3
    %v2424 = vrot.slane %v121, 3
    %v2425 = vsel %vm2282, %v2423, %v2424
    %v2426 = vrot.slane %v122, 3
    %v2427 = vsel %vm2282, %v2424, %v2426
    %v2428 = vrot.slane %v123, 3
    %v2429 = vsel %vm2282, %v2426, %v2428
    %v2430 = vrot.slane %v124, 3
    %v2431 = vrot.slane %v125, 3
    %v2432 = vsel %vm2282, %v2430, %v2431
    %v2433 = vrot.slane %v126, 3
    %v2434 = vsel %vm2282, %v2431, %v2433
    %v2435 = vrot.slane %v127, 3
    %v2436 = vsel %vm2282, %v2433, %v2435
    %v2437 = vrot.slane %v128, 3
    %v2438 = vrot.slane %v129, 3
    %v2439 = vsel %vm2282, %v2437, %v2438
    %v2440 = vrot.slane %v130, 3
    %v2441 = vsel %vm2282, %v2438, %v2440
    %v2442 = vrot.slane %v131, 3
    %v2443 = vsel %vm2282, %v2440, %v2442
    %v2444 = vrot.slane %v132, 3
    %v2445 = vrot.slane %v133, 3
    %v2446 = vsel %vm2282, %v2444, %v2445
    %v2447 = vrot.slane %v134, 3
    %v2448 = vsel %vm2282, %v2445, %v2447
    %v2449 = vrot.slane %v135, 3
    %v2450 = vsel %vm2282, %v2447, %v2449
    %v2451 = vrot.slane %v136, 3
    %v2452 = vrot.slane %v137, 3
    %v2453 = vsel %vm2282, %v2451, %v2452
    %v2454 = vrot.slane %v138, 3
    %v2455 = vsel %vm2282, %v2452, %v2454
    %v2456 = vrot.slane %v139, 3
    %v2457 = vsel %vm2282, %v2454, %v2456
    %v2458 = vrot.slane %v140, 3
    %v2459 = vrot.slane %v141, 3
    %v2460 = vsel %vm2282, %v2458, %v2459
    %v2461 = vrot.slane %v142, 3
    %v2462 = vsel %vm2282, %v2459, %v2461
    %v2463 = vrot.slane %v143, 3
    %v2464 = vsel %vm2282, %v2461, %v2463
    %v2465 = vrot.slane %v144, 3
    %v2466 = vrot.slane %v145, 3
    %v2467 = vsel %vm2282, %v2465, %v2466
    %v2468 = vrot.slane %v146, 3
    %v2469 = vsel %vm2282, %v2466, %v2468
    %v2470 = vrot.slane %v147, 3
    %v2471 = vsel %vm2282, %v2468, %v2470
    %v2472 = vrot.slane %v148, 3
    %v2473 = vrot.slane %v149, 3
    %v2474 = vsel %vm2282, %v2472, %v2473
    %v2475 = vrot.slane %v150, 3
    %v2476 = vsel %vm2282, %v2473, %v2475
    %v2477 = vrot.slane %v151, 3
    %v2478 = vsel %vm2282, %v2475, %v2477
    %v2479 = vrot.slane %v152, 3
    %v2480 = vrot.slane %v153, 3
    %v2481 = vsel %vm2282, %v2479, %v2480
    %v2482 = vrot.slane %v154, 3
    %v2483 = vsel %vm2282, %v2480, %v2482
    %v2484 = vrot.slane %v155, 3
    %v2485 = vsel %vm2282, %v2482, %v2484
    %v2486 = vrot.slane %v156, 3
    %v2487 = vrot.slane %v157, 3
    %v2488 = vsel %vm2282, %v2486, %v2487
    %v2489 = vrot.slane %v158, 3
    %v2490 = vsel %vm2282, %v2487, %v2489
    %v2491 = vrot.slane %v159, 3
    %v2492 = vsel %vm2282, %v2489, %v2491
    %v2493 = vrot.slane %v160, 3
    %v2494 = vrot.slane %v161, 3
    %v2495 = vsel %vm2282, %v2493, %v2494
    %v2496 = vrot.slane %v162, 3
    %v2497 = vsel %vm2282, %v2494, %v2496
    %v2498 = vrot.slane %v163, 3
    %v2499 = vsel %vm2282, %v2496, %v2498
    %v2500 = vrot.slane %v164, 3
    %v2501 = vrot.slane %v165, 3
    %v2502 = vsel %vm2282, %v2500, %v2501
    %v2503 = vrot.slane %v166, 3
    %v2504 = vsel %vm2282, %v2501, %v2503
    %v2505 = vrot.slane %v167, 3
    %v2506 = vsel %vm2282, %v2503, %v2505
    %v2507 = vrot.slane %v168, 3
    %v2508 = vrot.slane %v169, 3
    %v2509 = vsel %vm2282, %v2507, %v2508
    %v2510 = vrot.slane %v170, 3
    %v2511 = vsel %vm2282, %v2508, %v2510
    %v2512 = vrot.slane %v171, 3
    %v2513 = vsel %vm2282, %v2510, %v2512
    %v2514 = vrot.slane %v172, 3
    %v2515 = vrot.slane %v173, 3
    %v2516 = vsel %vm2282, %v2514, %v2515
    %v2517 = vrot.slane %v174, 3
    %v2518 = vsel %vm2282, %v2515, %v2517
    %v2519 = vrot.slane %v175, 3
    %v2520 = vsel %vm2282, %v2517, %v2519
    %v2521 = vrot.slane %v176, 3
    %v2522 = vrot.slane %v177, 3
    %v2523 = vsel %vm2282, %v2521, %v2522
    %v2524 = vrot.slane %v178, 3
    %v2525 = vsel %vm2282, %v2522, %v2524
    %v2526 = vrot.slane %v179, 3
    %v2527 = vsel %vm2282, %v2524, %v2526
    %v2528 = vrot.slane %v180, 3
    %v2529 = vrot.slane %v181, 3
    %v2530 = vsel %vm2282, %v2528, %v2529
    %v2531 = vrot.slane %v182, 3
    %v2532 = vsel %vm2282, %v2529, %v2531
    %v2533 = vrot.slane %v183, 3
    %v2534 = vsel %vm2282, %v2531, %v2533
    %v2535 = vrot.slane %v184, 3
    %v2536 = vrot.slane %v185, 3
    %v2537 = vsel %vm2282, %v2535, %v2536
    %v2538 = vrot.slane %v186, 3
    %v2539 = vsel %vm2282, %v2536, %v2538
    %v2540 = vrot.slane %v187, 3
    %v2541 = vsel %vm2282, %v2538, %v2540
    %v2542 = vrot.slane %v188, 3
    %v2543 = vrot.slane %v189, 3
    %v2544 = vsel %vm2282, %v2542, %v2543
    %v2545 = vrot.slane %v190, 3
    %v2546 = vsel %vm2282, %v2543, %v2545
    %v2547 = vrot.slane %v191, 3
    %v2548 = vsel %vm2282, %v2545, %v2547
    %v2549 = vrot.slane %v192, 3
    %v2550 = vrot.slane %v193, 3
    %v2551 = vsel %vm2282, %v2549, %v2550
    %v2552 = vrot.slane %v194, 3
    %v2553 = vsel %vm2282, %v2550, %v2552
    %v2554 = vrot.slane %v195, 3
    %v2555 = vsel %vm2282, %v2552, %v2554
    %v2556 = vrot.slane %v196, 3
    %v2557 = vrot.slane %v197, 3
    %v2558 = vsel %vm2282, %v2556, %v2557
    %v2559 = vrot.slane %v198, 3
    %v2560 = vsel %vm2282, %v2557, %v2559
    %v2561 = vrot.slane %v199, 3
    %v2562 = vsel %vm2282, %v2559, %v2561
    %v2563 = vrot.slane %v200, 3
    %v2564 = vrot.slane %v201, 3
    %v2565 = vsel %vm2282, %v2563, %v2564
    %v2566 = vrot.slane %v202, 3
    %v2567 = vsel %vm2282, %v2564, %v2566
    %v2568 = vrot.slane %v203, 3
    %v2569 = vsel %vm2282, %v2566, %v2568
    %v2570 = vrot.slane %v204, 3
    %v2571 = vrot.slane %v205, 3
    %v2572 = vsel %vm2282, %v2570, %v2571
    %v2573 = vrot.slane %v206, 3
    %v2574 = vsel %vm2282, %v2571, %v2573
    %v2575 = vrot.slane %v207, 3
    %v2576 = vsel %vm2282, %v2573, %v2575
    %v2577 = vrot.slane %v208, 3
    %v2578 = vrot.slane %v209, 3
    %v2579 = vsel %vm2282, %v2577, %v2578
    %v2580 = vrot.slane %v210, 3
    %v2581 = vsel %vm2282, %v2578, %v2580
    %v2582 = vrot.slane %v211, 3
    %v2583 = vsel %vm2282, %v2580, %v2582
    %v2584 = vrot.slane %v212, 3
    %v2585 = vrot.slane %v213, 3
    %v2586 = vsel %vm2282, %v2584, %v2585
    %v2587 = vrot.slane %v214, 3
    %v2588 = vsel %vm2282, %v2585, %v2587
    %v2589 = vrot.slane %v215, 3
    %v2590 = vsel %vm2282, %v2587, %v2589
    %v2591 = vrot.slane %v216, 3
    %v2592 = vrot.slane %v217, 3
    %v2593 = vsel %vm2282, %v2591, %v2592
    %v2594 = vrot.slane %v218, 3
    %v2595 = vsel %vm2282, %v2592, %v2594
    %v2596 = vrot.slane %v219, 3
    %v2597 = vsel %vm2282, %v2594, %v2596
    %v2598 = vrot.slane %v220, 3
    %v2599 = vrot.slane %v221, 3
    %v2600 = vsel %vm2282, %v2598, %v2599
    %v2601 = vrot.slane %v222, 3
    %v2602 = vsel %vm2282, %v2599, %v2601
    %v2603 = vrot.slane %v223, 3
    %v2604 = vsel %vm2282, %v2601, %v2603
    %v2605 = vrot.slane %v224, 3
    %v2606 = vrot.slane %v225, 3
    %v2607 = vsel %vm2282, %v2605, %v2606
    %v2608 = vrot.slane %v226, 3
    %v2609 = vsel %vm2282, %v2606, %v2608
    %v2610 = vrot.slane %v227, 3
    %v2611 = vsel %vm2282, %v2608, %v2610
    %v2612 = vrot.slane %v228, 3
    %v2613 = vrot.slane %v229, 3
    %v2614 = vsel %vm2282, %v2612, %v2613
    %v2615 = vrot.slane %v230, 3
    %v2616 = vsel %vm2282, %v2613, %v2615
    %v2617 = vrot.slane %v231, 3
    %v2618 = vsel %vm2282, %v2615, %v2617
    %v2619 = vrot.slane %v232, 3
    %v2620 = vrot.slane %v233, 3
    %v2621 = vsel %vm2282, %v2619, %v2620
    %v2622 = vrot.slane %v234, 3
    %v2623 = vsel %vm2282, %v2620, %v2622
    %v2624 = vrot.slane %v235, 3
    %v2625 = vsel %vm2282, %v2622, %v2624
    %v2626 = vrot.slane %v236, 3
    %v2627 = vrot.slane %v237, 3
    %v2628 = vsel %vm2282, %v2626, %v2627
    %v2629 = vrot.slane %v238, 3
    %v2630 = vsel %vm2282, %v2627, %v2629
    %v2631 = vrot.slane %v239, 3
    %v2632 = vsel %vm2282, %v2629, %v2631
    %v2633 = vrot.slane %v240, 3
    %v2634 = vrot.slane %v241, 3
    %v2635 = vsel %vm2282, %v2633, %v2634
    %v2636 = vrot.slane %v242, 3
    %v2637 = vsel %vm2282, %v2634, %v2636
    %v2638 = vrot.slane %v243, 3
    %v2639 = vsel %vm2282, %v2636, %v2638
    %v2640 = vrot.slane %v244, 3
    %v2641 = vrot.slane %v245, 3
    %v2642 = vsel %vm2282, %v2640, %v2641
    %v2643 = vrot.slane %v246, 3
    %v2644 = vsel %vm2282, %v2641, %v2643
    %v2645 = vrot.slane %v247, 3
    %v2646 = vsel %vm2282, %v2643, %v2645
    %v2647 = vrot.slane %v248, 3
    %v2648 = vrot.slane %v249, 3
    %v2649 = vsel %vm2282, %v2647, %v2648
    %v2650 = vrot.slane %v250, 3
    %v2651 = vsel %vm2282, %v2648, %v2650
    %v2652 = vrot.slane %v251, 3
    %v2653 = vsel %vm2282, %v2650, %v2652
    %v2654 = vrot.slane %v252, 3
    %v2655 = vrot.slane %v253, 3
    %v2656 = vsel %vm2282, %v2654, %v2655
    %v2657 = vrot.slane %v254, 3
    %v2658 = vsel %vm2282, %v2655, %v2657
    %v2659 = vrot.slane %v255, 3
    %v2660 = vsel %vm2282, %v2657, %v2659
    %v2661 = vrot.slane %v256, 3
    %v2662 = vrot.slane %v257, 3
    %v2663 = vsel %vm2282, %v2661, %v2662
    %v2664 = vrot.slane %v258, 3
    %v2665 = vsel %vm2282, %v2662, %v2664
    %v2666 = vrot.slane %v259, 3
    %v2667 = vsel %vm2282, %v2664, %v2666
    %v2668 = vrot.slane %v260, 3
    %v2669 = vrot.slane %v261, 3
    %v2670 = vsel %vm2282, %v2668, %v2669
    %v2671 = vrot.slane %v262, 3
    %v2672 = vsel %vm2282, %v2669, %v2671
    %v2673 = vrot.slane %v263, 3
    %v2674 = vsel %vm2282, %v2671, %v2673
    %2675 = vrot.lane.b32.xlu0 %v2285, 3
    %v2676 = vpop.permute.xlu0 %2675
    %2677 = vrot.lane.b32.xlu0 %v2287, 3
    %v2678 = vpop.permute.xlu0 %2677
    %2679 = vrot.lane.b32.xlu0 %v2289, 3
    %v2680 = vpop.permute.xlu0 %2679
    %2681 = vrot.lane.b32.xlu0 %v2292, 3
    %v2682 = vpop.permute.xlu0 %2681
    %2683 = vrot.lane.b32.xlu0 %v2294, 3
    %v2684 = vpop.permute.xlu0 %2683
    %2685 = vrot.lane.b32.xlu0 %v2296, 3
    %v2686 = vpop.permute.xlu0 %2685
    %2687 = vrot.lane.b32.xlu0 %v2299, 3
    %v2688 = vpop.permute.xlu0 %2687
    %2689 = vrot.lane.b32.xlu0 %v2301, 3
    %v2690 = vpop.permute.xlu0 %2689
    %2691 = vrot.lane.b32.xlu0 %v2303, 3
    %v2692 = vpop.permute.xlu0 %2691
    %2693 = vrot.lane.b32.xlu0 %v2306, 3
    %v2694 = vpop.permute.xlu0 %2693
    %2695 = vrot.lane.b32.xlu0 %v2308, 3
    %v2696 = vpop.permute.xlu0 %2695
    %2697 = vrot.lane.b32.xlu0 %v2310, 3
    %v2698 = vpop.permute.xlu0 %2697
    %2699 = vrot.lane.b32.xlu0 %v2313, 3
    %v2700 = vpop.permute.xlu0 %2699
    %2701 = vrot.lane.b32.xlu0 %v2315, 3
    %v2702 = vpop.permute.xlu0 %2701
    %2703 = vrot.lane.b32.xlu0 %v2317, 3
    %v2704 = vpop.permute.xlu0 %2703
    %2705 = vrot.lane.b32.xlu0 %v2320, 3
    %v2706 = vpop.permute.xlu0 %2705
    %2707 = vrot.lane.b32.xlu0 %v2322, 3
    %v2708 = vpop.permute.xlu0 %2707
    %2709 = vrot.lane.b32.xlu0 %v2324, 3
    %v2710 = vpop.permute.xlu0 %2709
    %2711 = vrot.lane.b32.xlu0 %v2327, 3
    %v2712 = vpop.permute.xlu0 %2711
    %2713 = vrot.lane.b32.xlu0 %v2329, 3
    %v2714 = vpop.permute.xlu0 %2713
    %2715 = vrot.lane.b32.xlu0 %v2331, 3
    %v2716 = vpop.permute.xlu0 %2715
    %2717 = vrot.lane.b32.xlu0 %v2334, 3
    %v2718 = vpop.permute.xlu0 %2717
    %2719 = vrot.lane.b32.xlu0 %v2336, 3
    %v2720 = vpop.permute.xlu0 %2719
    %2721 = vrot.lane.b32.xlu0 %v2338, 3
    %v2722 = vpop.permute.xlu0 %2721
    %2723 = vrot.lane.b32.xlu0 %v2341, 3
    %v2724 = vpop.permute.xlu0 %2723
    %2725 = vrot.lane.b32.xlu0 %v2343, 3
    %v2726 = vpop.permute.xlu0 %2725
    %2727 = vrot.lane.b32.xlu0 %v2345, 3
    %v2728 = vpop.permute.xlu0 %2727
    %2729 = vrot.lane.b32.xlu0 %v2348, 3
    %v2730 = vpop.permute.xlu0 %2729
    %2731 = vrot.lane.b32.xlu0 %v2350, 3
    %v2732 = vpop.permute.xlu0 %2731
    %2733 = vrot.lane.b32.xlu0 %v2352, 3
    %v2734 = vpop.permute.xlu0 %2733
    %2735 = vrot.lane.b32.xlu0 %v2355, 3
    %v2736 = vpop.permute.xlu0 %2735
    %2737 = vrot.lane.b32.xlu0 %v2357, 3
    %v2738 = vpop.permute.xlu0 %2737
    %2739 = vrot.lane.b32.xlu0 %v2359, 3
    %v2740 = vpop.permute.xlu0 %2739
    %2741 = vrot.lane.b32.xlu0 %v2362, 3
    %v2742 = vpop.permute.xlu0 %2741
    %2743 = vrot.lane.b32.xlu0 %v2364, 3
    %v2744 = vpop.permute.xlu0 %2743
    %2745 = vrot.lane.b32.xlu0 %v2366, 3
    %v2746 = vpop.permute.xlu0 %2745
    %2747 = vrot.lane.b32.xlu0 %v2369, 3
    %v2748 = vpop.permute.xlu0 %2747
    %2749 = vrot.lane.b32.xlu0 %v2371, 3
    %v2750 = vpop.permute.xlu0 %2749
    %2751 = vrot.lane.b32.xlu0 %v2373, 3
    %v2752 = vpop.permute.xlu0 %2751
    %2753 = vrot.lane.b32.xlu0 %v2376, 3
    %v2754 = vpop.permute.xlu0 %2753
    %2755 = vrot.lane.b32.xlu0 %v2378, 3
    %v2756 = vpop.permute.xlu0 %2755
    %2757 = vrot.lane.b32.xlu0 %v2380, 3
    %v2758 = vpop.permute.xlu0 %2757
    %2759 = vrot.lane.b32.xlu0 %v2383, 3
    %v2760 = vpop.permute.xlu0 %2759
    %2761 = vrot.lane.b32.xlu0 %v2385, 3
    %v2762 = vpop.permute.xlu0 %2761
    %2763 = vrot.lane.b32.xlu0 %v2387, 3
    %v2764 = vpop.permute.xlu0 %2763
    %2765 = vrot.lane.b32.xlu0 %v2390, 3
    %v2766 = vpop.permute.xlu0 %2765
    %2767 = vrot.lane.b32.xlu0 %v2392, 3
    %v2768 = vpop.permute.xlu0 %2767
    %2769 = vrot.lane.b32.xlu0 %v2394, 3
    %v2770 = vpop.permute.xlu0 %2769
    %2771 = vrot.lane.b32.xlu0 %v2397, 3
    %v2772 = vpop.permute.xlu0 %2771
    %2773 = vrot.lane.b32.xlu0 %v2399, 3
    %v2774 = vpop.permute.xlu0 %2773
    %2775 = vrot.lane.b32.xlu0 %v2401, 3
    %v2776 = vpop.permute.xlu0 %2775
    %2777 = vrot.lane.b32.xlu0 %v2404, 3
    %v2778 = vpop.permute.xlu0 %2777
    %2779 = vrot.lane.b32.xlu0 %v2406, 3
    %v2780 = vpop.permute.xlu0 %2779
    %2781 = vrot.lane.b32.xlu0 %v2408, 3
    %v2782 = vpop.permute.xlu0 %2781
    %2783 = vrot.lane.b32.xlu0 %v2411, 3
    %v2784 = vpop.permute.xlu0 %2783
    %2785 = vrot.lane.b32.xlu0 %v2413, 3
    %v2786 = vpop.permute.xlu0 %2785
    %2787 = vrot.lane.b32.xlu0 %v2415, 3
    %v2788 = vpop.permute.xlu0 %2787
    %2789 = vrot.lane.b32.xlu0 %v2418, 3
    %v2790 = vpop.permute.xlu0 %2789
    %2791 = vrot.lane.b32.xlu0 %v2420, 3
    %v2792 = vpop.permute.xlu0 %2791
    %2793 = vrot.lane.b32.xlu0 %v2422, 3
    %v2794 = vpop.permute.xlu0 %2793
    %2795 = vrot.lane.b32.xlu0 %v2425, 3
    %v2796 = vpop.permute.xlu0 %2795
    %2797 = vrot.lane.b32.xlu0 %v2427, 3
    %v2798 = vpop.permute.xlu0 %2797
    %2799 = vrot.lane.b32.xlu0 %v2429, 3
    %v2800 = vpop.permute.xlu0 %2799
    %2801 = vrot.lane.b32.xlu0 %v2432, 3
    %v2802 = vpop.permute.xlu0 %2801
    %2803 = vrot.lane.b32.xlu0 %v2434, 3
    %v2804 = vpop.permute.xlu0 %2803
    %2805 = vrot.lane.b32.xlu0 %v2436, 3
    %v2806 = vpop.permute.xlu0 %2805
    %2807 = vrot.lane.b32.xlu0 %v2439, 3
    %v2808 = vpop.permute.xlu0 %2807
    %2809 = vrot.lane.b32.xlu0 %v2441, 3
    %v2810 = vpop.permute.xlu0 %2809
    %2811 = vrot.lane.b32.xlu0 %v2443, 3
    %v2812 = vpop.permute.xlu0 %2811
    %2813 = vrot.lane.b32.xlu0 %v2446, 3
    %v2814 = vpop.permute.xlu0 %2813
    %2815 = vrot.lane.b32.xlu0 %v2448, 3
    %v2816 = vpop.permute.xlu0 %2815
    %2817 = vrot.lane.b32.xlu0 %v2450, 3
    %v2818 = vpop.permute.xlu0 %2817
    %2819 = vrot.lane.b32.xlu0 %v2453, 3
    %v2820 = vpop.permute.xlu0 %2819
    %2821 = vrot.lane.b32.xlu0 %v2455, 3
    %v2822 = vpop.permute.xlu0 %2821
    %2823 = vrot.lane.b32.xlu0 %v2457, 3
    %v2824 = vpop.permute.xlu0 %2823
    %2825 = vrot.lane.b32.xlu0 %v2460, 3
    %v2826 = vpop.permute.xlu0 %2825
    %2827 = vrot.lane.b32.xlu0 %v2462, 3
    %v2828 = vpop.permute.xlu0 %2827
    %2829 = vrot.lane.b32.xlu0 %v2464, 3
    %v2830 = vpop.permute.xlu0 %2829
    %2831 = vrot.lane.b32.xlu0 %v2467, 3
    %v2832 = vpop.permute.xlu0 %2831
    %2833 = vrot.lane.b32.xlu0 %v2469, 3
    %v2834 = vpop.permute.xlu0 %2833
    %2835 = vrot.lane.b32.xlu0 %v2471, 3
    %v2836 = vpop.permute.xlu0 %2835
    %2837 = vrot.lane.b32.xlu0 %v2474, 3
    %v2838 = vpop.permute.xlu0 %2837
    %2839 = vrot.lane.b32.xlu0 %v2476, 3
    %v2840 = vpop.permute.xlu0 %2839
    %2841 = vrot.lane.b32.xlu0 %v2478, 3
    %v2842 = vpop.permute.xlu0 %2841
    %2843 = vrot.lane.b32.xlu0 %v2481, 3
    %v2844 = vpop.permute.xlu0 %2843
    %2845 = vrot.lane.b32.xlu0 %v2483, 3
    %v2846 = vpop.permute.xlu0 %2845
    %2847 = vrot.lane.b32.xlu0 %v2485, 3
    %v2848 = vpop.permute.xlu0 %2847
    %2849 = vrot.lane.b32.xlu0 %v2488, 3
    %v2850 = vpop.permute.xlu0 %2849
    %2851 = vrot.lane.b32.xlu0 %v2490, 3
    %v2852 = vpop.permute.xlu0 %2851
    %2853 = vrot.lane.b32.xlu0 %v2492, 3
    %v2854 = vpop.permute.xlu0 %2853
    %2855 = vrot.lane.b32.xlu0 %v2495, 3
    %v2856 = vpop.permute.xlu0 %2855
    %2857 = vrot.lane.b32.xlu0 %v2497, 3
    %v2858 = vpop.permute.xlu0 %2857
    %2859 = vrot.lane.b32.xlu0 %v2499, 3
    %v2860 = vpop.permute.xlu0 %2859
    %2861 = vrot.lane.b32.xlu0 %v2502, 3
    %v2862 = vpop.permute.xlu0 %2861
    %2863 = vrot.lane.b32.xlu0 %v2504, 3
    %v2864 = vpop.permute.xlu0 %2863
    %2865 = vrot.lane.b32.xlu0 %v2506, 3
    %v2866 = vpop.permute.xlu0 %2865
    %2867 = vrot.lane.b32.xlu0 %v2509, 3
    %v2868 = vpop.permute.xlu0 %2867
    %2869 = vrot.lane.b32.xlu0 %v2511, 3
    %v2870 = vpop.permute.xlu0 %2869
    %2871 = vrot.lane.b32.xlu0 %v2513, 3
    %v2872 = vpop.permute.xlu0 %2871
    %2873 = vrot.lane.b32.xlu0 %v2516, 3
    %v2874 = vpop.permute.xlu0 %2873
    %2875 = vrot.lane.b32.xlu0 %v2518, 3
    %v2876 = vpop.permute.xlu0 %2875
    %2877 = vrot.lane.b32.xlu0 %v2520, 3
    %v2878 = vpop.permute.xlu0 %2877
    %2879 = vrot.lane.b32.xlu0 %v2523, 3
    %v2880 = vpop.permute.xlu0 %2879
    %2881 = vrot.lane.b32.xlu0 %v2525, 3
    %v2882 = vpop.permute.xlu0 %2881
    %2883 = vrot.lane.b32.xlu0 %v2527, 3
    %v2884 = vpop.permute.xlu0 %2883
    %2885 = vrot.lane.b32.xlu0 %v2530, 3
    %v2886 = vpop.permute.xlu0 %2885
    %2887 = vrot.lane.b32.xlu0 %v2532, 3
    %v2888 = vpop.permute.xlu0 %2887
    %2889 = vrot.lane.b32.xlu0 %v2534, 3
    %v2890 = vpop.permute.xlu0 %2889
    %2891 = vrot.lane.b32.xlu0 %v2537, 3
    %v2892 = vpop.permute.xlu0 %2891
    %2893 = vrot.lane.b32.xlu0 %v2539, 3
    %v2894 = vpop.permute.xlu0 %2893
    %2895 = vrot.lane.b32.xlu0 %v2541, 3
    %v2896 = vpop.permute.xlu0 %2895
    %2897 = vrot.lane.b32.xlu0 %v2544, 3
    %v2898 = vpop.permute.xlu0 %2897
    %2899 = vrot.lane.b32.xlu0 %v2546, 3
    %v2900 = vpop.permute.xlu0 %2899
    %2901 = vrot.lane.b32.xlu0 %v2548, 3
    %v2902 = vpop.permute.xlu0 %2901
    %2903 = vrot.lane.b32.xlu0 %v2551, 3
    %v2904 = vpop.permute.xlu0 %2903
    %2905 = vrot.lane.b32.xlu0 %v2553, 3
    %v2906 = vpop.permute.xlu0 %2905
    %2907 = vrot.lane.b32.xlu0 %v2555, 3
    %v2908 = vpop.permute.xlu0 %2907
    %2909 = vrot.lane.b32.xlu0 %v2558, 3
    %v2910 = vpop.permute.xlu0 %2909
    %2911 = vrot.lane.b32.xlu0 %v2560, 3
    %v2912 = vpop.permute.xlu0 %2911
    %2913 = vrot.lane.b32.xlu0 %v2562, 3
    %v2914 = vpop.permute.xlu0 %2913
    %2915 = vrot.lane.b32.xlu0 %v2565, 3
    %v2916 = vpop.permute.xlu0 %2915
    %2917 = vrot.lane.b32.xlu0 %v2567, 3
    %v2918 = vpop.permute.xlu0 %2917
    %2919 = vrot.lane.b32.xlu0 %v2569, 3
    %v2920 = vpop.permute.xlu0 %2919
    %2921 = vrot.lane.b32.xlu0 %v2572, 3
    %v2922 = vpop.permute.xlu0 %2921
    %2923 = vrot.lane.b32.xlu0 %v2574, 3
    %v2924 = vpop.permute.xlu0 %2923
    %2925 = vrot.lane.b32.xlu0 %v2576, 3
    %v2926 = vpop.permute.xlu0 %2925
    %2927 = vrot.lane.b32.xlu0 %v2579, 3
    %v2928 = vpop.permute.xlu0 %2927
    %2929 = vrot.lane.b32.xlu0 %v2581, 3
    %v2930 = vpop.permute.xlu0 %2929
    %2931 = vrot.lane.b32.xlu0 %v2583, 3
    %v2932 = vpop.permute.xlu0 %2931
    %2933 = vrot.lane.b32.xlu0 %v2586, 3
    %v2934 = vpop.permute.xlu0 %2933
    %2935 = vrot.lane.b32.xlu0 %v2588, 3
    %v2936 = vpop.permute.xlu0 %2935
    %2937 = vrot.lane.b32.xlu0 %v2590, 3
    %v2938 = vpop.permute.xlu0 %2937
    %2939 = vrot.lane.b32.xlu0 %v2593, 3
    %v2940 = vpop.permute.xlu0 %2939
    %2941 = vrot.lane.b32.xlu0 %v2595, 3
    %v2942 = vpop.permute.xlu0 %2941
    %2943 = vrot.lane.b32.xlu0 %v2597, 3
    %v2944 = vpop.permute.xlu0 %2943
    %2945 = vrot.lane.b32.xlu0 %v2600, 3
    %v2946 = vpop.permute.xlu0 %2945
    %2947 = vrot.lane.b32.xlu0 %v2602, 3
    %v2948 = vpop.permute.xlu0 %2947
    %2949 = vrot.lane.b32.xlu0 %v2604, 3
    %v2950 = vpop.permute.xlu0 %2949
    %2951 = vrot.lane.b32.xlu0 %v2607, 3
    %v2952 = vpop.permute.xlu0 %2951
    %2953 = vrot.lane.b32.xlu0 %v2609, 3
    %v2954 = vpop.permute.xlu0 %2953
    %2955 = vrot.lane.b32.xlu0 %v2611, 3
    %v2956 = vpop.permute.xlu0 %2955
    %2957 = vrot.lane.b32.xlu0 %v2614, 3
    %v2958 = vpop.permute.xlu0 %2957
    %2959 = vrot.lane.b32.xlu0 %v2616, 3
    %v2960 = vpop.permute.xlu0 %2959
    %2961 = vrot.lane.b32.xlu0 %v2618, 3
    %v2962 = vpop.permute.xlu0 %2961
    %2963 = vrot.lane.b32.xlu0 %v2621, 3
    %v2964 = vpop.permute.xlu0 %2963
    %2965 = vrot.lane.b32.xlu0 %v2623, 3
    %v2966 = vpop.permute.xlu0 %2965
    %2967 = vrot.lane.b32.xlu0 %v2625, 3
    %v2968 = vpop.permute.xlu0 %2967
    %2969 = vrot.lane.b32.xlu0 %v2628, 3
    %v2970 = vpop.permute.xlu0 %2969
    %2971 = vrot.lane.b32.xlu0 %v2630, 3
    %v2972 = vpop.permute.xlu0 %2971
    %2973 = vrot.lane.b32.xlu0 %v2632, 3
    %v2974 = vpop.permute.xlu0 %2973
    %2975 = vrot.lane.b32.xlu0 %v2635, 3
    %v2976 = vpop.permute.xlu0 %2975
    %2977 = vrot.lane.b32.xlu0 %v2637, 3
    %v2978 = vpop.permute.xlu0 %2977
    %2979 = vrot.lane.b32.xlu0 %v2639, 3
    %v2980 = vpop.permute.xlu0 %2979
    %2981 = vrot.lane.b32.xlu0 %v2642, 3
    %v2982 = vpop.permute.xlu0 %2981
    %2983 = vrot.lane.b32.xlu0 %v2644, 3
    %v2984 = vpop.permute.xlu0 %2983
    %2985 = vrot.lane.b32.xlu0 %v2646, 3
    %v2986 = vpop.permute.xlu0 %2985
    %2987 = vrot.lane.b32.xlu0 %v2649, 3
    %v2988 = vpop.permute.xlu0 %2987
    %2989 = vrot.lane.b32.xlu0 %v2651, 3
    %v2990 = vpop.permute.xlu0 %2989
    %2991 = vrot.lane.b32.xlu0 %v2653, 3
    %v2992 = vpop.permute.xlu0 %2991
    %2993 = vrot.lane.b32.xlu0 %v2656, 3
    %v2994 = vpop.permute.xlu0 %2993
    %2995 = vrot.lane.b32.xlu0 %v2658, 3
    %v2996 = vpop.permute.xlu0 %2995
    %2997 = vrot.lane.b32.xlu0 %v2660, 3
    %v2998 = vpop.permute.xlu0 %2997
    %2999 = vrot.lane.b32.xlu0 %v2663, 3
    %v3000 = vpop.permute.xlu0 %2999
    %3001 = vrot.lane.b32.xlu0 %v2665, 3
    %v3002 = vpop.permute.xlu0 %3001
    %3003 = vrot.lane.b32.xlu0 %v2667, 3
    %v3004 = vpop.permute.xlu0 %3003
    %3005 = vrot.lane.b32.xlu0 %v2670, 3
    %v3006 = vpop.permute.xlu0 %3005
    %3007 = vrot.lane.b32.xlu0 %v2672, 3
    %v3008 = vpop.permute.xlu0 %3007
    %3009 = vrot.lane.b32.xlu0 %v2674, 3
    %v3010 = vpop.permute.xlu0 %3009
    %vm3179 = vcmask 1043456
    %v3180 = vrot.slane %v40, 4
    %v3181 = vrot.slane %v41, 4
    %v3182 = vsel %vm3179, %v3180, %v3181
    %v3183 = vrot.slane %v42, 4
    %v3184 = vsel %vm3179, %v3181, %v3183
    %v3185 = vrot.slane %v43, 4
    %v3186 = vsel %vm3179, %v3183, %v3185
    %v3187 = vrot.slane %v44, 4
    %v3188 = vrot.slane %v45, 4
    %v3189 = vsel %vm3179, %v3187, %v3188
    %v3190 = vrot.slane %v46, 4
    %v3191 = vsel %vm3179, %v3188, %v3190
    %v3192 = vrot.slane %v47, 4
    %v3193 = vsel %vm3179, %v3190, %v3192
    %v3194 = vrot.slane %v48, 4
    %v3195 = vrot.slane %v49, 4
    %v3196 = vsel %vm3179, %v3194, %v3195
    %v3197 = vrot.slane %v50, 4
    %v3198 = vsel %vm3179, %v3195, %v3197
    %v3199 = vrot.slane %v51, 4
    %v3200 = vsel %vm3179, %v3197, %v3199
    %v3201 = vrot.slane %v52, 4
    %v3202 = vrot.slane %v53, 4
    %v3203 = vsel %vm3179, %v3201, %v3202
    %v3204 = vrot.slane %v54, 4
    %v3205 = vsel %vm3179, %v3202, %v3204
    %v3206 = vrot.slane %v55, 4
    %v3207 = vsel %vm3179, %v3204, %v3206
    %v3208 = vrot.slane %v56, 4
    %v3209 = vrot.slane %v57, 4
    %v3210 = vsel %vm3179, %v3208, %v3209
    %v3211 = vrot.slane %v58, 4
    %v3212 = vsel %vm3179, %v3209, %v3211
    %v3213 = vrot.slane %v59, 4
    %v3214 = vsel %vm3179, %v3211, %v3213
    %v3215 = vrot.slane %v60, 4
    %v3216 = vrot.slane %v61, 4
    %v3217 = vsel %vm3179, %v3215, %v3216
    %v3218 = vrot.slane %v62, 4
    %v3219 = vsel %vm3179, %v3216, %v3218
    %v3220 = vrot.slane %v63, 4
    %v3221 = vsel %vm3179, %v3218, %v3220
    %v3222 = vrot.slane %v64, 4
    %v3223 = vrot.slane %v65, 4
    %v3224 = vsel %vm3179, %v3222, %v3223
    %v3225 = vrot.slane %v66, 4
    %v3226 = vsel %vm3179, %v3223, %v3225
    %v3227 = vrot.slane %v67, 4
    %v3228 = vsel %vm3179, %v3225, %v3227
    %v3229 = vrot.slane %v68, 4
    %v3230 = vrot.slane %v69, 4
    %v3231 = vsel %vm3179, %v3229, %v3230
    %v3232 = vrot.slane %v70, 4
    %v3233 = vsel %vm3179, %v3230, %v3232
    %v3234 = vrot.slane %v71, 4
    %v3235 = vsel %vm3179, %v3232, %v3234
    %v3236 = vrot.slane %v72, 4
    %v3237 = vrot.slane %v73, 4
    %v3238 = vsel %vm3179, %v3236, %v3237
    %v3239 = vrot.slane %v74, 4
    %v3240 = vsel %vm3179, %v3237, %v3239
    %v3241 = vrot.slane %v75, 4
    %v3242 = vsel %vm3179, %v3239, %v3241
    %v3243 = vrot.slane %v76, 4
    %v3244 = vrot.slane %v77, 4
    %v3245 = vsel %vm3179, %v3243, %v3244
    %v3246 = vrot.slane %v78, 4
    %v3247 = vsel %vm3179, %v3244, %v3246
    %v3248 = vrot.slane %v79, 4
    %v3249 = vsel %vm3179, %v3246, %v3248
    %v3250 = vrot.slane %v80, 4
    %v3251 = vrot.slane %v81, 4
    %v3252 = vsel %vm3179, %v3250, %v3251
    %v3253 = vrot.slane %v82, 4
    %v3254 = vsel %vm3179, %v3251, %v3253
    %v3255 = vrot.slane %v83, 4
    %v3256 = vsel %vm3179, %v3253, %v3255
    %v3257 = vrot.slane %v84, 4
    %v3258 = vrot.slane %v85, 4
    %v3259 = vsel %vm3179, %v3257, %v3258
    %v3260 = vrot.slane %v86, 4
    %v3261 = vsel %vm3179, %v3258, %v3260
    %v3262 = vrot.slane %v87, 4
    %v3263 = vsel %vm3179, %v3260, %v3262
    %v3264 = vrot.slane %v88, 4
    %v3265 = vrot.slane %v89, 4
    %v3266 = vsel %vm3179, %v3264, %v3265
    %v3267 = vrot.slane %v90, 4
    %v3268 = vsel %vm3179, %v3265, %v3267
    %v3269 = vrot.slane %v91, 4
    %v3270 = vsel %vm3179, %v3267, %v3269
    %v3271 = vrot.slane %v92, 4
    %v3272 = vrot.slane %v93, 4
    %v3273 = vsel %vm3179, %v3271, %v3272
    %v3274 = vrot.slane %v94, 4
    %v3275 = vsel %vm3179, %v3272, %v3274
    %v3276 = vrot.slane %v95, 4
    %v3277 = vsel %vm3179, %v3274, %v3276
    %v3278 = vrot.slane %v96, 4
    %v3279 = vrot.slane %v97, 4
    %v3280 = vsel %vm3179, %v3278, %v3279
    %v3281 = vrot.slane %v98, 4
    %v3282 = vsel %vm3179, %v3279, %v3281
    %v3283 = vrot.slane %v99, 4
    %v3284 = vsel %vm3179, %v3281, %v3283
    %v3285 = vrot.slane %v100, 4
    %v3286 = vrot.slane %v101, 4
    %v3287 = vsel %vm3179, %v3285, %v3286
    %v3288 = vrot.slane %v102, 4
    %v3289 = vsel %vm3179, %v3286, %v3288
    %v3290 = vrot.slane %v103, 4
    %v3291 = vsel %vm3179, %v3288, %v3290
    %v3292 = vrot.slane %v104, 4
    %v3293 = vrot.slane %v105, 4
    %v3294 = vsel %vm3179, %v3292, %v3293
    %v3295 = vrot.slane %v106, 4
    %v3296 = vsel %vm3179, %v3293, %v3295
    %v3297 = vrot.slane %v107, 4
    %v3298 = vsel %vm3179, %v3295, %v3297
    %v3299 = vrot.slane %v108, 4
    %v3300 = vrot.slane %v109, 4
    %v3301 = vsel %vm3179, %v3299, %v3300
    %v3302 = vrot.slane %v110, 4
    %v3303 = vsel %vm3179, %v3300, %v3302
    %v3304 = vrot.slane %v111, 4
    %v3305 = vsel %vm3179, %v3302, %v3304
    %v3306 = vrot.slane %v112, 4
    %v3307 = vrot.slane %v113, 4
    %v3308 = vsel %vm3179, %v3306, %v3307
    %v3309 = vrot.slane %v114, 4
    %v3310 = vsel %vm3179, %v3307, %v3309
    %v3311 = vrot.slane %v115, 4
    %v3312 = vsel %vm3179, %v3309, %v3311
    %v3313 = vrot.slane %v116, 4
    %v3314 = vrot.slane %v117, 4
    %v3315 = vsel %vm3179, %v3313, %v3314
    %v3316 = vrot.slane %v118, 4
    %v3317 = vsel %vm3179, %v3314, %v3316
    %v3318 = vrot.slane %v119, 4
    %v3319 = vsel %vm3179, %v3316, %v3318
    %v3320 = vrot.slane %v120, 4
    %v3321 = vrot.slane %v121, 4
    %v3322 = vsel %vm3179, %v3320, %v3321
    %v3323 = vrot.slane %v122, 4
    %v3324 = vsel %vm3179, %v3321, %v3323
    %v3325 = vrot.slane %v123, 4
    %v3326 = vsel %vm3179, %v3323, %v3325
    %v3327 = vrot.slane %v124, 4
    %v3328 = vrot.slane %v125, 4
    %v3329 = vsel %vm3179, %v3327, %v3328
    %v3330 = vrot.slane %v126, 4
    %v3331 = vsel %vm3179, %v3328, %v3330
    %v3332 = vrot.slane %v127, 4
    %v3333 = vsel %vm3179, %v3330, %v3332
    %v3334 = vrot.slane %v128, 4
    %v3335 = vrot.slane %v129, 4
    %v3336 = vsel %vm3179, %v3334, %v3335
    %v3337 = vrot.slane %v130, 4
    %v3338 = vsel %vm3179, %v3335, %v3337
    %v3339 = vrot.slane %v131, 4
    %v3340 = vsel %vm3179, %v3337, %v3339
    %v3341 = vrot.slane %v132, 4
    %v3342 = vrot.slane %v133, 4
    %v3343 = vsel %vm3179, %v3341, %v3342
    %v3344 = vrot.slane %v134, 4
    %v3345 = vsel %vm3179, %v3342, %v3344
    %v3346 = vrot.slane %v135, 4
    %v3347 = vsel %vm3179, %v3344, %v3346
    %v3348 = vrot.slane %v136, 4
    %v3349 = vrot.slane %v137, 4
    %v3350 = vsel %vm3179, %v3348, %v3349
    %v3351 = vrot.slane %v138, 4
    %v3352 = vsel %vm3179, %v3349, %v3351
    %v3353 = vrot.slane %v139, 4
    %v3354 = vsel %vm3179, %v3351, %v3353
    %v3355 = vrot.slane %v140, 4
    %v3356 = vrot.slane %v141, 4
    %v3357 = vsel %vm3179, %v3355, %v3356
    %v3358 = vrot.slane %v142, 4
    %v3359 = vsel %vm3179, %v3356, %v3358
    %v3360 = vrot.slane %v143, 4
    %v3361 = vsel %vm3179, %v3358, %v3360
    %v3362 = vrot.slane %v144, 4
    %v3363 = vrot.slane %v145, 4
    %v3364 = vsel %vm3179, %v3362, %v3363
    %v3365 = vrot.slane %v146, 4
    %v3366 = vsel %vm3179, %v3363, %v3365
    %v3367 = vrot.slane %v147, 4
    %v3368 = vsel %vm3179, %v3365, %v3367
    %v3369 = vrot.slane %v148, 4
    %v3370 = vrot.slane %v149, 4
    %v3371 = vsel %vm3179, %v3369, %v3370
    %v3372 = vrot.slane %v150, 4
    %v3373 = vsel %vm3179, %v3370, %v3372
    %v3374 = vrot.slane %v151, 4
    %v3375 = vsel %vm3179, %v3372, %v3374
    %v3376 = vrot.slane %v152, 4
    %v3377 = vrot.slane %v153, 4
    %v3378 = vsel %vm3179, %v3376, %v3377
    %v3379 = vrot.slane %v154, 4
    %v3380 = vsel %vm3179, %v3377, %v3379
    %v3381 = vrot.slane %v155, 4
    %v3382 = vsel %vm3179, %v3379, %v3381
    %v3383 = vrot.slane %v156, 4
    %v3384 = vrot.slane %v157, 4
    %v3385 = vsel %vm3179, %v3383, %v3384
    %v3386 = vrot.slane %v158, 4
    %v3387 = vsel %vm3179, %v3384, %v3386
    %v3388 = vrot.slane %v159, 4
    %v3389 = vsel %vm3179, %v3386, %v3388
    %v3390 = vrot.slane %v160, 4
    %v3391 = vrot.slane %v161, 4
    %v3392 = vsel %vm3179, %v3390, %v3391
    %v3393 = vrot.slane %v162, 4
    %v3394 = vsel %vm3179, %v3391, %v3393
    %v3395 = vrot.slane %v163, 4
    %v3396 = vsel %vm3179, %v3393, %v3395
    %v3397 = vrot.slane %v164, 4
    %v3398 = vrot.slane %v165, 4
    %v3399 = vsel %vm3179, %v3397, %v3398
    %v3400 = vrot.slane %v166, 4
    %v3401 = vsel %vm3179, %v3398, %v3400
    %v3402 = vrot.slane %v167, 4
    %v3403 = vsel %vm3179, %v3400, %v3402
    %v3404 = vrot.slane %v168, 4
    %v3405 = vrot.slane %v169, 4
    %v3406 = vsel %vm3179, %v3404, %v3405
    %v3407 = vrot.slane %v170, 4
    %v3408 = vsel %vm3179, %v3405, %v3407
    %v3409 = vrot.slane %v171, 4
    %v3410 = vsel %vm3179, %v3407, %v3409
    %v3411 = vrot.slane %v172, 4
    %v3412 = vrot.slane %v173, 4
    %v3413 = vsel %vm3179, %v3411, %v3412
    %v3414 = vrot.slane %v174, 4
    %v3415 = vsel %vm3179, %v3412, %v3414
    %v3416 = vrot.slane %v175, 4
    %v3417 = vsel %vm3179, %v3414, %v3416
    %v3418 = vrot.slane %v176, 4
    %v3419 = vrot.slane %v177, 4
    %v3420 = vsel %vm3179, %v3418, %v3419
    %v3421 = vrot.slane %v178, 4
    %v3422 = vsel %vm3179, %v3419, %v3421
    %v3423 = vrot.slane %v179, 4
    %v3424 = vsel %vm3179, %v3421, %v3423
    %v3425 = vrot.slane %v180, 4
    %v3426 = vrot.slane %v181, 4
    %v3427 = vsel %vm3179, %v3425, %v3426
    %v3428 = vrot.slane %v182, 4
    %v3429 = vsel %vm3179, %v3426, %v3428
    %v3430 = vrot.slane %v183, 4
    %v3431 = vsel %vm3179, %v3428, %v3430
    %v3432 = vrot.slane %v184, 4
    %v3433 = vrot.slane %v185, 4
    %v3434 = vsel %vm3179, %v3432, %v3433
    %v3435 = vrot.slane %v186, 4
    %v3436 = vsel %vm3179, %v3433, %v3435
    %v3437 = vrot.slane %v187, 4
    %v3438 = vsel %vm3179, %v3435, %v3437
    %v3439 = vrot.slane %v188, 4
    %v3440 = vrot.slane %v189, 4
    %v3441 = vsel %vm3179, %v3439, %v3440
    %v3442 = vrot.slane %v190, 4
    %v3443 = vsel %vm3179, %v3440, %v3442
    %v3444 = vrot.slane %v191, 4
    %v3445 = vsel %vm3179, %v3442, %v3444
    %v3446 = vrot.slane %v192, 4
    %v3447 = vrot.slane %v193, 4
    %v3448 = vsel %vm3179, %v3446, %v3447
    %v3449 = vrot.slane %v194, 4
    %v3450 = vsel %vm3179, %v3447, %v3449
    %v3451 = vrot.slane %v195, 4
    %v3452 = vsel %vm3179, %v3449, %v3451
    %v3453 = vrot.slane %v196, 4
    %v3454 = vrot.slane %v197, 4
    %v3455 = vsel %vm3179, %v3453, %v3454
    %v3456 = vrot.slane %v198, 4
    %v3457 = vsel %vm3179, %v3454, %v3456
    %v3458 = vrot.slane %v199, 4
    %v3459 = vsel %vm3179, %v3456, %v3458
    %v3460 = vrot.slane %v200, 4
    %v3461 = vrot.slane %v201, 4
    %v3462 = vsel %vm3179, %v3460, %v3461
    %v3463 = vrot.slane %v202, 4
    %v3464 = vsel %vm3179, %v3461, %v3463
    %v3465 = vrot.slane %v203, 4
    %v3466 = vsel %vm3179, %v3463, %v3465
    %v3467 = vrot.slane %v204, 4
    %v3468 = vrot.slane %v205, 4
    %v3469 = vsel %vm3179, %v3467, %v3468
    %v3470 = vrot.slane %v206, 4
    %v3471 = vsel %vm3179, %v3468, %v3470
    %v3472 = vrot.slane %v207, 4
    %v3473 = vsel %vm3179, %v3470, %v3472
    %v3474 = vrot.slane %v208, 4
    %v3475 = vrot.slane %v209, 4
    %v3476 = vsel %vm3179, %v3474, %v3475
    %v3477 = vrot.slane %v210, 4
    %v3478 = vsel %vm3179, %v3475, %v3477
    %v3479 = vrot.slane %v211, 4
    %v3480 = vsel %vm3179, %v3477, %v3479
    %v3481 = vrot.slane %v212, 4
    %v3482 = vrot.slane %v213, 4
    %v3483 = vsel %vm3179, %v3481, %v3482
    %v3484 = vrot.slane %v214, 4
    %v3485 = vsel %vm3179, %v3482, %v3484
    %v3486 = vrot.slane %v215, 4
    %v3487 = vsel %vm3179, %v3484, %v3486
    %v3488 = vrot.slane %v216, 4
    %v3489 = vrot.slane %v217, 4
    %v3490 = vsel %vm3179, %v3488, %v3489
    %v3491 = vrot.slane %v218, 4
    %v3492 = vsel %vm3179, %v3489, %v3491
    %v3493 = vrot.slane %v219, 4
    %v3494 = vsel %vm3179, %v3491, %v3493
    %v3495 = vrot.slane %v220, 4
    %v3496 = vrot.slane %v221, 4
    %v3497 = vsel %vm3179, %v3495, %v3496
    %v3498 = vrot.slane %v222, 4
    %v3499 = vsel %vm3179, %v3496, %v3498
    %v3500 = vrot.slane %v223, 4
    %v3501 = vsel %vm3179, %v3498, %v3500
    %v3502 = vrot.slane %v224, 4
    %v3503 = vrot.slane %v225, 4
    %v3504 = vsel %vm3179, %v3502, %v3503
    %v3505 = vrot.slane %v226, 4
    %v3506 = vsel %vm3179, %v3503, %v3505
    %v3507 = vrot.slane %v227, 4
    %v3508 = vsel %vm3179, %v3505, %v3507
    %v3509 = vrot.slane %v228, 4
    %v3510 = vrot.slane %v229, 4
    %v3511 = vsel %vm3179, %v3509, %v3510
    %v3512 = vrot.slane %v230, 4
    %v3513 = vsel %vm3179, %v3510, %v3512
    %v3514 = vrot.slane %v231, 4
    %v3515 = vsel %vm3179, %v3512, %v3514
    %v3516 = vrot.slane %v232, 4
    %v3517 = vrot.slane %v233, 4
    %v3518 = vsel %vm3179, %v3516, %v3517
    %v3519 = vrot.slane %v234, 4
    %v3520 = vsel %vm3179, %v3517, %v3519
    %v3521 = vrot.slane %v235, 4
    %v3522 = vsel %vm3179, %v3519, %v3521
    %v3523 = vrot.slane %v236, 4
    %v3524 = vrot.slane %v237, 4
    %v3525 = vsel %vm3179, %v3523, %v3524
    %v3526 = vrot.slane %v238, 4
    %v3527 = vsel %vm3179, %v3524, %v3526
    %v3528 = vrot.slane %v239, 4
    %v3529 = vsel %vm3179, %v3526, %v3528
    %v3530 = vrot.slane %v240, 4
    %v3531 = vrot.slane %v241, 4
    %v3532 = vsel %vm3179, %v3530, %v3531
    %v3533 = vrot.slane %v242, 4
    %v3534 = vsel %vm3179, %v3531, %v3533
    %v3535 = vrot.slane %v243, 4
    %v3536 = vsel %vm3179, %v3533, %v3535
    %v3537 = vrot.slane %v244, 4
    %v3538 = vrot.slane %v245, 4
    %v3539 = vsel %vm3179, %v3537, %v3538
    %v3540 = vrot.slane %v246, 4
    %v3541 = vsel %vm3179, %v3538, %v3540
    %v3542 = vrot.slane %v247, 4
    %v3543 = vsel %vm3179, %v3540, %v3542
    %v3544 = vrot.slane %v248, 4
    %v3545 = vrot.slane %v249, 4
    %v3546 = vsel %vm3179, %v3544, %v3545
    %v3547 = vrot.slane %v250, 4
    %v3548 = vsel %vm3179, %v3545, %v3547
    %v3549 = vrot.slane %v251, 4
    %v3550 = vsel %vm3179, %v3547, %v3549
    %v3551 = vrot.slane %v252, 4
    %v3552 = vrot.slane %v253, 4
    %v3553 = vsel %vm3179, %v3551, %v3552
    %v3554 = vrot.slane %v254, 4
    %v3555 = vsel %vm3179, %v3552, %v3554
    %v3556 = vrot.slane %v255, 4
    %v3557 = vsel %vm3179, %v3554, %v3556
    %v3558 = vrot.slane %v256, 4
    %v3559 = vrot.slane %v257, 4
    %v3560 = vsel %vm3179, %v3558, %v3559
    %v3561 = vrot.slane %v258, 4
    %v3562 = vsel %vm3179, %v3559, %v3561
    %v3563 = vrot.slane %v259, 4
    %v3564 = vsel %vm3179, %v3561, %v3563
    %v3565 = vrot.slane %v260, 4
    %v3566 = vrot.slane %v261, 4
    %v3567 = vsel %vm3179, %v3565, %v3566
    %v3568 = vrot.slane %v262, 4
    %v3569 = vsel %vm3179, %v3566, %v3568
    %v3570 = vrot.slane %v263, 4
    %v3571 = vsel %vm3179, %v3568, %v3570
    %3572 = vrot.lane.b32.xlu0 %v3182, 4
    %v3573 = vpop.permute.xlu0 %3572
    %3574 = vrot.lane.b32.xlu0 %v3184, 4
    %v3575 = vpop.permute.xlu0 %3574
    %3576 = vrot.lane.b32.xlu0 %v3186, 4
    %v3577 = vpop.permute.xlu0 %3576
    %3578 = vrot.lane.b32.xlu0 %v3189, 4
    %v3579 = vpop.permute.xlu0 %3578
    %3580 = vrot.lane.b32.xlu0 %v3191, 4
    %v3581 = vpop.permute.xlu0 %3580
    %3582 = vrot.lane.b32.xlu0 %v3193, 4
    %v3583 = vpop.permute.xlu0 %3582
    %3584 = vrot.lane.b32.xlu0 %v3196, 4
    %v3585 = vpop.permute.xlu0 %3584
    %3586 = vrot.lane.b32.xlu0 %v3198, 4
    %v3587 = vpop.permute.xlu0 %3586
    %3588 = vrot.lane.b32.xlu0 %v3200, 4
    %v3589 = vpop.permute.xlu0 %3588
    %3590 = vrot.lane.b32.xlu0 %v3203, 4
    %v3591 = vpop.permute.xlu0 %3590
    %3592 = vrot.lane.b32.xlu0 %v3205, 4
    %v3593 = vpop.permute.xlu0 %3592
    %3594 = vrot.lane.b32.xlu0 %v3207, 4
    %v3595 = vpop.permute.xlu0 %3594
    %3596 = vrot.lane.b32.xlu0 %v3210, 4
    %v3597 = vpop.permute.xlu0 %3596
    %3598 = vrot.lane.b32.xlu0 %v3212, 4
    %v3599 = vpop.permute.xlu0 %3598
    %3600 = vrot.lane.b32.xlu0 %v3214, 4
    %v3601 = vpop.permute.xlu0 %3600
    %3602 = vrot.lane.b32.xlu0 %v3217, 4
    %v3603 = vpop.permute.xlu0 %3602
    %3604 = vrot.lane.b32.xlu0 %v3219, 4
    %v3605 = vpop.permute.xlu0 %3604
    %3606 = vrot.lane.b32.xlu0 %v3221, 4
    %v3607 = vpop.permute.xlu0 %3606
    %3608 = vrot.lane.b32.xlu0 %v3224, 4
    %v3609 = vpop.permute.xlu0 %3608
    %3610 = vrot.lane.b32.xlu0 %v3226, 4
    %v3611 = vpop.permute.xlu0 %3610
    %3612 = vrot.lane.b32.xlu0 %v3228, 4
    %v3613 = vpop.permute.xlu0 %3612
    %3614 = vrot.lane.b32.xlu0 %v3231, 4
    %v3615 = vpop.permute.xlu0 %3614
    %3616 = vrot.lane.b32.xlu0 %v3233, 4
    %v3617 = vpop.permute.xlu0 %3616
    %3618 = vrot.lane.b32.xlu0 %v3235, 4
    %v3619 = vpop.permute.xlu0 %3618
    %3620 = vrot.lane.b32.xlu0 %v3238, 4
    %v3621 = vpop.permute.xlu0 %3620
    %3622 = vrot.lane.b32.xlu0 %v3240, 4
    %v3623 = vpop.permute.xlu0 %3622
    %3624 = vrot.lane.b32.xlu0 %v3242, 4
    %v3625 = vpop.permute.xlu0 %3624
    %3626 = vrot.lane.b32.xlu0 %v3245, 4
    %v3627 = vpop.permute.xlu0 %3626
    %3628 = vrot.lane.b32.xlu0 %v3247, 4
    %v3629 = vpop.permute.xlu0 %3628
    %3630 = vrot.lane.b32.xlu0 %v3249, 4
    %v3631 = vpop.permute.xlu0 %3630
    %3632 = vrot.lane.b32.xlu0 %v3252, 4
    %v3633 = vpop.permute.xlu0 %3632
    %3634 = vrot.lane.b32.xlu0 %v3254, 4
    %v3635 = vpop.permute.xlu0 %3634
    %3636 = vrot.lane.b32.xlu0 %v3256, 4
    %v3637 = vpop.permute.xlu0 %3636
    %3638 = vrot.lane.b32.xlu0 %v3259, 4
    %v3639 = vpop.permute.xlu0 %3638
    %3640 = vrot.lane.b32.xlu0 %v3261, 4
    %v3641 = vpop.permute.xlu0 %3640
    %3642 = vrot.lane.b32.xlu0 %v3263, 4
    %v3643 = vpop.permute.xlu0 %3642
    %3644 = vrot.lane.b32.xlu0 %v3266, 4
    %v3645 = vpop.permute.xlu0 %3644
    %3646 = vrot.lane.b32.xlu0 %v3268, 4
    %v3647 = vpop.permute.xlu0 %3646
    %3648 = vrot.lane.b32.xlu0 %v3270, 4
    %v3649 = vpop.permute.xlu0 %3648
    %3650 = vrot.lane.b32.xlu0 %v3273, 4
    %v3651 = vpop.permute.xlu0 %3650
    %3652 = vrot.lane.b32.xlu0 %v3275, 4
    %v3653 = vpop.permute.xlu0 %3652
    %3654 = vrot.lane.b32.xlu0 %v3277, 4
    %v3655 = vpop.permute.xlu0 %3654
    %3656 = vrot.lane.b32.xlu0 %v3280, 4
    %v3657 = vpop.permute.xlu0 %3656
    %3658 = vrot.lane.b32.xlu0 %v3282, 4
    %v3659 = vpop.permute.xlu0 %3658
    %3660 = vrot.lane.b32.xlu0 %v3284, 4
    %v3661 = vpop.permute.xlu0 %3660
    %3662 = vrot.lane.b32.xlu0 %v3287, 4
    %v3663 = vpop.permute.xlu0 %3662
    %3664 = vrot.lane.b32.xlu0 %v3289, 4
    %v3665 = vpop.permute.xlu0 %3664
    %3666 = vrot.lane.b32.xlu0 %v3291, 4
    %v3667 = vpop.permute.xlu0 %3666
    %3668 = vrot.lane.b32.xlu0 %v3294, 4
    %v3669 = vpop.permute.xlu0 %3668
    %3670 = vrot.lane.b32.xlu0 %v3296, 4
    %v3671 = vpop.permute.xlu0 %3670
    %3672 = vrot.lane.b32.xlu0 %v3298, 4
    %v3673 = vpop.permute.xlu0 %3672
    %3674 = vrot.lane.b32.xlu0 %v3301, 4
    %v3675 = vpop.permute.xlu0 %3674
    %3676 = vrot.lane.b32.xlu0 %v3303, 4
    %v3677 = vpop.permute.xlu0 %3676
    %3678 = vrot.lane.b32.xlu0 %v3305, 4
    %v3679 = vpop.permute.xlu0 %3678
    %3680 = vrot.lane.b32.xlu0 %v3308, 4
    %v3681 = vpop.permute.xlu0 %3680
    %3682 = vrot.lane.b32.xlu0 %v3310, 4
    %v3683 = vpop.permute.xlu0 %3682
    %3684 = vrot.lane.b32.xlu0 %v3312, 4
    %v3685 = vpop.permute.xlu0 %3684
    %3686 = vrot.lane.b32.xlu0 %v3315, 4
    %v3687 = vpop.permute.xlu0 %3686
    %3688 = vrot.lane.b32.xlu0 %v3317, 4
    %v3689 = vpop.permute.xlu0 %3688
    %3690 = vrot.lane.b32.xlu0 %v3319, 4
    %v3691 = vpop.permute.xlu0 %3690
    %3692 = vrot.lane.b32.xlu0 %v3322, 4
    %v3693 = vpop.permute.xlu0 %3692
    %3694 = vrot.lane.b32.xlu0 %v3324, 4
    %v3695 = vpop.permute.xlu0 %3694
    %3696 = vrot.lane.b32.xlu0 %v3326, 4
    %v3697 = vpop.permute.xlu0 %3696
    %3698 = vrot.lane.b32.xlu0 %v3329, 4
    %v3699 = vpop.permute.xlu0 %3698
    %3700 = vrot.lane.b32.xlu0 %v3331, 4
    %v3701 = vpop.permute.xlu0 %3700
    %3702 = vrot.lane.b32.xlu0 %v3333, 4
    %v3703 = vpop.permute.xlu0 %3702
    %3704 = vrot.lane.b32.xlu0 %v3336, 4
    %v3705 = vpop.permute.xlu0 %3704
    %3706 = vrot.lane.b32.xlu0 %v3338, 4
    %v3707 = vpop.permute.xlu0 %3706
    %3708 = vrot.lane.b32.xlu0 %v3340, 4
    %v3709 = vpop.permute.xlu0 %3708
    %3710 = vrot.lane.b32.xlu0 %v3343, 4
    %v3711 = vpop.permute.xlu0 %3710
    %3712 = vrot.lane.b32.xlu0 %v3345, 4
    %v3713 = vpop.permute.xlu0 %3712
    %3714 = vrot.lane.b32.xlu0 %v3347, 4
    %v3715 = vpop.permute.xlu0 %3714
    %3716 = vrot.lane.b32.xlu0 %v3350, 4
    %v3717 = vpop.permute.xlu0 %3716
    %3718 = vrot.lane.b32.xlu0 %v3352, 4
    %v3719 = vpop.permute.xlu0 %3718
    %3720 = vrot.lane.b32.xlu0 %v3354, 4
    %v3721 = vpop.permute.xlu0 %3720
    %3722 = vrot.lane.b32.xlu0 %v3357, 4
    %v3723 = vpop.permute.xlu0 %3722
    %3724 = vrot.lane.b32.xlu0 %v3359, 4
    %v3725 = vpop.permute.xlu0 %3724
    %3726 = vrot.lane.b32.xlu0 %v3361, 4
    %v3727 = vpop.permute.xlu0 %3726
    %3728 = vrot.lane.b32.xlu0 %v3364, 4
    %v3729 = vpop.permute.xlu0 %3728
    %3730 = vrot.lane.b32.xlu0 %v3366, 4
    %v3731 = vpop.permute.xlu0 %3730
    %3732 = vrot.lane.b32.xlu0 %v3368, 4
    %v3733 = vpop.permute.xlu0 %3732
    %3734 = vrot.lane.b32.xlu0 %v3371, 4
    %v3735 = vpop.permute.xlu0 %3734
    %3736 = vrot.lane.b32.xlu0 %v3373, 4
    %v3737 = vpop.permute.xlu0 %3736
    %3738 = vrot.lane.b32.xlu0 %v3375, 4
    %v3739 = vpop.permute.xlu0 %3738
    %3740 = vrot.lane.b32.xlu0 %v3378, 4
    %v3741 = vpop.permute.xlu0 %3740
    %3742 = vrot.lane.b32.xlu0 %v3380, 4
    %v3743 = vpop.permute.xlu0 %3742
    %3744 = vrot.lane.b32.xlu0 %v3382, 4
    %v3745 = vpop.permute.xlu0 %3744
    %3746 = vrot.lane.b32.xlu0 %v3385, 4
    %v3747 = vpop.permute.xlu0 %3746
    %3748 = vrot.lane.b32.xlu0 %v3387, 4
    %v3749 = vpop.permute.xlu0 %3748
    %3750 = vrot.lane.b32.xlu0 %v3389, 4
    %v3751 = vpop.permute.xlu0 %3750
    %3752 = vrot.lane.b32.xlu0 %v3392, 4
    %v3753 = vpop.permute.xlu0 %3752
    %3754 = vrot.lane.b32.xlu0 %v3394, 4
    %v3755 = vpop.permute.xlu0 %3754
    %3756 = vrot.lane.b32.xlu0 %v3396, 4
    %v3757 = vpop.permute.xlu0 %3756
    %3758 = vrot.lane.b32.xlu0 %v3399, 4
    %v3759 = vpop.permute.xlu0 %3758
    %3760 = vrot.lane.b32.xlu0 %v3401, 4
    %v3761 = vpop.permute.xlu0 %3760
    %3762 = vrot.lane.b32.xlu0 %v3403, 4
    %v3763 = vpop.permute.xlu0 %3762
    %3764 = vrot.lane.b32.xlu0 %v3406, 4
    %v3765 = vpop.permute.xlu0 %3764
    %3766 = vrot.lane.b32.xlu0 %v3408, 4
    %v3767 = vpop.permute.xlu0 %3766
    %3768 = vrot.lane.b32.xlu0 %v3410, 4
    %v3769 = vpop.permute.xlu0 %3768
    %3770 = vrot.lane.b32.xlu0 %v3413, 4
    %v3771 = vpop.permute.xlu0 %3770
    %3772 = vrot.lane.b32.xlu0 %v3415, 4
    %v3773 = vpop.permute.xlu0 %3772
    %3774 = vrot.lane.b32.xlu0 %v3417, 4
    %v3775 = vpop.permute.xlu0 %3774
    %3776 = vrot.lane.b32.xlu0 %v3420, 4
    %v3777 = vpop.permute.xlu0 %3776
    %3778 = vrot.lane.b32.xlu0 %v3422, 4
    %v3779 = vpop.permute.xlu0 %3778
    %3780 = vrot.lane.b32.xlu0 %v3424, 4
    %v3781 = vpop.permute.xlu0 %3780
    %3782 = vrot.lane.b32.xlu0 %v3427, 4
    %v3783 = vpop.permute.xlu0 %3782
    %3784 = vrot.lane.b32.xlu0 %v3429, 4
    %v3785 = vpop.permute.xlu0 %3784
    %3786 = vrot.lane.b32.xlu0 %v3431, 4
    %v3787 = vpop.permute.xlu0 %3786
    %3788 = vrot.lane.b32.xlu0 %v3434, 4
    %v3789 = vpop.permute.xlu0 %3788
    %3790 = vrot.lane.b32.xlu0 %v3436, 4
    %v3791 = vpop.permute.xlu0 %3790
    %3792 = vrot.lane.b32.xlu0 %v3438, 4
    %v3793 = vpop.permute.xlu0 %3792
    %3794 = vrot.lane.b32.xlu0 %v3441, 4
    %v3795 = vpop.permute.xlu0 %3794
    %3796 = vrot.lane.b32.xlu0 %v3443, 4
    %v3797 = vpop.permute.xlu0 %3796
    %3798 = vrot.lane.b32.xlu0 %v3445, 4
    %v3799 = vpop.permute.xlu0 %3798
    %3800 = vrot.lane.b32.xlu0 %v3448, 4
    %v3801 = vpop.permute.xlu0 %3800
    %3802 = vrot.lane.b32.xlu0 %v3450, 4
    %v3803 = vpop.permute.xlu0 %3802
    %3804 = vrot.lane.b32.xlu0 %v3452, 4
    %v3805 = vpop.permute.xlu0 %3804
    %3806 = vrot.lane.b32.xlu0 %v3455, 4
    %v3807 = vpop.permute.xlu0 %3806
    %3808 = vrot.lane.b32.xlu0 %v3457, 4
    %v3809 = vpop.permute.xlu0 %3808
    %3810 = vrot.lane.b32.xlu0 %v3459, 4
    %v3811 = vpop.permute.xlu0 %3810
    %3812 = vrot.lane.b32.xlu0 %v3462, 4
    %v3813 = vpop.permute.xlu0 %3812
    %3814 = vrot.lane.b32.xlu0 %v3464, 4
    %v3815 = vpop.permute.xlu0 %3814
    %3816 = vrot.lane.b32.xlu0 %v3466, 4
    %v3817 = vpop.permute.xlu0 %3816
    %3818 = vrot.lane.b32.xlu0 %v3469, 4
    %v3819 = vpop.permute.xlu0 %3818
    %3820 = vrot.lane.b32.xlu0 %v3471, 4
    %v3821 = vpop.permute.xlu0 %3820
    %3822 = vrot.lane.b32.xlu0 %v3473, 4
    %v3823 = vpop.permute.xlu0 %3822
    %3824 = vrot.lane.b32.xlu0 %v3476, 4
    %v3825 = vpop.permute.xlu0 %3824
    %3826 = vrot.lane.b32.xlu0 %v3478, 4
    %v3827 = vpop.permute.xlu0 %3826
    %3828 = vrot.lane.b32.xlu0 %v3480, 4
    %v3829 = vpop.permute.xlu0 %3828
    %3830 = vrot.lane.b32.xlu0 %v3483, 4
    %v3831 = vpop.permute.xlu0 %3830
    %3832 = vrot.lane.b32.xlu0 %v3485, 4
    %v3833 = vpop.permute.xlu0 %3832
    %3834 = vrot.lane.b32.xlu0 %v3487, 4
    %v3835 = vpop.permute.xlu0 %3834
    %3836 = vrot.lane.b32.xlu0 %v3490, 4
    %v3837 = vpop.permute.xlu0 %3836
    %3838 = vrot.lane.b32.xlu0 %v3492, 4
    %v3839 = vpop.permute.xlu0 %3838
    %3840 = vrot.lane.b32.xlu0 %v3494, 4
    %v3841 = vpop.permute.xlu0 %3840
    %3842 = vrot.lane.b32.xlu0 %v3497, 4
    %v3843 = vpop.permute.xlu0 %3842
    %3844 = vrot.lane.b32.xlu0 %v3499, 4
    %v3845 = vpop.permute.xlu0 %3844
    %3846 = vrot.lane.b32.xlu0 %v3501, 4
    %v3847 = vpop.permute.xlu0 %3846
    %3848 = vrot.lane.b32.xlu0 %v3504, 4
    %v3849 = vpop.permute.xlu0 %3848
    %3850 = vrot.lane.b32.xlu0 %v3506, 4
    %v3851 = vpop.permute.xlu0 %3850
    %3852 = vrot.lane.b32.xlu0 %v3508, 4
    %v3853 = vpop.permute.xlu0 %3852
    %3854 = vrot.lane.b32.xlu0 %v3511, 4
    %v3855 = vpop.permute.xlu0 %3854
    %3856 = vrot.lane.b32.xlu0 %v3513, 4
    %v3857 = vpop.permute.xlu0 %3856
    %3858 = vrot.lane.b32.xlu0 %v3515, 4
    %v3859 = vpop.permute.xlu0 %3858
    %3860 = vrot.lane.b32.xlu0 %v3518, 4
    %v3861 = vpop.permute.xlu0 %3860
    %3862 = vrot.lane.b32.xlu0 %v3520, 4
    %v3863 = vpop.permute.xlu0 %3862
    %3864 = vrot.lane.b32.xlu0 %v3522, 4
    %v3865 = vpop.permute.xlu0 %3864
    %3866 = vrot.lane.b32.xlu0 %v3525, 4
    %v3867 = vpop.permute.xlu0 %3866
    %3868 = vrot.lane.b32.xlu0 %v3527, 4
    %v3869 = vpop.permute.xlu0 %3868
    %3870 = vrot.lane.b32.xlu0 %v3529, 4
    %v3871 = vpop.permute.xlu0 %3870
    %3872 = vrot.lane.b32.xlu0 %v3532, 4
    %v3873 = vpop.permute.xlu0 %3872
    %3874 = vrot.lane.b32.xlu0 %v3534, 4
    %v3875 = vpop.permute.xlu0 %3874
    %3876 = vrot.lane.b32.xlu0 %v3536, 4
    %v3877 = vpop.permute.xlu0 %3876
    %3878 = vrot.lane.b32.xlu0 %v3539, 4
    %v3879 = vpop.permute.xlu0 %3878
    %3880 = vrot.lane.b32.xlu0 %v3541, 4
    %v3881 = vpop.permute.xlu0 %3880
    %3882 = vrot.lane.b32.xlu0 %v3543, 4
    %v3883 = vpop.permute.xlu0 %3882
    %3884 = vrot.lane.b32.xlu0 %v3546, 4
    %v3885 = vpop.permute.xlu0 %3884
    %3886 = vrot.lane.b32.xlu0 %v3548, 4
    %v3887 = vpop.permute.xlu0 %3886
    %3888 = vrot.lane.b32.xlu0 %v3550, 4
    %v3889 = vpop.permute.xlu0 %3888
    %3890 = vrot.lane.b32.xlu0 %v3553, 4
    %v3891 = vpop.permute.xlu0 %3890
    %3892 = vrot.lane.b32.xlu0 %v3555, 4
    %v3893 = vpop.permute.xlu0 %3892
    %3894 = vrot.lane.b32.xlu0 %v3557, 4
    %v3895 = vpop.permute.xlu0 %3894
    %3896 = vrot.lane.b32.xlu0 %v3560, 4
    %v3897 = vpop.permute.xlu0 %3896
    %3898 = vrot.lane.b32.xlu0 %v3562, 4
    %v3899 = vpop.permute.xlu0 %3898
    %3900 = vrot.lane.b32.xlu0 %v3564, 4
    %v3901 = vpop.permute.xlu0 %3900
    %3902 = vrot.lane.b32.xlu0 %v3567, 4
    %v3903 = vpop.permute.xlu0 %3902
    %3904 = vrot.lane.b32.xlu0 %v3569, 4
    %v3905 = vpop.permute.xlu0 %3904
    %3906 = vrot.lane.b32.xlu0 %v3571, 4
    %v3907 = vpop.permute.xlu0 %3906
    %vm4076 = vcmask 7168
    %v4077 = vsel %vm4076, %v40, %v882
    %v4078 = vsel %vm4076, %v41, %v884
    %v4079 = vsel %vm4076, %v42, %v886
    %v4080 = vsel %vm4076, %v44, %v888
    %v4081 = vsel %vm4076, %v45, %v890
    %v4082 = vsel %vm4076, %v46, %v892
    %v4083 = vsel %vm4076, %v48, %v894
    %v4084 = vsel %vm4076, %v49, %v896
    %v4085 = vsel %vm4076, %v50, %v898
    %v4086 = vsel %vm4076, %v52, %v900
    %v4087 = vsel %vm4076, %v53, %v902
    %v4088 = vsel %vm4076, %v54, %v904
    %v4089 = vsel %vm4076, %v56, %v906
    %v4090 = vsel %vm4076, %v57, %v908
    %v4091 = vsel %vm4076, %v58, %v910
    %v4092 = vsel %vm4076, %v60, %v912
    %v4093 = vsel %vm4076, %v61, %v914
    %v4094 = vsel %vm4076, %v62, %v916
    %v4095 = vsel %vm4076, %v64, %v918
    %v4096 = vsel %vm4076, %v65, %v920
    %v4097 = vsel %vm4076, %v66, %v922
    %v4098 = vsel %vm4076, %v68, %v924
    %v4099 = vsel %vm4076, %v69, %v926
    %v4100 = vsel %vm4076, %v70, %v928
    %v4101 = vsel %vm4076, %v72, %v930
    %v4102 = vsel %vm4076, %v73, %v932
    %v4103 = vsel %vm4076, %v74, %v934
    %v4104 = vsel %vm4076, %v76, %v936
    %v4105 = vsel %vm4076, %v77, %v938
    %v4106 = vsel %vm4076, %v78, %v940
    %v4107 = vsel %vm4076, %v80, %v942
    %v4108 = vsel %vm4076, %v81, %v944
    %v4109 = vsel %vm4076, %v82, %v946
    %v4110 = vsel %vm4076, %v84, %v948
    %v4111 = vsel %vm4076, %v85, %v950
    %v4112 = vsel %vm4076, %v86, %v952
    %v4113 = vsel %vm4076, %v88, %v954
    %v4114 = vsel %vm4076, %v89, %v956
    %v4115 = vsel %vm4076, %v90, %v958
    %v4116 = vsel %vm4076, %v92, %v960
    %v4117 = vsel %vm4076, %v93, %v962
    %v4118 = vsel %vm4076, %v94, %v964
    %v4119 = vsel %vm4076, %v96, %v966
    %v4120 = vsel %vm4076, %v97, %v968
    %v4121 = vsel %vm4076, %v98, %v970
    %v4122 = vsel %vm4076, %v100, %v972
    %v4123 = vsel %vm4076, %v101, %v974
    %v4124 = vsel %vm4076, %v102, %v976
    %v4125 = vsel %vm4076, %v104, %v978
    %v4126 = vsel %vm4076, %v105, %v980
    %v4127 = vsel %vm4076, %v106, %v982
    %v4128 = vsel %vm4076, %v108, %v984
    %v4129 = vsel %vm4076, %v109, %v986
    %v4130 = vsel %vm4076, %v110, %v988
    %v4131 = vsel %vm4076, %v112, %v990
    %v4132 = vsel %vm4076, %v113, %v992
    %v4133 = vsel %vm4076, %v114, %v994
    %v4134 = vsel %vm4076, %v116, %v996
    %v4135 = vsel %vm4076, %v117, %v998
    %v4136 = vsel %vm4076, %v118, %v1000
    %v4137 = vsel %vm4076, %v120, %v1002
    %v4138 = vsel %vm4076, %v121, %v1004
    %v4139 = vsel %vm4076, %v122, %v1006
    %v4140 = vsel %vm4076, %v124, %v1008
    %v4141 = vsel %vm4076, %v125, %v1010
    %v4142 = vsel %vm4076, %v126, %v1012
    %v4143 = vsel %vm4076, %v128, %v1014
    %v4144 = vsel %vm4076, %v129, %v1016
    %v4145 = vsel %vm4076, %v130, %v1018
    %v4146 = vsel %vm4076, %v132, %v1020
    %v4147 = vsel %vm4076, %v133, %v1022
    %v4148 = vsel %vm4076, %v134, %v1024
    %v4149 = vsel %vm4076, %v136, %v1026
    %v4150 = vsel %vm4076, %v137, %v1028
    %v4151 = vsel %vm4076, %v138, %v1030
    %v4152 = vsel %vm4076, %v140, %v1032
    %v4153 = vsel %vm4076, %v141, %v1034
    %v4154 = vsel %vm4076, %v142, %v1036
    %v4155 = vsel %vm4076, %v144, %v1038
    %v4156 = vsel %vm4076, %v145, %v1040
    %v4157 = vsel %vm4076, %v146, %v1042
    %v4158 = vsel %vm4076, %v148, %v1044
    %v4159 = vsel %vm4076, %v149, %v1046
    %v4160 = vsel %vm4076, %v150, %v1048
    %v4161 = vsel %vm4076, %v152, %v1050
    %v4162 = vsel %vm4076, %v153, %v1052
    %v4163 = vsel %vm4076, %v154, %v1054
    %v4164 = vsel %vm4076, %v156, %v1056
    %v4165 = vsel %vm4076, %v157, %v1058
    %v4166 = vsel %vm4076, %v158, %v1060
    %v4167 = vsel %vm4076, %v160, %v1062
    %v4168 = vsel %vm4076, %v161, %v1064
    %v4169 = vsel %vm4076, %v162, %v1066
    %v4170 = vsel %vm4076, %v164, %v1068
    %v4171 = vsel %vm4076, %v165, %v1070
    %v4172 = vsel %vm4076, %v166, %v1072
    %v4173 = vsel %vm4076, %v168, %v1074
    %v4174 = vsel %vm4076, %v169, %v1076
    %v4175 = vsel %vm4076, %v170, %v1078
    %v4176 = vsel %vm4076, %v172, %v1080
    %v4177 = vsel %vm4076, %v173, %v1082
    %v4178 = vsel %vm4076, %v174, %v1084
    %v4179 = vsel %vm4076, %v176, %v1086
    %v4180 = vsel %vm4076, %v177, %v1088
    %v4181 = vsel %vm4076, %v178, %v1090
    %v4182 = vsel %vm4076, %v180, %v1092
    %v4183 = vsel %vm4076, %v181, %v1094
    %v4184 = vsel %vm4076, %v182, %v1096
    %v4185 = vsel %vm4076, %v184, %v1098
    %v4186 = vsel %vm4076, %v185, %v1100
    %v4187 = vsel %vm4076, %v186, %v1102
    %v4188 = vsel %vm4076, %v188, %v1104
    %v4189 = vsel %vm4076, %v189, %v1106
    %v4190 = vsel %vm4076, %v190, %v1108
    %v4191 = vsel %vm4076, %v192, %v1110
    %v4192 = vsel %vm4076, %v193, %v1112
    %v4193 = vsel %vm4076, %v194, %v1114
    %v4194 = vsel %vm4076, %v196, %v1116
    %v4195 = vsel %vm4076, %v197, %v1118
    %v4196 = vsel %vm4076, %v198, %v1120
    %v4197 = vsel %vm4076, %v200, %v1122
    %v4198 = vsel %vm4076, %v201, %v1124
    %v4199 = vsel %vm4076, %v202, %v1126
    %v4200 = vsel %vm4076, %v204, %v1128
    %v4201 = vsel %vm4076, %v205, %v1130
    %v4202 = vsel %vm4076, %v206, %v1132
    %v4203 = vsel %vm4076, %v208, %v1134
    %v4204 = vsel %vm4076, %v209, %v1136
    %v4205 = vsel %vm4076, %v210, %v1138
    %v4206 = vsel %vm4076, %v212, %v1140
    %v4207 = vsel %vm4076, %v213, %v1142
    %v4208 = vsel %vm4076, %v214, %v1144
    %v4209 = vsel %vm4076, %v216, %v1146
    %v4210 = vsel %vm4076, %v217, %v1148
    %v4211 = vsel %vm4076, %v218, %v1150
    %v4212 = vsel %vm4076, %v220, %v1152
    %v4213 = vsel %vm4076, %v221, %v1154
    %v4214 = vsel %vm4076, %v222, %v1156
    %v4215 = vsel %vm4076, %v224, %v1158
    %v4216 = vsel %vm4076, %v225, %v1160
    %v4217 = vsel %vm4076, %v226, %v1162
    %v4218 = vsel %vm4076, %v228, %v1164
    %v4219 = vsel %vm4076, %v229, %v1166
    %v4220 = vsel %vm4076, %v230, %v1168
    %v4221 = vsel %vm4076, %v232, %v1170
    %v4222 = vsel %vm4076, %v233, %v1172
    %v4223 = vsel %vm4076, %v234, %v1174
    %v4224 = vsel %vm4076, %v236, %v1176
    %v4225 = vsel %vm4076, %v237, %v1178
    %v4226 = vsel %vm4076, %v238, %v1180
    %v4227 = vsel %vm4076, %v240, %v1182
    %v4228 = vsel %vm4076, %v241, %v1184
    %v4229 = vsel %vm4076, %v242, %v1186
    %v4230 = vsel %vm4076, %v244, %v1188
    %v4231 = vsel %vm4076, %v245, %v1190
    %v4232 = vsel %vm4076, %v246, %v1192
    %v4233 = vsel %vm4076, %v248, %v1194
    %v4234 = vsel %vm4076, %v249, %v1196
    %v4235 = vsel %vm4076, %v250, %v1198
    %v4236 = vsel %vm4076, %v252, %v1200
    %v4237 = vsel %vm4076, %v253, %v1202
    %v4238 = vsel %vm4076, %v254, %v1204
    %v4239 = vsel %vm4076, %v256, %v1206
    %v4240 = vsel %vm4076, %v257, %v1208
    %v4241 = vsel %vm4076, %v258, %v1210
    %v4242 = vsel %vm4076, %v260, %v1212
    %v4243 = vsel %vm4076, %v261, %v1214
    %v4244 = vsel %vm4076, %v262, %v1216
    %vm4245 = vcmask 15360
    %v4246 = vsel %vm4245, %v4077, %v1779
    %v4247 = vsel %vm4245, %v4078, %v1781
    %v4248 = vsel %vm4245, %v4079, %v1783
    %v4249 = vsel %vm4245, %v4080, %v1785
    %v4250 = vsel %vm4245, %v4081, %v1787
    %v4251 = vsel %vm4245, %v4082, %v1789
    %v4252 = vsel %vm4245, %v4083, %v1791
    %v4253 = vsel %vm4245, %v4084, %v1793
    %v4254 = vsel %vm4245, %v4085, %v1795
    %v4255 = vsel %vm4245, %v4086, %v1797
    %v4256 = vsel %vm4245, %v4087, %v1799
    %v4257 = vsel %vm4245, %v4088, %v1801
    %v4258 = vsel %vm4245, %v4089, %v1803
    %v4259 = vsel %vm4245, %v4090, %v1805
    %v4260 = vsel %vm4245, %v4091, %v1807
    %v4261 = vsel %vm4245, %v4092, %v1809
    %v4262 = vsel %vm4245, %v4093, %v1811
    %v4263 = vsel %vm4245, %v4094, %v1813
    %v4264 = vsel %vm4245, %v4095, %v1815
    %v4265 = vsel %vm4245, %v4096, %v1817
    %v4266 = vsel %vm4245, %v4097, %v1819
    %v4267 = vsel %vm4245, %v4098, %v1821
    %v4268 = vsel %vm4245, %v4099, %v1823
    %v4269 = vsel %vm4245, %v4100, %v1825
    %v4270 = vsel %vm4245, %v4101, %v1827
    %v4271 = vsel %vm4245, %v4102, %v1829
    %v4272 = vsel %vm4245, %v4103, %v1831
    %v4273 = vsel %vm4245, %v4104, %v1833
    %v4274 = vsel %vm4245, %v4105, %v1835
    %v4275 = vsel %vm4245, %v4106, %v1837
    %v4276 = vsel %vm4245, %v4107, %v1839
    %v4277 = vsel %vm4245, %v4108, %v1841
    %v4278 = vsel %vm4245, %v4109, %v1843
    %v4279 = vsel %vm4245, %v4110, %v1845
    %v4280 = vsel %vm4245, %v4111, %v1847
    %v4281 = vsel %vm4245, %v4112, %v1849
    %v4282 = vsel %vm4245, %v4113, %v1851
    %v4283 = vsel %vm4245, %v4114, %v1853
    %v4284 = vsel %vm4245, %v4115, %v1855
    %v4285 = vsel %vm4245, %v4116, %v1857
    %v4286 = vsel %vm4245, %v4117, %v1859
    %v4287 = vsel %vm4245, %v4118, %v1861
    %v4288 = vsel %vm4245, %v4119, %v1863
    %v4289 = vsel %vm4245, %v4120, %v1865
    %v4290 = vsel %vm4245, %v4121, %v1867
    %v4291 = vsel %vm4245, %v4122, %v1869
    %v4292 = vsel %vm4245, %v4123, %v1871
    %v4293 = vsel %vm4245, %v4124, %v1873
    %v4294 = vsel %vm4245, %v4125, %v1875
    %v4295 = vsel %vm4245, %v4126, %v1877
    %v4296 = vsel %vm4245, %v4127, %v1879
    %v4297 = vsel %vm4245, %v4128, %v1881
    %v4298 = vsel %vm4245, %v4129, %v1883
    %v4299 = vsel %vm4245, %v4130, %v1885
    %v4300 = vsel %vm4245, %v4131, %v1887
    %v4301 = vsel %vm4245, %v4132, %v1889
    %v4302 = vsel %vm4245, %v4133, %v1891
    %v4303 = vsel %vm4245, %v4134, %v1893
    %v4304 = vsel %vm4245, %v4135, %v1895
    %v4305 = vsel %vm4245, %v4136, %v1897
    %v4306 = vsel %vm4245, %v4137, %v1899
    %v4307 = vsel %vm4245, %v4138, %v1901
    %v4308 = vsel %vm4245, %v4139, %v1903
    %v4309 = vsel %vm4245, %v4140, %v1905
    %v4310 = vsel %vm4245, %v4141, %v1907
    %v4311 = vsel %vm4245, %v4142, %v1909
    %v4312 = vsel %vm4245, %v4143, %v1911
    %v4313 = vsel %vm4245, %v4144, %v1913
    %v4314 = vsel %vm4245, %v4145, %v1915
    %v4315 = vsel %vm4245, %v4146, %v1917
    %v4316 = vsel %vm4245, %v4147, %v1919
    %v4317 = vsel %vm4245, %v4148, %v1921
    %v4318 = vsel %vm4245, %v4149, %v1923
    %v4319 = vsel %vm4245, %v4150, %v1925
    %v4320 = vsel %vm4245, %v4151, %v1927
    %v4321 = vsel %vm4245, %v4152, %v1929
    %v4322 = vsel %vm4245, %v4153, %v1931
    %v4323 = vsel %vm4245, %v4154, %v1933
    %v4324 = vsel %vm4245, %v4155, %v1935
    %v4325 = vsel %vm4245, %v4156, %v1937
    %v4326 = vsel %vm4245, %v4157, %v1939
    %v4327 = vsel %vm4245, %v4158, %v1941
    %v4328 = vsel %vm4245, %v4159, %v1943
    %v4329 = vsel %vm4245, %v4160, %v1945
    %v4330 = vsel %vm4245, %v4161, %v1947
    %v4331 = vsel %vm4245, %v4162, %v1949
    %v4332 = vsel %vm4245, %v4163, %v1951
    %v4333 = vsel %vm4245, %v4164, %v1953
    %v4334 = vsel %vm4245, %v4165, %v1955
    %v4335 = vsel %vm4245, %v4166, %v1957
    %v4336 = vsel %vm4245, %v4167, %v1959
    %v4337 = vsel %vm4245, %v4168, %v1961
    %v4338 = vsel %vm4245, %v4169, %v1963
    %v4339 = vsel %vm4245, %v4170, %v1965
    %v4340 = vsel %vm4245, %v4171, %v1967
    %v4341 = vsel %vm4245, %v4172, %v1969
    %v4342 = vsel %vm4245, %v4173, %v1971
    %v4343 = vsel %vm4245, %v4174, %v1973
    %v4344 = vsel %vm4245, %v4175, %v1975
    %v4345 = vsel %vm4245, %v4176, %v1977
    %v4346 = vsel %vm4245, %v4177, %v1979
    %v4347 = vsel %vm4245, %v4178, %v1981
    %v4348 = vsel %vm4245, %v4179, %v1983
    %v4349 = vsel %vm4245, %v4180, %v1985
    %v4350 = vsel %vm4245, %v4181, %v1987
    %v4351 = vsel %vm4245, %v4182, %v1989
    %v4352 = vsel %vm4245, %v4183, %v1991
    %v4353 = vsel %vm4245, %v4184, %v1993
    %v4354 = vsel %vm4245, %v4185, %v1995
    %v4355 = vsel %vm4245, %v4186, %v1997
    %v4356 = vsel %vm4245, %v4187, %v1999
    %v4357 = vsel %vm4245, %v4188, %v2001
    %v4358 = vsel %vm4245, %v4189, %v2003
    %v4359 = vsel %vm4245, %v4190, %v2005
    %v4360 = vsel %vm4245, %v4191, %v2007
    %v4361 = vsel %vm4245, %v4192, %v2009
    %v4362 = vsel %vm4245, %v4193, %v2011
    %v4363 = vsel %vm4245, %v4194, %v2013
    %v4364 = vsel %vm4245, %v4195, %v2015
    %v4365 = vsel %vm4245, %v4196, %v2017
    %v4366 = vsel %vm4245, %v4197, %v2019
    %v4367 = vsel %vm4245, %v4198, %v2021
    %v4368 = vsel %vm4245, %v4199, %v2023
    %v4369 = vsel %vm4245, %v4200, %v2025
    %v4370 = vsel %vm4245, %v4201, %v2027
    %v4371 = vsel %vm4245, %v4202, %v2029
    %v4372 = vsel %vm4245, %v4203, %v2031
    %v4373 = vsel %vm4245, %v4204, %v2033
    %v4374 = vsel %vm4245, %v4205, %v2035
    %v4375 = vsel %vm4245, %v4206, %v2037
    %v4376 = vsel %vm4245, %v4207, %v2039
    %v4377 = vsel %vm4245, %v4208, %v2041
    %v4378 = vsel %vm4245, %v4209, %v2043
    %v4379 = vsel %vm4245, %v4210, %v2045
    %v4380 = vsel %vm4245, %v4211, %v2047
    %v4381 = vsel %vm4245, %v4212, %v2049
    %v4382 = vsel %vm4245, %v4213, %v2051
    %v4383 = vsel %vm4245, %v4214, %v2053
    %v4384 = vsel %vm4245, %v4215, %v2055
    %v4385 = vsel %vm4245, %v4216, %v2057
    %v4386 = vsel %vm4245, %v4217, %v2059
    %v4387 = vsel %vm4245, %v4218, %v2061
    %v4388 = vsel %vm4245, %v4219, %v2063
    %v4389 = vsel %vm4245, %v4220, %v2065
    %v4390 = vsel %vm4245, %v4221, %v2067
    %v4391 = vsel %vm4245, %v4222, %v2069
    %v4392 = vsel %vm4245, %v4223, %v2071
    %v4393 = vsel %vm4245, %v4224, %v2073
    %v4394 = vsel %vm4245, %v4225, %v2075
    %v4395 = vsel %vm4245, %v4226, %v2077
    %v4396 = vsel %vm4245, %v4227, %v2079
    %v4397 = vsel %vm4245, %v4228, %v2081
    %v4398 = vsel %vm4245, %v4229, %v2083
    %v4399 = vsel %vm4245, %v4230, %v2085
    %v4400 = vsel %vm4245, %v4231, %v2087
    %v4401 = vsel %vm4245, %v4232, %v2089
    %v4402 = vsel %vm4245, %v4233, %v2091
    %v4403 = vsel %vm4245, %v4234, %v2093
    %v4404 = vsel %vm4245, %v4235, %v2095
    %v4405 = vsel %vm4245, %v4236, %v2097
    %v4406 = vsel %vm4245, %v4237, %v2099
    %v4407 = vsel %vm4245, %v4238, %v2101
    %v4408 = vsel %vm4245, %v4239, %v2103
    %v4409 = vsel %vm4245, %v4240, %v2105
    %v4410 = vsel %vm4245, %v4241, %v2107
    %v4411 = vsel %vm4245, %v4242, %v2109
    %v4412 = vsel %vm4245, %v4243, %v2111
    %v4413 = vsel %vm4245, %v4244, %v2113
    %vm4414 = vcmask 23552
    %v4415 = vsel %vm4414, %v4246, %v2676
    %v4416 = vsel %vm4414, %v4247, %v2678
    %v4417 = vsel %vm4414, %v4248, %v2680
    %v4418 = vsel %vm4414, %v4249, %v2682
    %v4419 = vsel %vm4414, %v4250, %v2684
    %v4420 = vsel %vm4414, %v4251, %v2686
    %v4421 = vsel %vm4414, %v4252, %v2688
    %v4422 = vsel %vm4414, %v4253, %v2690
    %v4423 = vsel %vm4414, %v4254, %v2692
    %v4424 = vsel %vm4414, %v4255, %v2694
    %v4425 = vsel %vm4414, %v4256, %v2696
    %v4426 = vsel %vm4414, %v4257, %v2698
    %v4427 = vsel %vm4414, %v4258, %v2700
    %v4428 = vsel %vm4414, %v4259, %v2702
    %v4429 = vsel %vm4414, %v4260, %v2704
    %v4430 = vsel %vm4414, %v4261, %v2706
    %v4431 = vsel %vm4414, %v4262, %v2708
    %v4432 = vsel %vm4414, %v4263, %v2710
    %v4433 = vsel %vm4414, %v4264, %v2712
    %v4434 = vsel %vm4414, %v4265, %v2714
    %v4435 = vsel %vm4414, %v4266, %v2716
    %v4436 = vsel %vm4414, %v4267, %v2718
    %v4437 = vsel %vm4414, %v4268, %v2720
    %v4438 = vsel %vm4414, %v4269, %v2722
    %v4439 = vsel %vm4414, %v4270, %v2724
    %v4440 = vsel %vm4414, %v4271, %v2726
    %v4441 = vsel %vm4414, %v4272, %v2728
    %v4442 = vsel %vm4414, %v4273, %v2730
    %v4443 = vsel %vm4414, %v4274, %v2732
    %v4444 = vsel %vm4414, %v4275, %v2734
    %v4445 = vsel %vm4414, %v4276, %v2736
    %v4446 = vsel %vm4414, %v4277, %v2738
    %v4447 = vsel %vm4414, %v4278, %v2740
    %v4448 = vsel %vm4414, %v4279, %v2742
    %v4449 = vsel %vm4414, %v4280, %v2744
    %v4450 = vsel %vm4414, %v4281, %v2746
    %v4451 = vsel %vm4414, %v4282, %v2748
    %v4452 = vsel %vm4414, %v4283, %v2750
    %v4453 = vsel %vm4414, %v4284, %v2752
    %v4454 = vsel %vm4414, %v4285, %v2754
    %v4455 = vsel %vm4414, %v4286, %v2756
    %v4456 = vsel %vm4414, %v4287, %v2758
    %v4457 = vsel %vm4414, %v4288, %v2760
    %v4458 = vsel %vm4414, %v4289, %v2762
    %v4459 = vsel %vm4414, %v4290, %v2764
    %v4460 = vsel %vm4414, %v4291, %v2766
    %v4461 = vsel %vm4414, %v4292, %v2768
    %v4462 = vsel %vm4414, %v4293, %v2770
    %v4463 = vsel %vm4414, %v4294, %v2772
    %v4464 = vsel %vm4414, %v4295, %v2774
    %v4465 = vsel %vm4414, %v4296, %v2776
    %v4466 = vsel %vm4414, %v4297, %v2778
    %v4467 = vsel %vm4414, %v4298, %v2780
    %v4468 = vsel %vm4414, %v4299, %v2782
    %v4469 = vsel %vm4414, %v4300, %v2784
    %v4470 = vsel %vm4414, %v4301, %v2786
    %v4471 = vsel %vm4414, %v4302, %v2788
    %v4472 = vsel %vm4414, %v4303, %v2790
    %v4473 = vsel %vm4414, %v4304, %v2792
    %v4474 = vsel %vm4414, %v4305, %v2794
    %v4475 = vsel %vm4414, %v4306, %v2796
    %v4476 = vsel %vm4414, %v4307, %v2798
    %v4477 = vsel %vm4414, %v4308, %v2800
    %v4478 = vsel %vm4414, %v4309, %v2802
    %v4479 = vsel %vm4414, %v4310, %v2804
    %v4480 = vsel %vm4414, %v4311, %v2806
    %v4481 = vsel %vm4414, %v4312, %v2808
    %v4482 = vsel %vm4414, %v4313, %v2810
    %v4483 = vsel %vm4414, %v4314, %v2812
    %v4484 = vsel %vm4414, %v4315, %v2814
    %v4485 = vsel %vm4414, %v4316, %v2816
    %v4486 = vsel %vm4414, %v4317, %v2818
    %v4487 = vsel %vm4414, %v4318, %v2820
    %v4488 = vsel %vm4414, %v4319, %v2822
    %v4489 = vsel %vm4414, %v4320, %v2824
    %v4490 = vsel %vm4414, %v4321, %v2826
    %v4491 = vsel %vm4414, %v4322, %v2828
    %v4492 = vsel %vm4414, %v4323, %v2830
    %v4493 = vsel %vm4414, %v4324, %v2832
    %v4494 = vsel %vm4414, %v4325, %v2834
    %v4495 = vsel %vm4414, %v4326, %v2836
    %v4496 = vsel %vm4414, %v4327, %v2838
    %v4497 = vsel %vm4414, %v4328, %v2840
    %v4498 = vsel %vm4414, %v4329, %v2842
    %v4499 = vsel %vm4414, %v4330, %v2844
    %v4500 = vsel %vm4414, %v4331, %v2846
    %v4501 = vsel %vm4414, %v4332, %v2848
    %v4502 = vsel %vm4414, %v4333, %v2850
    %v4503 = vsel %vm4414, %v4334, %v2852
    %v4504 = vsel %vm4414, %v4335, %v2854
    %v4505 = vsel %vm4414, %v4336, %v2856
    %v4506 = vsel %vm4414, %v4337, %v2858
    %v4507 = vsel %vm4414, %v4338, %v2860
    %v4508 = vsel %vm4414, %v4339, %v2862
    %v4509 = vsel %vm4414, %v4340, %v2864
    %v4510 = vsel %vm4414, %v4341, %v2866
    %v4511 = vsel %vm4414, %v4342, %v2868
    %v4512 = vsel %vm4414, %v4343, %v2870
    %v4513 = vsel %vm4414, %v4344, %v2872
    %v4514 = vsel %vm4414, %v4345, %v2874
    %v4515 = vsel %vm4414, %v4346, %v2876
    %v4516 = vsel %vm4414, %v4347, %v2878
    %v4517 = vsel %vm4414, %v4348, %v2880
    %v4518 = vsel %vm4414, %v4349, %v2882
    %v4519 = vsel %vm4414, %v4350, %v2884
    %v4520 = vsel %vm4414, %v4351, %v2886
    %v4521 = vsel %vm4414, %v4352, %v2888
    %v4522 = vsel %vm4414, %v4353, %v2890
    %v4523 = vsel %vm4414, %v4354, %v2892
    %v4524 = vsel %vm4414, %v4355, %v2894
    %v4525 = vsel %vm4414, %v4356, %v2896
    %v4526 = vsel %vm4414, %v4357, %v2898
    %v4527 = vsel %vm4414, %v4358, %v2900
    %v4528 = vsel %vm4414, %v4359, %v2902
    %v4529 = vsel %vm4414, %v4360, %v2904
    %v4530 = vsel %vm4414, %v4361, %v2906
    %v4531 = vsel %vm4414, %v4362, %v2908
    %v4532 = vsel %vm4414, %v4363, %v2910
    %v4533 = vsel %vm4414, %v4364, %v2912
    %v4534 = vsel %vm4414, %v4365, %v2914
    %v4535 = vsel %vm4414, %v4366, %v2916
    %v4536 = vsel %vm4414, %v4367, %v2918
    %v4537 = vsel %vm4414, %v4368, %v2920
    %v4538 = vsel %vm4414, %v4369, %v2922
    %v4539 = vsel %vm4414, %v4370, %v2924
    %v4540 = vsel %vm4414, %v4371, %v2926
    %v4541 = vsel %vm4414, %v4372, %v2928
    %v4542 = vsel %vm4414, %v4373, %v2930
    %v4543 = vsel %vm4414, %v4374, %v2932
    %v4544 = vsel %vm4414, %v4375, %v2934
    %v4545 = vsel %vm4414, %v4376, %v2936
    %v4546 = vsel %vm4414, %v4377, %v2938
    %v4547 = vsel %vm4414, %v4378, %v2940
    %v4548 = vsel %vm4414, %v4379, %v2942
    %v4549 = vsel %vm4414, %v4380, %v2944
    %v4550 = vsel %vm4414, %v4381, %v2946
    %v4551 = vsel %vm4414, %v4382, %v2948
    %v4552 = vsel %vm4414, %v4383, %v2950
    %v4553 = vsel %vm4414, %v4384, %v2952
    %v4554 = vsel %vm4414, %v4385, %v2954
    %v4555 = vsel %vm4414, %v4386, %v2956
    %v4556 = vsel %vm4414, %v4387, %v2958
    %v4557 = vsel %vm4414, %v4388, %v2960
    %v4558 = vsel %vm4414, %v4389, %v2962
    %v4559 = vsel %vm4414, %v4390, %v2964
    %v4560 = vsel %vm4414, %v4391, %v2966
    %v4561 = vsel %vm4414, %v4392, %v2968
    %v4562 = vsel %vm4414, %v4393, %v2970
    %v4563 = vsel %vm4414, %v4394, %v2972
    %v4564 = vsel %vm4414, %v4395, %v2974
    %v4565 = vsel %vm4414, %v4396, %v2976
    %v4566 = vsel %vm4414, %v4397, %v2978
    %v4567 = vsel %vm4414, %v4398, %v2980
    %v4568 = vsel %vm4414, %v4399, %v2982
    %v4569 = vsel %vm4414, %v4400, %v2984
    %v4570 = vsel %vm4414, %v4401, %v2986
    %v4571 = vsel %vm4414, %v4402, %v2988
    %v4572 = vsel %vm4414, %v4403, %v2990
    %v4573 = vsel %vm4414, %v4404, %v2992
    %v4574 = vsel %vm4414, %v4405, %v2994
    %v4575 = vsel %vm4414, %v4406, %v2996
    %v4576 = vsel %vm4414, %v4407, %v2998
    %v4577 = vsel %vm4414, %v4408, %v3000
    %v4578 = vsel %vm4414, %v4409, %v3002
    %v4579 = vsel %vm4414, %v4410, %v3004
    %v4580 = vsel %vm4414, %v4411, %v3006
    %v4581 = vsel %vm4414, %v4412, %v3008
    %v4582 = vsel %vm4414, %v4413, %v3010
    %vm4583 = vcmask 31744
    %v4584 = vsel %vm4583, %v4415, %v3573
    %v4585 = vsel %vm4583, %v4416, %v3575
    %v4586 = vsel %vm4583, %v4417, %v3577
    %v4587 = vsel %vm4583, %v4418, %v3579
    %v4588 = vsel %vm4583, %v4419, %v3581
    %v4589 = vsel %vm4583, %v4420, %v3583
    %v4590 = vsel %vm4583, %v4421, %v3585
    %v4591 = vsel %vm4583, %v4422, %v3587
    %v4592 = vsel %vm4583, %v4423, %v3589
    %v4593 = vsel %vm4583, %v4424, %v3591
    %v4594 = vsel %vm4583, %v4425, %v3593
    %v4595 = vsel %vm4583, %v4426, %v3595
    %v4596 = vsel %vm4583, %v4427, %v3597
    %v4597 = vsel %vm4583, %v4428, %v3599
    %v4598 = vsel %vm4583, %v4429, %v3601
    %v4599 = vsel %vm4583, %v4430, %v3603
    %v4600 = vsel %vm4583, %v4431, %v3605
    %v4601 = vsel %vm4583, %v4432, %v3607
    %v4602 = vsel %vm4583, %v4433, %v3609
    %v4603 = vsel %vm4583, %v4434, %v3611
    %v4604 = vsel %vm4583, %v4435, %v3613
    %v4605 = vsel %vm4583, %v4436, %v3615
    %v4606 = vsel %vm4583, %v4437, %v3617
    %v4607 = vsel %vm4583, %v4438, %v3619
    %v4608 = vsel %vm4583, %v4439, %v3621
    %v4609 = vsel %vm4583, %v4440, %v3623
    %v4610 = vsel %vm4583, %v4441, %v3625
    %v4611 = vsel %vm4583, %v4442, %v3627
    %v4612 = vsel %vm4583, %v4443, %v3629
    %v4613 = vsel %vm4583, %v4444, %v3631
    %v4614 = vsel %vm4583, %v4445, %v3633
    %v4615 = vsel %vm4583, %v4446, %v3635
    %v4616 = vsel %vm4583, %v4447, %v3637
    %v4617 = vsel %vm4583, %v4448, %v3639
    %v4618 = vsel %vm4583, %v4449, %v3641
    %v4619 = vsel %vm4583, %v4450, %v3643
    %v4620 = vsel %vm4583, %v4451, %v3645
    %v4621 = vsel %vm4583, %v4452, %v3647
    %v4622 = vsel %vm4583, %v4453, %v3649
    %v4623 = vsel %vm4583, %v4454, %v3651
    %v4624 = vsel %vm4583, %v4455, %v3653
    %v4625 = vsel %vm4583, %v4456, %v3655
    %v4626 = vsel %vm4583, %v4457, %v3657
    %v4627 = vsel %vm4583, %v4458, %v3659
    %v4628 = vsel %vm4583, %v4459, %v3661
    %v4629 = vsel %vm4583, %v4460, %v3663
    %v4630 = vsel %vm4583, %v4461, %v3665
    %v4631 = vsel %vm4583, %v4462, %v3667
    %v4632 = vsel %vm4583, %v4463, %v3669
    %v4633 = vsel %vm4583, %v4464, %v3671
    %v4634 = vsel %vm4583, %v4465, %v3673
    %v4635 = vsel %vm4583, %v4466, %v3675
    %v4636 = vsel %vm4583, %v4467, %v3677
    %v4637 = vsel %vm4583, %v4468, %v3679
    %v4638 = vsel %vm4583, %v4469, %v3681
    %v4639 = vsel %vm4583, %v4470, %v3683
    %v4640 = vsel %vm4583, %v4471, %v3685
    %v4641 = vsel %vm4583, %v4472, %v3687
    %v4642 = vsel %vm4583, %v4473, %v3689
    %v4643 = vsel %vm4583, %v4474, %v3691
    %v4644 = vsel %vm4583, %v4475, %v3693
    %v4645 = vsel %vm4583, %v4476, %v3695
    %v4646 = vsel %vm4583, %v4477, %v3697
    %v4647 = vsel %vm4583, %v4478, %v3699
    %v4648 = vsel %vm4583, %v4479, %v3701
    %v4649 = vsel %vm4583, %v4480, %v3703
    %v4650 = vsel %vm4583, %v4481, %v3705
    %v4651 = vsel %vm4583, %v4482, %v3707
    %v4652 = vsel %vm4583, %v4483, %v3709
    %v4653 = vsel %vm4583, %v4484, %v3711
    %v4654 = vsel %vm4583, %v4485, %v3713
    %v4655 = vsel %vm4583, %v4486, %v3715
    %v4656 = vsel %vm4583, %v4487, %v3717
    %v4657 = vsel %vm4583, %v4488, %v3719
    %v4658 = vsel %vm4583, %v4489, %v3721
    %v4659 = vsel %vm4583, %v4490, %v3723
    %v4660 = vsel %vm4583, %v4491, %v3725
    %v4661 = vsel %vm4583, %v4492, %v3727
    %v4662 = vsel %vm4583, %v4493, %v3729
    %v4663 = vsel %vm4583, %v4494, %v3731
    %v4664 = vsel %vm4583, %v4495, %v3733
    %v4665 = vsel %vm4583, %v4496, %v3735
    %v4666 = vsel %vm4583, %v4497, %v3737
    %v4667 = vsel %vm4583, %v4498, %v3739
    %v4668 = vsel %vm4583, %v4499, %v3741
    %v4669 = vsel %vm4583, %v4500, %v3743
    %v4670 = vsel %vm4583, %v4501, %v3745
    %v4671 = vsel %vm4583, %v4502, %v3747
    %v4672 = vsel %vm4583, %v4503, %v3749
    %v4673 = vsel %vm4583, %v4504, %v3751
    %v4674 = vsel %vm4583, %v4505, %v3753
    %v4675 = vsel %vm4583, %v4506, %v3755
    %v4676 = vsel %vm4583, %v4507, %v3757
    %v4677 = vsel %vm4583, %v4508, %v3759
    %v4678 = vsel %vm4583, %v4509, %v3761
    %v4679 = vsel %vm4583, %v4510, %v3763
    %v4680 = vsel %vm4583, %v4511, %v3765
    %v4681 = vsel %vm4583, %v4512, %v3767
    %v4682 = vsel %vm4583, %v4513, %v3769
    %v4683 = vsel %vm4583, %v4514, %v3771
    %v4684 = vsel %vm4583, %v4515, %v3773
    %v4685 = vsel %vm4583, %v4516, %v3775
    %v4686 = vsel %vm4583, %v4517, %v3777
    %v4687 = vsel %vm4583, %v4518, %v3779
    %v4688 = vsel %vm4583, %v4519, %v3781
    %v4689 = vsel %vm4583, %v4520, %v3783
    %v4690 = vsel %vm4583, %v4521, %v3785
    %v4691 = vsel %vm4583, %v4522, %v3787
    %v4692 = vsel %vm4583, %v4523, %v3789
    %v4693 = vsel %vm4583, %v4524, %v3791
    %v4694 = vsel %vm4583, %v4525, %v3793
    %v4695 = vsel %vm4583, %v4526, %v3795
    %v4696 = vsel %vm4583, %v4527, %v3797
    %v4697 = vsel %vm4583, %v4528, %v3799
    %v4698 = vsel %vm4583, %v4529, %v3801
    %v4699 = vsel %vm4583, %v4530, %v3803
    %v4700 = vsel %vm4583, %v4531, %v3805
    %v4701 = vsel %vm4583, %v4532, %v3807
    %v4702 = vsel %vm4583, %v4533, %v3809
    %v4703 = vsel %vm4583, %v4534, %v3811
    %v4704 = vsel %vm4583, %v4535, %v3813
    %v4705 = vsel %vm4583, %v4536, %v3815
    %v4706 = vsel %vm4583, %v4537, %v3817
    %v4707 = vsel %vm4583, %v4538, %v3819
    %v4708 = vsel %vm4583, %v4539, %v3821
    %v4709 = vsel %vm4583, %v4540, %v3823
    %v4710 = vsel %vm4583, %v4541, %v3825
    %v4711 = vsel %vm4583, %v4542, %v3827
    %v4712 = vsel %vm4583, %v4543, %v3829
    %v4713 = vsel %vm4583, %v4544, %v3831
    %v4714 = vsel %vm4583, %v4545, %v3833
    %v4715 = vsel %vm4583, %v4546, %v3835
    %v4716 = vsel %vm4583, %v4547, %v3837
    %v4717 = vsel %vm4583, %v4548, %v3839
    %v4718 = vsel %vm4583, %v4549, %v3841
    %v4719 = vsel %vm4583, %v4550, %v3843
    %v4720 = vsel %vm4583, %v4551, %v3845
    %v4721 = vsel %vm4583, %v4552, %v3847
    %v4722 = vsel %vm4583, %v4553, %v3849
    %v4723 = vsel %vm4583, %v4554, %v3851
    %v4724 = vsel %vm4583, %v4555, %v3853
    %v4725 = vsel %vm4583, %v4556, %v3855
    %v4726 = vsel %vm4583, %v4557, %v3857
    %v4727 = vsel %vm4583, %v4558, %v3859
    %v4728 = vsel %vm4583, %v4559, %v3861
    %v4729 = vsel %vm4583, %v4560, %v3863
    %v4730 = vsel %vm4583, %v4561, %v3865
    %v4731 = vsel %vm4583, %v4562, %v3867
    %v4732 = vsel %vm4583, %v4563, %v3869
    %v4733 = vsel %vm4583, %v4564, %v3871
    %v4734 = vsel %vm4583, %v4565, %v3873
    %v4735 = vsel %vm4583, %v4566, %v3875
    %v4736 = vsel %vm4583, %v4567, %v3877
    %v4737 = vsel %vm4583, %v4568, %v3879
    %v4738 = vsel %vm4583, %v4569, %v3881
    %v4739 = vsel %vm4583, %v4570, %v3883
    %v4740 = vsel %vm4583, %v4571, %v3885
    %v4741 = vsel %vm4583, %v4572, %v3887
    %v4742 = vsel %vm4583, %v4573, %v3889
    %v4743 = vsel %vm4583, %v4574, %v3891
    %v4744 = vsel %vm4583, %v4575, %v3893
    %v4745 = vsel %vm4583, %v4576, %v3895
    %v4746 = vsel %vm4583, %v4577, %v3897
    %v4747 = vsel %vm4583, %v4578, %v3899
    %v4748 = vsel %vm4583, %v4579, %v3901
    %v4749 = vsel %vm4583, %v4580, %v3903
    %v4750 = vsel %vm4583, %v4581, %v3905
    %v4751 = vsel %vm4583, %v4582, %v3907
    %4896 = vrot.lane.b32.xlu0 %v4587, 5
    %v4897 = vpop.permute.xlu0 %4896
    %4898 = vrot.lane.b32.xlu0 %v4588, 5
    %v4899 = vpop.permute.xlu0 %4898
    %4900 = vrot.lane.b32.xlu0 %v4589, 5
    %v4901 = vpop.permute.xlu0 %4900
    %4902 = vrot.lane.b32.xlu0 %v4590, 5
    %v4903 = vpop.permute.xlu0 %4902
    %4904 = vrot.lane.b32.xlu0 %v4591, 5
    %v4905 = vpop.permute.xlu0 %4904
    %4906 = vrot.lane.b32.xlu0 %v4592, 5
    %v4907 = vpop.permute.xlu0 %4906
    %4908 = vrot.lane.b32.xlu0 %v4593, 5
    %v4909 = vpop.permute.xlu0 %4908
    %4910 = vrot.lane.b32.xlu0 %v4594, 5
    %v4911 = vpop.permute.xlu0 %4910
    %4912 = vrot.lane.b32.xlu0 %v4595, 5
    %v4913 = vpop.permute.xlu0 %4912
    %4914 = vrot.lane.b32.xlu0 %v4596, 5
    %v4915 = vpop.permute.xlu0 %4914
    %4916 = vrot.lane.b32.xlu0 %v4597, 5
    %v4917 = vpop.permute.xlu0 %4916
    %4918 = vrot.lane.b32.xlu0 %v4598, 5
    %v4919 = vpop.permute.xlu0 %4918
    %4920 = vrot.lane.b32.xlu0 %v4599, 5
    %v4921 = vpop.permute.xlu0 %4920
    %4922 = vrot.lane.b32.xlu0 %v4600, 5
    %v4923 = vpop.permute.xlu0 %4922
    %4924 = vrot.lane.b32.xlu0 %v4601, 5
    %v4925 = vpop.permute.xlu0 %4924
    %4926 = vrot.lane.b32.xlu0 %v4602, 5
    %v4927 = vpop.permute.xlu0 %4926
    %4928 = vrot.lane.b32.xlu0 %v4603, 5
    %v4929 = vpop.permute.xlu0 %4928
    %4930 = vrot.lane.b32.xlu0 %v4604, 5
    %v4931 = vpop.permute.xlu0 %4930
    %4932 = vrot.lane.b32.xlu0 %v4605, 5
    %v4933 = vpop.permute.xlu0 %4932
    %4934 = vrot.lane.b32.xlu0 %v4606, 5
    %v4935 = vpop.permute.xlu0 %4934
    %4936 = vrot.lane.b32.xlu0 %v4607, 5
    %v4937 = vpop.permute.xlu0 %4936
    %4938 = vrot.lane.b32.xlu0 %v4608, 5
    %v4939 = vpop.permute.xlu0 %4938
    %4940 = vrot.lane.b32.xlu0 %v4609, 5
    %v4941 = vpop.permute.xlu0 %4940
    %4942 = vrot.lane.b32.xlu0 %v4610, 5
    %v4943 = vpop.permute.xlu0 %4942
    %4944 = vrot.lane.b32.xlu0 %v4611, 5
    %v4945 = vpop.permute.xlu0 %4944
    %4946 = vrot.lane.b32.xlu0 %v4612, 5
    %v4947 = vpop.permute.xlu0 %4946
    %4948 = vrot.lane.b32.xlu0 %v4613, 5
    %v4949 = vpop.permute.xlu0 %4948
    %4950 = vrot.lane.b32.xlu0 %v4614, 5
    %v4951 = vpop.permute.xlu0 %4950
    %4952 = vrot.lane.b32.xlu0 %v4615, 5
    %v4953 = vpop.permute.xlu0 %4952
    %4954 = vrot.lane.b32.xlu0 %v4616, 5
    %v4955 = vpop.permute.xlu0 %4954
    %4956 = vrot.lane.b32.xlu0 %v4617, 5
    %v4957 = vpop.permute.xlu0 %4956
    %4958 = vrot.lane.b32.xlu0 %v4618, 5
    %v4959 = vpop.permute.xlu0 %4958
    %4960 = vrot.lane.b32.xlu0 %v4619, 5
    %v4961 = vpop.permute.xlu0 %4960
    %4962 = vrot.lane.b32.xlu0 %v4620, 5
    %v4963 = vpop.permute.xlu0 %4962
    %4964 = vrot.lane.b32.xlu0 %v4621, 5
    %v4965 = vpop.permute.xlu0 %4964
    %4966 = vrot.lane.b32.xlu0 %v4622, 5
    %v4967 = vpop.permute.xlu0 %4966
    %4968 = vrot.lane.b32.xlu0 %v4623, 5
    %v4969 = vpop.permute.xlu0 %4968
    %4970 = vrot.lane.b32.xlu0 %v4624, 5
    %v4971 = vpop.permute.xlu0 %4970
    %4972 = vrot.lane.b32.xlu0 %v4625, 5
    %v4973 = vpop.permute.xlu0 %4972
    %4974 = vrot.lane.b32.xlu0 %v4626, 5
    %v4975 = vpop.permute.xlu0 %4974
    %4976 = vrot.lane.b32.xlu0 %v4627, 5
    %v4977 = vpop.permute.xlu0 %4976
    %4978 = vrot.lane.b32.xlu0 %v4628, 5
    %v4979 = vpop.permute.xlu0 %4978
    %4980 = vrot.lane.b32.xlu0 %v4629, 5
    %v4981 = vpop.permute.xlu0 %4980
    %4982 = vrot.lane.b32.xlu0 %v4630, 5
    %v4983 = vpop.permute.xlu0 %4982
    %4984 = vrot.lane.b32.xlu0 %v4631, 5
    %v4985 = vpop.permute.xlu0 %4984
    %4986 = vrot.lane.b32.xlu0 %v4632, 5
    %v4987 = vpop.permute.xlu0 %4986
    %4988 = vrot.lane.b32.xlu0 %v4633, 5
    %v4989 = vpop.permute.xlu0 %4988
    %4990 = vrot.lane.b32.xlu0 %v4634, 5
    %v4991 = vpop.permute.xlu0 %4990
    %4992 = vrot.lane.b32.xlu0 %v4635, 5
    %v4993 = vpop.permute.xlu0 %4992
    %4994 = vrot.lane.b32.xlu0 %v4636, 5
    %v4995 = vpop.permute.xlu0 %4994
    %4996 = vrot.lane.b32.xlu0 %v4637, 5
    %v4997 = vpop.permute.xlu0 %4996
    %4998 = vrot.lane.b32.xlu0 %v4638, 5
    %v4999 = vpop.permute.xlu0 %4998
    %5000 = vrot.lane.b32.xlu0 %v4639, 5
    %v5001 = vpop.permute.xlu0 %5000
    %5002 = vrot.lane.b32.xlu0 %v4640, 5
    %v5003 = vpop.permute.xlu0 %5002
    %5004 = vrot.lane.b32.xlu0 %v4641, 5
    %v5005 = vpop.permute.xlu0 %5004
    %5006 = vrot.lane.b32.xlu0 %v4642, 5
    %v5007 = vpop.permute.xlu0 %5006
    %5008 = vrot.lane.b32.xlu0 %v4643, 5
    %v5009 = vpop.permute.xlu0 %5008
    %5010 = vrot.lane.b32.xlu0 %v4644, 5
    %v5011 = vpop.permute.xlu0 %5010
    %5012 = vrot.lane.b32.xlu0 %v4645, 5
    %v5013 = vpop.permute.xlu0 %5012
    %5014 = vrot.lane.b32.xlu0 %v4646, 5
    %v5015 = vpop.permute.xlu0 %5014
    %5016 = vrot.lane.b32.xlu0 %v4647, 5
    %v5017 = vpop.permute.xlu0 %5016
    %5018 = vrot.lane.b32.xlu0 %v4648, 5
    %v5019 = vpop.permute.xlu0 %5018
    %5020 = vrot.lane.b32.xlu0 %v4649, 5
    %v5021 = vpop.permute.xlu0 %5020
    %5022 = vrot.lane.b32.xlu0 %v4650, 5
    %v5023 = vpop.permute.xlu0 %5022
    %5024 = vrot.lane.b32.xlu0 %v4651, 5
    %v5025 = vpop.permute.xlu0 %5024
    %5026 = vrot.lane.b32.xlu0 %v4652, 5
    %v5027 = vpop.permute.xlu0 %5026
    %5028 = vrot.lane.b32.xlu0 %v4653, 5
    %v5029 = vpop.permute.xlu0 %5028
    %5030 = vrot.lane.b32.xlu0 %v4654, 5
    %v5031 = vpop.permute.xlu0 %5030
    %5032 = vrot.lane.b32.xlu0 %v4655, 5
    %v5033 = vpop.permute.xlu0 %5032
    %5034 = vrot.lane.b32.xlu0 %v4656, 5
    %v5035 = vpop.permute.xlu0 %5034
    %5036 = vrot.lane.b32.xlu0 %v4657, 5
    %v5037 = vpop.permute.xlu0 %5036
    %5038 = vrot.lane.b32.xlu0 %v4658, 5
    %v5039 = vpop.permute.xlu0 %5038
    %5040 = vrot.lane.b32.xlu0 %v4671, 5
    %v5041 = vpop.permute.xlu0 %5040
    %5042 = vrot.lane.b32.xlu0 %v4672, 5
    %v5043 = vpop.permute.xlu0 %5042
    %5044 = vrot.lane.b32.xlu0 %v4673, 5
    %v5045 = vpop.permute.xlu0 %5044
    %5046 = vrot.lane.b32.xlu0 %v4674, 5
    %v5047 = vpop.permute.xlu0 %5046
    %5048 = vrot.lane.b32.xlu0 %v4675, 5
    %v5049 = vpop.permute.xlu0 %5048
    %5050 = vrot.lane.b32.xlu0 %v4676, 5
    %v5051 = vpop.permute.xlu0 %5050
    %5052 = vrot.lane.b32.xlu0 %v4677, 5
    %v5053 = vpop.permute.xlu0 %5052
    %5054 = vrot.lane.b32.xlu0 %v4678, 5
    %v5055 = vpop.permute.xlu0 %5054
    %5056 = vrot.lane.b32.xlu0 %v4679, 5
    %v5057 = vpop.permute.xlu0 %5056
    %5058 = vrot.lane.b32.xlu0 %v4680, 5
    %v5059 = vpop.permute.xlu0 %5058
    %5060 = vrot.lane.b32.xlu0 %v4681, 5
    %v5061 = vpop.permute.xlu0 %5060
    %5062 = vrot.lane.b32.xlu0 %v4682, 5
    %v5063 = vpop.permute.xlu0 %5062
    %5064 = vrot.lane.b32.xlu0 %v4683, 5
    %v5065 = vpop.permute.xlu0 %5064
    %5066 = vrot.lane.b32.xlu0 %v4684, 5
    %v5067 = vpop.permute.xlu0 %5066
    %5068 = vrot.lane.b32.xlu0 %v4685, 5
    %v5069 = vpop.permute.xlu0 %5068
    %5070 = vrot.lane.b32.xlu0 %v4686, 5
    %v5071 = vpop.permute.xlu0 %5070
    %5072 = vrot.lane.b32.xlu0 %v4687, 5
    %v5073 = vpop.permute.xlu0 %5072
    %5074 = vrot.lane.b32.xlu0 %v4688, 5
    %v5075 = vpop.permute.xlu0 %5074
    %5076 = vrot.lane.b32.xlu0 %v4689, 5
    %v5077 = vpop.permute.xlu0 %5076
    %5078 = vrot.lane.b32.xlu0 %v4690, 5
    %v5079 = vpop.permute.xlu0 %5078
    %5080 = vrot.lane.b32.xlu0 %v4691, 5
    %v5081 = vpop.permute.xlu0 %5080
    %5082 = vrot.lane.b32.xlu0 %v4692, 5
    %v5083 = vpop.permute.xlu0 %5082
    %5084 = vrot.lane.b32.xlu0 %v4693, 5
    %v5085 = vpop.permute.xlu0 %5084
    %5086 = vrot.lane.b32.xlu0 %v4694, 5
    %v5087 = vpop.permute.xlu0 %5086
    %5088 = vrot.lane.b32.xlu0 %v4695, 5
    %v5089 = vpop.permute.xlu0 %5088
    %5090 = vrot.lane.b32.xlu0 %v4696, 5
    %v5091 = vpop.permute.xlu0 %5090
    %5092 = vrot.lane.b32.xlu0 %v4697, 5
    %v5093 = vpop.permute.xlu0 %5092
    %5094 = vrot.lane.b32.xlu0 %v4698, 5
    %v5095 = vpop.permute.xlu0 %5094
    %5096 = vrot.lane.b32.xlu0 %v4699, 5
    %v5097 = vpop.permute.xlu0 %5096
    %5098 = vrot.lane.b32.xlu0 %v4700, 5
    %v5099 = vpop.permute.xlu0 %5098
    %5100 = vrot.lane.b32.xlu0 %v4701, 5
    %v5101 = vpop.permute.xlu0 %5100
    %5102 = vrot.lane.b32.xlu0 %v4702, 5
    %v5103 = vpop.permute.xlu0 %5102
    %5104 = vrot.lane.b32.xlu0 %v4703, 5
    %v5105 = vpop.permute.xlu0 %5104
    %5106 = vrot.lane.b32.xlu0 %v4704, 5
    %v5107 = vpop.permute.xlu0 %5106
    %5108 = vrot.lane.b32.xlu0 %v4705, 5
    %v5109 = vpop.permute.xlu0 %5108
    %5110 = vrot.lane.b32.xlu0 %v4706, 5
    %v5111 = vpop.permute.xlu0 %5110
    %5112 = vrot.lane.b32.xlu0 %v4707, 5
    %v5113 = vpop.permute.xlu0 %5112
    %5114 = vrot.lane.b32.xlu0 %v4708, 5
    %v5115 = vpop.permute.xlu0 %5114
    %5116 = vrot.lane.b32.xlu0 %v4709, 5
    %v5117 = vpop.permute.xlu0 %5116
    %5118 = vrot.lane.b32.xlu0 %v4710, 5
    %v5119 = vpop.permute.xlu0 %5118
    %5120 = vrot.lane.b32.xlu0 %v4711, 5
    %v5121 = vpop.permute.xlu0 %5120
    %5122 = vrot.lane.b32.xlu0 %v4712, 5
    %v5123 = vpop.permute.xlu0 %5122
    %5124 = vrot.lane.b32.xlu0 %v4713, 5
    %v5125 = vpop.permute.xlu0 %5124
    %5126 = vrot.lane.b32.xlu0 %v4714, 5
    %v5127 = vpop.permute.xlu0 %5126
    %5128 = vrot.lane.b32.xlu0 %v4715, 5
    %v5129 = vpop.permute.xlu0 %5128
    %5130 = vrot.lane.b32.xlu0 %v4716, 5
    %v5131 = vpop.permute.xlu0 %5130
    %5132 = vrot.lane.b32.xlu0 %v4717, 5
    %v5133 = vpop.permute.xlu0 %5132
    %5134 = vrot.lane.b32.xlu0 %v4718, 5
    %v5135 = vpop.permute.xlu0 %5134
    %5136 = vrot.lane.b32.xlu0 %v4719, 5
    %v5137 = vpop.permute.xlu0 %5136
    %5138 = vrot.lane.b32.xlu0 %v4720, 5
    %v5139 = vpop.permute.xlu0 %5138
    %5140 = vrot.lane.b32.xlu0 %v4721, 5
    %v5141 = vpop.permute.xlu0 %5140
    %5142 = vrot.lane.b32.xlu0 %v4722, 5
    %v5143 = vpop.permute.xlu0 %5142
    %5144 = vrot.lane.b32.xlu0 %v4723, 5
    %v5145 = vpop.permute.xlu0 %5144
    %5146 = vrot.lane.b32.xlu0 %v4724, 5
    %v5147 = vpop.permute.xlu0 %5146
    %5148 = vrot.lane.b32.xlu0 %v4725, 5
    %v5149 = vpop.permute.xlu0 %5148
    %5150 = vrot.lane.b32.xlu0 %v4726, 5
    %v5151 = vpop.permute.xlu0 %5150
    %5152 = vrot.lane.b32.xlu0 %v4727, 5
    %v5153 = vpop.permute.xlu0 %5152
    %5154 = vrot.lane.b32.xlu0 %v4728, 5
    %v5155 = vpop.permute.xlu0 %5154
    %5156 = vrot.lane.b32.xlu0 %v4729, 5
    %v5157 = vpop.permute.xlu0 %5156
    %5158 = vrot.lane.b32.xlu0 %v4730, 5
    %v5159 = vpop.permute.xlu0 %5158
    %5160 = vrot.lane.b32.xlu0 %v4731, 5
    %v5161 = vpop.permute.xlu0 %5160
    %5162 = vrot.lane.b32.xlu0 %v4732, 5
    %v5163 = vpop.permute.xlu0 %5162
    %5164 = vrot.lane.b32.xlu0 %v4733, 5
    %v5165 = vpop.permute.xlu0 %5164
    %5166 = vrot.lane.b32.xlu0 %v4734, 5
    %v5167 = vpop.permute.xlu0 %5166
    %5168 = vrot.lane.b32.xlu0 %v4735, 5
    %v5169 = vpop.permute.xlu0 %5168
    %5170 = vrot.lane.b32.xlu0 %v4736, 5
    %v5171 = vpop.permute.xlu0 %5170
    %5172 = vrot.lane.b32.xlu0 %v4737, 5
    %v5173 = vpop.permute.xlu0 %5172
    %5174 = vrot.lane.b32.xlu0 %v4738, 5
    %v5175 = vpop.permute.xlu0 %5174
    %5176 = vrot.lane.b32.xlu0 %v4739, 5
    %v5177 = vpop.permute.xlu0 %5176
    %5178 = vrot.lane.b32.xlu0 %v4740, 5
    %v5179 = vpop.permute.xlu0 %5178
    %5180 = vrot.lane.b32.xlu0 %v4741, 5
    %v5181 = vpop.permute.xlu0 %5180
    %5182 = vrot.lane.b32.xlu0 %v4742, 5
    %v5183 = vpop.permute.xlu0 %5182
    %5334 = vrot.lane.b32.xlu0 %v4590, 10
    %v5335 = vpop.permute.xlu0 %5334
    %5336 = vrot.lane.b32.xlu0 %v4591, 10
    %v5337 = vpop.permute.xlu0 %5336
    %5338 = vrot.lane.b32.xlu0 %v4592, 10
    %v5339 = vpop.permute.xlu0 %5338
    %5340 = vrot.lane.b32.xlu0 %v4593, 10
    %v5341 = vpop.permute.xlu0 %5340
    %5342 = vrot.lane.b32.xlu0 %v4594, 10
    %v5343 = vpop.permute.xlu0 %5342
    %5344 = vrot.lane.b32.xlu0 %v4595, 10
    %v5345 = vpop.permute.xlu0 %5344
    %5346 = vrot.lane.b32.xlu0 %v4596, 10
    %v5347 = vpop.permute.xlu0 %5346
    %5348 = vrot.lane.b32.xlu0 %v4597, 10
    %v5349 = vpop.permute.xlu0 %5348
    %5350 = vrot.lane.b32.xlu0 %v4598, 10
    %v5351 = vpop.permute.xlu0 %5350
    %5352 = vrot.lane.b32.xlu0 %v4599, 10
    %v5353 = vpop.permute.xlu0 %5352
    %5354 = vrot.lane.b32.xlu0 %v4600, 10
    %v5355 = vpop.permute.xlu0 %5354
    %5356 = vrot.lane.b32.xlu0 %v4601, 10
    %v5357 = vpop.permute.xlu0 %5356
    %5358 = vrot.lane.b32.xlu0 %v4602, 10
    %v5359 = vpop.permute.xlu0 %5358
    %5360 = vrot.lane.b32.xlu0 %v4603, 10
    %v5361 = vpop.permute.xlu0 %5360
    %5362 = vrot.lane.b32.xlu0 %v4604, 10
    %v5363 = vpop.permute.xlu0 %5362
    %5364 = vrot.lane.b32.xlu0 %v4605, 10
    %v5365 = vpop.permute.xlu0 %5364
    %5366 = vrot.lane.b32.xlu0 %v4606, 10
    %v5367 = vpop.permute.xlu0 %5366
    %5368 = vrot.lane.b32.xlu0 %v4607, 10
    %v5369 = vpop.permute.xlu0 %5368
    %5370 = vrot.lane.b32.xlu0 %v4608, 10
    %v5371 = vpop.permute.xlu0 %5370
    %5372 = vrot.lane.b32.xlu0 %v4609, 10
    %v5373 = vpop.permute.xlu0 %5372
    %5374 = vrot.lane.b32.xlu0 %v4610, 10
    %v5375 = vpop.permute.xlu0 %5374
    %5376 = vrot.lane.b32.xlu0 %v4611, 10
    %v5377 = vpop.permute.xlu0 %5376
    %5378 = vrot.lane.b32.xlu0 %v4612, 10
    %v5379 = vpop.permute.xlu0 %5378
    %5380 = vrot.lane.b32.xlu0 %v4613, 10
    %v5381 = vpop.permute.xlu0 %5380
    %5382 = vrot.lane.b32.xlu0 %v4614, 10
    %v5383 = vpop.permute.xlu0 %5382
    %5384 = vrot.lane.b32.xlu0 %v4615, 10
    %v5385 = vpop.permute.xlu0 %5384
    %5386 = vrot.lane.b32.xlu0 %v4616, 10
    %v5387 = vpop.permute.xlu0 %5386
    %5388 = vrot.lane.b32.xlu0 %v4617, 10
    %v5389 = vpop.permute.xlu0 %5388
    %5390 = vrot.lane.b32.xlu0 %v4618, 10
    %v5391 = vpop.permute.xlu0 %5390
    %5392 = vrot.lane.b32.xlu0 %v4619, 10
    %v5393 = vpop.permute.xlu0 %5392
    %5394 = vrot.lane.b32.xlu0 %v4620, 10
    %v5395 = vpop.permute.xlu0 %5394
    %5396 = vrot.lane.b32.xlu0 %v4621, 10
    %v5397 = vpop.permute.xlu0 %5396
    %5398 = vrot.lane.b32.xlu0 %v4622, 10
    %v5399 = vpop.permute.xlu0 %5398
    %5400 = vrot.lane.b32.xlu0 %v4623, 10
    %v5401 = vpop.permute.xlu0 %5400
    %5402 = vrot.lane.b32.xlu0 %v4624, 10
    %v5403 = vpop.permute.xlu0 %5402
    %5404 = vrot.lane.b32.xlu0 %v4625, 10
    %v5405 = vpop.permute.xlu0 %5404
    %5406 = vrot.lane.b32.xlu0 %v4626, 10
    %v5407 = vpop.permute.xlu0 %5406
    %5408 = vrot.lane.b32.xlu0 %v4627, 10
    %v5409 = vpop.permute.xlu0 %5408
    %5410 = vrot.lane.b32.xlu0 %v4628, 10
    %v5411 = vpop.permute.xlu0 %5410
    %5412 = vrot.lane.b32.xlu0 %v4629, 10
    %v5413 = vpop.permute.xlu0 %5412
    %5414 = vrot.lane.b32.xlu0 %v4630, 10
    %v5415 = vpop.permute.xlu0 %5414
    %5416 = vrot.lane.b32.xlu0 %v4631, 10
    %v5417 = vpop.permute.xlu0 %5416
    %5418 = vrot.lane.b32.xlu0 %v4632, 10
    %v5419 = vpop.permute.xlu0 %5418
    %5420 = vrot.lane.b32.xlu0 %v4633, 10
    %v5421 = vpop.permute.xlu0 %5420
    %5422 = vrot.lane.b32.xlu0 %v4634, 10
    %v5423 = vpop.permute.xlu0 %5422
    %5424 = vrot.lane.b32.xlu0 %v4635, 10
    %v5425 = vpop.permute.xlu0 %5424
    %5426 = vrot.lane.b32.xlu0 %v4636, 10
    %v5427 = vpop.permute.xlu0 %5426
    %5428 = vrot.lane.b32.xlu0 %v4637, 10
    %v5429 = vpop.permute.xlu0 %5428
    %5430 = vrot.lane.b32.xlu0 %v4638, 10
    %v5431 = vpop.permute.xlu0 %5430
    %5432 = vrot.lane.b32.xlu0 %v4639, 10
    %v5433 = vpop.permute.xlu0 %5432
    %5434 = vrot.lane.b32.xlu0 %v4640, 10
    %v5435 = vpop.permute.xlu0 %5434
    %5436 = vrot.lane.b32.xlu0 %v4641, 10
    %v5437 = vpop.permute.xlu0 %5436
    %5438 = vrot.lane.b32.xlu0 %v4642, 10
    %v5439 = vpop.permute.xlu0 %5438
    %5440 = vrot.lane.b32.xlu0 %v4643, 10
    %v5441 = vpop.permute.xlu0 %5440
    %5442 = vrot.lane.b32.xlu0 %v4644, 10
    %v5443 = vpop.permute.xlu0 %5442
    %5444 = vrot.lane.b32.xlu0 %v4645, 10
    %v5445 = vpop.permute.xlu0 %5444
    %5446 = vrot.lane.b32.xlu0 %v4646, 10
    %v5447 = vpop.permute.xlu0 %5446
    %5448 = vrot.lane.b32.xlu0 %v4647, 10
    %v5449 = vpop.permute.xlu0 %5448
    %5450 = vrot.lane.b32.xlu0 %v4648, 10
    %v5451 = vpop.permute.xlu0 %5450
    %5452 = vrot.lane.b32.xlu0 %v4649, 10
    %v5453 = vpop.permute.xlu0 %5452
    %5454 = vrot.lane.b32.xlu0 %v4650, 10
    %v5455 = vpop.permute.xlu0 %5454
    %5456 = vrot.lane.b32.xlu0 %v4651, 10
    %v5457 = vpop.permute.xlu0 %5456
    %5458 = vrot.lane.b32.xlu0 %v4652, 10
    %v5459 = vpop.permute.xlu0 %5458
    %5460 = vrot.lane.b32.xlu0 %v4653, 10
    %v5461 = vpop.permute.xlu0 %5460
    %5462 = vrot.lane.b32.xlu0 %v4654, 10
    %v5463 = vpop.permute.xlu0 %5462
    %5464 = vrot.lane.b32.xlu0 %v4655, 10
    %v5465 = vpop.permute.xlu0 %5464
    %5466 = vrot.lane.b32.xlu0 %v4656, 10
    %v5467 = vpop.permute.xlu0 %5466
    %5468 = vrot.lane.b32.xlu0 %v4657, 10
    %v5469 = vpop.permute.xlu0 %5468
    %5470 = vrot.lane.b32.xlu0 %v4658, 10
    %v5471 = vpop.permute.xlu0 %5470
    %5472 = vrot.lane.b32.xlu0 %v4659, 10
    %v5473 = vpop.permute.xlu0 %5472
    %5474 = vrot.lane.b32.xlu0 %v4660, 10
    %v5475 = vpop.permute.xlu0 %5474
    %5476 = vrot.lane.b32.xlu0 %v4661, 10
    %v5477 = vpop.permute.xlu0 %5476
    %5478 = vrot.lane.b32.xlu0 %v4674, 10
    %v5479 = vpop.permute.xlu0 %5478
    %5480 = vrot.lane.b32.xlu0 %v4675, 10
    %v5481 = vpop.permute.xlu0 %5480
    %5482 = vrot.lane.b32.xlu0 %v4676, 10
    %v5483 = vpop.permute.xlu0 %5482
    %5484 = vrot.lane.b32.xlu0 %v4677, 10
    %v5485 = vpop.permute.xlu0 %5484
    %5486 = vrot.lane.b32.xlu0 %v4678, 10
    %v5487 = vpop.permute.xlu0 %5486
    %5488 = vrot.lane.b32.xlu0 %v4679, 10
    %v5489 = vpop.permute.xlu0 %5488
    %5490 = vrot.lane.b32.xlu0 %v4680, 10
    %v5491 = vpop.permute.xlu0 %5490
    %5492 = vrot.lane.b32.xlu0 %v4681, 10
    %v5493 = vpop.permute.xlu0 %5492
    %5494 = vrot.lane.b32.xlu0 %v4682, 10
    %v5495 = vpop.permute.xlu0 %5494
    %5496 = vrot.lane.b32.xlu0 %v4683, 10
    %v5497 = vpop.permute.xlu0 %5496
    %5498 = vrot.lane.b32.xlu0 %v4684, 10
    %v5499 = vpop.permute.xlu0 %5498
    %5500 = vrot.lane.b32.xlu0 %v4685, 10
    %v5501 = vpop.permute.xlu0 %5500
    %5502 = vrot.lane.b32.xlu0 %v4686, 10
    %v5503 = vpop.permute.xlu0 %5502
    %5504 = vrot.lane.b32.xlu0 %v4687, 10
    %v5505 = vpop.permute.xlu0 %5504
    %5506 = vrot.lane.b32.xlu0 %v4688, 10
    %v5507 = vpop.permute.xlu0 %5506
    %5508 = vrot.lane.b32.xlu0 %v4689, 10
    %v5509 = vpop.permute.xlu0 %5508
    %5510 = vrot.lane.b32.xlu0 %v4690, 10
    %v5511 = vpop.permute.xlu0 %5510
    %5512 = vrot.lane.b32.xlu0 %v4691, 10
    %v5513 = vpop.permute.xlu0 %5512
    %5514 = vrot.lane.b32.xlu0 %v4692, 10
    %v5515 = vpop.permute.xlu0 %5514
    %5516 = vrot.lane.b32.xlu0 %v4693, 10
    %v5517 = vpop.permute.xlu0 %5516
    %5518 = vrot.lane.b32.xlu0 %v4694, 10
    %v5519 = vpop.permute.xlu0 %5518
    %5520 = vrot.lane.b32.xlu0 %v4695, 10
    %v5521 = vpop.permute.xlu0 %5520
    %5522 = vrot.lane.b32.xlu0 %v4696, 10
    %v5523 = vpop.permute.xlu0 %5522
    %5524 = vrot.lane.b32.xlu0 %v4697, 10
    %v5525 = vpop.permute.xlu0 %5524
    %5526 = vrot.lane.b32.xlu0 %v4698, 10
    %v5527 = vpop.permute.xlu0 %5526
    %5528 = vrot.lane.b32.xlu0 %v4699, 10
    %v5529 = vpop.permute.xlu0 %5528
    %5530 = vrot.lane.b32.xlu0 %v4700, 10
    %v5531 = vpop.permute.xlu0 %5530
    %5532 = vrot.lane.b32.xlu0 %v4701, 10
    %v5533 = vpop.permute.xlu0 %5532
    %5534 = vrot.lane.b32.xlu0 %v4702, 10
    %v5535 = vpop.permute.xlu0 %5534
    %5536 = vrot.lane.b32.xlu0 %v4703, 10
    %v5537 = vpop.permute.xlu0 %5536
    %5538 = vrot.lane.b32.xlu0 %v4704, 10
    %v5539 = vpop.permute.xlu0 %5538
    %5540 = vrot.lane.b32.xlu0 %v4705, 10
    %v5541 = vpop.permute.xlu0 %5540
    %5542 = vrot.lane.b32.xlu0 %v4706, 10
    %v5543 = vpop.permute.xlu0 %5542
    %5544 = vrot.lane.b32.xlu0 %v4707, 10
    %v5545 = vpop.permute.xlu0 %5544
    %5546 = vrot.lane.b32.xlu0 %v4708, 10
    %v5547 = vpop.permute.xlu0 %5546
    %5548 = vrot.lane.b32.xlu0 %v4709, 10
    %v5549 = vpop.permute.xlu0 %5548
    %5550 = vrot.lane.b32.xlu0 %v4710, 10
    %v5551 = vpop.permute.xlu0 %5550
    %5552 = vrot.lane.b32.xlu0 %v4711, 10
    %v5553 = vpop.permute.xlu0 %5552
    %5554 = vrot.lane.b32.xlu0 %v4712, 10
    %v5555 = vpop.permute.xlu0 %5554
    %5556 = vrot.lane.b32.xlu0 %v4713, 10
    %v5557 = vpop.permute.xlu0 %5556
    %5558 = vrot.lane.b32.xlu0 %v4714, 10
    %v5559 = vpop.permute.xlu0 %5558
    %5560 = vrot.lane.b32.xlu0 %v4715, 10
    %v5561 = vpop.permute.xlu0 %5560
    %5562 = vrot.lane.b32.xlu0 %v4716, 10
    %v5563 = vpop.permute.xlu0 %5562
    %5564 = vrot.lane.b32.xlu0 %v4717, 10
    %v5565 = vpop.permute.xlu0 %5564
    %5566 = vrot.lane.b32.xlu0 %v4718, 10
    %v5567 = vpop.permute.xlu0 %5566
    %5568 = vrot.lane.b32.xlu0 %v4719, 10
    %v5569 = vpop.permute.xlu0 %5568
    %5570 = vrot.lane.b32.xlu0 %v4720, 10
    %v5571 = vpop.permute.xlu0 %5570
    %5572 = vrot.lane.b32.xlu0 %v4721, 10
    %v5573 = vpop.permute.xlu0 %5572
    %5574 = vrot.lane.b32.xlu0 %v4722, 10
    %v5575 = vpop.permute.xlu0 %5574
    %5576 = vrot.lane.b32.xlu0 %v4723, 10
    %v5577 = vpop.permute.xlu0 %5576
    %5578 = vrot.lane.b32.xlu0 %v4724, 10
    %v5579 = vpop.permute.xlu0 %5578
    %5580 = vrot.lane.b32.xlu0 %v4725, 10
    %v5581 = vpop.permute.xlu0 %5580
    %5582 = vrot.lane.b32.xlu0 %v4726, 10
    %v5583 = vpop.permute.xlu0 %5582
    %5584 = vrot.lane.b32.xlu0 %v4727, 10
    %v5585 = vpop.permute.xlu0 %5584
    %5586 = vrot.lane.b32.xlu0 %v4728, 10
    %v5587 = vpop.permute.xlu0 %5586
    %5588 = vrot.lane.b32.xlu0 %v4729, 10
    %v5589 = vpop.permute.xlu0 %5588
    %5590 = vrot.lane.b32.xlu0 %v4730, 10
    %v5591 = vpop.permute.xlu0 %5590
    %5592 = vrot.lane.b32.xlu0 %v4731, 10
    %v5593 = vpop.permute.xlu0 %5592
    %5594 = vrot.lane.b32.xlu0 %v4732, 10
    %v5595 = vpop.permute.xlu0 %5594
    %5596 = vrot.lane.b32.xlu0 %v4733, 10
    %v5597 = vpop.permute.xlu0 %5596
    %5598 = vrot.lane.b32.xlu0 %v4734, 10
    %v5599 = vpop.permute.xlu0 %5598
    %5600 = vrot.lane.b32.xlu0 %v4735, 10
    %v5601 = vpop.permute.xlu0 %5600
    %5602 = vrot.lane.b32.xlu0 %v4736, 10
    %v5603 = vpop.permute.xlu0 %5602
    %5604 = vrot.lane.b32.xlu0 %v4737, 10
    %v5605 = vpop.permute.xlu0 %5604
    %5606 = vrot.lane.b32.xlu0 %v4738, 10
    %v5607 = vpop.permute.xlu0 %5606
    %5608 = vrot.lane.b32.xlu0 %v4739, 10
    %v5609 = vpop.permute.xlu0 %5608
    %5610 = vrot.lane.b32.xlu0 %v4740, 10
    %v5611 = vpop.permute.xlu0 %5610
    %5612 = vrot.lane.b32.xlu0 %v4741, 10
    %v5613 = vpop.permute.xlu0 %5612
    %5614 = vrot.lane.b32.xlu0 %v4742, 10
    %v5615 = vpop.permute.xlu0 %5614
    %5616 = vrot.lane.b32.xlu0 %v4743, 10
    %v5617 = vpop.permute.xlu0 %5616
    %5618 = vrot.lane.b32.xlu0 %v4744, 10
    %v5619 = vpop.permute.xlu0 %5618
    %5620 = vrot.lane.b32.xlu0 %v4745, 10
    %v5621 = vpop.permute.xlu0 %5620
    %5772 = vrot.lane.b32.xlu0 %v4593, 15
    %v5773 = vpop.permute.xlu0 %5772
    %5774 = vrot.lane.b32.xlu0 %v4594, 15
    %v5775 = vpop.permute.xlu0 %5774
    %5776 = vrot.lane.b32.xlu0 %v4595, 15
    %v5777 = vpop.permute.xlu0 %5776
    %5778 = vrot.lane.b32.xlu0 %v4596, 15
    %v5779 = vpop.permute.xlu0 %5778
    %5780 = vrot.lane.b32.xlu0 %v4597, 15
    %v5781 = vpop.permute.xlu0 %5780
    %5782 = vrot.lane.b32.xlu0 %v4598, 15
    %v5783 = vpop.permute.xlu0 %5782
    %5784 = vrot.lane.b32.xlu0 %v4599, 15
    %v5785 = vpop.permute.xlu0 %5784
    %5786 = vrot.lane.b32.xlu0 %v4600, 15
    %v5787 = vpop.permute.xlu0 %5786
    %5788 = vrot.lane.b32.xlu0 %v4601, 15
    %v5789 = vpop.permute.xlu0 %5788
    %5790 = vrot.lane.b32.xlu0 %v4602, 15
    %v5791 = vpop.permute.xlu0 %5790
    %5792 = vrot.lane.b32.xlu0 %v4603, 15
    %v5793 = vpop.permute.xlu0 %5792
    %5794 = vrot.lane.b32.xlu0 %v4604, 15
    %v5795 = vpop.permute.xlu0 %5794
    %5796 = vrot.lane.b32.xlu0 %v4605, 15
    %v5797 = vpop.permute.xlu0 %5796
    %5798 = vrot.lane.b32.xlu0 %v4606, 15
    %v5799 = vpop.permute.xlu0 %5798
    %5800 = vrot.lane.b32.xlu0 %v4607, 15
    %v5801 = vpop.permute.xlu0 %5800
    %5802 = vrot.lane.b32.xlu0 %v4608, 15
    %v5803 = vpop.permute.xlu0 %5802
    %5804 = vrot.lane.b32.xlu0 %v4609, 15
    %v5805 = vpop.permute.xlu0 %5804
    %5806 = vrot.lane.b32.xlu0 %v4610, 15
    %v5807 = vpop.permute.xlu0 %5806
    %5808 = vrot.lane.b32.xlu0 %v4611, 15
    %v5809 = vpop.permute.xlu0 %5808
    %5810 = vrot.lane.b32.xlu0 %v4612, 15
    %v5811 = vpop.permute.xlu0 %5810
    %5812 = vrot.lane.b32.xlu0 %v4613, 15
    %v5813 = vpop.permute.xlu0 %5812
    %5814 = vrot.lane.b32.xlu0 %v4614, 15
    %v5815 = vpop.permute.xlu0 %5814
    %5816 = vrot.lane.b32.xlu0 %v4615, 15
    %v5817 = vpop.permute.xlu0 %5816
    %5818 = vrot.lane.b32.xlu0 %v4616, 15
    %v5819 = vpop.permute.xlu0 %5818
    %5820 = vrot.lane.b32.xlu0 %v4617, 15
    %v5821 = vpop.permute.xlu0 %5820
    %5822 = vrot.lane.b32.xlu0 %v4618, 15
    %v5823 = vpop.permute.xlu0 %5822
    %5824 = vrot.lane.b32.xlu0 %v4619, 15
    %v5825 = vpop.permute.xlu0 %5824
    %5826 = vrot.lane.b32.xlu0 %v4620, 15
    %v5827 = vpop.permute.xlu0 %5826
    %5828 = vrot.lane.b32.xlu0 %v4621, 15
    %v5829 = vpop.permute.xlu0 %5828
    %5830 = vrot.lane.b32.xlu0 %v4622, 15
    %v5831 = vpop.permute.xlu0 %5830
    %5832 = vrot.lane.b32.xlu0 %v4623, 15
    %v5833 = vpop.permute.xlu0 %5832
    %5834 = vrot.lane.b32.xlu0 %v4624, 15
    %v5835 = vpop.permute.xlu0 %5834
    %5836 = vrot.lane.b32.xlu0 %v4625, 15
    %v5837 = vpop.permute.xlu0 %5836
    %5838 = vrot.lane.b32.xlu0 %v4626, 15
    %v5839 = vpop.permute.xlu0 %5838
    %5840 = vrot.lane.b32.xlu0 %v4627, 15
    %v5841 = vpop.permute.xlu0 %5840
    %5842 = vrot.lane.b32.xlu0 %v4628, 15
    %v5843 = vpop.permute.xlu0 %5842
    %5844 = vrot.lane.b32.xlu0 %v4629, 15
    %v5845 = vpop.permute.xlu0 %5844
    %5846 = vrot.lane.b32.xlu0 %v4630, 15
    %v5847 = vpop.permute.xlu0 %5846
    %5848 = vrot.lane.b32.xlu0 %v4631, 15
    %v5849 = vpop.permute.xlu0 %5848
    %5850 = vrot.lane.b32.xlu0 %v4632, 15
    %v5851 = vpop.permute.xlu0 %5850
    %5852 = vrot.lane.b32.xlu0 %v4633, 15
    %v5853 = vpop.permute.xlu0 %5852
    %5854 = vrot.lane.b32.xlu0 %v4634, 15
    %v5855 = vpop.permute.xlu0 %5854
    %5856 = vrot.lane.b32.xlu0 %v4635, 15
    %v5857 = vpop.permute.xlu0 %5856
    %5858 = vrot.lane.b32.xlu0 %v4636, 15
    %v5859 = vpop.permute.xlu0 %5858
    %5860 = vrot.lane.b32.xlu0 %v4637, 15
    %v5861 = vpop.permute.xlu0 %5860
    %5862 = vrot.lane.b32.xlu0 %v4638, 15
    %v5863 = vpop.permute.xlu0 %5862
    %5864 = vrot.lane.b32.xlu0 %v4639, 15
    %v5865 = vpop.permute.xlu0 %5864
    %5866 = vrot.lane.b32.xlu0 %v4640, 15
    %v5867 = vpop.permute.xlu0 %5866
    %5868 = vrot.lane.b32.xlu0 %v4641, 15
    %v5869 = vpop.permute.xlu0 %5868
    %5870 = vrot.lane.b32.xlu0 %v4642, 15
    %v5871 = vpop.permute.xlu0 %5870
    %5872 = vrot.lane.b32.xlu0 %v4643, 15
    %v5873 = vpop.permute.xlu0 %5872
    %5874 = vrot.lane.b32.xlu0 %v4644, 15
    %v5875 = vpop.permute.xlu0 %5874
    %5876 = vrot.lane.b32.xlu0 %v4645, 15
    %v5877 = vpop.permute.xlu0 %5876
    %5878 = vrot.lane.b32.xlu0 %v4646, 15
    %v5879 = vpop.permute.xlu0 %5878
    %5880 = vrot.lane.b32.xlu0 %v4647, 15
    %v5881 = vpop.permute.xlu0 %5880
    %5882 = vrot.lane.b32.xlu0 %v4648, 15
    %v5883 = vpop.permute.xlu0 %5882
    %5884 = vrot.lane.b32.xlu0 %v4649, 15
    %v5885 = vpop.permute.xlu0 %5884
    %5886 = vrot.lane.b32.xlu0 %v4650, 15
    %v5887 = vpop.permute.xlu0 %5886
    %5888 = vrot.lane.b32.xlu0 %v4651, 15
    %v5889 = vpop.permute.xlu0 %5888
    %5890 = vrot.lane.b32.xlu0 %v4652, 15
    %v5891 = vpop.permute.xlu0 %5890
    %5892 = vrot.lane.b32.xlu0 %v4653, 15
    %v5893 = vpop.permute.xlu0 %5892
    %5894 = vrot.lane.b32.xlu0 %v4654, 15
    %v5895 = vpop.permute.xlu0 %5894
    %5896 = vrot.lane.b32.xlu0 %v4655, 15
    %v5897 = vpop.permute.xlu0 %5896
    %5898 = vrot.lane.b32.xlu0 %v4656, 15
    %v5899 = vpop.permute.xlu0 %5898
    %5900 = vrot.lane.b32.xlu0 %v4657, 15
    %v5901 = vpop.permute.xlu0 %5900
    %5902 = vrot.lane.b32.xlu0 %v4658, 15
    %v5903 = vpop.permute.xlu0 %5902
    %5904 = vrot.lane.b32.xlu0 %v4659, 15
    %v5905 = vpop.permute.xlu0 %5904
    %5906 = vrot.lane.b32.xlu0 %v4660, 15
    %v5907 = vpop.permute.xlu0 %5906
    %5908 = vrot.lane.b32.xlu0 %v4661, 15
    %v5909 = vpop.permute.xlu0 %5908
    %5910 = vrot.lane.b32.xlu0 %v4662, 15
    %v5911 = vpop.permute.xlu0 %5910
    %5912 = vrot.lane.b32.xlu0 %v4663, 15
    %v5913 = vpop.permute.xlu0 %5912
    %5914 = vrot.lane.b32.xlu0 %v4664, 15
    %v5915 = vpop.permute.xlu0 %5914
    %5916 = vrot.lane.b32.xlu0 %v4677, 15
    %v5917 = vpop.permute.xlu0 %5916
    %5918 = vrot.lane.b32.xlu0 %v4678, 15
    %v5919 = vpop.permute.xlu0 %5918
    %5920 = vrot.lane.b32.xlu0 %v4679, 15
    %v5921 = vpop.permute.xlu0 %5920
    %5922 = vrot.lane.b32.xlu0 %v4680, 15
    %v5923 = vpop.permute.xlu0 %5922
    %5924 = vrot.lane.b32.xlu0 %v4681, 15
    %v5925 = vpop.permute.xlu0 %5924
    %5926 = vrot.lane.b32.xlu0 %v4682, 15
    %v5927 = vpop.permute.xlu0 %5926
    %5928 = vrot.lane.b32.xlu0 %v4683, 15
    %v5929 = vpop.permute.xlu0 %5928
    %5930 = vrot.lane.b32.xlu0 %v4684, 15
    %v5931 = vpop.permute.xlu0 %5930
    %5932 = vrot.lane.b32.xlu0 %v4685, 15
    %v5933 = vpop.permute.xlu0 %5932
    %5934 = vrot.lane.b32.xlu0 %v4686, 15
    %v5935 = vpop.permute.xlu0 %5934
    %5936 = vrot.lane.b32.xlu0 %v4687, 15
    %v5937 = vpop.permute.xlu0 %5936
    %5938 = vrot.lane.b32.xlu0 %v4688, 15
    %v5939 = vpop.permute.xlu0 %5938
    %5940 = vrot.lane.b32.xlu0 %v4689, 15
    %v5941 = vpop.permute.xlu0 %5940
    %5942 = vrot.lane.b32.xlu0 %v4690, 15
    %v5943 = vpop.permute.xlu0 %5942
    %5944 = vrot.lane.b32.xlu0 %v4691, 15
    %v5945 = vpop.permute.xlu0 %5944
    %5946 = vrot.lane.b32.xlu0 %v4692, 15
    %v5947 = vpop.permute.xlu0 %5946
    %5948 = vrot.lane.b32.xlu0 %v4693, 15
    %v5949 = vpop.permute.xlu0 %5948
    %5950 = vrot.lane.b32.xlu0 %v4694, 15
    %v5951 = vpop.permute.xlu0 %5950
    %5952 = vrot.lane.b32.xlu0 %v4695, 15
    %v5953 = vpop.permute.xlu0 %5952
    %5954 = vrot.lane.b32.xlu0 %v4696, 15
    %v5955 = vpop.permute.xlu0 %5954
    %5956 = vrot.lane.b32.xlu0 %v4697, 15
    %v5957 = vpop.permute.xlu0 %5956
    %5958 = vrot.lane.b32.xlu0 %v4698, 15
    %v5959 = vpop.permute.xlu0 %5958
    %5960 = vrot.lane.b32.xlu0 %v4699, 15
    %v5961 = vpop.permute.xlu0 %5960
    %5962 = vrot.lane.b32.xlu0 %v4700, 15
    %v5963 = vpop.permute.xlu0 %5962
    %5964 = vrot.lane.b32.xlu0 %v4701, 15
    %v5965 = vpop.permute.xlu0 %5964
    %5966 = vrot.lane.b32.xlu0 %v4702, 15
    %v5967 = vpop.permute.xlu0 %5966
    %5968 = vrot.lane.b32.xlu0 %v4703, 15
    %v5969 = vpop.permute.xlu0 %5968
    %5970 = vrot.lane.b32.xlu0 %v4704, 15
    %v5971 = vpop.permute.xlu0 %5970
    %5972 = vrot.lane.b32.xlu0 %v4705, 15
    %v5973 = vpop.permute.xlu0 %5972
    %5974 = vrot.lane.b32.xlu0 %v4706, 15
    %v5975 = vpop.permute.xlu0 %5974
    %5976 = vrot.lane.b32.xlu0 %v4707, 15
    %v5977 = vpop.permute.xlu0 %5976
    %5978 = vrot.lane.b32.xlu0 %v4708, 15
    %v5979 = vpop.permute.xlu0 %5978
    %5980 = vrot.lane.b32.xlu0 %v4709, 15
    %v5981 = vpop.permute.xlu0 %5980
    %5982 = vrot.lane.b32.xlu0 %v4710, 15
    %v5983 = vpop.permute.xlu0 %5982
    %5984 = vrot.lane.b32.xlu0 %v4711, 15
    %v5985 = vpop.permute.xlu0 %5984
    %5986 = vrot.lane.b32.xlu0 %v4712, 15
    %v5987 = vpop.permute.xlu0 %5986
    %5988 = vrot.lane.b32.xlu0 %v4713, 15
    %v5989 = vpop.permute.xlu0 %5988
    %5990 = vrot.lane.b32.xlu0 %v4714, 15
    %v5991 = vpop.permute.xlu0 %5990
    %5992 = vrot.lane.b32.xlu0 %v4715, 15
    %v5993 = vpop.permute.xlu0 %5992
    %5994 = vrot.lane.b32.xlu0 %v4716, 15
    %v5995 = vpop.permute.xlu0 %5994
    %5996 = vrot.lane.b32.xlu0 %v4717, 15
    %v5997 = vpop.permute.xlu0 %5996
    %5998 = vrot.lane.b32.xlu0 %v4718, 15
    %v5999 = vpop.permute.xlu0 %5998
    %6000 = vrot.lane.b32.xlu0 %v4719, 15
    %v6001 = vpop.permute.xlu0 %6000
    %6002 = vrot.lane.b32.xlu0 %v4720, 15
    %v6003 = vpop.permute.xlu0 %6002
    %6004 = vrot.lane.b32.xlu0 %v4721, 15
    %v6005 = vpop.permute.xlu0 %6004
    %6006 = vrot.lane.b32.xlu0 %v4722, 15
    %v6007 = vpop.permute.xlu0 %6006
    %6008 = vrot.lane.b32.xlu0 %v4723, 15
    %v6009 = vpop.permute.xlu0 %6008
    %6010 = vrot.lane.b32.xlu0 %v4724, 15
    %v6011 = vpop.permute.xlu0 %6010
    %6012 = vrot.lane.b32.xlu0 %v4725, 15
    %v6013 = vpop.permute.xlu0 %6012
    %6014 = vrot.lane.b32.xlu0 %v4726, 15
    %v6015 = vpop.permute.xlu0 %6014
    %6016 = vrot.lane.b32.xlu0 %v4727, 15
    %v6017 = vpop.permute.xlu0 %6016
    %6018 = vrot.lane.b32.xlu0 %v4728, 15
    %v6019 = vpop.permute.xlu0 %6018
    %6020 = vrot.lane.b32.xlu0 %v4729, 15
    %v6021 = vpop.permute.xlu0 %6020
    %6022 = vrot.lane.b32.xlu0 %v4730, 15
    %v6023 = vpop.permute.xlu0 %6022
    %6024 = vrot.lane.b32.xlu0 %v4731, 15
    %v6025 = vpop.permute.xlu0 %6024
    %6026 = vrot.lane.b32.xlu0 %v4732, 15
    %v6027 = vpop.permute.xlu0 %6026
    %6028 = vrot.lane.b32.xlu0 %v4733, 15
    %v6029 = vpop.permute.xlu0 %6028
    %6030 = vrot.lane.b32.xlu0 %v4734, 15
    %v6031 = vpop.permute.xlu0 %6030
    %6032 = vrot.lane.b32.xlu0 %v4735, 15
    %v6033 = vpop.permute.xlu0 %6032
    %6034 = vrot.lane.b32.xlu0 %v4736, 15
    %v6035 = vpop.permute.xlu0 %6034
    %6036 = vrot.lane.b32.xlu0 %v4737, 15
    %v6037 = vpop.permute.xlu0 %6036
    %6038 = vrot.lane.b32.xlu0 %v4738, 15
    %v6039 = vpop.permute.xlu0 %6038
    %6040 = vrot.lane.b32.xlu0 %v4739, 15
    %v6041 = vpop.permute.xlu0 %6040
    %6042 = vrot.lane.b32.xlu0 %v4740, 15
    %v6043 = vpop.permute.xlu0 %6042
    %6044 = vrot.lane.b32.xlu0 %v4741, 15
    %v6045 = vpop.permute.xlu0 %6044
    %6046 = vrot.lane.b32.xlu0 %v4742, 15
    %v6047 = vpop.permute.xlu0 %6046
    %6048 = vrot.lane.b32.xlu0 %v4743, 15
    %v6049 = vpop.permute.xlu0 %6048
    %6050 = vrot.lane.b32.xlu0 %v4744, 15
    %v6051 = vpop.permute.xlu0 %6050
    %6052 = vrot.lane.b32.xlu0 %v4745, 15
    %v6053 = vpop.permute.xlu0 %6052
    %6054 = vrot.lane.b32.xlu0 %v4746, 15
    %v6055 = vpop.permute.xlu0 %6054
    %6056 = vrot.lane.b32.xlu0 %v4747, 15
    %v6057 = vpop.permute.xlu0 %6056
    %6058 = vrot.lane.b32.xlu0 %v4748, 15
    %v6059 = vpop.permute.xlu0 %6058
    %6210 = vrot.lane.b32.xlu0 %v4596, 20
    %v6211 = vpop.permute.xlu0 %6210
    %6212 = vrot.lane.b32.xlu0 %v4597, 20
    %v6213 = vpop.permute.xlu0 %6212
    %6214 = vrot.lane.b32.xlu0 %v4598, 20
    %v6215 = vpop.permute.xlu0 %6214
    %6216 = vrot.lane.b32.xlu0 %v4599, 20
    %v6217 = vpop.permute.xlu0 %6216
    %6218 = vrot.lane.b32.xlu0 %v4600, 20
    %v6219 = vpop.permute.xlu0 %6218
    %6220 = vrot.lane.b32.xlu0 %v4601, 20
    %v6221 = vpop.permute.xlu0 %6220
    %6222 = vrot.lane.b32.xlu0 %v4602, 20
    %v6223 = vpop.permute.xlu0 %6222
    %6224 = vrot.lane.b32.xlu0 %v4603, 20
    %v6225 = vpop.permute.xlu0 %6224
    %6226 = vrot.lane.b32.xlu0 %v4604, 20
    %v6227 = vpop.permute.xlu0 %6226
    %6228 = vrot.lane.b32.xlu0 %v4605, 20
    %v6229 = vpop.permute.xlu0 %6228
    %6230 = vrot.lane.b32.xlu0 %v4606, 20
    %v6231 = vpop.permute.xlu0 %6230
    %6232 = vrot.lane.b32.xlu0 %v4607, 20
    %v6233 = vpop.permute.xlu0 %6232
    %6234 = vrot.lane.b32.xlu0 %v4608, 20
    %v6235 = vpop.permute.xlu0 %6234
    %6236 = vrot.lane.b32.xlu0 %v4609, 20
    %v6237 = vpop.permute.xlu0 %6236
    %6238 = vrot.lane.b32.xlu0 %v4610, 20
    %v6239 = vpop.permute.xlu0 %6238
    %6240 = vrot.lane.b32.xlu0 %v4611, 20
    %v6241 = vpop.permute.xlu0 %6240
    %6242 = vrot.lane.b32.xlu0 %v4612, 20
    %v6243 = vpop.permute.xlu0 %6242
    %6244 = vrot.lane.b32.xlu0 %v4613, 20
    %v6245 = vpop.permute.xlu0 %6244
    %6246 = vrot.lane.b32.xlu0 %v4614, 20
    %v6247 = vpop.permute.xlu0 %6246
    %6248 = vrot.lane.b32.xlu0 %v4615, 20
    %v6249 = vpop.permute.xlu0 %6248
    %6250 = vrot.lane.b32.xlu0 %v4616, 20
    %v6251 = vpop.permute.xlu0 %6250
    %6252 = vrot.lane.b32.xlu0 %v4617, 20
    %v6253 = vpop.permute.xlu0 %6252
    %6254 = vrot.lane.b32.xlu0 %v4618, 20
    %v6255 = vpop.permute.xlu0 %6254
    %6256 = vrot.lane.b32.xlu0 %v4619, 20
    %v6257 = vpop.permute.xlu0 %6256
    %6258 = vrot.lane.b32.xlu0 %v4620, 20
    %v6259 = vpop.permute.xlu0 %6258
    %6260 = vrot.lane.b32.xlu0 %v4621, 20
    %v6261 = vpop.permute.xlu0 %6260
    %6262 = vrot.lane.b32.xlu0 %v4622, 20
    %v6263 = vpop.permute.xlu0 %6262
    %6264 = vrot.lane.b32.xlu0 %v4623, 20
    %v6265 = vpop.permute.xlu0 %6264
    %6266 = vrot.lane.b32.xlu0 %v4624, 20
    %v6267 = vpop.permute.xlu0 %6266
    %6268 = vrot.lane.b32.xlu0 %v4625, 20
    %v6269 = vpop.permute.xlu0 %6268
    %6270 = vrot.lane.b32.xlu0 %v4626, 20
    %v6271 = vpop.permute.xlu0 %6270
    %6272 = vrot.lane.b32.xlu0 %v4627, 20
    %v6273 = vpop.permute.xlu0 %6272
    %6274 = vrot.lane.b32.xlu0 %v4628, 20
    %v6275 = vpop.permute.xlu0 %6274
    %6276 = vrot.lane.b32.xlu0 %v4629, 20
    %v6277 = vpop.permute.xlu0 %6276
    %6278 = vrot.lane.b32.xlu0 %v4630, 20
    %v6279 = vpop.permute.xlu0 %6278
    %6280 = vrot.lane.b32.xlu0 %v4631, 20
    %v6281 = vpop.permute.xlu0 %6280
    %6282 = vrot.lane.b32.xlu0 %v4632, 20
    %v6283 = vpop.permute.xlu0 %6282
    %6284 = vrot.lane.b32.xlu0 %v4633, 20
    %v6285 = vpop.permute.xlu0 %6284
    %6286 = vrot.lane.b32.xlu0 %v4634, 20
    %v6287 = vpop.permute.xlu0 %6286
    %6288 = vrot.lane.b32.xlu0 %v4635, 20
    %v6289 = vpop.permute.xlu0 %6288
    %6290 = vrot.lane.b32.xlu0 %v4636, 20
    %v6291 = vpop.permute.xlu0 %6290
    %6292 = vrot.lane.b32.xlu0 %v4637, 20
    %v6293 = vpop.permute.xlu0 %6292
    %6294 = vrot.lane.b32.xlu0 %v4638, 20
    %v6295 = vpop.permute.xlu0 %6294
    %6296 = vrot.lane.b32.xlu0 %v4639, 20
    %v6297 = vpop.permute.xlu0 %6296
    %6298 = vrot.lane.b32.xlu0 %v4640, 20
    %v6299 = vpop.permute.xlu0 %6298
    %6300 = vrot.lane.b32.xlu0 %v4641, 20
    %v6301 = vpop.permute.xlu0 %6300
    %6302 = vrot.lane.b32.xlu0 %v4642, 20
    %v6303 = vpop.permute.xlu0 %6302
    %6304 = vrot.lane.b32.xlu0 %v4643, 20
    %v6305 = vpop.permute.xlu0 %6304
    %6306 = vrot.lane.b32.xlu0 %v4644, 20
    %v6307 = vpop.permute.xlu0 %6306
    %6308 = vrot.lane.b32.xlu0 %v4645, 20
    %v6309 = vpop.permute.xlu0 %6308
    %6310 = vrot.lane.b32.xlu0 %v4646, 20
    %v6311 = vpop.permute.xlu0 %6310
    %6312 = vrot.lane.b32.xlu0 %v4647, 20
    %v6313 = vpop.permute.xlu0 %6312
    %6314 = vrot.lane.b32.xlu0 %v4648, 20
    %v6315 = vpop.permute.xlu0 %6314
    %6316 = vrot.lane.b32.xlu0 %v4649, 20
    %v6317 = vpop.permute.xlu0 %6316
    %6318 = vrot.lane.b32.xlu0 %v4650, 20
    %v6319 = vpop.permute.xlu0 %6318
    %6320 = vrot.lane.b32.xlu0 %v4651, 20
    %v6321 = vpop.permute.xlu0 %6320
    %6322 = vrot.lane.b32.xlu0 %v4652, 20
    %v6323 = vpop.permute.xlu0 %6322
    %6324 = vrot.lane.b32.xlu0 %v4653, 20
    %v6325 = vpop.permute.xlu0 %6324
    %6326 = vrot.lane.b32.xlu0 %v4654, 20
    %v6327 = vpop.permute.xlu0 %6326
    %6328 = vrot.lane.b32.xlu0 %v4655, 20
    %v6329 = vpop.permute.xlu0 %6328
    %6330 = vrot.lane.b32.xlu0 %v4656, 20
    %v6331 = vpop.permute.xlu0 %6330
    %6332 = vrot.lane.b32.xlu0 %v4657, 20
    %v6333 = vpop.permute.xlu0 %6332
    %6334 = vrot.lane.b32.xlu0 %v4658, 20
    %v6335 = vpop.permute.xlu0 %6334
    %6336 = vrot.lane.b32.xlu0 %v4659, 20
    %v6337 = vpop.permute.xlu0 %6336
    %6338 = vrot.lane.b32.xlu0 %v4660, 20
    %v6339 = vpop.permute.xlu0 %6338
    %6340 = vrot.lane.b32.xlu0 %v4661, 20
    %v6341 = vpop.permute.xlu0 %6340
    %6342 = vrot.lane.b32.xlu0 %v4662, 20
    %v6343 = vpop.permute.xlu0 %6342
    %6344 = vrot.lane.b32.xlu0 %v4663, 20
    %v6345 = vpop.permute.xlu0 %6344
    %6346 = vrot.lane.b32.xlu0 %v4664, 20
    %v6347 = vpop.permute.xlu0 %6346
    %6348 = vrot.lane.b32.xlu0 %v4665, 20
    %v6349 = vpop.permute.xlu0 %6348
    %6350 = vrot.lane.b32.xlu0 %v4666, 20
    %v6351 = vpop.permute.xlu0 %6350
    %6352 = vrot.lane.b32.xlu0 %v4667, 20
    %v6353 = vpop.permute.xlu0 %6352
    %6354 = vrot.lane.b32.xlu0 %v4680, 20
    %v6355 = vpop.permute.xlu0 %6354
    %6356 = vrot.lane.b32.xlu0 %v4681, 20
    %v6357 = vpop.permute.xlu0 %6356
    %6358 = vrot.lane.b32.xlu0 %v4682, 20
    %v6359 = vpop.permute.xlu0 %6358
    %6360 = vrot.lane.b32.xlu0 %v4683, 20
    %v6361 = vpop.permute.xlu0 %6360
    %6362 = vrot.lane.b32.xlu0 %v4684, 20
    %v6363 = vpop.permute.xlu0 %6362
    %6364 = vrot.lane.b32.xlu0 %v4685, 20
    %v6365 = vpop.permute.xlu0 %6364
    %6366 = vrot.lane.b32.xlu0 %v4686, 20
    %v6367 = vpop.permute.xlu0 %6366
    %6368 = vrot.lane.b32.xlu0 %v4687, 20
    %v6369 = vpop.permute.xlu0 %6368
    %6370 = vrot.lane.b32.xlu0 %v4688, 20
    %v6371 = vpop.permute.xlu0 %6370
    %6372 = vrot.lane.b32.xlu0 %v4689, 20
    %v6373 = vpop.permute.xlu0 %6372
    %6374 = vrot.lane.b32.xlu0 %v4690, 20
    %v6375 = vpop.permute.xlu0 %6374
    %6376 = vrot.lane.b32.xlu0 %v4691, 20
    %v6377 = vpop.permute.xlu0 %6376
    %6378 = vrot.lane.b32.xlu0 %v4692, 20
    %v6379 = vpop.permute.xlu0 %6378
    %6380 = vrot.lane.b32.xlu0 %v4693, 20
    %v6381 = vpop.permute.xlu0 %6380
    %6382 = vrot.lane.b32.xlu0 %v4694, 20
    %v6383 = vpop.permute.xlu0 %6382
    %6384 = vrot.lane.b32.xlu0 %v4695, 20
    %v6385 = vpop.permute.xlu0 %6384
    %6386 = vrot.lane.b32.xlu0 %v4696, 20
    %v6387 = vpop.permute.xlu0 %6386
    %6388 = vrot.lane.b32.xlu0 %v4697, 20
    %v6389 = vpop.permute.xlu0 %6388
    %6390 = vrot.lane.b32.xlu0 %v4698, 20
    %v6391 = vpop.permute.xlu0 %6390
    %6392 = vrot.lane.b32.xlu0 %v4699, 20
    %v6393 = vpop.permute.xlu0 %6392
    %6394 = vrot.lane.b32.xlu0 %v4700, 20
    %v6395 = vpop.permute.xlu0 %6394
    %6396 = vrot.lane.b32.xlu0 %v4701, 20
    %v6397 = vpop.permute.xlu0 %6396
    %6398 = vrot.lane.b32.xlu0 %v4702, 20
    %v6399 = vpop.permute.xlu0 %6398
    %6400 = vrot.lane.b32.xlu0 %v4703, 20
    %v6401 = vpop.permute.xlu0 %6400
    %6402 = vrot.lane.b32.xlu0 %v4704, 20
    %v6403 = vpop.permute.xlu0 %6402
    %6404 = vrot.lane.b32.xlu0 %v4705, 20
    %v6405 = vpop.permute.xlu0 %6404
    %6406 = vrot.lane.b32.xlu0 %v4706, 20
    %v6407 = vpop.permute.xlu0 %6406
    %6408 = vrot.lane.b32.xlu0 %v4707, 20
    %v6409 = vpop.permute.xlu0 %6408
    %6410 = vrot.lane.b32.xlu0 %v4708, 20
    %v6411 = vpop.permute.xlu0 %6410
    %6412 = vrot.lane.b32.xlu0 %v4709, 20
    %v6413 = vpop.permute.xlu0 %6412
    %6414 = vrot.lane.b32.xlu0 %v4710, 20
    %v6415 = vpop.permute.xlu0 %6414
    %6416 = vrot.lane.b32.xlu0 %v4711, 20
    %v6417 = vpop.permute.xlu0 %6416
    %6418 = vrot.lane.b32.xlu0 %v4712, 20
    %v6419 = vpop.permute.xlu0 %6418
    %6420 = vrot.lane.b32.xlu0 %v4713, 20
    %v6421 = vpop.permute.xlu0 %6420
    %6422 = vrot.lane.b32.xlu0 %v4714, 20
    %v6423 = vpop.permute.xlu0 %6422
    %6424 = vrot.lane.b32.xlu0 %v4715, 20
    %v6425 = vpop.permute.xlu0 %6424
    %6426 = vrot.lane.b32.xlu0 %v4716, 20
    %v6427 = vpop.permute.xlu0 %6426
    %6428 = vrot.lane.b32.xlu0 %v4717, 20
    %v6429 = vpop.permute.xlu0 %6428
    %6430 = vrot.lane.b32.xlu0 %v4718, 20
    %v6431 = vpop.permute.xlu0 %6430
    %6432 = vrot.lane.b32.xlu0 %v4719, 20
    %v6433 = vpop.permute.xlu0 %6432
    %6434 = vrot.lane.b32.xlu0 %v4720, 20
    %v6435 = vpop.permute.xlu0 %6434
    %6436 = vrot.lane.b32.xlu0 %v4721, 20
    %v6437 = vpop.permute.xlu0 %6436
    %6438 = vrot.lane.b32.xlu0 %v4722, 20
    %v6439 = vpop.permute.xlu0 %6438
    %6440 = vrot.lane.b32.xlu0 %v4723, 20
    %v6441 = vpop.permute.xlu0 %6440
    %6442 = vrot.lane.b32.xlu0 %v4724, 20
    %v6443 = vpop.permute.xlu0 %6442
    %6444 = vrot.lane.b32.xlu0 %v4725, 20
    %v6445 = vpop.permute.xlu0 %6444
    %6446 = vrot.lane.b32.xlu0 %v4726, 20
    %v6447 = vpop.permute.xlu0 %6446
    %6448 = vrot.lane.b32.xlu0 %v4727, 20
    %v6449 = vpop.permute.xlu0 %6448
    %6450 = vrot.lane.b32.xlu0 %v4728, 20
    %v6451 = vpop.permute.xlu0 %6450
    %6452 = vrot.lane.b32.xlu0 %v4729, 20
    %v6453 = vpop.permute.xlu0 %6452
    %6454 = vrot.lane.b32.xlu0 %v4730, 20
    %v6455 = vpop.permute.xlu0 %6454
    %6456 = vrot.lane.b32.xlu0 %v4731, 20
    %v6457 = vpop.permute.xlu0 %6456
    %6458 = vrot.lane.b32.xlu0 %v4732, 20
    %v6459 = vpop.permute.xlu0 %6458
    %6460 = vrot.lane.b32.xlu0 %v4733, 20
    %v6461 = vpop.permute.xlu0 %6460
    %6462 = vrot.lane.b32.xlu0 %v4734, 20
    %v6463 = vpop.permute.xlu0 %6462
    %6464 = vrot.lane.b32.xlu0 %v4735, 20
    %v6465 = vpop.permute.xlu0 %6464
    %6466 = vrot.lane.b32.xlu0 %v4736, 20
    %v6467 = vpop.permute.xlu0 %6466
    %6468 = vrot.lane.b32.xlu0 %v4737, 20
    %v6469 = vpop.permute.xlu0 %6468
    %6470 = vrot.lane.b32.xlu0 %v4738, 20
    %v6471 = vpop.permute.xlu0 %6470
    %6472 = vrot.lane.b32.xlu0 %v4739, 20
    %v6473 = vpop.permute.xlu0 %6472
    %6474 = vrot.lane.b32.xlu0 %v4740, 20
    %v6475 = vpop.permute.xlu0 %6474
    %6476 = vrot.lane.b32.xlu0 %v4741, 20
    %v6477 = vpop.permute.xlu0 %6476
    %6478 = vrot.lane.b32.xlu0 %v4742, 20
    %v6479 = vpop.permute.xlu0 %6478
    %6480 = vrot.lane.b32.xlu0 %v4743, 20
    %v6481 = vpop.permute.xlu0 %6480
    %6482 = vrot.lane.b32.xlu0 %v4744, 20
    %v6483 = vpop.permute.xlu0 %6482
    %6484 = vrot.lane.b32.xlu0 %v4745, 20
    %v6485 = vpop.permute.xlu0 %6484
    %6486 = vrot.lane.b32.xlu0 %v4746, 20
    %v6487 = vpop.permute.xlu0 %6486
    %6488 = vrot.lane.b32.xlu0 %v4747, 20
    %v6489 = vpop.permute.xlu0 %6488
    %6490 = vrot.lane.b32.xlu0 %v4748, 20
    %v6491 = vpop.permute.xlu0 %6490
    %6492 = vrot.lane.b32.xlu0 %v4749, 20
    %v6493 = vpop.permute.xlu0 %6492
    %6494 = vrot.lane.b32.xlu0 %v4750, 20
    %v6495 = vpop.permute.xlu0 %6494
    %6496 = vrot.lane.b32.xlu0 %v4751, 20
    %v6497 = vpop.permute.xlu0 %6496
    %vm6642 = vcmask 39936
    %v6643 = vsel %vm6642, %v4584, %v4897
    %v6644 = vsel %vm6642, %v4585, %v4899
    %v6645 = vsel %vm6642, %v4586, %v4901
    %v6646 = vsel %vm6642, %v4587, %v4903
    %v6647 = vsel %vm6642, %v4588, %v4905
    %v6648 = vsel %vm6642, %v4589, %v4907
    %v6649 = vsel %vm6642, %v4590, %v4909
    %v6650 = vsel %vm6642, %v4591, %v4911
    %v6651 = vsel %vm6642, %v4592, %v4913
    %v6652 = vsel %vm6642, %v4593, %v4915
    %v6653 = vsel %vm6642, %v4594, %v4917
    %v6654 = vsel %vm6642, %v4595, %v4919
    %v6655 = vsel %vm6642, %v4596, %v4921
    %v6656 = vsel %vm6642, %v4597, %v4923
    %v6657 = vsel %vm6642, %v4598, %v4925
    %v6658 = vsel %vm6642, %v4599, %v4927
    %v6659 = vsel %vm6642, %v4600, %v4929
    %v6660 = vsel %vm6642, %v4601, %v4931
    %v6661 = vsel %vm6642, %v4602, %v4933
    %v6662 = vsel %vm6642, %v4603, %v4935
    %v6663 = vsel %vm6642, %v4604, %v4937
    %v6664 = vsel %vm6642, %v4605, %v4939
    %v6665 = vsel %vm6642, %v4606, %v4941
    %v6666 = vsel %vm6642, %v4607, %v4943
    %v6667 = vsel %vm6642, %v4608, %v4945
    %v6668 = vsel %vm6642, %v4609, %v4947
    %v6669 = vsel %vm6642, %v4610, %v4949
    %v6670 = vsel %vm6642, %v4611, %v4951
    %v6671 = vsel %vm6642, %v4612, %v4953
    %v6672 = vsel %vm6642, %v4613, %v4955
    %v6673 = vsel %vm6642, %v4614, %v4957
    %v6674 = vsel %vm6642, %v4615, %v4959
    %v6675 = vsel %vm6642, %v4616, %v4961
    %v6676 = vsel %vm6642, %v4617, %v4963
    %v6677 = vsel %vm6642, %v4618, %v4965
    %v6678 = vsel %vm6642, %v4619, %v4967
    %v6679 = vsel %vm6642, %v4620, %v4969
    %v6680 = vsel %vm6642, %v4621, %v4971
    %v6681 = vsel %vm6642, %v4622, %v4973
    %v6682 = vsel %vm6642, %v4623, %v4975
    %v6683 = vsel %vm6642, %v4624, %v4977
    %v6684 = vsel %vm6642, %v4625, %v4979
    %v6685 = vsel %vm6642, %v4626, %v4981
    %v6686 = vsel %vm6642, %v4627, %v4983
    %v6687 = vsel %vm6642, %v4628, %v4985
    %v6688 = vsel %vm6642, %v4629, %v4987
    %v6689 = vsel %vm6642, %v4630, %v4989
    %v6690 = vsel %vm6642, %v4631, %v4991
    %v6691 = vsel %vm6642, %v4632, %v4993
    %v6692 = vsel %vm6642, %v4633, %v4995
    %v6693 = vsel %vm6642, %v4634, %v4997
    %v6694 = vsel %vm6642, %v4635, %v4999
    %v6695 = vsel %vm6642, %v4636, %v5001
    %v6696 = vsel %vm6642, %v4637, %v5003
    %v6697 = vsel %vm6642, %v4638, %v5005
    %v6698 = vsel %vm6642, %v4639, %v5007
    %v6699 = vsel %vm6642, %v4640, %v5009
    %v6700 = vsel %vm6642, %v4641, %v5011
    %v6701 = vsel %vm6642, %v4642, %v5013
    %v6702 = vsel %vm6642, %v4643, %v5015
    %v6703 = vsel %vm6642, %v4644, %v5017
    %v6704 = vsel %vm6642, %v4645, %v5019
    %v6705 = vsel %vm6642, %v4646, %v5021
    %v6706 = vsel %vm6642, %v4647, %v5023
    %v6707 = vsel %vm6642, %v4648, %v5025
    %v6708 = vsel %vm6642, %v4649, %v5027
    %v6709 = vsel %vm6642, %v4650, %v5029
    %v6710 = vsel %vm6642, %v4651, %v5031
    %v6711 = vsel %vm6642, %v4652, %v5033
    %v6712 = vsel %vm6642, %v4653, %v5035
    %v6713 = vsel %vm6642, %v4654, %v5037
    %v6714 = vsel %vm6642, %v4655, %v5039
    %v6715 = vsel %vm6642, %v4668, %v5041
    %v6716 = vsel %vm6642, %v4669, %v5043
    %v6717 = vsel %vm6642, %v4670, %v5045
    %v6718 = vsel %vm6642, %v4671, %v5047
    %v6719 = vsel %vm6642, %v4672, %v5049
    %v6720 = vsel %vm6642, %v4673, %v5051
    %v6721 = vsel %vm6642, %v4674, %v5053
    %v6722 = vsel %vm6642, %v4675, %v5055
    %v6723 = vsel %vm6642, %v4676, %v5057
    %v6724 = vsel %vm6642, %v4677, %v5059
    %v6725 = vsel %vm6642, %v4678, %v5061
    %v6726 = vsel %vm6642, %v4679, %v5063
    %v6727 = vsel %vm6642, %v4680, %v5065
    %v6728 = vsel %vm6642, %v4681, %v5067
    %v6729 = vsel %vm6642, %v4682, %v5069
    %v6730 = vsel %vm6642, %v4683, %v5071
    %v6731 = vsel %vm6642, %v4684, %v5073
    %v6732 = vsel %vm6642, %v4685, %v5075
    %v6733 = vsel %vm6642, %v4686, %v5077
    %v6734 = vsel %vm6642, %v4687, %v5079
    %v6735 = vsel %vm6642, %v4688, %v5081
    %v6736 = vsel %vm6642, %v4689, %v5083
    %v6737 = vsel %vm6642, %v4690, %v5085
    %v6738 = vsel %vm6642, %v4691, %v5087
    %v6739 = vsel %vm6642, %v4692, %v5089
    %v6740 = vsel %vm6642, %v4693, %v5091
    %v6741 = vsel %vm6642, %v4694, %v5093
    %v6742 = vsel %vm6642, %v4695, %v5095
    %v6743 = vsel %vm6642, %v4696, %v5097
    %v6744 = vsel %vm6642, %v4697, %v5099
    %v6745 = vsel %vm6642, %v4698, %v5101
    %v6746 = vsel %vm6642, %v4699, %v5103
    %v6747 = vsel %vm6642, %v4700, %v5105
    %v6748 = vsel %vm6642, %v4701, %v5107
    %v6749 = vsel %vm6642, %v4702, %v5109
    %v6750 = vsel %vm6642, %v4703, %v5111
    %v6751 = vsel %vm6642, %v4704, %v5113
    %v6752 = vsel %vm6642, %v4705, %v5115
    %v6753 = vsel %vm6642, %v4706, %v5117
    %v6754 = vsel %vm6642, %v4707, %v5119
    %v6755 = vsel %vm6642, %v4708, %v5121
    %v6756 = vsel %vm6642, %v4709, %v5123
    %v6757 = vsel %vm6642, %v4710, %v5125
    %v6758 = vsel %vm6642, %v4711, %v5127
    %v6759 = vsel %vm6642, %v4712, %v5129
    %v6760 = vsel %vm6642, %v4713, %v5131
    %v6761 = vsel %vm6642, %v4714, %v5133
    %v6762 = vsel %vm6642, %v4715, %v5135
    %v6763 = vsel %vm6642, %v4716, %v5137
    %v6764 = vsel %vm6642, %v4717, %v5139
    %v6765 = vsel %vm6642, %v4718, %v5141
    %v6766 = vsel %vm6642, %v4719, %v5143
    %v6767 = vsel %vm6642, %v4720, %v5145
    %v6768 = vsel %vm6642, %v4721, %v5147
    %v6769 = vsel %vm6642, %v4722, %v5149
    %v6770 = vsel %vm6642, %v4723, %v5151
    %v6771 = vsel %vm6642, %v4724, %v5153
    %v6772 = vsel %vm6642, %v4725, %v5155
    %v6773 = vsel %vm6642, %v4726, %v5157
    %v6774 = vsel %vm6642, %v4727, %v5159
    %v6775 = vsel %vm6642, %v4728, %v5161
    %v6776 = vsel %vm6642, %v4729, %v5163
    %v6777 = vsel %vm6642, %v4730, %v5165
    %v6778 = vsel %vm6642, %v4731, %v5167
    %v6779 = vsel %vm6642, %v4732, %v5169
    %v6780 = vsel %vm6642, %v4733, %v5171
    %v6781 = vsel %vm6642, %v4734, %v5173
    %v6782 = vsel %vm6642, %v4735, %v5175
    %v6783 = vsel %vm6642, %v4736, %v5177
    %v6784 = vsel %vm6642, %v4737, %v5179
    %v6785 = vsel %vm6642, %v4738, %v5181
    %v6786 = vsel %vm6642, %v4739, %v5183
    %vm6787 = vcmask 80896
    %v6788 = vsel %vm6787, %v6643, %v5335
    %v6789 = vsel %vm6787, %v6644, %v5337
    %v6790 = vsel %vm6787, %v6645, %v5339
    %v6791 = vsel %vm6787, %v6646, %v5341
    %v6792 = vsel %vm6787, %v6647, %v5343
    %v6793 = vsel %vm6787, %v6648, %v5345
    %v6794 = vsel %vm6787, %v6649, %v5347
    %v6795 = vsel %vm6787, %v6650, %v5349
    %v6796 = vsel %vm6787, %v6651, %v5351
    %v6797 = vsel %vm6787, %v6652, %v5353
    %v6798 = vsel %vm6787, %v6653, %v5355
    %v6799 = vsel %vm6787, %v6654, %v5357
    %v6800 = vsel %vm6787, %v6655, %v5359
    %v6801 = vsel %vm6787, %v6656, %v5361
    %v6802 = vsel %vm6787, %v6657, %v5363
    %v6803 = vsel %vm6787, %v6658, %v5365
    %v6804 = vsel %vm6787, %v6659, %v5367
    %v6805 = vsel %vm6787, %v6660, %v5369
    %v6806 = vsel %vm6787, %v6661, %v5371
    %v6807 = vsel %vm6787, %v6662, %v5373
    %v6808 = vsel %vm6787, %v6663, %v5375
    %v6809 = vsel %vm6787, %v6664, %v5377
    %v6810 = vsel %vm6787, %v6665, %v5379
    %v6811 = vsel %vm6787, %v6666, %v5381
    %v6812 = vsel %vm6787, %v6667, %v5383
    %v6813 = vsel %vm6787, %v6668, %v5385
    %v6814 = vsel %vm6787, %v6669, %v5387
    %v6815 = vsel %vm6787, %v6670, %v5389
    %v6816 = vsel %vm6787, %v6671, %v5391
    %v6817 = vsel %vm6787, %v6672, %v5393
    %v6818 = vsel %vm6787, %v6673, %v5395
    %v6819 = vsel %vm6787, %v6674, %v5397
    %v6820 = vsel %vm6787, %v6675, %v5399
    %v6821 = vsel %vm6787, %v6676, %v5401
    %v6822 = vsel %vm6787, %v6677, %v5403
    %v6823 = vsel %vm6787, %v6678, %v5405
    %v6824 = vsel %vm6787, %v6679, %v5407
    %v6825 = vsel %vm6787, %v6680, %v5409
    %v6826 = vsel %vm6787, %v6681, %v5411
    %v6827 = vsel %vm6787, %v6682, %v5413
    %v6828 = vsel %vm6787, %v6683, %v5415
    %v6829 = vsel %vm6787, %v6684, %v5417
    %v6830 = vsel %vm6787, %v6685, %v5419
    %v6831 = vsel %vm6787, %v6686, %v5421
    %v6832 = vsel %vm6787, %v6687, %v5423
    %v6833 = vsel %vm6787, %v6688, %v5425
    %v6834 = vsel %vm6787, %v6689, %v5427
    %v6835 = vsel %vm6787, %v6690, %v5429
    %v6836 = vsel %vm6787, %v6691, %v5431
    %v6837 = vsel %vm6787, %v6692, %v5433
    %v6838 = vsel %vm6787, %v6693, %v5435
    %v6839 = vsel %vm6787, %v6694, %v5437
    %v6840 = vsel %vm6787, %v6695, %v5439
    %v6841 = vsel %vm6787, %v6696, %v5441
    %v6842 = vsel %vm6787, %v6697, %v5443
    %v6843 = vsel %vm6787, %v6698, %v5445
    %v6844 = vsel %vm6787, %v6699, %v5447
    %v6845 = vsel %vm6787, %v6700, %v5449
    %v6846 = vsel %vm6787, %v6701, %v5451
    %v6847 = vsel %vm6787, %v6702, %v5453
    %v6848 = vsel %vm6787, %v6703, %v5455
    %v6849 = vsel %vm6787, %v6704, %v5457
    %v6850 = vsel %vm6787, %v6705, %v5459
    %v6851 = vsel %vm6787, %v6706, %v5461
    %v6852 = vsel %vm6787, %v6707, %v5463
    %v6853 = vsel %vm6787, %v6708, %v5465
    %v6854 = vsel %vm6787, %v6709, %v5467
    %v6855 = vsel %vm6787, %v6710, %v5469
    %v6856 = vsel %vm6787, %v6711, %v5471
    %v6857 = vsel %vm6787, %v6712, %v5473
    %v6858 = vsel %vm6787, %v6713, %v5475
    %v6859 = vsel %vm6787, %v6714, %v5477
    %v6860 = vsel %vm6787, %v6715, %v5479
    %v6861 = vsel %vm6787, %v6716, %v5481
    %v6862 = vsel %vm6787, %v6717, %v5483
    %v6863 = vsel %vm6787, %v6718, %v5485
    %v6864 = vsel %vm6787, %v6719, %v5487
    %v6865 = vsel %vm6787, %v6720, %v5489
    %v6866 = vsel %vm6787, %v6721, %v5491
    %v6867 = vsel %vm6787, %v6722, %v5493
    %v6868 = vsel %vm6787, %v6723, %v5495
    %v6869 = vsel %vm6787, %v6724, %v5497
    %v6870 = vsel %vm6787, %v6725, %v5499
    %v6871 = vsel %vm6787, %v6726, %v5501
    %v6872 = vsel %vm6787, %v6727, %v5503
    %v6873 = vsel %vm6787, %v6728, %v5505
    %v6874 = vsel %vm6787, %v6729, %v5507
    %v6875 = vsel %vm6787, %v6730, %v5509
    %v6876 = vsel %vm6787, %v6731, %v5511
    %v6877 = vsel %vm6787, %v6732, %v5513
    %v6878 = vsel %vm6787, %v6733, %v5515
    %v6879 = vsel %vm6787, %v6734, %v5517
    %v6880 = vsel %vm6787, %v6735, %v5519
    %v6881 = vsel %vm6787, %v6736, %v5521
    %v6882 = vsel %vm6787, %v6737, %v5523
    %v6883 = vsel %vm6787, %v6738, %v5525
    %v6884 = vsel %vm6787, %v6739, %v5527
    %v6885 = vsel %vm6787, %v6740, %v5529
    %v6886 = vsel %vm6787, %v6741, %v5531
    %v6887 = vsel %vm6787, %v6742, %v5533
    %v6888 = vsel %vm6787, %v6743, %v5535
    %v6889 = vsel %vm6787, %v6744, %v5537
    %v6890 = vsel %vm6787, %v6745, %v5539
    %v6891 = vsel %vm6787, %v6746, %v5541
    %v6892 = vsel %vm6787, %v6747, %v5543
    %v6893 = vsel %vm6787, %v6748, %v5545
    %v6894 = vsel %vm6787, %v6749, %v5547
    %v6895 = vsel %vm6787, %v6750, %v5549
    %v6896 = vsel %vm6787, %v6751, %v5551
    %v6897 = vsel %vm6787, %v6752, %v5553
    %v6898 = vsel %vm6787, %v6753, %v5555
    %v6899 = vsel %vm6787, %v6754, %v5557
    %v6900 = vsel %vm6787, %v6755, %v5559
    %v6901 = vsel %vm6787, %v6756, %v5561
    %v6902 = vsel %vm6787, %v6757, %v5563
    %v6903 = vsel %vm6787, %v6758, %v5565
    %v6904 = vsel %vm6787, %v6759, %v5567
    %v6905 = vsel %vm6787, %v6760, %v5569
    %v6906 = vsel %vm6787, %v6761, %v5571
    %v6907 = vsel %vm6787, %v6762, %v5573
    %v6908 = vsel %vm6787, %v6763, %v5575
    %v6909 = vsel %vm6787, %v6764, %v5577
    %v6910 = vsel %vm6787, %v6765, %v5579
    %v6911 = vsel %vm6787, %v6766, %v5581
    %v6912 = vsel %vm6787, %v6767, %v5583
    %v6913 = vsel %vm6787, %v6768, %v5585
    %v6914 = vsel %vm6787, %v6769, %v5587
    %v6915 = vsel %vm6787, %v6770, %v5589
    %v6916 = vsel %vm6787, %v6771, %v5591
    %v6917 = vsel %vm6787, %v6772, %v5593
    %v6918 = vsel %vm6787, %v6773, %v5595
    %v6919 = vsel %vm6787, %v6774, %v5597
    %v6920 = vsel %vm6787, %v6775, %v5599
    %v6921 = vsel %vm6787, %v6776, %v5601
    %v6922 = vsel %vm6787, %v6777, %v5603
    %v6923 = vsel %vm6787, %v6778, %v5605
    %v6924 = vsel %vm6787, %v6779, %v5607
    %v6925 = vsel %vm6787, %v6780, %v5609
    %v6926 = vsel %vm6787, %v6781, %v5611
    %v6927 = vsel %vm6787, %v6782, %v5613
    %v6928 = vsel %vm6787, %v6783, %v5615
    %v6929 = vsel %vm6787, %v6784, %v5617
    %v6930 = vsel %vm6787, %v6785, %v5619
    %v6931 = vsel %vm6787, %v6786, %v5621
    %vm6932 = vcmask 121856
    %v6933 = vsel %vm6932, %v6788, %v5773
    %v6934 = vsel %vm6932, %v6789, %v5775
    %v6935 = vsel %vm6932, %v6790, %v5777
    %v6936 = vsel %vm6932, %v6791, %v5779
    %v6937 = vsel %vm6932, %v6792, %v5781
    %v6938 = vsel %vm6932, %v6793, %v5783
    %v6939 = vsel %vm6932, %v6794, %v5785
    %v6940 = vsel %vm6932, %v6795, %v5787
    %v6941 = vsel %vm6932, %v6796, %v5789
    %v6942 = vsel %vm6932, %v6797, %v5791
    %v6943 = vsel %vm6932, %v6798, %v5793
    %v6944 = vsel %vm6932, %v6799, %v5795
    %v6945 = vsel %vm6932, %v6800, %v5797
    %v6946 = vsel %vm6932, %v6801, %v5799
    %v6947 = vsel %vm6932, %v6802, %v5801
    %v6948 = vsel %vm6932, %v6803, %v5803
    %v6949 = vsel %vm6932, %v6804, %v5805
    %v6950 = vsel %vm6932, %v6805, %v5807
    %v6951 = vsel %vm6932, %v6806, %v5809
    %v6952 = vsel %vm6932, %v6807, %v5811
    %v6953 = vsel %vm6932, %v6808, %v5813
    %v6954 = vsel %vm6932, %v6809, %v5815
    %v6955 = vsel %vm6932, %v6810, %v5817
    %v6956 = vsel %vm6932, %v6811, %v5819
    %v6957 = vsel %vm6932, %v6812, %v5821
    %v6958 = vsel %vm6932, %v6813, %v5823
    %v6959 = vsel %vm6932, %v6814, %v5825
    %v6960 = vsel %vm6932, %v6815, %v5827
    %v6961 = vsel %vm6932, %v6816, %v5829
    %v6962 = vsel %vm6932, %v6817, %v5831
    %v6963 = vsel %vm6932, %v6818, %v5833
    %v6964 = vsel %vm6932, %v6819, %v5835
    %v6965 = vsel %vm6932, %v6820, %v5837
    %v6966 = vsel %vm6932, %v6821, %v5839
    %v6967 = vsel %vm6932, %v6822, %v5841
    %v6968 = vsel %vm6932, %v6823, %v5843
    %v6969 = vsel %vm6932, %v6824, %v5845
    %v6970 = vsel %vm6932, %v6825, %v5847
    %v6971 = vsel %vm6932, %v6826, %v5849
    %v6972 = vsel %vm6932, %v6827, %v5851
    %v6973 = vsel %vm6932, %v6828, %v5853
    %v6974 = vsel %vm6932, %v6829, %v5855
    %v6975 = vsel %vm6932, %v6830, %v5857
    %v6976 = vsel %vm6932, %v6831, %v5859
    %v6977 = vsel %vm6932, %v6832, %v5861
    %v6978 = vsel %vm6932, %v6833, %v5863
    %v6979 = vsel %vm6932, %v6834, %v5865
    %v6980 = vsel %vm6932, %v6835, %v5867
    %v6981 = vsel %vm6932, %v6836, %v5869
    %v6982 = vsel %vm6932, %v6837, %v5871
    %v6983 = vsel %vm6932, %v6838, %v5873
    %v6984 = vsel %vm6932, %v6839, %v5875
    %v6985 = vsel %vm6932, %v6840, %v5877
    %v6986 = vsel %vm6932, %v6841, %v5879
    %v6987 = vsel %vm6932, %v6842, %v5881
    %v6988 = vsel %vm6932, %v6843, %v5883
    %v6989 = vsel %vm6932, %v6844, %v5885
    %v6990 = vsel %vm6932, %v6845, %v5887
    %v6991 = vsel %vm6932, %v6846, %v5889
    %v6992 = vsel %vm6932, %v6847, %v5891
    %v6993 = vsel %vm6932, %v6848, %v5893
    %v6994 = vsel %vm6932, %v6849, %v5895
    %v6995 = vsel %vm6932, %v6850, %v5897
    %v6996 = vsel %vm6932, %v6851, %v5899
    %v6997 = vsel %vm6932, %v6852, %v5901
    %v6998 = vsel %vm6932, %v6853, %v5903
    %v6999 = vsel %vm6932, %v6854, %v5905
    %v7000 = vsel %vm6932, %v6855, %v5907
    %v7001 = vsel %vm6932, %v6856, %v5909
    %v7002 = vsel %vm6932, %v6857, %v5911
    %v7003 = vsel %vm6932, %v6858, %v5913
    %v7004 = vsel %vm6932, %v6859, %v5915
    %v7005 = vsel %vm6932, %v6860, %v5917
    %v7006 = vsel %vm6932, %v6861, %v5919
    %v7007 = vsel %vm6932, %v6862, %v5921
    %v7008 = vsel %vm6932, %v6863, %v5923
    %v7009 = vsel %vm6932, %v6864, %v5925
    %v7010 = vsel %vm6932, %v6865, %v5927
    %v7011 = vsel %vm6932, %v6866, %v5929
    %v7012 = vsel %vm6932, %v6867, %v5931
    %v7013 = vsel %vm6932, %v6868, %v5933
    %v7014 = vsel %vm6932, %v6869, %v5935
    %v7015 = vsel %vm6932, %v6870, %v5937
    %v7016 = vsel %vm6932, %v6871, %v5939
    %v7017 = vsel %vm6932, %v6872, %v5941
    %v7018 = vsel %vm6932, %v6873, %v5943
    %v7019 = vsel %vm6932, %v6874, %v5945
    %v7020 = vsel %vm6932, %v6875, %v5947
    %v7021 = vsel %vm6932, %v6876, %v5949
    %v7022 = vsel %vm6932, %v6877, %v5951
    %v7023 = vsel %vm6932, %v6878, %v5953
    %v7024 = vsel %vm6932, %v6879, %v5955
    %v7025 = vsel %vm6932, %v6880, %v5957
    %v7026 = vsel %vm6932, %v6881, %v5959
    %v7027 = vsel %vm6932, %v6882, %v5961
    %v7028 = vsel %vm6932, %v6883, %v5963
    %v7029 = vsel %vm6932, %v6884, %v5965
    %v7030 = vsel %vm6932, %v6885, %v5967
    %v7031 = vsel %vm6932, %v6886, %v5969
    %v7032 = vsel %vm6932, %v6887, %v5971
    %v7033 = vsel %vm6932, %v6888, %v5973
    %v7034 = vsel %vm6932, %v6889, %v5975
    %v7035 = vsel %vm6932, %v6890, %v5977
    %v7036 = vsel %vm6932, %v6891, %v5979
    %v7037 = vsel %vm6932, %v6892, %v5981
    %v7038 = vsel %vm6932, %v6893, %v5983
    %v7039 = vsel %vm6932, %v6894, %v5985
    %v7040 = vsel %vm6932, %v6895, %v5987
    %v7041 = vsel %vm6932, %v6896, %v5989
    %v7042 = vsel %vm6932, %v6897, %v5991
    %v7043 = vsel %vm6932, %v6898, %v5993
    %v7044 = vsel %vm6932, %v6899, %v5995
    %v7045 = vsel %vm6932, %v6900, %v5997
    %v7046 = vsel %vm6932, %v6901, %v5999
    %v7047 = vsel %vm6932, %v6902, %v6001
    %v7048 = vsel %vm6932, %v6903, %v6003
    %v7049 = vsel %vm6932, %v6904, %v6005
    %v7050 = vsel %vm6932, %v6905, %v6007
    %v7051 = vsel %vm6932, %v6906, %v6009
    %v7052 = vsel %vm6932, %v6907, %v6011
    %v7053 = vsel %vm6932, %v6908, %v6013
    %v7054 = vsel %vm6932, %v6909, %v6015
    %v7055 = vsel %vm6932, %v6910, %v6017
    %v7056 = vsel %vm6932, %v6911, %v6019
    %v7057 = vsel %vm6932, %v6912, %v6021
    %v7058 = vsel %vm6932, %v6913, %v6023
    %v7059 = vsel %vm6932, %v6914, %v6025
    %v7060 = vsel %vm6932, %v6915, %v6027
    %v7061 = vsel %vm6932, %v6916, %v6029
    %v7062 = vsel %vm6932, %v6917, %v6031
    %v7063 = vsel %vm6932, %v6918, %v6033
    %v7064 = vsel %vm6932, %v6919, %v6035
    %v7065 = vsel %vm6932, %v6920, %v6037
    %v7066 = vsel %vm6932, %v6921, %v6039
    %v7067 = vsel %vm6932, %v6922, %v6041
    %v7068 = vsel %vm6932, %v6923, %v6043
    %v7069 = vsel %vm6932, %v6924, %v6045
    %v7070 = vsel %vm6932, %v6925, %v6047
    %v7071 = vsel %vm6932, %v6926, %v6049
    %v7072 = vsel %vm6932, %v6927, %v6051
    %v7073 = vsel %vm6932, %v6928, %v6053
    %v7074 = vsel %vm6932, %v6929, %v6055
    %v7075 = vsel %vm6932, %v6930, %v6057
    %v7076 = vsel %vm6932, %v6931, %v6059
    %vm7077 = vcmask 162816
    %v7078 = vsel %vm7077, %v6933, %v6211
    %v7079 = vsel %vm7077, %v6934, %v6213
    %v7080 = vsel %vm7077, %v6935, %v6215
    %v7081 = vsel %vm7077, %v6936, %v6217
    %v7082 = vsel %vm7077, %v6937, %v6219
    %v7083 = vsel %vm7077, %v6938, %v6221
    %v7084 = vsel %vm7077, %v6939, %v6223
    %v7085 = vsel %vm7077, %v6940, %v6225
    %v7086 = vsel %vm7077, %v6941, %v6227
    %v7087 = vsel %vm7077, %v6942, %v6229
    %v7088 = vsel %vm7077, %v6943, %v6231
    %v7089 = vsel %vm7077, %v6944, %v6233
    %v7090 = vsel %vm7077, %v6945, %v6235
    %v7091 = vsel %vm7077, %v6946, %v6237
    %v7092 = vsel %vm7077, %v6947, %v6239
    %v7093 = vsel %vm7077, %v6948, %v6241
    %v7094 = vsel %vm7077, %v6949, %v6243
    %v7095 = vsel %vm7077, %v6950, %v6245
    %v7096 = vsel %vm7077, %v6951, %v6247
    %v7097 = vsel %vm7077, %v6952, %v6249
    %v7098 = vsel %vm7077, %v6953, %v6251
    %v7099 = vsel %vm7077, %v6954, %v6253
    %v7100 = vsel %vm7077, %v6955, %v6255
    %v7101 = vsel %vm7077, %v6956, %v6257
    %v7102 = vsel %vm7077, %v6957, %v6259
    %v7103 = vsel %vm7077, %v6958, %v6261
    %v7104 = vsel %vm7077, %v6959, %v6263
    %v7105 = vsel %vm7077, %v6960, %v6265
    %v7106 = vsel %vm7077, %v6961, %v6267
    %v7107 = vsel %vm7077, %v6962, %v6269
    %v7108 = vsel %vm7077, %v6963, %v6271
    %v7109 = vsel %vm7077, %v6964, %v6273
    %v7110 = vsel %vm7077, %v6965, %v6275
    %v7111 = vsel %vm7077, %v6966, %v6277
    %v7112 = vsel %vm7077, %v6967, %v6279
    %v7113 = vsel %vm7077, %v6968, %v6281
    %v7114 = vsel %vm7077, %v6969, %v6283
    %v7115 = vsel %vm7077, %v6970, %v6285
    %v7116 = vsel %vm7077, %v6971, %v6287
    %v7117 = vsel %vm7077, %v6972, %v6289
    %v7118 = vsel %vm7077, %v6973, %v6291
    %v7119 = vsel %vm7077, %v6974, %v6293
    %v7120 = vsel %vm7077, %v6975, %v6295
    %v7121 = vsel %vm7077, %v6976, %v6297
    %v7122 = vsel %vm7077, %v6977, %v6299
    %v7123 = vsel %vm7077, %v6978, %v6301
    %v7124 = vsel %vm7077, %v6979, %v6303
    %v7125 = vsel %vm7077, %v6980, %v6305
    %v7126 = vsel %vm7077, %v6981, %v6307
    %v7127 = vsel %vm7077, %v6982, %v6309
    %v7128 = vsel %vm7077, %v6983, %v6311
    %v7129 = vsel %vm7077, %v6984, %v6313
    %v7130 = vsel %vm7077, %v6985, %v6315
    %v7131 = vsel %vm7077, %v6986, %v6317
    %v7132 = vsel %vm7077, %v6987, %v6319
    %v7133 = vsel %vm7077, %v6988, %v6321
    %v7134 = vsel %vm7077, %v6989, %v6323
    %v7135 = vsel %vm7077, %v6990, %v6325
    %v7136 = vsel %vm7077, %v6991, %v6327
    %v7137 = vsel %vm7077, %v6992, %v6329
    %v7138 = vsel %vm7077, %v6993, %v6331
    %v7139 = vsel %vm7077, %v6994, %v6333
    %v7140 = vsel %vm7077, %v6995, %v6335
    %v7141 = vsel %vm7077, %v6996, %v6337
    %v7142 = vsel %vm7077, %v6997, %v6339
    %v7143 = vsel %vm7077, %v6998, %v6341
    %v7144 = vsel %vm7077, %v6999, %v6343
    %v7145 = vsel %vm7077, %v7000, %v6345
    %v7146 = vsel %vm7077, %v7001, %v6347
    %v7147 = vsel %vm7077, %v7002, %v6349
    %v7148 = vsel %vm7077, %v7003, %v6351
    %v7149 = vsel %vm7077, %v7004, %v6353
    %v7150 = vsel %vm7077, %v7005, %v6355
    %v7151 = vsel %vm7077, %v7006, %v6357
    %v7152 = vsel %vm7077, %v7007, %v6359
    %v7153 = vsel %vm7077, %v7008, %v6361
    %v7154 = vsel %vm7077, %v7009, %v6363
    %v7155 = vsel %vm7077, %v7010, %v6365
    %v7156 = vsel %vm7077, %v7011, %v6367
    %v7157 = vsel %vm7077, %v7012, %v6369
    %v7158 = vsel %vm7077, %v7013, %v6371
    %v7159 = vsel %vm7077, %v7014, %v6373
    %v7160 = vsel %vm7077, %v7015, %v6375
    %v7161 = vsel %vm7077, %v7016, %v6377
    %v7162 = vsel %vm7077, %v7017, %v6379
    %v7163 = vsel %vm7077, %v7018, %v6381
    %v7164 = vsel %vm7077, %v7019, %v6383
    %v7165 = vsel %vm7077, %v7020, %v6385
    %v7166 = vsel %vm7077, %v7021, %v6387
    %v7167 = vsel %vm7077, %v7022, %v6389
    %v7168 = vsel %vm7077, %v7023, %v6391
    %v7169 = vsel %vm7077, %v7024, %v6393
    %v7170 = vsel %vm7077, %v7025, %v6395
    %v7171 = vsel %vm7077, %v7026, %v6397
    %v7172 = vsel %vm7077, %v7027, %v6399
    %v7173 = vsel %vm7077, %v7028, %v6401
    %v7174 = vsel %vm7077, %v7029, %v6403
    %v7175 = vsel %vm7077, %v7030, %v6405
    %v7176 = vsel %vm7077, %v7031, %v6407
    %v7177 = vsel %vm7077, %v7032, %v6409
    %v7178 = vsel %vm7077, %v7033, %v6411
    %v7179 = vsel %vm7077, %v7034, %v6413
    %v7180 = vsel %vm7077, %v7035, %v6415
    %v7181 = vsel %vm7077, %v7036, %v6417
    %v7182 = vsel %vm7077, %v7037, %v6419
    %v7183 = vsel %vm7077, %v7038, %v6421
    %v7184 = vsel %vm7077, %v7039, %v6423
    %v7185 = vsel %vm7077, %v7040, %v6425
    %v7186 = vsel %vm7077, %v7041, %v6427
    %v7187 = vsel %vm7077, %v7042, %v6429
    %v7188 = vsel %vm7077, %v7043, %v6431
    %v7189 = vsel %vm7077, %v7044, %v6433
    %v7190 = vsel %vm7077, %v7045, %v6435
    %v7191 = vsel %vm7077, %v7046, %v6437
    %v7192 = vsel %vm7077, %v7047, %v6439
    %v7193 = vsel %vm7077, %v7048, %v6441
    %v7194 = vsel %vm7077, %v7049, %v6443
    %v7195 = vsel %vm7077, %v7050, %v6445
    %v7196 = vsel %vm7077, %v7051, %v6447
    %v7197 = vsel %vm7077, %v7052, %v6449
    %v7198 = vsel %vm7077, %v7053, %v6451
    %v7199 = vsel %vm7077, %v7054, %v6453
    %v7200 = vsel %vm7077, %v7055, %v6455
    %v7201 = vsel %vm7077, %v7056, %v6457
    %v7202 = vsel %vm7077, %v7057, %v6459
    %v7203 = vsel %vm7077, %v7058, %v6461
    %v7204 = vsel %vm7077, %v7059, %v6463
    %v7205 = vsel %vm7077, %v7060, %v6465
    %v7206 = vsel %vm7077, %v7061, %v6467
    %v7207 = vsel %vm7077, %v7062, %v6469
    %v7208 = vsel %vm7077, %v7063, %v6471
    %v7209 = vsel %vm7077, %v7064, %v6473
    %v7210 = vsel %vm7077, %v7065, %v6475
    %v7211 = vsel %vm7077, %v7066, %v6477
    %v7212 = vsel %vm7077, %v7067, %v6479
    %v7213 = vsel %vm7077, %v7068, %v6481
    %v7214 = vsel %vm7077, %v7069, %v6483
    %v7215 = vsel %vm7077, %v7070, %v6485
    %v7216 = vsel %vm7077, %v7071, %v6487
    %v7217 = vsel %vm7077, %v7072, %v6489
    %v7218 = vsel %vm7077, %v7073, %v6491
    %v7219 = vsel %vm7077, %v7074, %v6493
    %v7220 = vsel %vm7077, %v7075, %v6495
    %v7221 = vsel %vm7077, %v7076, %v6497
    %v7222 = vpack.c.bf16 %v7079, %v7078
    %v7223 = vpack.c.bf16 %v7081, %v7080
    %v7224 = vpack.c.bf16 %v7083, %v7082
    %v7225 = vpack.c.bf16 %v7085, %v7084
    %v7226 = vpack.c.bf16 %v7087, %v7086
    %v7227 = vpack.c.bf16 %v7089, %v7088
    %v7228 = vpack.c.bf16 %v7091, %v7090
    %v7229 = vpack.c.bf16 %v7093, %v7092
    %v7230 = vpack.c.bf16 %v7095, %v7094
    %v7231 = vpack.c.bf16 %v7097, %v7096
    %v7232 = vpack.c.bf16 %v7099, %v7098
    %v7233 = vpack.c.bf16 %v7101, %v7100
    %v7234 = vpack.c.bf16 %v7103, %v7102
    %v7235 = vpack.c.bf16 %v7105, %v7104
    %v7236 = vpack.c.bf16 %v7107, %v7106
    %v7237 = vpack.c.bf16 %v7109, %v7108
    %v7238 = vpack.c.bf16 %v7111, %v7110
    %v7239 = vpack.c.bf16 %v7113, %v7112
    %v7240 = vpack.c.bf16 %v7115, %v7114
    %v7241 = vpack.c.bf16 %v7117, %v7116
    %v7242 = vpack.c.bf16 %v7119, %v7118
    %v7243 = vpack.c.bf16 %v7121, %v7120
    %v7244 = vpack.c.bf16 %v7123, %v7122
    %v7245 = vpack.c.bf16 %v7125, %v7124
    %v7246 = vpack.c.bf16 %v7127, %v7126
    %v7247 = vpack.c.bf16 %v7129, %v7128
    %v7248 = vpack.c.bf16 %v7131, %v7130
    %v7249 = vpack.c.bf16 %v7133, %v7132
    %v7250 = vpack.c.bf16 %v7135, %v7134
    %v7251 = vpack.c.bf16 %v7137, %v7136
    %v7252 = vpack.c.bf16 %v7139, %v7138
    %v7253 = vpack.c.bf16 %v7141, %v7140
    %v7254 = vpack.c.bf16 %v7143, %v7142
    %v7255 = vpack.c.bf16 %v7145, %v7144
    %v7256 = vpack.c.bf16 %v7147, %v7146
    %v7257 = vpack.c.bf16 %v7149, %v7148
    %v7258 = vpack.c.bf16 %v7151, %v7150
    %v7259 = vpack.c.bf16 %v7153, %v7152
    %v7260 = vpack.c.bf16 %v7155, %v7154
    %v7261 = vpack.c.bf16 %v7157, %v7156
    %v7262 = vpack.c.bf16 %v7159, %v7158
    %v7263 = vpack.c.bf16 %v7161, %v7160
    %v7264 = vpack.c.bf16 %v7163, %v7162
    %v7265 = vpack.c.bf16 %v7165, %v7164
    %v7266 = vpack.c.bf16 %v7167, %v7166
    %v7267 = vpack.c.bf16 %v7169, %v7168
    %v7268 = vpack.c.bf16 %v7171, %v7170
    %v7269 = vpack.c.bf16 %v7173, %v7172
    %v7270 = vpack.c.bf16 %v7175, %v7174
    %v7271 = vpack.c.bf16 %v7177, %v7176
    %v7272 = vpack.c.bf16 %v7179, %v7178
    %v7273 = vpack.c.bf16 %v7181, %v7180
    %v7274 = vpack.c.bf16 %v7183, %v7182
    %v7275 = vpack.c.bf16 %v7185, %v7184
    %v7276 = vpack.c.bf16 %v7187, %v7186
    %v7277 = vpack.c.bf16 %v7189, %v7188
    %v7278 = vpack.c.bf16 %v7191, %v7190
    %v7279 = vpack.c.bf16 %v7193, %v7192
    %v7280 = vpack.c.bf16 %v7195, %v7194
    %v7281 = vpack.c.bf16 %v7197, %v7196
    %v7282 = vpack.c.bf16 %v7199, %v7198
    %v7283 = vpack.c.bf16 %v7201, %v7200
    %v7284 = vpack.c.bf16 %v7203, %v7202
    %v7285 = vpack.c.bf16 %v7205, %v7204
    %v7286 = vpack.c.bf16 %v7207, %v7206
    %v7287 = vpack.c.bf16 %v7209, %v7208
    %v7288 = vpack.c.bf16 %v7211, %v7210
    %v7289 = vpack.c.bf16 %v7213, %v7212
    %v7290 = vpack.c.bf16 %v7215, %v7214
    %v7291 = vpack.c.bf16 %v7217, %v7216
    %v7292 = vpack.c.bf16 %v7219, %v7218
    %v7293 = vpack.c.bf16 %v7221, %v7220
    %v7294 = vld [vmem:[%s1] sm:$0xf]
    %v7295 = vld [vmem:[%s1 + $0x4] sm:$0xf]
    %v7296 = vld [vmem:[%s1 + $0x8] sm:$0xf]
    %v7297 = vld [vmem:[%s1 + $0xc] sm:$0x1]
    %v7302 = vunpack.c.l.b16 %v7294
    %v7303 = vunpack.c.l.b16 %v7295
    %v7304 = vunpack.c.l.b16 %v7296
    %v7305 = vunpack.c.l.b16 %v7297
    %v7306 = vpack.c.b16 %v7303, %v7302
    %v7307 = vpack.c.b16 %v7305, %v7304
    %vm7309 = vcmask 203776
    %v7311 = vsel %vm7309, %v7222, 0
    %v7314 = vsel %vm7309, %v7223, 0
    %v7317 = vsel %vm7309, %v7224, 0
    %v7320 = vsel %vm7309, %v7225, 0
    %v7323 = vsel %vm7309, %v7226, 0
    %v7326 = vsel %vm7309, %v7227, 0
    %v7329 = vsel %vm7309, %v7228, 0
    %v7332 = vsel %vm7309, %v7229, 0
    %v7335 = vsel %vm7309, %v7230, 0
    %v7338 = vsel %vm7309, %v7231, 0
    %v7341 = vsel %vm7309, %v7232, 0
    %v7344 = vsel %vm7309, %v7233, 0
    %v7347 = vsel %vm7309, %v7234, 0
    %v7350 = vsel %vm7309, %v7235, 0
    %v7353 = vsel %vm7309, %v7236, 0
    %v7356 = vsel %vm7309, %v7237, 0
    %v7359 = vsel %vm7309, %v7238, 0
    %v7362 = vsel %vm7309, %v7239, 0
    %v7365 = vsel %vm7309, %v7240, 0
    %v7368 = vsel %vm7309, %v7241, 0
    %v7371 = vsel %vm7309, %v7242, 0
    %v7374 = vsel %vm7309, %v7243, 0
    %v7377 = vsel %vm7309, %v7244, 0
    %v7380 = vsel %vm7309, %v7245, 0
    %v7383 = vsel %vm7309, %v7246, 0
    %v7386 = vsel %vm7309, %v7247, 0
    %v7389 = vsel %vm7309, %v7248, 0
    %v7392 = vsel %vm7309, %v7249, 0
    %v7395 = vsel %vm7309, %v7250, 0
    %v7398 = vsel %vm7309, %v7251, 0
    %v7401 = vsel %vm7309, %v7252, 0
    %v7404 = vsel %vm7309, %v7253, 0
    %v7407 = vsel %vm7309, %v7254, 0
    %v7410 = vsel %vm7309, %v7255, 0
    %v7413 = vsel %vm7309, %v7256, 0
    %v7416 = vsel %vm7309, %v7257, 0
    %v7419 = vsel %vm7309, %v7258, 0
    %v7422 = vsel %vm7309, %v7259, 0
    %v7425 = vsel %vm7309, %v7260, 0
    %v7428 = vsel %vm7309, %v7261, 0
    %v7431 = vsel %vm7309, %v7262, 0
    %v7434 = vsel %vm7309, %v7263, 0
    %v7437 = vsel %vm7309, %v7264, 0
    %v7440 = vsel %vm7309, %v7265, 0
    %v7443 = vsel %vm7309, %v7266, 0
    %v7446 = vsel %vm7309, %v7267, 0
    %v7449 = vsel %vm7309, %v7268, 0
    %v7452 = vsel %vm7309, %v7269, 0
    %v7455 = vsel %vm7309, %v7270, 0
    %v7458 = vsel %vm7309, %v7271, 0
    %v7461 = vsel %vm7309, %v7272, 0
    %v7464 = vsel %vm7309, %v7273, 0
    %v7467 = vsel %vm7309, %v7274, 0
    %v7470 = vsel %vm7309, %v7275, 0
    %v7473 = vsel %vm7309, %v7276, 0
    %v7476 = vsel %vm7309, %v7277, 0
    %v7479 = vsel %vm7309, %v7278, 0
    %v7482 = vsel %vm7309, %v7279, 0
    %v7485 = vsel %vm7309, %v7280, 0
    %v7488 = vsel %vm7309, %v7281, 0
    %v7491 = vsel %vm7309, %v7282, 0
    %v7494 = vsel %vm7309, %v7283, 0
    %v7497 = vsel %vm7309, %v7284, 0
    %v7500 = vsel %vm7309, %v7285, 0
    %v7503 = vsel %vm7309, %v7286, 0
    %v7506 = vsel %vm7309, %v7287, 0
    %v7509 = vsel %vm7309, %v7288, 0
    %v7512 = vsel %vm7309, %v7289, 0
    %v7515 = vsel %vm7309, %v7290, 0
    %v7518 = vsel %vm7309, %v7291, 0
    %v7521 = vsel %vm7309, %v7292, 0
    %v7524 = vsel %vm7309, %v7293, 0
    %v7526 = vsel %vm3179, 4294967295, 65535
    %v7527 = vsel %vm2282, %v7526, 0
    %v7529 = vand.u32 %v7307, %v7527
    %7531 = vmatprep.subr.bf16.mxu0 0
    %7532 = vmatpush1.bf16.msra.mxu0 %v7306
    %7533 = vmatprep.subr.bf16.mxu0 0
    %7534 = vmatpush1.bf16.msra.mxu0 %v7529
    %7535 = vmatprep.subr.bf16.mxu0 0
    %7536 = vmatpush1.bf16.msra.mxu0 0
    %7537 = vmatprep.subr.bf16.mxu0 0
    %7538 = vmatpush1.bf16.msra.mxu0 0
    %7539 = vmatprep.subr.bf16.mxu0 0
    %7540 = vmatpush1.bf16.msra.mxu0 0
    %7541 = vmatprep.subr.bf16.mxu0 0
    %7542 = vmatpush1.bf16.msra.mxu0 0
    %7543 = vmatprep.subr.bf16.mxu0 0
    %7544 = vmatpush1.bf16.msra.mxu0 0
    %7545 = vmatprep.subr.bf16.mxu0 0
    %7546 = vmatpush1.bf16.msra.mxu0 0
    %7547 = vmatprep.subr.bf16.mxu0 0
    %7548 = vmatpush1.bf16.msra.mxu0 0
    %7549 = vmatprep.subr.bf16.mxu0 0
    %7550 = vmatpush1.bf16.msra.mxu0 0
    %7551 = vmatprep.subr.bf16.mxu0 0
    %7552 = vmatpush1.bf16.msra.mxu0 0
    %7553 = vmatprep.subr.bf16.mxu0 0
    %7554 = vmatpush1.bf16.msra.mxu0 0
    %7555 = vmatprep.subr.bf16.mxu0 0
    %7556 = vmatpush1.bf16.msra.mxu0 0
    %7557 = vmatprep.subr.bf16.mxu0 0
    %7558 = vmatpush1.bf16.msra.mxu0 0
    %7559 = vmatprep.subr.bf16.mxu0 0
    %7560 = vmatpush1.bf16.msra.mxu0 0
    %7561 = vmatprep.subr.bf16.mxu0 0
    %7562 = vmatpush1.bf16.msra.mxu0 0
    %7563 = vmatprep.mubr.bf16.mxu0 0
    %7564 = vmatmul.mubr.bf16.gmra.mrb[0].mxu0 %v7311
    %v7565 = vpop.f32.mrb[0].mxu0
    %v7566 = vadd.f32 0.0, %v7565
    %v7567 = vpop.f32.mrb[0].mxu0
    %v7568 = vpop.f32.mrb[0].mxu0
    %v7569 = vadd.f32 0.0, %v7568
    %v7570 = vpop.f32.mrb[0].mxu0
    %7571 = vmatprep.mubr.bf16.mxu0 0
    %7572 = vmatmul.mubr.bf16.gmra.mrb[0].mxu0 %v7314
    %v7573 = vpop.f32.mrb[0].mxu0
    %v7574 = vadd.f32 0.0, %v7573
    %v7575 = vpop.f32.mrb[0].mxu0
    %v7576 = vpop.f32.mrb[0].mxu0
    %v7577 = vadd.f32 0.0, %v7576
    %v7578 = vpop.f32.mrb[0].mxu0
    %7579 = vmatprep.mubr.bf16.mxu0 0
    %7580 = vmatmul.mubr.bf16.gmra.mrb[0].mxu0 %v7317
    %v7581 = vpop.f32.mrb[0].mxu0
    %v7582 = vadd.f32 0.0, %v7581
    %v7583 = vpop.f32.mrb[0].mxu0
    %v7584 = vpop.f32.mrb[0].mxu0
    %v7585 = vadd.f32 0.0, %v7584
    %v7586 = vpop.f32.mrb[0].mxu0
    %7587 = vmatprep.mubr.bf16.mxu0 0
    %7588 = vmatmul.mubr.bf16.gmra.mrb[0].mxu0 %v7320
    %v7589 = vpop.f32.mrb[0].mxu0
    %v7590 = vadd.f32 0.0, %v7589
    %v7591 = vpop.f32.mrb[0].mxu0
    %v7592 = vpop.f32.mrb[0].mxu0
    %v7593 = vadd.f32 0.0, %v7592
    %v7594 = vpop.f32.mrb[0].mxu0
    %7595 = vmatprep.mubr.bf16.mxu0 0
    %7596 = vmatmul.mubr.bf16.gmra.mrb[0].mxu0 %v7323
    %v7597 = vpop.f32.mrb[0].mxu0
    %v7598 = vadd.f32 0.0, %v7597
    %v7599 = vpop.f32.mrb[0].mxu0
    %v7600 = vpop.f32.mrb[0].mxu0
    %v7601 = vadd.f32 0.0, %v7600
    %v7602 = vpop.f32.mrb[0].mxu0
    %7603 = vmatprep.mubr.bf16.mxu0 0
    %7604 = vmatmul.mubr.bf16.gmra.mrb[0].mxu0 %v7326
    %v7605 = vpop.f32.mrb[0].mxu0
    %v7606 = vadd.f32 0.0, %v7605
    %v7607 = vpop.f32.mrb[0].mxu0
    %v7608 = vpop.f32.mrb[0].mxu0
    %v7609 = vadd.f32 0.0, %v7608
    %v7610 = vpop.f32.mrb[0].mxu0
    %7611 = vmatprep.mubr.bf16.mxu0 0
    %7612 = vmatmul.mubr.bf16.gmra.mrb[0].mxu0 %v7329
    %v7613 = vpop.f32.mrb[0].mxu0
    %v7614 = vadd.f32 0.0, %v7613
    %v7615 = vpop.f32.mrb[0].mxu0
    %v7616 = vpop.f32.mrb[0].mxu0
    %v7617 = vadd.f32 0.0, %v7616
    %v7618 = vpop.f32.mrb[0].mxu0
    %7619 = vmatprep.mubr.bf16.mxu0 0
    %7620 = vmatmul.mubr.bf16.gmra.mrb[0].mxu0 %v7332
    %v7621 = vpop.f32.mrb[0].mxu0
    %v7622 = vadd.f32 0.0, %v7621
    %v7623 = vpop.f32.mrb[0].mxu0
    %v7624 = vpop.f32.mrb[0].mxu0
    %v7625 = vadd.f32 0.0, %v7624
    %v7626 = vpop.f32.mrb[0].mxu0
    %7627 = vmatprep.mubr.bf16.mxu0 0
    %7628 = vmatmul.mubr.bf16.gmra.mrb[0].mxu0 %v7335
    %v7629 = vpop.f32.mrb[0].mxu0
    %v7630 = vadd.f32 0.0, %v7629
    %v7631 = vpop.f32.mrb[0].mxu0
    %v7632 = vpop.f32.mrb[0].mxu0
    %v7633 = vadd.f32 0.0, %v7632
    %v7634 = vpop.f32.mrb[0].mxu0
    %7635 = vmatprep.mubr.bf16.mxu0 0
    %7636 = vmatmul.mubr.bf16.gmra.mrb[0].mxu0 %v7338
    %v7637 = vpop.f32.mrb[0].mxu0
    %v7638 = vadd.f32 0.0, %v7637
    %v7639 = vpop.f32.mrb[0].mxu0
    %v7640 = vpop.f32.mrb[0].mxu0
    %v7641 = vadd.f32 0.0, %v7640
    %v7642 = vpop.f32.mrb[0].mxu0
    %7643 = vmatprep.mubr.bf16.mxu0 0
    %7644 = vmatmul.mubr.bf16.gmra.mrb[0].mxu0 %v7341
    %v7645 = vpop.f32.mrb[0].mxu0
    %v7646 = vadd.f32 0.0, %v7645
    %v7647 = vpop.f32.mrb[0].mxu0
    %v7648 = vpop.f32.mrb[0].mxu0
    %v7649 = vadd.f32 0.0, %v7648
    %v7650 = vpop.f32.mrb[0].mxu0
    %7651 = vmatprep.mubr.bf16.mxu0 0
    %7652 = vmatmul.mubr.bf16.gmra.mrb[0].mxu0 %v7344
    %v7653 = vpop.f32.mrb[0].mxu0
    %v7654 = vadd.f32 0.0, %v7653
    %v7655 = vpop.f32.mrb[0].mxu0
    %v7656 = vpop.f32.mrb[0].mxu0
    %v7657 = vadd.f32 0.0, %v7656
    %v7658 = vpop.f32.mrb[0].mxu0
    %7659 = vmatprep.mubr.bf16.mxu0 0
    %7660 = vmatmul.mubr.bf16.gmra.mrb[0].mxu0 %v7347
    %v7661 = vpop.f32.mrb[0].mxu0
    %v7662 = vadd.f32 0.0, %v7661
    %v7663 = vpop.f32.mrb[0].mxu0
    %v7664 = vpop.f32.mrb[0].mxu0
    %v7665 = vadd.f32 0.0, %v7664
    %v7666 = vpop.f32.mrb[0].mxu0
    %7667 = vmatprep.mubr.bf16.mxu0 0
    %7668 = vmatmul.mubr.bf16.gmra.mrb[0].mxu0 %v7350
    %v7669 = vpop.f32.mrb[0].mxu0
    %v7670 = vadd.f32 0.0, %v7669
    %v7671 = vpop.f32.mrb[0].mxu0
    %v7672 = vpop.f32.mrb[0].mxu0
    %v7673 = vadd.f32 0.0, %v7672
    %v7674 = vpop.f32.mrb[0].mxu0
    %7675 = vmatprep.mubr.bf16.mxu0 0
    %7676 = vmatmul.mubr.bf16.gmra.mrb[0].mxu0 %v7353
    %v7677 = vpop.f32.mrb[0].mxu0
    %v7678 = vadd.f32 0.0, %v7677
    %v7679 = vpop.f32.mrb[0].mxu0
    %v7680 = vpop.f32.mrb[0].mxu0
    %v7681 = vadd.f32 0.0, %v7680
    %v7682 = vpop.f32.mrb[0].mxu0
    %7683 = vmatprep.mubr.bf16.mxu0 0
    %7684 = vmatmul.mubr.bf16.gmra.mrb[0].mxu0 %v7356
    %v7685 = vpop.f32.mrb[0].mxu0
    %v7686 = vadd.f32 0.0, %v7685
    %v7687 = vpop.f32.mrb[0].mxu0
    %v7688 = vpop.f32.mrb[0].mxu0
    %v7689 = vadd.f32 0.0, %v7688
    %v7690 = vpop.f32.mrb[0].mxu0
    %7691 = vmatprep.mubr.bf16.mxu0 0
    %7692 = vmatmul.mubr.bf16.gmra.mrb[0].mxu0 %v7359
    %v7693 = vpop.f32.mrb[0].mxu0
    %v7694 = vadd.f32 0.0, %v7693
    %v7695 = vpop.f32.mrb[0].mxu0
    %v7696 = vpop.f32.mrb[0].mxu0
    %v7697 = vadd.f32 0.0, %v7696
    %v7698 = vpop.f32.mrb[0].mxu0
    %7699 = vmatprep.mubr.bf16.mxu0 0
    %7700 = vmatmul.mubr.bf16.gmra.mrb[0].mxu0 %v7362
    %v7701 = vpop.f32.mrb[0].mxu0
    %v7702 = vadd.f32 0.0, %v7701
    %v7703 = vpop.f32.mrb[0].mxu0
    %v7704 = vpop.f32.mrb[0].mxu0
    %v7705 = vadd.f32 0.0, %v7704
    %v7706 = vpop.f32.mrb[0].mxu0
    %7707 = vmatprep.mubr.bf16.mxu0 0
    %7708 = vmatmul.mubr.bf16.gmra.mrb[0].mxu0 %v7365
    %v7709 = vpop.f32.mrb[0].mxu0
    %v7710 = vadd.f32 0.0, %v7709
    %v7711 = vpop.f32.mrb[0].mxu0
    %v7712 = vpop.f32.mrb[0].mxu0
    %v7713 = vadd.f32 0.0, %v7712
    %v7714 = vpop.f32.mrb[0].mxu0
    %7715 = vmatprep.mubr.bf16.mxu0 0
    %7716 = vmatmul.mubr.bf16.gmra.mrb[0].mxu0 %v7368
    %v7717 = vpop.f32.mrb[0].mxu0
    %v7718 = vadd.f32 0.0, %v7717
    %v7719 = vpop.f32.mrb[0].mxu0
    %v7720 = vpop.f32.mrb[0].mxu0
    %v7721 = vadd.f32 0.0, %v7720
    %v7722 = vpop.f32.mrb[0].mxu0
    %7723 = vmatprep.mubr.bf16.mxu0 0
    %7724 = vmatmul.mubr.bf16.gmra.mrb[0].mxu0 %v7371
    %v7725 = vpop.f32.mrb[0].mxu0
    %v7726 = vadd.f32 0.0, %v7725
    %v7727 = vpop.f32.mrb[0].mxu0
    %v7728 = vpop.f32.mrb[0].mxu0
    %v7729 = vadd.f32 0.0, %v7728
    %v7730 = vpop.f32.mrb[0].mxu0
    %7731 = vmatprep.mubr.bf16.mxu0 0
    %7732 = vmatmul.mubr.bf16.gmra.mrb[0].mxu0 %v7374
    %v7733 = vpop.f32.mrb[0].mxu0
    %v7734 = vadd.f32 0.0, %v7733
    %v7735 = vpop.f32.mrb[0].mxu0
    %v7736 = vpop.f32.mrb[0].mxu0
    %v7737 = vadd.f32 0.0, %v7736
    %v7738 = vpop.f32.mrb[0].mxu0
    %7739 = vmatprep.mubr.bf16.mxu0 0
    %7740 = vmatmul.mubr.bf16.gmra.mrb[0].mxu0 %v7377
    %v7741 = vpop.f32.mrb[0].mxu0
    %v7742 = vadd.f32 0.0, %v7741
    %v7743 = vpop.f32.mrb[0].mxu0
    %v7744 = vpop.f32.mrb[0].mxu0
    %v7745 = vadd.f32 0.0, %v7744
    %v7746 = vpop.f32.mrb[0].mxu0
    %7747 = vmatprep.mubr.bf16.mxu0 0
    %7748 = vmatmul.mubr.bf16.gmra.mrb[0].mxu0 %v7380
    %v7749 = vpop.f32.mrb[0].mxu0
    %v7750 = vadd.f32 0.0, %v7749
    %v7751 = vpop.f32.mrb[0].mxu0
    %v7752 = vpop.f32.mrb[0].mxu0
    %v7753 = vadd.f32 0.0, %v7752
    %v7754 = vpop.f32.mrb[0].mxu0
    %7755 = vmatprep.mubr.bf16.mxu0 0
    %7756 = vmatmul.mubr.bf16.gmra.mrb[0].mxu0 %v7383
    %v7757 = vpop.f32.mrb[0].mxu0
    %v7758 = vadd.f32 0.0, %v7757
    %v7759 = vpop.f32.mrb[0].mxu0
    %v7760 = vpop.f32.mrb[0].mxu0
    %v7761 = vadd.f32 0.0, %v7760
    %v7762 = vpop.f32.mrb[0].mxu0
    %7763 = vmatprep.mubr.bf16.mxu0 0
    %7764 = vmatmul.mubr.bf16.gmra.mrb[0].mxu0 %v7386
    %v7765 = vpop.f32.mrb[0].mxu0
    %v7766 = vadd.f32 0.0, %v7765
    %v7767 = vpop.f32.mrb[0].mxu0
    %v7768 = vpop.f32.mrb[0].mxu0
    %v7769 = vadd.f32 0.0, %v7768
    %v7770 = vpop.f32.mrb[0].mxu0
    %7771 = vmatprep.mubr.bf16.mxu0 0
    %7772 = vmatmul.mubr.bf16.gmra.mrb[0].mxu0 %v7389
    %v7773 = vpop.f32.mrb[0].mxu0
    %v7774 = vadd.f32 0.0, %v7773
    %v7775 = vpop.f32.mrb[0].mxu0
    %v7776 = vpop.f32.mrb[0].mxu0
    %v7777 = vadd.f32 0.0, %v7776
    %v7778 = vpop.f32.mrb[0].mxu0
    %7779 = vmatprep.mubr.bf16.mxu0 0
    %7780 = vmatmul.mubr.bf16.gmra.mrb[0].mxu0 %v7392
    %v7781 = vpop.f32.mrb[0].mxu0
    %v7782 = vadd.f32 0.0, %v7781
    %v7783 = vpop.f32.mrb[0].mxu0
    %v7784 = vpop.f32.mrb[0].mxu0
    %v7785 = vadd.f32 0.0, %v7784
    %v7786 = vpop.f32.mrb[0].mxu0
    %7787 = vmatprep.mubr.bf16.mxu0 0
    %7788 = vmatmul.mubr.bf16.gmra.mrb[0].mxu0 %v7395
    %v7789 = vpop.f32.mrb[0].mxu0
    %v7790 = vadd.f32 0.0, %v7789
    %v7791 = vpop.f32.mrb[0].mxu0
    %v7792 = vpop.f32.mrb[0].mxu0
    %v7793 = vadd.f32 0.0, %v7792
    %v7794 = vpop.f32.mrb[0].mxu0
    %7795 = vmatprep.mubr.bf16.mxu0 0
    %7796 = vmatmul.mubr.bf16.gmra.mrb[0].mxu0 %v7398
    %v7797 = vpop.f32.mrb[0].mxu0
    %v7798 = vadd.f32 0.0, %v7797
    %v7799 = vpop.f32.mrb[0].mxu0
    %v7800 = vpop.f32.mrb[0].mxu0
    %v7801 = vadd.f32 0.0, %v7800
    %v7802 = vpop.f32.mrb[0].mxu0
    %7803 = vmatprep.mubr.bf16.mxu0 0
    %7804 = vmatmul.mubr.bf16.gmra.mrb[0].mxu0 %v7401
    %v7805 = vpop.f32.mrb[0].mxu0
    %v7806 = vadd.f32 0.0, %v7805
    %v7807 = vpop.f32.mrb[0].mxu0
    %v7808 = vpop.f32.mrb[0].mxu0
    %v7809 = vadd.f32 0.0, %v7808
    %v7810 = vpop.f32.mrb[0].mxu0
    %7811 = vmatprep.mubr.bf16.mxu0 0
    %7812 = vmatmul.mubr.bf16.gmra.mrb[0].mxu0 %v7404
    %v7813 = vpop.f32.mrb[0].mxu0
    %v7814 = vadd.f32 0.0, %v7813
    %v7815 = vpop.f32.mrb[0].mxu0
    %v7816 = vpop.f32.mrb[0].mxu0
    %v7817 = vadd.f32 0.0, %v7816
    %v7818 = vpop.f32.mrb[0].mxu0
    %7819 = vmatprep.mubr.bf16.mxu0 0
    %7820 = vmatmul.mubr.bf16.gmra.mrb[0].mxu0 %v7407
    %v7821 = vpop.f32.mrb[0].mxu0
    %v7822 = vadd.f32 0.0, %v7821
    %v7823 = vpop.f32.mrb[0].mxu0
    %v7824 = vpop.f32.mrb[0].mxu0
    %v7825 = vadd.f32 0.0, %v7824
    %v7826 = vpop.f32.mrb[0].mxu0
    %7827 = vmatprep.mubr.bf16.mxu0 0
    %7828 = vmatmul.mubr.bf16.gmra.mrb[0].mxu0 %v7410
    %v7829 = vpop.f32.mrb[0].mxu0
    %v7830 = vadd.f32 0.0, %v7829
    %v7831 = vpop.f32.mrb[0].mxu0
    %v7832 = vpop.f32.mrb[0].mxu0
    %v7833 = vadd.f32 0.0, %v7832
    %v7834 = vpop.f32.mrb[0].mxu0
    %7835 = vmatprep.mubr.bf16.mxu0 0
    %7836 = vmatmul.mubr.bf16.gmra.mrb[0].mxu0 %v7413
    %v7837 = vpop.f32.mrb[0].mxu0
    %v7838 = vadd.f32 0.0, %v7837
    %v7839 = vpop.f32.mrb[0].mxu0
    %v7840 = vpop.f32.mrb[0].mxu0
    %v7841 = vadd.f32 0.0, %v7840
    %v7842 = vpop.f32.mrb[0].mxu0
    %7843 = vmatprep.mubr.bf16.mxu0 0
    %7844 = vmatmul.mubr.bf16.gmra.mrb[0].mxu0 %v7416
    %v7845 = vpop.f32.mrb[0].mxu0
    %v7846 = vadd.f32 0.0, %v7845
    %v7847 = vpop.f32.mrb[0].mxu0
    %v7848 = vpop.f32.mrb[0].mxu0
    %v7849 = vadd.f32 0.0, %v7848
    %v7850 = vpop.f32.mrb[0].mxu0
    %7851 = vmatprep.mubr.bf16.mxu0 0
    %7852 = vmatmul.mubr.bf16.gmra.mrb[0].mxu0 %v7419
    %v7853 = vpop.f32.mrb[0].mxu0
    %v7854 = vadd.f32 0.0, %v7853
    %v7855 = vpop.f32.mrb[0].mxu0
    %v7856 = vpop.f32.mrb[0].mxu0
    %v7857 = vadd.f32 0.0, %v7856
    %v7858 = vpop.f32.mrb[0].mxu0
    %7859 = vmatprep.mubr.bf16.mxu0 0
    %7860 = vmatmul.mubr.bf16.gmra.mrb[0].mxu0 %v7422
    %v7861 = vpop.f32.mrb[0].mxu0
    %v7862 = vadd.f32 0.0, %v7861
    %v7863 = vpop.f32.mrb[0].mxu0
    %v7864 = vpop.f32.mrb[0].mxu0
    %v7865 = vadd.f32 0.0, %v7864
    %v7866 = vpop.f32.mrb[0].mxu0
    %7867 = vmatprep.mubr.bf16.mxu0 0
    %7868 = vmatmul.mubr.bf16.gmra.mrb[0].mxu0 %v7425
    %v7869 = vpop.f32.mrb[0].mxu0
    %v7870 = vadd.f32 0.0, %v7869
    %v7871 = vpop.f32.mrb[0].mxu0
    %v7872 = vpop.f32.mrb[0].mxu0
    %v7873 = vadd.f32 0.0, %v7872
    %v7874 = vpop.f32.mrb[0].mxu0
    %7875 = vmatprep.mubr.bf16.mxu0 0
    %7876 = vmatmul.mubr.bf16.gmra.mrb[0].mxu0 %v7428
    %v7877 = vpop.f32.mrb[0].mxu0
    %v7878 = vadd.f32 0.0, %v7877
    %v7879 = vpop.f32.mrb[0].mxu0
    %v7880 = vpop.f32.mrb[0].mxu0
    %v7881 = vadd.f32 0.0, %v7880
    %v7882 = vpop.f32.mrb[0].mxu0
    %7883 = vmatprep.mubr.bf16.mxu0 0
    %7884 = vmatmul.mubr.bf16.gmra.mrb[0].mxu0 %v7431
    %v7885 = vpop.f32.mrb[0].mxu0
    %v7886 = vadd.f32 0.0, %v7885
    %v7887 = vpop.f32.mrb[0].mxu0
    %v7888 = vpop.f32.mrb[0].mxu0
    %v7889 = vadd.f32 0.0, %v7888
    %v7890 = vpop.f32.mrb[0].mxu0
    %7891 = vmatprep.mubr.bf16.mxu0 0
    %7892 = vmatmul.mubr.bf16.gmra.mrb[0].mxu0 %v7434
    %v7893 = vpop.f32.mrb[0].mxu0
    %v7894 = vadd.f32 0.0, %v7893
    %v7895 = vpop.f32.mrb[0].mxu0
    %v7896 = vpop.f32.mrb[0].mxu0
    %v7897 = vadd.f32 0.0, %v7896
    %v7898 = vpop.f32.mrb[0].mxu0
    %7899 = vmatprep.mubr.bf16.mxu0 0
    %7900 = vmatmul.mubr.bf16.gmra.mrb[0].mxu0 %v7437
    %v7901 = vpop.f32.mrb[0].mxu0
    %v7902 = vadd.f32 0.0, %v7901
    %v7903 = vpop.f32.mrb[0].mxu0
    %v7904 = vpop.f32.mrb[0].mxu0
    %v7905 = vadd.f32 0.0, %v7904
    %v7906 = vpop.f32.mrb[0].mxu0
    %7907 = vmatprep.mubr.bf16.mxu0 0
    %7908 = vmatmul.mubr.bf16.gmra.mrb[0].mxu0 %v7440
    %v7909 = vpop.f32.mrb[0].mxu0
    %v7910 = vadd.f32 0.0, %v7909
    %v7911 = vpop.f32.mrb[0].mxu0
    %v7912 = vpop.f32.mrb[0].mxu0
    %v7913 = vadd.f32 0.0, %v7912
    %v7914 = vpop.f32.mrb[0].mxu0
    %7915 = vmatprep.mubr.bf16.mxu0 0
    %7916 = vmatmul.mubr.bf16.gmra.mrb[0].mxu0 %v7443
    %v7917 = vpop.f32.mrb[0].mxu0
    %v7918 = vadd.f32 0.0, %v7917
    %v7919 = vpop.f32.mrb[0].mxu0
    %v7920 = vpop.f32.mrb[0].mxu0
    %v7921 = vadd.f32 0.0, %v7920
    %v7922 = vpop.f32.mrb[0].mxu0
    %7923 = vmatprep.mubr.bf16.mxu0 0
    %7924 = vmatmul.mubr.bf16.gmra.mrb[0].mxu0 %v7446
    %v7925 = vpop.f32.mrb[0].mxu0
    %v7926 = vadd.f32 0.0, %v7925
    %v7927 = vpop.f32.mrb[0].mxu0
    %v7928 = vpop.f32.mrb[0].mxu0
    %v7929 = vadd.f32 0.0, %v7928
    %v7930 = vpop.f32.mrb[0].mxu0
    %7931 = vmatprep.mubr.bf16.mxu0 0
    %7932 = vmatmul.mubr.bf16.gmra.mrb[0].mxu0 %v7449
    %v7933 = vpop.f32.mrb[0].mxu0
    %v7934 = vadd.f32 0.0, %v7933
    %v7935 = vpop.f32.mrb[0].mxu0
    %v7936 = vpop.f32.mrb[0].mxu0
    %v7937 = vadd.f32 0.0, %v7936
    %v7938 = vpop.f32.mrb[0].mxu0
    %7939 = vmatprep.mubr.bf16.mxu0 0
    %7940 = vmatmul.mubr.bf16.gmra.mrb[0].mxu0 %v7452
    %v7941 = vpop.f32.mrb[0].mxu0
    %v7942 = vadd.f32 0.0, %v7941
    %v7943 = vpop.f32.mrb[0].mxu0
    %v7944 = vpop.f32.mrb[0].mxu0
    %v7945 = vadd.f32 0.0, %v7944
    %v7946 = vpop.f32.mrb[0].mxu0
    %7947 = vmatprep.mubr.bf16.mxu0 0
    %7948 = vmatmul.mubr.bf16.gmra.mrb[0].mxu0 %v7455
    %v7949 = vpop.f32.mrb[0].mxu0
    %v7950 = vadd.f32 0.0, %v7949
    %v7951 = vpop.f32.mrb[0].mxu0
    %v7952 = vpop.f32.mrb[0].mxu0
    %v7953 = vadd.f32 0.0, %v7952
    %v7954 = vpop.f32.mrb[0].mxu0
    %7955 = vmatprep.mubr.bf16.mxu0 0
    %7956 = vmatmul.mubr.bf16.gmra.mrb[0].mxu0 %v7458
    %v7957 = vpop.f32.mrb[0].mxu0
    %v7958 = vadd.f32 0.0, %v7957
    %v7959 = vpop.f32.mrb[0].mxu0
    %v7960 = vpop.f32.mrb[0].mxu0
    %v7961 = vadd.f32 0.0, %v7960
    %v7962 = vpop.f32.mrb[0].mxu0
    %7963 = vmatprep.mubr.bf16.mxu0 0
    %7964 = vmatmul.mubr.bf16.gmra.mrb[0].mxu0 %v7461
    %v7965 = vpop.f32.mrb[0].mxu0
    %v7966 = vadd.f32 0.0, %v7965
    %v7967 = vpop.f32.mrb[0].mxu0
    %v7968 = vpop.f32.mrb[0].mxu0
    %v7969 = vadd.f32 0.0, %v7968
    %v7970 = vpop.f32.mrb[0].mxu0
    %7971 = vmatprep.mubr.bf16.mxu0 0
    %7972 = vmatmul.mubr.bf16.gmra.mrb[0].mxu0 %v7464
    %v7973 = vpop.f32.mrb[0].mxu0
    %v7974 = vadd.f32 0.0, %v7973
    %v7975 = vpop.f32.mrb[0].mxu0
    %v7976 = vpop.f32.mrb[0].mxu0
    %v7977 = vadd.f32 0.0, %v7976
    %v7978 = vpop.f32.mrb[0].mxu0
    %7979 = vmatprep.mubr.bf16.mxu0 0
    %7980 = vmatmul.mubr.bf16.gmra.mrb[0].mxu0 %v7467
    %v7981 = vpop.f32.mrb[0].mxu0
    %v7982 = vadd.f32 0.0, %v7981
    %v7983 = vpop.f32.mrb[0].mxu0
    %v7984 = vpop.f32.mrb[0].mxu0
    %v7985 = vadd.f32 0.0, %v7984
    %v7986 = vpop.f32.mrb[0].mxu0
    %7987 = vmatprep.mubr.bf16.mxu0 0
    %7988 = vmatmul.mubr.bf16.gmra.mrb[0].mxu0 %v7470
    %v7989 = vpop.f32.mrb[0].mxu0
    %v7990 = vadd.f32 0.0, %v7989
    %v7991 = vpop.f32.mrb[0].mxu0
    %v7992 = vpop.f32.mrb[0].mxu0
    %v7993 = vadd.f32 0.0, %v7992
    %v7994 = vpop.f32.mrb[0].mxu0
    %7995 = vmatprep.mubr.bf16.mxu0 0
    %7996 = vmatmul.mubr.bf16.gmra.mrb[0].mxu0 %v7473
    %v7997 = vpop.f32.mrb[0].mxu0
    %v7998 = vadd.f32 0.0, %v7997
    %v7999 = vpop.f32.mrb[0].mxu0
    %v8000 = vpop.f32.mrb[0].mxu0
    %v8001 = vadd.f32 0.0, %v8000
    %v8002 = vpop.f32.mrb[0].mxu0
    %8003 = vmatprep.mubr.bf16.mxu0 0
    %8004 = vmatmul.mubr.bf16.gmra.mrb[0].mxu0 %v7476
    %v8005 = vpop.f32.mrb[0].mxu0
    %v8006 = vadd.f32 0.0, %v8005
    %v8007 = vpop.f32.mrb[0].mxu0
    %v8008 = vpop.f32.mrb[0].mxu0
    %v8009 = vadd.f32 0.0, %v8008
    %v8010 = vpop.f32.mrb[0].mxu0
    %8011 = vmatprep.mubr.bf16.mxu0 0
    %8012 = vmatmul.mubr.bf16.gmra.mrb[0].mxu0 %v7479
    %v8013 = vpop.f32.mrb[0].mxu0
    %v8014 = vadd.f32 0.0, %v8013
    %v8015 = vpop.f32.mrb[0].mxu0
    %v8016 = vpop.f32.mrb[0].mxu0
    %v8017 = vadd.f32 0.0, %v8016
    %v8018 = vpop.f32.mrb[0].mxu0
    %8019 = vmatprep.mubr.bf16.mxu0 0
    %8020 = vmatmul.mubr.bf16.gmra.mrb[0].mxu0 %v7482
    %v8021 = vpop.f32.mrb[0].mxu0
    %v8022 = vadd.f32 0.0, %v8021
    %v8023 = vpop.f32.mrb[0].mxu0
    %v8024 = vpop.f32.mrb[0].mxu0
    %v8025 = vadd.f32 0.0, %v8024
    %v8026 = vpop.f32.mrb[0].mxu0
    %8027 = vmatprep.mubr.bf16.mxu0 0
    %8028 = vmatmul.mubr.bf16.gmra.mrb[0].mxu0 %v7485
    %v8029 = vpop.f32.mrb[0].mxu0
    %v8030 = vadd.f32 0.0, %v8029
    %v8031 = vpop.f32.mrb[0].mxu0
    %v8032 = vpop.f32.mrb[0].mxu0
    %v8033 = vadd.f32 0.0, %v8032
    %v8034 = vpop.f32.mrb[0].mxu0
    %8035 = vmatprep.mubr.bf16.mxu0 0
    %8036 = vmatmul.mubr.bf16.gmra.mrb[0].mxu0 %v7488
    %v8037 = vpop.f32.mrb[0].mxu0
    %v8038 = vadd.f32 0.0, %v8037
    %v8039 = vpop.f32.mrb[0].mxu0
    %v8040 = vpop.f32.mrb[0].mxu0
    %v8041 = vadd.f32 0.0, %v8040
    %v8042 = vpop.f32.mrb[0].mxu0
    %8043 = vmatprep.mubr.bf16.mxu0 0
    %8044 = vmatmul.mubr.bf16.gmra.mrb[0].mxu0 %v7491
    %v8045 = vpop.f32.mrb[0].mxu0
    %v8046 = vadd.f32 0.0, %v8045
    %v8047 = vpop.f32.mrb[0].mxu0
    %v8048 = vpop.f32.mrb[0].mxu0
    %v8049 = vadd.f32 0.0, %v8048
    %v8050 = vpop.f32.mrb[0].mxu0
    %8051 = vmatprep.mubr.bf16.mxu0 0
    %8052 = vmatmul.mubr.bf16.gmra.mrb[0].mxu0 %v7494
    %v8053 = vpop.f32.mrb[0].mxu0
    %v8054 = vadd.f32 0.0, %v8053
    %v8055 = vpop.f32.mrb[0].mxu0
    %v8056 = vpop.f32.mrb[0].mxu0
    %v8057 = vadd.f32 0.0, %v8056
    %v8058 = vpop.f32.mrb[0].mxu0
    %8059 = vmatprep.mubr.bf16.mxu0 0
    %8060 = vmatmul.mubr.bf16.gmra.mrb[0].mxu0 %v7497
    %v8061 = vpop.f32.mrb[0].mxu0
    %v8062 = vadd.f32 0.0, %v8061
    %v8063 = vpop.f32.mrb[0].mxu0
    %v8064 = vpop.f32.mrb[0].mxu0
    %v8065 = vadd.f32 0.0, %v8064
    %v8066 = vpop.f32.mrb[0].mxu0
    %8067 = vmatprep.mubr.bf16.mxu0 0
    %8068 = vmatmul.mubr.bf16.gmra.mrb[0].mxu0 %v7500
    %v8069 = vpop.f32.mrb[0].mxu0
    %v8070 = vadd.f32 0.0, %v8069
    %v8071 = vpop.f32.mrb[0].mxu0
    %v8072 = vpop.f32.mrb[0].mxu0
    %v8073 = vadd.f32 0.0, %v8072
    %v8074 = vpop.f32.mrb[0].mxu0
    %8075 = vmatprep.mubr.bf16.mxu0 0
    %8076 = vmatmul.mubr.bf16.gmra.mrb[0].mxu0 %v7503
    %v8077 = vpop.f32.mrb[0].mxu0
    %v8078 = vadd.f32 0.0, %v8077
    %v8079 = vpop.f32.mrb[0].mxu0
    %v8080 = vpop.f32.mrb[0].mxu0
    %v8081 = vadd.f32 0.0, %v8080
    %v8082 = vpop.f32.mrb[0].mxu0
    %8083 = vmatprep.mubr.bf16.mxu0 0
    %8084 = vmatmul.mubr.bf16.gmra.mrb[0].mxu0 %v7506
    %v8085 = vpop.f32.mrb[0].mxu0
    %v8086 = vadd.f32 0.0, %v8085
    %v8087 = vpop.f32.mrb[0].mxu0
    %v8088 = vpop.f32.mrb[0].mxu0
    %v8089 = vadd.f32 0.0, %v8088
    %v8090 = vpop.f32.mrb[0].mxu0
    %8091 = vmatprep.mubr.bf16.mxu0 0
    %8092 = vmatmul.mubr.bf16.gmra.mrb[0].mxu0 %v7509
    %v8093 = vpop.f32.mrb[0].mxu0
    %v8094 = vadd.f32 0.0, %v8093
    %v8095 = vpop.f32.mrb[0].mxu0
    %v8096 = vpop.f32.mrb[0].mxu0
    %v8097 = vadd.f32 0.0, %v8096
    %v8098 = vpop.f32.mrb[0].mxu0
    %8099 = vmatprep.mubr.bf16.mxu0 0
    %8100 = vmatmul.mubr.bf16.gmra.mrb[0].mxu0 %v7512
    %v8101 = vpop.f32.mrb[0].mxu0
    %v8102 = vadd.f32 0.0, %v8101
    %v8103 = vpop.f32.mrb[0].mxu0
    %v8104 = vpop.f32.mrb[0].mxu0
    %v8105 = vadd.f32 0.0, %v8104
    %v8106 = vpop.f32.mrb[0].mxu0
    %8107 = vmatprep.mubr.bf16.mxu0 0
    %8108 = vmatmul.mubr.bf16.gmra.mrb[0].mxu0 %v7515
    %v8109 = vpop.f32.mrb[0].mxu0
    %v8110 = vadd.f32 0.0, %v8109
    %v8111 = vpop.f32.mrb[0].mxu0
    %v8112 = vpop.f32.mrb[0].mxu0
    %v8113 = vadd.f32 0.0, %v8112
    %v8114 = vpop.f32.mrb[0].mxu0
    %8115 = vmatprep.mubr.bf16.mxu0 0
    %8116 = vmatmul.mubr.bf16.gmra.mrb[0].mxu0 %v7518
    %v8117 = vpop.f32.mrb[0].mxu0
    %v8118 = vadd.f32 0.0, %v8117
    %v8119 = vpop.f32.mrb[0].mxu0
    %v8120 = vpop.f32.mrb[0].mxu0
    %v8121 = vadd.f32 0.0, %v8120
    %v8122 = vpop.f32.mrb[0].mxu0
    %8123 = vmatprep.mubr.bf16.mxu0 0
    %8124 = vmatmul.mubr.bf16.gmra.mrb[0].mxu0 %v7521
    %v8125 = vpop.f32.mrb[0].mxu0
    %v8126 = vadd.f32 0.0, %v8125
    %v8127 = vpop.f32.mrb[0].mxu0
    %v8128 = vpop.f32.mrb[0].mxu0
    %v8129 = vadd.f32 0.0, %v8128
    %v8130 = vpop.f32.mrb[0].mxu0
    %8131 = vmatprep.mubr.bf16.mxu0 0
    %8132 = vmatmul.mubr.bf16.gmra.mrb[0].mxu0 %v7524
    %v8133 = vpop.f32.mrb[0].mxu0
    %v8134 = vadd.f32 0.0, %v8133
    %v8135 = vpop.f32.mrb[0].mxu0
    %v8136 = vpop.f32.mrb[0].mxu0
    %v8137 = vadd.f32 0.0, %v8136
    %v8138 = vpop.f32.mrb[0].mxu0
    %8139 = vdwg.mxu0
    %v8140 = vmax.f32 %v7566, %v7577
    %v8141 = vmax.f32 %v7569, %v7582
    %v8142 = vmax.f32 %v7574, %v7585
    %v8143 = vmax.f32 %v7590, %v7601
    %v8144 = vmax.f32 %v7593, %v7606
    %v8145 = vmax.f32 %v7598, %v7609
    %v8146 = vmax.f32 %v7614, %v7625
    %v8147 = vmax.f32 %v7617, %v7630
    %v8148 = vmax.f32 %v7622, %v7633
    %v8149 = vmax.f32 %v7638, %v7649
    %v8150 = vmax.f32 %v7641, %v7654
    %v8151 = vmax.f32 %v7646, %v7657
    %v8152 = vmax.f32 %v7662, %v7673
    %v8153 = vmax.f32 %v7665, %v7678
    %v8154 = vmax.f32 %v7670, %v7681
    %v8155 = vmax.f32 %v7686, %v7697
    %v8156 = vmax.f32 %v7689, %v7702
    %v8157 = vmax.f32 %v7694, %v7705
    %v8158 = vmax.f32 %v7710, %v7721
    %v8159 = vmax.f32 %v7713, %v7726
    %v8160 = vmax.f32 %v7718, %v7729
    %v8161 = vmax.f32 %v7734, %v7745
    %v8162 = vmax.f32 %v7737, %v7750
    %v8163 = vmax.f32 %v7742, %v7753
    %v8164 = vmax.f32 %v7758, %v7769
    %v8165 = vmax.f32 %v7761, %v7774
    %v8166 = vmax.f32 %v7766, %v7777
    %v8167 = vmax.f32 %v7782, %v7793
    %v8168 = vmax.f32 %v7785, %v7798
    %v8169 = vmax.f32 %v7790, %v7801
    %v8170 = vmax.f32 %v7806, %v7817
    %v8171 = vmax.f32 %v7809, %v7822
    %v8172 = vmax.f32 %v7814, %v7825
    %v8173 = vmax.f32 %v7830, %v7841
    %v8174 = vmax.f32 %v7833, %v7846
    %v8175 = vmax.f32 %v7838, %v7849
    %v8176 = vmax.f32 %v7854, %v7865
    %v8177 = vmax.f32 %v7857, %v7870
    %v8178 = vmax.f32 %v7862, %v7873
    %v8179 = vmax.f32 %v7878, %v7889
    %v8180 = vmax.f32 %v7881, %v7894
    %v8181 = vmax.f32 %v7886, %v7897
    %v8182 = vmax.f32 %v7902, %v7913
    %v8183 = vmax.f32 %v7905, %v7918
    %v8184 = vmax.f32 %v7910, %v7921
    %v8185 = vmax.f32 %v7926, %v7937
    %v8186 = vmax.f32 %v7929, %v7942
    %v8187 = vmax.f32 %v7934, %v7945
    %v8188 = vmax.f32 %v7950, %v7961
    %v8189 = vmax.f32 %v7953, %v7966
    %v8190 = vmax.f32 %v7958, %v7969
    %v8191 = vmax.f32 %v7974, %v7985
    %v8192 = vmax.f32 %v7977, %v7990
    %v8193 = vmax.f32 %v7982, %v7993
    %v8194 = vmax.f32 %v7998, %v8009
    %v8195 = vmax.f32 %v8001, %v8014
    %v8196 = vmax.f32 %v8006, %v8017
    %v8197 = vmax.f32 %v8022, %v8033
    %v8198 = vmax.f32 %v8025, %v8038
    %v8199 = vmax.f32 %v8030, %v8041
    %v8200 = vmax.f32 %v8046, %v8057
    %v8201 = vmax.f32 %v8049, %v8062
    %v8202 = vmax.f32 %v8054, %v8065
    %v8203 = vmax.f32 %v8070, %v8081
    %v8204 = vmax.f32 %v8073, %v8086
    %v8205 = vmax.f32 %v8078, %v8089
    %v8206 = vmax.f32 %v8094, %v8105
    %v8207 = vmax.f32 %v8097, %v8110
    %v8208 = vmax.f32 %v8102, %v8113
    %v8209 = vmax.f32 %v8118, %v8129
    %v8210 = vmax.f32 %v8121, %v8134
    %v8211 = vmax.f32 %v8126, %v8137
    %8215 = vrot.lane.b32.xlu0 %v8143, 8
    %v8216 = vpop.permute.xlu0 %8215
    %8217 = vrot.lane.b32.xlu0 %v8144, 8
    %v8218 = vpop.permute.xlu0 %8217
    %8219 = vrot.lane.b32.xlu0 %v8145, 8
    %v8220 = vpop.permute.xlu0 %8219
    %8227 = vrot.lane.b32.xlu0 %v8146, 16
    %v8228 = vpop.permute.xlu0 %8227
    %8229 = vrot.lane.b32.xlu0 %v8147, 16
    %v8230 = vpop.permute.xlu0 %8229
    %8231 = vrot.lane.b32.xlu0 %v8148, 16
    %v8232 = vpop.permute.xlu0 %8231
    %8239 = vrot.lane.b32.xlu0 %v8149, 24
    %v8240 = vpop.permute.xlu0 %8239
    %8241 = vrot.lane.b32.xlu0 %v8150, 24
    %v8242 = vpop.permute.xlu0 %8241
    %8243 = vrot.lane.b32.xlu0 %v8151, 24
    %v8244 = vpop.permute.xlu0 %8243
    %8251 = vrot.lane.b32.xlu0 %v8152, 32
    %v8252 = vpop.permute.xlu0 %8251
    %8253 = vrot.lane.b32.xlu0 %v8153, 32
    %v8254 = vpop.permute.xlu0 %8253
    %8255 = vrot.lane.b32.xlu0 %v8154, 32
    %v8256 = vpop.permute.xlu0 %8255
    %8263 = vrot.lane.b32.xlu0 %v8155, 40
    %v8264 = vpop.permute.xlu0 %8263
    %8265 = vrot.lane.b32.xlu0 %v8156, 40
    %v8266 = vpop.permute.xlu0 %8265
    %8267 = vrot.lane.b32.xlu0 %v8157, 40
    %v8268 = vpop.permute.xlu0 %8267
    %8275 = vrot.lane.b32.xlu0 %v8158, 48
    %v8276 = vpop.permute.xlu0 %8275
    %8277 = vrot.lane.b32.xlu0 %v8159, 48
    %v8278 = vpop.permute.xlu0 %8277
    %8279 = vrot.lane.b32.xlu0 %v8160, 48
    %v8280 = vpop.permute.xlu0 %8279
    %8287 = vrot.lane.b32.xlu0 %v8161, 56
    %v8288 = vpop.permute.xlu0 %8287
    %8289 = vrot.lane.b32.xlu0 %v8162, 56
    %v8290 = vpop.permute.xlu0 %8289
    %8291 = vrot.lane.b32.xlu0 %v8163, 56
    %v8292 = vpop.permute.xlu0 %8291
    %8299 = vrot.lane.b32.xlu0 %v8164, 64
    %v8300 = vpop.permute.xlu0 %8299
    %8301 = vrot.lane.b32.xlu0 %v8165, 64
    %v8302 = vpop.permute.xlu0 %8301
    %8303 = vrot.lane.b32.xlu0 %v8166, 64
    %v8304 = vpop.permute.xlu0 %8303
    %8311 = vrot.lane.b32.xlu0 %v8167, 72
    %v8312 = vpop.permute.xlu0 %8311
    %8313 = vrot.lane.b32.xlu0 %v8168, 72
    %v8314 = vpop.permute.xlu0 %8313
    %8315 = vrot.lane.b32.xlu0 %v8169, 72
    %v8316 = vpop.permute.xlu0 %8315
    %8323 = vrot.lane.b32.xlu0 %v8170, 80
    %v8324 = vpop.permute.xlu0 %8323
    %8325 = vrot.lane.b32.xlu0 %v8171, 80
    %v8326 = vpop.permute.xlu0 %8325
    %8327 = vrot.lane.b32.xlu0 %v8172, 80
    %v8328 = vpop.permute.xlu0 %8327
    %8335 = vrot.lane.b32.xlu0 %v8173, 88
    %v8336 = vpop.permute.xlu0 %8335
    %8337 = vrot.lane.b32.xlu0 %v8174, 88
    %v8338 = vpop.permute.xlu0 %8337
    %8339 = vrot.lane.b32.xlu0 %v8175, 88
    %v8340 = vpop.permute.xlu0 %8339
    %8347 = vrot.lane.b32.xlu0 %v8176, 96
    %v8348 = vpop.permute.xlu0 %8347
    %8349 = vrot.lane.b32.xlu0 %v8177, 96
    %v8350 = vpop.permute.xlu0 %8349
    %8351 = vrot.lane.b32.xlu0 %v8178, 96
    %v8352 = vpop.permute.xlu0 %8351
    %8359 = vrot.lane.b32.xlu0 %v8179, 104
    %v8360 = vpop.permute.xlu0 %8359
    %8361 = vrot.lane.b32.xlu0 %v8180, 104
    %v8362 = vpop.permute.xlu0 %8361
    %8363 = vrot.lane.b32.xlu0 %v8181, 104
    %v8364 = vpop.permute.xlu0 %8363
    %8371 = vrot.lane.b32.xlu0 %v8182, 112
    %v8372 = vpop.permute.xlu0 %8371
    %8373 = vrot.lane.b32.xlu0 %v8183, 112
    %v8374 = vpop.permute.xlu0 %8373
    %8375 = vrot.lane.b32.xlu0 %v8184, 112
    %v8376 = vpop.permute.xlu0 %8375
    %8383 = vrot.lane.b32.xlu0 %v8185, 120
    %v8384 = vpop.permute.xlu0 %8383
    %8385 = vrot.lane.b32.xlu0 %v8186, 120
    %v8386 = vpop.permute.xlu0 %8385
    %8387 = vrot.lane.b32.xlu0 %v8187, 120
    %v8388 = vpop.permute.xlu0 %8387
    %vm8392 = vcmask 64512
    %v8393 = vsel %vm8392, %v8140, %v8216
    %v8394 = vsel %vm8392, %v8141, %v8218
    %v8395 = vsel %vm8392, %v8142, %v8220
    %vm8396 = vcmask 130048
    %v8397 = vsel %vm8396, %v8393, %v8228
    %v8398 = vsel %vm8396, %v8394, %v8230
    %v8399 = vsel %vm8396, %v8395, %v8232
    %vm8400 = vcmask 195584
    %v8401 = vsel %vm8400, %v8397, %v8240
    %v8402 = vsel %vm8400, %v8398, %v8242
    %v8403 = vsel %vm8400, %v8399, %v8244
    %vm8404 = vcmask 261120
    %v8405 = vsel %vm8404, %v8401, %v8252
    %v8406 = vsel %vm8404, %v8402, %v8254
    %v8407 = vsel %vm8404, %v8403, %v8256
    %vm8408 = vcmask 326656
    %v8409 = vsel %vm8408, %v8405, %v8264
    %v8410 = vsel %vm8408, %v8406, %v8266
    %v8411 = vsel %vm8408, %v8407, %v8268
    %vm8412 = vcmask 392192
    %v8413 = vsel %vm8412, %v8409, %v8276
    %v8414 = vsel %vm8412, %v8410, %v8278
    %v8415 = vsel %vm8412, %v8411, %v8280
    %vm8416 = vcmask 457728
    %v8417 = vsel %vm8416, %v8413, %v8288
    %v8418 = vsel %vm8416, %v8414, %v8290
    %v8419 = vsel %vm8416, %v8415, %v8292
    %vm8420 = vcmask 523264
    %v8421 = vsel %vm8420, %v8417, %v8300
    %v8422 = vsel %vm8420, %v8418, %v8302
    %v8423 = vsel %vm8420, %v8419, %v8304
    %vm8424 = vcmask 588800
    %v8425 = vsel %vm8424, %v8421, %v8312
    %v8426 = vsel %vm8424, %v8422, %v8314
    %v8427 = vsel %vm8424, %v8423, %v8316
    %vm8428 = vcmask 654336
    %v8429 = vsel %vm8428, %v8425, %v8324
    %v8430 = vsel %vm8428, %v8426, %v8326
    %v8431 = vsel %vm8428, %v8427, %v8328
    %vm8432 = vcmask 719872
    %v8433 = vsel %vm8432, %v8429, %v8336
    %v8434 = vsel %vm8432, %v8430, %v8338
    %v8435 = vsel %vm8432, %v8431, %v8340
    %vm8436 = vcmask 785408
    %v8437 = vsel %vm8436, %v8433, %v8348
    %v8438 = vsel %vm8436, %v8434, %v8350
    %v8439 = vsel %vm8436, %v8435, %v8352
    %vm8440 = vcmask 850944
    %v8441 = vsel %vm8440, %v8437, %v8360
    %v8442 = vsel %vm8440, %v8438, %v8362
    %v8443 = vsel %vm8440, %v8439, %v8364
    %vm8444 = vcmask 916480
    %v8445 = vsel %vm8444, %v8441, %v8372
    %v8446 = vsel %vm8444, %v8442, %v8374
    %v8447 = vsel %vm8444, %v8443, %v8376
    %vm8448 = vcmask 982016
    %v8449 = vsel %vm8448, %v8445, %v8384
    %v8450 = vsel %vm8448, %v8446, %v8386
    %v8451 = vsel %vm8448, %v8447, %v8388
    %8455 = vrot.lane.b32.xlu0 %v8191, 8
    %v8456 = vpop.permute.xlu0 %8455
    %8457 = vrot.lane.b32.xlu0 %v8192, 8
    %v8458 = vpop.permute.xlu0 %8457
    %8459 = vrot.lane.b32.xlu0 %v8193, 8
    %v8460 = vpop.permute.xlu0 %8459
    %8467 = vrot.lane.b32.xlu0 %v8194, 16
    %v8468 = vpop.permute.xlu0 %8467
    %8469 = vrot.lane.b32.xlu0 %v8195, 16
    %v8470 = vpop.permute.xlu0 %8469
    %8471 = vrot.lane.b32.xlu0 %v8196, 16
    %v8472 = vpop.permute.xlu0 %8471
    %8479 = vrot.lane.b32.xlu0 %v8197, 24
    %v8480 = vpop.permute.xlu0 %8479
    %8481 = vrot.lane.b32.xlu0 %v8198, 24
    %v8482 = vpop.permute.xlu0 %8481
    %8483 = vrot.lane.b32.xlu0 %v8199, 24
    %v8484 = vpop.permute.xlu0 %8483
    %8491 = vrot.lane.b32.xlu0 %v8200, 32
    %v8492 = vpop.permute.xlu0 %8491
    %8493 = vrot.lane.b32.xlu0 %v8201, 32
    %v8494 = vpop.permute.xlu0 %8493
    %8495 = vrot.lane.b32.xlu0 %v8202, 32
    %v8496 = vpop.permute.xlu0 %8495
    %8503 = vrot.lane.b32.xlu0 %v8203, 40
    %v8504 = vpop.permute.xlu0 %8503
    %8505 = vrot.lane.b32.xlu0 %v8204, 40
    %v8506 = vpop.permute.xlu0 %8505
    %8507 = vrot.lane.b32.xlu0 %v8205, 40
    %v8508 = vpop.permute.xlu0 %8507
    %8515 = vrot.lane.b32.xlu0 %v8206, 48
    %v8516 = vpop.permute.xlu0 %8515
    %8517 = vrot.lane.b32.xlu0 %v8207, 48
    %v8518 = vpop.permute.xlu0 %8517
    %8519 = vrot.lane.b32.xlu0 %v8208, 48
    %v8520 = vpop.permute.xlu0 %8519
    %8527 = vrot.lane.b32.xlu0 %v8209, 56
    %v8528 = vpop.permute.xlu0 %8527
    %8529 = vrot.lane.b32.xlu0 %v8210, 56
    %v8530 = vpop.permute.xlu0 %8529
    %8531 = vrot.lane.b32.xlu0 %v8211, 56
    %v8532 = vpop.permute.xlu0 %8531
    %v8536 = vsel %vm8392, %v8188, %v8456
    %v8537 = vsel %vm8392, %v8189, %v8458
    %v8538 = vsel %vm8392, %v8190, %v8460
    %v8539 = vsel %vm8396, %v8536, %v8468
    %v8540 = vsel %vm8396, %v8537, %v8470
    %v8541 = vsel %vm8396, %v8538, %v8472
    %v8542 = vsel %vm8400, %v8539, %v8480
    %v8543 = vsel %vm8400, %v8540, %v8482
    %v8544 = vsel %vm8400, %v8541, %v8484
    %v8545 = vsel %vm8404, %v8542, %v8492
    %v8546 = vsel %vm8404, %v8543, %v8494
    %v8547 = vsel %vm8404, %v8544, %v8496
    %v8548 = vsel %vm8408, %v8545, %v8504
    %v8549 = vsel %vm8408, %v8546, %v8506
    %v8550 = vsel %vm8408, %v8547, %v8508
    %v8551 = vsel %vm8412, %v8548, %v8516
    %v8552 = vsel %vm8412, %v8549, %v8518
    %v8553 = vsel %vm8412, %v8550, %v8520
    %v8554 = vsel %vm8416, %v8551, %v8528
    %v8555 = vsel %vm8416, %v8552, %v8530
    %v8556 = vsel %vm8416, %v8553, %v8532
    %v8557 = vlaneseq
    %v8558 = vshrl.u32 %v8557, 7
    %v8559 = vadd.s32 %v8558, 8
    %v8560 = vlaneseq
    %v8561 = vand.u32 %v8560, 127
    %v8562 = vmul.u32 %v8558, 2
    %v8563 = vmul.u32 %v8559, 2
    %vm8564 = vcmp.eq.s32.totalorder %v8561, %v8562
    %vm8565 = vcmp.eq.s32.totalorder %v8561, %v8563
    %v8566 = vsel %vm8564, 1.0, 0.0
    %v8567 = vsel %vm8565, 1.0, 0.0
    %v8568 = vadd.s32 %v8562, 1
    %v8569 = vadd.s32 %v8563, 1
    %vm8570 = vcmp.eq.s32.totalorder %v8561, %v8568
    %vm8571 = vcmp.eq.s32.totalorder %v8561, %v8569
    %v8572 = vsel %vm8570, 1.0, 0.0
    %v8573 = vsel %vm8571, 1.0, 0.0
    %v8575 = vsel %vm8400, %v8566, 0
    %v8578 = vsel %vm8400, %v8567, 0
    %8580 = vmatprep.subr.mxu0 %v8554
    %8581 = vmatpush1.msra.mxu0 %v8449
    %8582 = vmatprep.subr.mxu0 %v8555
    %8583 = vmatpush1.msra.mxu0 %v8450
    %8584 = vmatprep.subr.mxu0 %v8556
    %8585 = vmatpush1.msra.mxu0 %v8451
    %8586 = vmatprep.subr.mxu0 0.0
    %8587 = vmatpush1.msra.mxu0 0.0
    %8588 = vmatprep.subr.mxu0 0.0
    %8589 = vmatpush1.msra.mxu0 0.0
    %8590 = vmatprep.subr.mxu0 0.0
    %8591 = vmatpush1.msra.mxu0 0.0
    %8592 = vmatprep.subr.mxu0 0.0
    %8593 = vmatpush1.msra.mxu0 0.0
    %8594 = vmatprep.subr.mxu0 0.0
    %8595 = vmatpush1.msra.mxu0 0.0
    %8596 = vmatprep.subr.mxu0 0.0
    %8597 = vmatpush1.msra.mxu0 0.0
    %8598 = vmatprep.subr.mxu0 0.0
    %8599 = vmatpush1.msra.mxu0 0.0
    %8600 = vmatprep.subr.mxu0 0.0
    %8601 = vmatpush1.msra.mxu0 0.0
    %8602 = vmatprep.subr.mxu0 0.0
    %8603 = vmatpush1.msra.mxu0 0.0
    %8604 = vmatprep.subr.mxu0 0.0
    %8605 = vmatpush1.msra.mxu0 0.0
    %8606 = vmatprep.subr.mxu0 0.0
    %8607 = vmatpush1.msra.mxu0 0.0
    %8608 = vmatprep.subr.mxu0 0.0
    %8609 = vmatpush1.msra.mxu0 0.0
    %8610 = vmatprep.subr.mxu0 0.0
    %8611 = vmatpush1.msra.mxu0 0.0
    %8612 = vmatprep.subr.mxu0 0.0
    %8613 = vmatpush1.msra.mxu0 0.0
    %8614 = vmatprep.subr.mxu0 0.0
    %8615 = vmatpush1.msra.mxu0 0.0
    %8616 = vmatprep.subr.mxu0 0.0
    %8617 = vmatpush1.msra.mxu0 0.0
    %8618 = vmatprep.subr.mxu0 0.0
    %8619 = vmatpush1.msra.mxu0 0.0
    %8620 = vmatprep.subr.mxu0 0.0
    %8621 = vmatpush1.msra.mxu0 0.0
    %8622 = vmatprep.subr.mxu0 0.0
    %8623 = vmatpush1.msra.mxu0 0.0
    %8624 = vmatprep.subr.mxu0 0.0
    %8625 = vmatpush1.msra.mxu0 0.0
    %8626 = vmatprep.subr.mxu0 0.0
    %8627 = vmatpush1.msra.mxu0 0.0
    %8628 = vmatprep.subr.mxu0 0.0
    %8629 = vmatpush1.msra.mxu0 0.0
    %8630 = vmatprep.subr.mxu0 0.0
    %8631 = vmatpush1.msra.mxu0 0.0
    %8632 = vmatprep.subr.mxu0 0.0
    %8633 = vmatpush1.msra.mxu0 0.0
    %8634 = vmatprep.subr.mxu0 0.0
    %8635 = vmatpush1.msra.mxu0 0.0
    %8636 = vmatprep.subr.mxu0 0.0
    %8637 = vmatpush1.msra.mxu0 0.0
    %8638 = vmatprep.subr.mxu0 0.0
    %8639 = vmatpush1.msra.mxu0 0.0
    %8640 = vmatprep.subr.mxu0 0.0
    %8641 = vmatpush1.msra.mxu0 0.0
    %8642 = vmatprep.subr.mxu0 0.0
    %8643 = vmatpush1.msra.mxu0 0.0
    %8644 = vmatprep.mubr.f32.mxu0 0.0
    %8645 = vmatmul.mubr.f32.gmra.mrb[0].mxu0 %v8575
    %v8646 = vpop.f32.mrb[0].mxu0
    %v8647 = vadd.f32 0.0, %v8646
    %v8648 = vpop.f32.mrb[0].mxu0
    %v8649 = vadd.f32 0.0, %v8648
    %8650 = vmatprep.mubr.f32.mxu0 0.0
    %8651 = vmatmul.mubr.f32.gmra.mrb[0].mxu0 %v8578
    %v8652 = vpop.f32.mrb[0].mxu0
    %v8653 = vadd.f32 0.0, %v8652
    %v8654 = vpop.f32.mrb[0].mxu0
    %v8655 = vadd.f32 0.0, %v8654
    %8656 = vdwg.mxu0
    %v8658 = vsel %vm8400, %v8572, 0
    %v8661 = vsel %vm8400, %v8573, 0
    %8663 = vmatprep.subr.mxu0 %v8554
    %8664 = vmatpush1.msra.mxu0 %v8449
    %8665 = vmatprep.subr.mxu0 %v8555
    %8666 = vmatpush1.msra.mxu0 %v8450
    %8667 = vmatprep.subr.mxu0 %v8556
    %8668 = vmatpush1.msra.mxu0 %v8451
    %8669 = vmatprep.subr.mxu0 0.0
    %8670 = vmatpush1.msra.mxu0 0.0
    %8671 = vmatprep.subr.mxu0 0.0
    %8672 = vmatpush1.msra.mxu0 0.0
    %8673 = vmatprep.subr.mxu0 0.0
    %8674 = vmatpush1.msra.mxu0 0.0
    %8675 = vmatprep.subr.mxu0 0.0
    %8676 = vmatpush1.msra.mxu0 0.0
    %8677 = vmatprep.subr.mxu0 0.0
    %8678 = vmatpush1.msra.mxu0 0.0
    %8679 = vmatprep.subr.mxu0 0.0
    %8680 = vmatpush1.msra.mxu0 0.0
    %8681 = vmatprep.subr.mxu0 0.0
    %8682 = vmatpush1.msra.mxu0 0.0
    %8683 = vmatprep.subr.mxu0 0.0
    %8684 = vmatpush1.msra.mxu0 0.0
    %8685 = vmatprep.subr.mxu0 0.0
    %8686 = vmatpush1.msra.mxu0 0.0
    %8687 = vmatprep.subr.mxu0 0.0
    %8688 = vmatpush1.msra.mxu0 0.0
    %8689 = vmatprep.subr.mxu0 0.0
    %8690 = vmatpush1.msra.mxu0 0.0
    %8691 = vmatprep.subr.mxu0 0.0
    %8692 = vmatpush1.msra.mxu0 0.0
    %8693 = vmatprep.subr.mxu0 0.0
    %8694 = vmatpush1.msra.mxu0 0.0
    %8695 = vmatprep.subr.mxu0 0.0
    %8696 = vmatpush1.msra.mxu0 0.0
    %8697 = vmatprep.subr.mxu0 0.0
    %8698 = vmatpush1.msra.mxu0 0.0
    %8699 = vmatprep.subr.mxu0 0.0
    %8700 = vmatpush1.msra.mxu0 0.0
    %8701 = vmatprep.subr.mxu0 0.0
    %8702 = vmatpush1.msra.mxu0 0.0
    %8703 = vmatprep.subr.mxu0 0.0
    %8704 = vmatpush1.msra.mxu0 0.0
    %8705 = vmatprep.subr.mxu0 0.0
    %8706 = vmatpush1.msra.mxu0 0.0
    %8707 = vmatprep.subr.mxu0 0.0
    %8708 = vmatpush1.msra.mxu0 0.0
    %8709 = vmatprep.subr.mxu0 0.0
    %8710 = vmatpush1.msra.mxu0 0.0
    %8711 = vmatprep.subr.mxu0 0.0
    %8712 = vmatpush1.msra.mxu0 0.0
    %8713 = vmatprep.subr.mxu0 0.0
    %8714 = vmatpush1.msra.mxu0 0.0
    %8715 = vmatprep.subr.mxu0 0.0
    %8716 = vmatpush1.msra.mxu0 0.0
    %8717 = vmatprep.subr.mxu0 0.0
    %8718 = vmatpush1.msra.mxu0 0.0
    %8719 = vmatprep.subr.mxu0 0.0
    %8720 = vmatpush1.msra.mxu0 0.0
    %8721 = vmatprep.subr.mxu0 0.0
    %8722 = vmatpush1.msra.mxu0 0.0
    %8723 = vmatprep.subr.mxu0 0.0
    %8724 = vmatpush1.msra.mxu0 0.0
    %8725 = vmatprep.subr.mxu0 0.0
    %8726 = vmatpush1.msra.mxu0 0.0
    %8727 = vmatprep.mubr.f32.mxu0 0.0
    %8728 = vmatmul.mubr.f32.gmra.mrb[0].mxu0 %v8658
    %v8729 = vpop.f32.mrb[0].mxu0
    %v8730 = vadd.f32 0.0, %v8729
    %v8731 = vpop.f32.mrb[0].mxu0
    %v8732 = vadd.f32 0.0, %v8731
    %8733 = vmatprep.mubr.f32.mxu0 0.0
    %8734 = vmatmul.mubr.f32.gmra.mrb[0].mxu0 %v8661
    %v8735 = vpop.f32.mrb[0].mxu0
    %v8736 = vadd.f32 0.0, %v8735
    %v8737 = vpop.f32.mrb[0].mxu0
    %v8738 = vadd.f32 0.0, %v8737
    %8739 = vdwg.mxu0
    %v8740 = vmax.f32 %v8647, %v8730
    %v8741 = vmax.f32 %v8649, %v8732
    %v8742 = vmax.f32 %v8653, %v8736
    %v8743 = vmax.f32 %v8655, %v8738
    %v8744 = vld [vmem:[%s2] sm:$0x1]
    %v8746 = vlaneseq
    %v8747 = vshrl.u32 %v8746, 7
    %v8748 = vsub.s32 0, %v8747
    %v8749 = vrot.slane %v8744, %v8748
    %8750 = vrot.lane.b32.xlu0 %v8749, 8
    %v8751 = vpop.permute.xlu0 %8750
    %8753 = vrot.lane.b32.xlu0 %v8749, 16
    %v8754 = vpop.permute.xlu0 %8753
    %8756 = vrot.lane.b32.xlu0 %v8749, 24
    %v8757 = vpop.permute.xlu0 %8756
    %8759 = vrot.lane.b32.xlu0 %v8749, 32
    %v8760 = vpop.permute.xlu0 %8759
    %8762 = vrot.lane.b32.xlu0 %v8749, 40
    %v8763 = vpop.permute.xlu0 %8762
    %8765 = vrot.lane.b32.xlu0 %v8749, 48
    %v8766 = vpop.permute.xlu0 %8765
    %8768 = vrot.lane.b32.xlu0 %v8749, 56
    %v8769 = vpop.permute.xlu0 %8768
    %8771 = vrot.lane.b32.xlu0 %v8749, 64
    %v8772 = vpop.permute.xlu0 %8771
    %8774 = vrot.lane.b32.xlu0 %v8749, 72
    %v8775 = vpop.permute.xlu0 %8774
    %8777 = vrot.lane.b32.xlu0 %v8749, 80
    %v8778 = vpop.permute.xlu0 %8777
    %8780 = vrot.lane.b32.xlu0 %v8749, 88
    %v8781 = vpop.permute.xlu0 %8780
    %8783 = vrot.lane.b32.xlu0 %v8749, 96
    %v8784 = vpop.permute.xlu0 %8783
    %8786 = vrot.lane.b32.xlu0 %v8749, 104
    %v8787 = vpop.permute.xlu0 %8786
    %8789 = vrot.lane.b32.xlu0 %v8749, 112
    %v8790 = vpop.permute.xlu0 %8789
    %8792 = vrot.lane.b32.xlu0 %v8749, 120
    %v8793 = vpop.permute.xlu0 %8792
    %v8795 = vsel %vm8392, %v8744, %v8751
    %v8796 = vsel %vm8396, %v8795, %v8754
    %v8797 = vsel %vm8400, %v8796, %v8757
    %v8798 = vsel %vm8404, %v8797, %v8760
    %v8799 = vsel %vm8408, %v8798, %v8763
    %v8800 = vsel %vm8412, %v8799, %v8766
    %v8801 = vsel %vm8416, %v8800, %v8769
    %v8802 = vsel %vm8420, %v8801, %v8772
    %v8803 = vsel %vm8424, %v8802, %v8775
    %v8804 = vsel %vm8428, %v8803, %v8778
    %v8805 = vsel %vm8432, %v8804, %v8781
    %v8806 = vsel %vm8436, %v8805, %v8784
    %v8807 = vsel %vm8440, %v8806, %v8787
    %v8808 = vsel %vm8444, %v8807, %v8790
    %v8809 = vsel %vm8448, %v8808, %v8793
    %v8810 = vlaneseq
    %v8811 = vshrl.u32 %v8810, 7
    %v8812 = vsub.s32 0, %v8811
    %v8813 = vrot.slane %v8809, %v8812
    %v8814 = vlaneseq
    %v8815 = vshrl.u32 %v8814, 7
    %v8816 = vsub.s32 0, %v8815
    %v8817 = vrot.slane %v8801, %v8816
    %v8818 = vadd.f32 %v8740, %v8813
    %v8819 = vadd.f32 %v8741, %v8817
    %v8820 = vadd.f32 %v8742, %v8813
    %v8821 = vadd.f32 %v8743, %v8817
    %v8822 = vmax.f32 %v8818, 0.0
    %v8823 = vmax.f32 %v8819, 0.0
    %v8824 = vmax.f32 %v8820, 0.0
    %v8825 = vmax.f32 %v8821, 0.0
    %v8828 = vrot.slane %v8822, 1
    %v8829 = vrot.slane %v8824, 1
    %v8830 = vsel %vm488, %v8828, %v8829
    %8831 = vrot.lane.b32.xlu0 %v8830, 8
    %v8832 = vpop.permute.xlu0 %8831
    %v8834 = vrot.slane %v8822, 2
    %v8835 = vrot.slane %v8824, 2
    %v8836 = vsel %vm1385, %v8834, %v8835
    %8837 = vrot.lane.b32.xlu0 %v8836, 16
    %v8838 = vpop.permute.xlu0 %8837
    %v8840 = vrot.slane %v8822, 3
    %v8841 = vrot.slane %v8824, 3
    %v8842 = vsel %vm2282, %v8840, %v8841
    %8843 = vrot.lane.b32.xlu0 %v8842, 24
    %v8844 = vpop.permute.xlu0 %8843
    %v8846 = vrot.slane %v8822, 4
    %v8847 = vrot.slane %v8824, 4
    %v8848 = vsel %vm3179, %v8846, %v8847
    %8849 = vrot.lane.b32.xlu0 %v8848, 32
    %v8850 = vpop.permute.xlu0 %8849
    %v8852 = vsel %vm8392, %v8822, %v8832
    %v8853 = vsel %vm8396, %v8852, %v8838
    %v8854 = vsel %vm8400, %v8853, %v8844
    %v8855 = vsel %vm8404, %v8854, %v8850
    %8856 = vrot.lane.b32.xlu0 %v8822, 120
    %v8857 = vpop.permute.xlu0 %8856
    %8860 = vrot.lane.b32.xlu0 %v8836, 8
    %v8861 = vpop.permute.xlu0 %8860
    %8863 = vrot.lane.b32.xlu0 %v8842, 16
    %v8864 = vpop.permute.xlu0 %8863
    %8866 = vrot.lane.b32.xlu0 %v8848, 24
    %v8867 = vpop.permute.xlu0 %8866
    %v8869 = vsel %vm8392, %v8857, %v8830
    %v8870 = vsel %vm8396, %v8869, %v8861
    %v8871 = vsel %vm8400, %v8870, %v8864
    %v8872 = vsel %vm8404, %v8871, %v8867
    %8873 = vrot.lane.b32.xlu0 %v8822, 112
    %v8874 = vpop.permute.xlu0 %8873
    %8876 = vrot.lane.b32.xlu0 %v8830, 120
    %v8877 = vpop.permute.xlu0 %8876
    %8880 = vrot.lane.b32.xlu0 %v8842, 8
    %v8881 = vpop.permute.xlu0 %8880
    %8883 = vrot.lane.b32.xlu0 %v8848, 16
    %v8884 = vpop.permute.xlu0 %8883
    %v8886 = vsel %vm8392, %v8874, %v8877
    %v8887 = vsel %vm8396, %v8886, %v8836
    %v8888 = vsel %vm8400, %v8887, %v8881
    %v8889 = vsel %vm8404, %v8888, %v8884
    %8890 = vrot.lane.b32.xlu0 %v8822, 104
    %v8891 = vpop.permute.xlu0 %8890
    %8893 = vrot.lane.b32.xlu0 %v8830, 112
    %v8894 = vpop.permute.xlu0 %8893
    %8896 = vrot.lane.b32.xlu0 %v8836, 120
    %v8897 = vpop.permute.xlu0 %8896
    %8900 = vrot.lane.b32.xlu0 %v8848, 8
    %v8901 = vpop.permute.xlu0 %8900
    %v8903 = vsel %vm8392, %v8891, %v8894
    %v8904 = vsel %vm8396, %v8903, %v8897
    %v8905 = vsel %vm8400, %v8904, %v8842
    %v8906 = vsel %vm8404, %v8905, %v8901
    %8907 = vrot.lane.b32.xlu0 %v8822, 96
    %v8908 = vpop.permute.xlu0 %8907
    %8910 = vrot.lane.b32.xlu0 %v8830, 104
    %v8911 = vpop.permute.xlu0 %8910
    %8913 = vrot.lane.b32.xlu0 %v8836, 112
    %v8914 = vpop.permute.xlu0 %8913
    %8916 = vrot.lane.b32.xlu0 %v8842, 120
    %v8917 = vpop.permute.xlu0 %8916
    %v8920 = vsel %vm8392, %v8908, %v8911
    %v8921 = vsel %vm8396, %v8920, %v8914
    %v8922 = vsel %vm8400, %v8921, %v8917
    %v8923 = vsel %vm8404, %v8922, %v8848
    %8924 = vrot.lane.b32.xlu0 %v8822, 88
    %v8925 = vpop.permute.xlu0 %8924
    %8927 = vrot.lane.b32.xlu0 %v8830, 96
    %v8928 = vpop.permute.xlu0 %8927
    %8930 = vrot.lane.b32.xlu0 %v8836, 104
    %v8931 = vpop.permute.xlu0 %8930
    %8933 = vrot.lane.b32.xlu0 %v8842, 112
    %v8934 = vpop.permute.xlu0 %8933
    %8936 = vrot.lane.b32.xlu0 %v8848, 120
    %v8937 = vpop.permute.xlu0 %8936
    %v8939 = vsel %vm8392, %v8925, %v8928
    %v8940 = vsel %vm8396, %v8939, %v8931
    %v8941 = vsel %vm8400, %v8940, %v8934
    %v8942 = vsel %vm8404, %v8941, %v8937
    %8943 = vrot.lane.b32.xlu0 %v8822, 80
    %v8944 = vpop.permute.xlu0 %8943
    %8946 = vrot.lane.b32.xlu0 %v8830, 88
    %v8947 = vpop.permute.xlu0 %8946
    %8949 = vrot.lane.b32.xlu0 %v8836, 96
    %v8950 = vpop.permute.xlu0 %8949
    %8952 = vrot.lane.b32.xlu0 %v8842, 104
    %v8953 = vpop.permute.xlu0 %8952
    %8955 = vrot.lane.b32.xlu0 %v8848, 112
    %v8956 = vpop.permute.xlu0 %8955
    %v8958 = vsel %vm8392, %v8944, %v8947
    %v8959 = vsel %vm8396, %v8958, %v8950
    %v8960 = vsel %vm8400, %v8959, %v8953
    %v8961 = vsel %vm8404, %v8960, %v8956
    %8962 = vrot.lane.b32.xlu0 %v8822, 72
    %v8963 = vpop.permute.xlu0 %8962
    %8965 = vrot.lane.b32.xlu0 %v8830, 80
    %v8966 = vpop.permute.xlu0 %8965
    %8968 = vrot.lane.b32.xlu0 %v8836, 88
    %v8969 = vpop.permute.xlu0 %8968
    %8971 = vrot.lane.b32.xlu0 %v8842, 96
    %v8972 = vpop.permute.xlu0 %8971
    %8974 = vrot.lane.b32.xlu0 %v8848, 104
    %v8975 = vpop.permute.xlu0 %8974
    %v8977 = vsel %vm8392, %v8963, %v8966
    %v8978 = vsel %vm8396, %v8977, %v8969
    %v8979 = vsel %vm8400, %v8978, %v8972
    %v8980 = vsel %vm8404, %v8979, %v8975
    %8981 = vrot.lane.b32.xlu0 %v8822, 64
    %v8982 = vpop.permute.xlu0 %8981
    %8984 = vrot.lane.b32.xlu0 %v8830, 72
    %v8985 = vpop.permute.xlu0 %8984
    %8987 = vrot.lane.b32.xlu0 %v8836, 80
    %v8988 = vpop.permute.xlu0 %8987
    %8990 = vrot.lane.b32.xlu0 %v8842, 88
    %v8991 = vpop.permute.xlu0 %8990
    %8993 = vrot.lane.b32.xlu0 %v8848, 96
    %v8994 = vpop.permute.xlu0 %8993
    %v8996 = vsel %vm8392, %v8982, %v8985
    %v8997 = vsel %vm8396, %v8996, %v8988
    %v8998 = vsel %vm8400, %v8997, %v8991
    %v8999 = vsel %vm8404, %v8998, %v8994
    %9000 = vrot.lane.b32.xlu0 %v8822, 56
    %v9001 = vpop.permute.xlu0 %9000
    %9003 = vrot.lane.b32.xlu0 %v8830, 64
    %v9004 = vpop.permute.xlu0 %9003
    %9006 = vrot.lane.b32.xlu0 %v8836, 72
    %v9007 = vpop.permute.xlu0 %9006
    %9009 = vrot.lane.b32.xlu0 %v8842, 80
    %v9010 = vpop.permute.xlu0 %9009
    %9012 = vrot.lane.b32.xlu0 %v8848, 88
    %v9013 = vpop.permute.xlu0 %9012
    %v9015 = vsel %vm8392, %v9001, %v9004
    %v9016 = vsel %vm8396, %v9015, %v9007
    %v9017 = vsel %vm8400, %v9016, %v9010
    %v9018 = vsel %vm8404, %v9017, %v9013
    %9019 = vrot.lane.b32.xlu0 %v8822, 48
    %v9020 = vpop.permute.xlu0 %9019
    %9022 = vrot.lane.b32.xlu0 %v8830, 56
    %v9023 = vpop.permute.xlu0 %9022
    %9025 = vrot.lane.b32.xlu0 %v8836, 64
    %v9026 = vpop.permute.xlu0 %9025
    %9028 = vrot.lane.b32.xlu0 %v8842, 72
    %v9029 = vpop.permute.xlu0 %9028
    %9031 = vrot.lane.b32.xlu0 %v8848, 80
    %v9032 = vpop.permute.xlu0 %9031
    %v9034 = vsel %vm8392, %v9020, %v9023
    %v9035 = vsel %vm8396, %v9034, %v9026
    %v9036 = vsel %vm8400, %v9035, %v9029
    %v9037 = vsel %vm8404, %v9036, %v9032
    %9038 = vrot.lane.b32.xlu0 %v8822, 40
    %v9039 = vpop.permute.xlu0 %9038
    %9041 = vrot.lane.b32.xlu0 %v8830, 48
    %v9042 = vpop.permute.xlu0 %9041
    %9044 = vrot.lane.b32.xlu0 %v8836, 56
    %v9045 = vpop.permute.xlu0 %9044
    %9047 = vrot.lane.b32.xlu0 %v8842, 64
    %v9048 = vpop.permute.xlu0 %9047
    %9050 = vrot.lane.b32.xlu0 %v8848, 72
    %v9051 = vpop.permute.xlu0 %9050
    %v9053 = vsel %vm8392, %v9039, %v9042
    %v9054 = vsel %vm8396, %v9053, %v9045
    %v9055 = vsel %vm8400, %v9054, %v9048
    %v9056 = vsel %vm8404, %v9055, %v9051
    %9057 = vrot.lane.b32.xlu0 %v8822, 32
    %v9058 = vpop.permute.xlu0 %9057
    %9060 = vrot.lane.b32.xlu0 %v8830, 40
    %v9061 = vpop.permute.xlu0 %9060
    %9063 = vrot.lane.b32.xlu0 %v8836, 48
    %v9064 = vpop.permute.xlu0 %9063
    %9066 = vrot.lane.b32.xlu0 %v8842, 56
    %v9067 = vpop.permute.xlu0 %9066
    %9069 = vrot.lane.b32.xlu0 %v8848, 64
    %v9070 = vpop.permute.xlu0 %9069
    %v9072 = vsel %vm8392, %v9058, %v9061
    %v9073 = vsel %vm8396, %v9072, %v9064
    %v9074 = vsel %vm8400, %v9073, %v9067
    %v9075 = vsel %vm8404, %v9074, %v9070
    %9076 = vrot.lane.b32.xlu0 %v8822, 24
    %v9077 = vpop.permute.xlu0 %9076
    %9079 = vrot.lane.b32.xlu0 %v8830, 32
    %v9080 = vpop.permute.xlu0 %9079
    %9082 = vrot.lane.b32.xlu0 %v8836, 40
    %v9083 = vpop.permute.xlu0 %9082
    %9085 = vrot.lane.b32.xlu0 %v8842, 48
    %v9086 = vpop.permute.xlu0 %9085
    %9088 = vrot.lane.b32.xlu0 %v8848, 56
    %v9089 = vpop.permute.xlu0 %9088
    %v9091 = vsel %vm8392, %v9077, %v9080
    %v9092 = vsel %vm8396, %v9091, %v9083
    %v9093 = vsel %vm8400, %v9092, %v9086
    %v9094 = vsel %vm8404, %v9093, %v9089
    %9095 = vrot.lane.b32.xlu0 %v8822, 16
    %v9096 = vpop.permute.xlu0 %9095
    %9098 = vrot.lane.b32.xlu0 %v8830, 24
    %v9099 = vpop.permute.xlu0 %9098
    %9101 = vrot.lane.b32.xlu0 %v8836, 32
    %v9102 = vpop.permute.xlu0 %9101
    %9104 = vrot.lane.b32.xlu0 %v8842, 40
    %v9105 = vpop.permute.xlu0 %9104
    %9107 = vrot.lane.b32.xlu0 %v8848, 48
    %v9108 = vpop.permute.xlu0 %9107
    %v9110 = vsel %vm8392, %v9096, %v9099
    %v9111 = vsel %vm8396, %v9110, %v9102
    %v9112 = vsel %vm8400, %v9111, %v9105
    %v9113 = vsel %vm8404, %v9112, %v9108
    %9114 = vrot.lane.b32.xlu0 %v8822, 8
    %v9115 = vpop.permute.xlu0 %9114
    %9117 = vrot.lane.b32.xlu0 %v8830, 16
    %v9118 = vpop.permute.xlu0 %9117
    %9120 = vrot.lane.b32.xlu0 %v8836, 24
    %v9121 = vpop.permute.xlu0 %9120
    %9123 = vrot.lane.b32.xlu0 %v8842, 32
    %v9124 = vpop.permute.xlu0 %9123
    %9126 = vrot.lane.b32.xlu0 %v8848, 40
    %v9127 = vpop.permute.xlu0 %9126
    %v9129 = vsel %vm8392, %v9115, %v9118
    %v9130 = vsel %vm8396, %v9129, %v9121
    %v9131 = vsel %vm8400, %v9130, %v9124
    %v9132 = vsel %vm8404, %v9131, %v9127
    %v9135 = vrot.slane %v8823, 1
    %v9136 = vrot.slane %v8825, 1
    %v9137 = vsel %vm488, %v9135, %v9136
    %9138 = vrot.lane.b32.xlu0 %v9137, 8
    %v9139 = vpop.permute.xlu0 %9138
    %v9141 = vrot.slane %v8823, 2
    %v9142 = vrot.slane %v8825, 2
    %v9143 = vsel %vm1385, %v9141, %v9142
    %9144 = vrot.lane.b32.xlu0 %v9143, 16
    %v9145 = vpop.permute.xlu0 %9144
    %v9147 = vrot.slane %v8823, 3
    %v9148 = vrot.slane %v8825, 3
    %v9149 = vsel %vm2282, %v9147, %v9148
    %9150 = vrot.lane.b32.xlu0 %v9149, 24
    %v9151 = vpop.permute.xlu0 %9150
    %v9153 = vrot.slane %v8823, 4
    %v9154 = vrot.slane %v8825, 4
    %v9155 = vsel %vm3179, %v9153, %v9154
    %9156 = vrot.lane.b32.xlu0 %v9155, 32
    %v9157 = vpop.permute.xlu0 %9156
    %v9159 = vsel %vm8392, %v8823, %v9139
    %v9160 = vsel %vm8396, %v9159, %v9145
    %v9161 = vsel %vm8400, %v9160, %v9151
    %v9162 = vsel %vm8404, %v9161, %v9157
    %9163 = vrot.lane.b32.xlu0 %v8823, 120
    %v9164 = vpop.permute.xlu0 %9163
    %9167 = vrot.lane.b32.xlu0 %v9143, 8
    %v9168 = vpop.permute.xlu0 %9167
    %9170 = vrot.lane.b32.xlu0 %v9149, 16
    %v9171 = vpop.permute.xlu0 %9170
    %9173 = vrot.lane.b32.xlu0 %v9155, 24
    %v9174 = vpop.permute.xlu0 %9173
    %v9176 = vsel %vm8392, %v9164, %v9137
    %v9177 = vsel %vm8396, %v9176, %v9168
    %v9178 = vsel %vm8400, %v9177, %v9171
    %v9179 = vsel %vm8404, %v9178, %v9174
    %9180 = vrot.lane.b32.xlu0 %v8823, 112
    %v9181 = vpop.permute.xlu0 %9180
    %9183 = vrot.lane.b32.xlu0 %v9137, 120
    %v9184 = vpop.permute.xlu0 %9183
    %9187 = vrot.lane.b32.xlu0 %v9149, 8
    %v9188 = vpop.permute.xlu0 %9187
    %9190 = vrot.lane.b32.xlu0 %v9155, 16
    %v9191 = vpop.permute.xlu0 %9190
    %v9193 = vsel %vm8392, %v9181, %v9184
    %v9194 = vsel %vm8396, %v9193, %v9143
    %v9195 = vsel %vm8400, %v9194, %v9188
    %v9196 = vsel %vm8404, %v9195, %v9191
    %9197 = vrot.lane.b32.xlu0 %v8823, 104
    %v9198 = vpop.permute.xlu0 %9197
    %9200 = vrot.lane.b32.xlu0 %v9137, 112
    %v9201 = vpop.permute.xlu0 %9200
    %9203 = vrot.lane.b32.xlu0 %v9143, 120
    %v9204 = vpop.permute.xlu0 %9203
    %9207 = vrot.lane.b32.xlu0 %v9155, 8
    %v9208 = vpop.permute.xlu0 %9207
    %v9210 = vsel %vm8392, %v9198, %v9201
    %v9211 = vsel %vm8396, %v9210, %v9204
    %v9212 = vsel %vm8400, %v9211, %v9149
    %v9213 = vsel %vm8404, %v9212, %v9208
    %9214 = vrot.lane.b32.xlu0 %v8823, 96
    %v9215 = vpop.permute.xlu0 %9214
    %9217 = vrot.lane.b32.xlu0 %v9137, 104
    %v9218 = vpop.permute.xlu0 %9217
    %9220 = vrot.lane.b32.xlu0 %v9143, 112
    %v9221 = vpop.permute.xlu0 %9220
    %9223 = vrot.lane.b32.xlu0 %v9149, 120
    %v9224 = vpop.permute.xlu0 %9223
    %v9227 = vsel %vm8392, %v9215, %v9218
    %v9228 = vsel %vm8396, %v9227, %v9221
    %v9229 = vsel %vm8400, %v9228, %v9224
    %v9230 = vsel %vm8404, %v9229, %v9155
    %9231 = vrot.lane.b32.xlu0 %v8823, 88
    %v9232 = vpop.permute.xlu0 %9231
    %9234 = vrot.lane.b32.xlu0 %v9137, 96
    %v9235 = vpop.permute.xlu0 %9234
    %9237 = vrot.lane.b32.xlu0 %v9143, 104
    %v9238 = vpop.permute.xlu0 %9237
    %9240 = vrot.lane.b32.xlu0 %v9149, 112
    %v9241 = vpop.permute.xlu0 %9240
    %9243 = vrot.lane.b32.xlu0 %v9155, 120
    %v9244 = vpop.permute.xlu0 %9243
    %v9246 = vsel %vm8392, %v9232, %v9235
    %v9247 = vsel %vm8396, %v9246, %v9238
    %v9248 = vsel %vm8400, %v9247, %v9241
    %v9249 = vsel %vm8404, %v9248, %v9244
    %9250 = vrot.lane.b32.xlu0 %v8823, 80
    %v9251 = vpop.permute.xlu0 %9250
    %9253 = vrot.lane.b32.xlu0 %v9137, 88
    %v9254 = vpop.permute.xlu0 %9253
    %9256 = vrot.lane.b32.xlu0 %v9143, 96
    %v9257 = vpop.permute.xlu0 %9256
    %9259 = vrot.lane.b32.xlu0 %v9149, 104
    %v9260 = vpop.permute.xlu0 %9259
    %9262 = vrot.lane.b32.xlu0 %v9155, 112
    %v9263 = vpop.permute.xlu0 %9262
    %v9265 = vsel %vm8392, %v9251, %v9254
    %v9266 = vsel %vm8396, %v9265, %v9257
    %v9267 = vsel %vm8400, %v9266, %v9260
    %v9268 = vsel %vm8404, %v9267, %v9263
    %9269 = vrot.lane.b32.xlu0 %v8823, 72
    %v9270 = vpop.permute.xlu0 %9269
    %9272 = vrot.lane.b32.xlu0 %v9137, 80
    %v9273 = vpop.permute.xlu0 %9272
    %9275 = vrot.lane.b32.xlu0 %v9143, 88
    %v9276 = vpop.permute.xlu0 %9275
    %9278 = vrot.lane.b32.xlu0 %v9149, 96
    %v9279 = vpop.permute.xlu0 %9278
    %9281 = vrot.lane.b32.xlu0 %v9155, 104
    %v9282 = vpop.permute.xlu0 %9281
    %v9284 = vsel %vm8392, %v9270, %v9273
    %v9285 = vsel %vm8396, %v9284, %v9276
    %v9286 = vsel %vm8400, %v9285, %v9279
    %v9287 = vsel %vm8404, %v9286, %v9282
    %9289 = vrot.lane.b32.xlu0 %v8872, 40
    %v9290 = vpop.permute.xlu0 %9289
    %9293 = vrot.lane.b32.xlu0 %v8889, 80
    %v9294 = vpop.permute.xlu0 %9293
    %9297 = vrot.lane.b32.xlu0 %v8906, 120
    %v9298 = vpop.permute.xlu0 %9297
    %9301 = vrot.lane.b32.xlu0 %v8923, 32
    %v9302 = vpop.permute.xlu0 %9301
    %v9304 = vsel %vm8408, %v8855, %v9290
    %v9305 = vsel %vm8428, %v9304, %v9294
    %v9306 = vsel %vm8448, %v9305, %v9298
    %v9307 = vsel %vm8404, %v9298, %v9302
    %9308 = vrot.lane.b32.xlu0 %v8889, 40
    %v9309 = vpop.permute.xlu0 %9308
    %9311 = vrot.lane.b32.xlu0 %v8906, 80
    %v9312 = vpop.permute.xlu0 %9311
    %9314 = vrot.lane.b32.xlu0 %v8923, 120
    %v9315 = vpop.permute.xlu0 %9314
    %9318 = vrot.lane.b32.xlu0 %v8942, 32
    %v9319 = vpop.permute.xlu0 %9318
    %v9321 = vsel %vm8408, %v8872, %v9309
    %v9322 = vsel %vm8428, %v9321, %v9312
    %v9323 = vsel %vm8448, %v9322, %v9315
    %v9324 = vsel %vm8404, %v9315, %v9319
    %9325 = vrot.lane.b32.xlu0 %v8906, 40
    %v9326 = vpop.permute.xlu0 %9325
    %9328 = vrot.lane.b32.xlu0 %v8923, 80
    %v9329 = vpop.permute.xlu0 %9328
    %9331 = vrot.lane.b32.xlu0 %v8942, 120
    %v9332 = vpop.permute.xlu0 %9331
    %9335 = vrot.lane.b32.xlu0 %v8961, 32
    %v9336 = vpop.permute.xlu0 %9335
    %v9338 = vsel %vm8408, %v8889, %v9326
    %v9339 = vsel %vm8428, %v9338, %v9329
    %v9340 = vsel %vm8448, %v9339, %v9332
    %v9341 = vsel %vm8404, %v9332, %v9336
    %9342 = vrot.lane.b32.xlu0 %v8923, 40
    %v9343 = vpop.permute.xlu0 %9342
    %9345 = vrot.lane.b32.xlu0 %v8942, 80
    %v9346 = vpop.permute.xlu0 %9345
    %9348 = vrot.lane.b32.xlu0 %v8961, 120
    %v9349 = vpop.permute.xlu0 %9348
    %9352 = vrot.lane.b32.xlu0 %v8980, 32
    %v9353 = vpop.permute.xlu0 %9352
    %v9355 = vsel %vm8408, %v8906, %v9343
    %v9356 = vsel %vm8428, %v9355, %v9346
    %v9357 = vsel %vm8448, %v9356, %v9349
    %v9358 = vsel %vm8404, %v9349, %v9353
    %9359 = vrot.lane.b32.xlu0 %v8942, 40
    %v9360 = vpop.permute.xlu0 %9359
    %9362 = vrot.lane.b32.xlu0 %v8961, 80
    %v9363 = vpop.permute.xlu0 %9362
    %9365 = vrot.lane.b32.xlu0 %v8980, 120
    %v9366 = vpop.permute.xlu0 %9365
    %9369 = vrot.lane.b32.xlu0 %v8999, 32
    %v9370 = vpop.permute.xlu0 %9369
    %v9372 = vsel %vm8408, %v8923, %v9360
    %v9373 = vsel %vm8428, %v9372, %v9363
    %v9374 = vsel %vm8448, %v9373, %v9366
    %v9375 = vsel %vm8404, %v9366, %v9370
    %9376 = vrot.lane.b32.xlu0 %v8961, 40
    %v9377 = vpop.permute.xlu0 %9376
    %9379 = vrot.lane.b32.xlu0 %v8980, 80
    %v9380 = vpop.permute.xlu0 %9379
    %9382 = vrot.lane.b32.xlu0 %v8999, 120
    %v9383 = vpop.permute.xlu0 %9382
    %9386 = vrot.lane.b32.xlu0 %v9018, 32
    %v9387 = vpop.permute.xlu0 %9386
    %v9389 = vsel %vm8408, %v8942, %v9377
    %v9390 = vsel %vm8428, %v9389, %v9380
    %v9391 = vsel %vm8448, %v9390, %v9383
    %v9392 = vsel %vm8404, %v9383, %v9387
    %9393 = vrot.lane.b32.xlu0 %v8980, 40
    %v9394 = vpop.permute.xlu0 %9393
    %9396 = vrot.lane.b32.xlu0 %v8999, 80
    %v9397 = vpop.permute.xlu0 %9396
    %9399 = vrot.lane.b32.xlu0 %v9018, 120
    %v9400 = vpop.permute.xlu0 %9399
    %9403 = vrot.lane.b32.xlu0 %v9037, 32
    %v9404 = vpop.permute.xlu0 %9403
    %v9406 = vsel %vm8408, %v8961, %v9394
    %v9407 = vsel %vm8428, %v9406, %v9397
    %v9408 = vsel %vm8448, %v9407, %v9400
    %v9409 = vsel %vm8404, %v9400, %v9404
    %9410 = vrot.lane.b32.xlu0 %v8999, 40
    %v9411 = vpop.permute.xlu0 %9410
    %9413 = vrot.lane.b32.xlu0 %v9018, 80
    %v9414 = vpop.permute.xlu0 %9413
    %9416 = vrot.lane.b32.xlu0 %v9037, 120
    %v9417 = vpop.permute.xlu0 %9416
    %9420 = vrot.lane.b32.xlu0 %v9056, 32
    %v9421 = vpop.permute.xlu0 %9420
    %v9423 = vsel %vm8408, %v8980, %v9411
    %v9424 = vsel %vm8428, %v9423, %v9414
    %v9425 = vsel %vm8448, %v9424, %v9417
    %v9426 = vsel %vm8404, %v9417, %v9421
    %9428 = vrot.lane.b32.xlu0 %v9094, 40
    %v9429 = vpop.permute.xlu0 %9428
    %9432 = vrot.lane.b32.xlu0 %v9113, 80
    %v9433 = vpop.permute.xlu0 %9432
    %9436 = vrot.lane.b32.xlu0 %v9132, 120
    %v9437 = vpop.permute.xlu0 %9436
    %9440 = vrot.lane.b32.xlu0 %v9162, 32
    %v9441 = vpop.permute.xlu0 %9440
    %v9443 = vsel %vm8408, %v9075, %v9429
    %v9444 = vsel %vm8428, %v9443, %v9433
    %v9445 = vsel %vm8448, %v9444, %v9437
    %v9446 = vsel %vm8404, %v9437, %v9441
    %9447 = vrot.lane.b32.xlu0 %v9113, 40
    %v9448 = vpop.permute.xlu0 %9447
    %9450 = vrot.lane.b32.xlu0 %v9132, 80
    %v9451 = vpop.permute.xlu0 %9450
    %9453 = vrot.lane.b32.xlu0 %v9162, 120
    %v9454 = vpop.permute.xlu0 %9453
    %9457 = vrot.lane.b32.xlu0 %v9179, 32
    %v9458 = vpop.permute.xlu0 %9457
    %v9460 = vsel %vm8408, %v9094, %v9448
    %v9461 = vsel %vm8428, %v9460, %v9451
    %v9462 = vsel %vm8448, %v9461, %v9454
    %v9463 = vsel %vm8404, %v9454, %v9458
    %9464 = vrot.lane.b32.xlu0 %v9132, 40
    %v9465 = vpop.permute.xlu0 %9464
    %9467 = vrot.lane.b32.xlu0 %v9162, 80
    %v9468 = vpop.permute.xlu0 %9467
    %9470 = vrot.lane.b32.xlu0 %v9179, 120
    %v9471 = vpop.permute.xlu0 %9470
    %9474 = vrot.lane.b32.xlu0 %v9196, 32
    %v9475 = vpop.permute.xlu0 %9474
    %v9477 = vsel %vm8408, %v9113, %v9465
    %v9478 = vsel %vm8428, %v9477, %v9468
    %v9479 = vsel %vm8448, %v9478, %v9471
    %v9480 = vsel %vm8404, %v9471, %v9475
    %9481 = vrot.lane.b32.xlu0 %v9162, 40
    %v9482 = vpop.permute.xlu0 %9481
    %9484 = vrot.lane.b32.xlu0 %v9179, 80
    %v9485 = vpop.permute.xlu0 %9484
    %9487 = vrot.lane.b32.xlu0 %v9196, 120
    %v9488 = vpop.permute.xlu0 %9487
    %9491 = vrot.lane.b32.xlu0 %v9213, 32
    %v9492 = vpop.permute.xlu0 %9491
    %v9494 = vsel %vm8408, %v9132, %v9482
    %v9495 = vsel %vm8428, %v9494, %v9485
    %v9496 = vsel %vm8448, %v9495, %v9488
    %v9497 = vsel %vm8404, %v9488, %v9492
    %9498 = vrot.lane.b32.xlu0 %v9179, 40
    %v9499 = vpop.permute.xlu0 %9498
    %9501 = vrot.lane.b32.xlu0 %v9196, 80
    %v9502 = vpop.permute.xlu0 %9501
    %9504 = vrot.lane.b32.xlu0 %v9213, 120
    %v9505 = vpop.permute.xlu0 %9504
    %9508 = vrot.lane.b32.xlu0 %v9230, 32
    %v9509 = vpop.permute.xlu0 %9508
    %v9511 = vsel %vm8408, %v9162, %v9499
    %v9512 = vsel %vm8428, %v9511, %v9502
    %v9513 = vsel %vm8448, %v9512, %v9505
    %v9514 = vsel %vm8404, %v9505, %v9509
    %9515 = vrot.lane.b32.xlu0 %v9196, 40
    %v9516 = vpop.permute.xlu0 %9515
    %9518 = vrot.lane.b32.xlu0 %v9213, 80
    %v9519 = vpop.permute.xlu0 %9518
    %9521 = vrot.lane.b32.xlu0 %v9230, 120
    %v9522 = vpop.permute.xlu0 %9521
    %9525 = vrot.lane.b32.xlu0 %v9249, 32
    %v9526 = vpop.permute.xlu0 %9525
    %v9528 = vsel %vm8408, %v9179, %v9516
    %v9529 = vsel %vm8428, %v9528, %v9519
    %v9530 = vsel %vm8448, %v9529, %v9522
    %v9531 = vsel %vm8404, %v9522, %v9526
    %9532 = vrot.lane.b32.xlu0 %v9213, 40
    %v9533 = vpop.permute.xlu0 %9532
    %9535 = vrot.lane.b32.xlu0 %v9230, 80
    %v9536 = vpop.permute.xlu0 %9535
    %9538 = vrot.lane.b32.xlu0 %v9249, 120
    %v9539 = vpop.permute.xlu0 %9538
    %9542 = vrot.lane.b32.xlu0 %v9268, 32
    %v9543 = vpop.permute.xlu0 %9542
    %v9545 = vsel %vm8408, %v9196, %v9533
    %v9546 = vsel %vm8428, %v9545, %v9536
    %v9547 = vsel %vm8448, %v9546, %v9539
    %v9548 = vsel %vm8404, %v9539, %v9543
    %9549 = vrot.lane.b32.xlu0 %v9230, 40
    %v9550 = vpop.permute.xlu0 %9549
    %9552 = vrot.lane.b32.xlu0 %v9249, 80
    %v9553 = vpop.permute.xlu0 %9552
    %9555 = vrot.lane.b32.xlu0 %v9268, 120
    %v9556 = vpop.permute.xlu0 %9555
    %9559 = vrot.lane.b32.xlu0 %v9287, 32
    %v9560 = vpop.permute.xlu0 %9559
    %v9562 = vsel %vm8408, %v9213, %v9550
    %v9563 = vsel %vm8428, %v9562, %v9553
    %v9564 = vsel %vm8448, %v9563, %v9556
    %v9565 = vsel %vm8404, %v9556, %v9560
    %v9566 = vpack.c.bf16 %v9323, %v9306
    %v9567 = vpack.c.bf16 %v9324, %v9307
    %v9568 = vpack.c.bf16 %v9357, %v9340
    %v9569 = vpack.c.bf16 %v9358, %v9341
    %v9570 = vpack.c.bf16 %v9391, %v9374
    %v9571 = vpack.c.bf16 %v9392, %v9375
    %v9572 = vpack.c.bf16 %v9425, %v9408
    %v9573 = vpack.c.bf16 %v9426, %v9409
    %v9574 = vpack.c.bf16 %v9462, %v9445
    %v9575 = vpack.c.bf16 %v9463, %v9446
    %v9576 = vpack.c.bf16 %v9496, %v9479
    %v9577 = vpack.c.bf16 %v9497, %v9480
    %v9578 = vpack.c.bf16 %v9530, %v9513
    %v9579 = vpack.c.bf16 %v9531, %v9514
    %v9580 = vpack.c.bf16 %v9564, %v9547
    %v9581 = vpack.c.bf16 %v9565, %v9548
    %v9582 = vld [vmem:[%s3] sm:$0xf]
    %v9583 = vld [vmem:[%s3 + $0x4] sm:$0xf]
    %v9584 = vld [vmem:[%s3 + $0x8] sm:$0xf]
    %v9585 = vld [vmem:[%s3 + $0xc] sm:$0xf]
    %v9586 = vld [vmem:[%s3 + $0x10] sm:$0xf]
    %v9587 = vld [vmem:[%s3 + $0x14] sm:$0xf]
    %v9588 = vld [vmem:[%s3 + $0x18] sm:$0xf]
    %v9589 = vld [vmem:[%s3 + $0x1c] sm:$0xf]
    %v9590 = vld [vmem:[%s3 + $0x20] sm:$0xf]
    %v9591 = vld [vmem:[%s3 + $0x24] sm:$0xf]
    %v9592 = vld [vmem:[%s3 + $0x28] sm:$0xf]
    %v9593 = vld [vmem:[%s3 + $0x2c] sm:$0xf]
    %v9594 = vld [vmem:[%s3 + $0x30] sm:$0xf]
    %v9595 = vld [vmem:[%s3 + $0x34] sm:$0xf]
    %v9596 = vld [vmem:[%s3 + $0x38] sm:$0xf]
    %v9597 = vld [vmem:[%s3 + $0x3c] sm:$0xf]
    %v9598 = vld [vmem:[%s3 + $0x40] sm:$0xf]
    %v9599 = vld [vmem:[%s3 + $0x44] sm:$0xf]
    %v9600 = vld [vmem:[%s3 + $0x48] sm:$0xf]
    %v9601 = vld [vmem:[%s3 + $0x4c] sm:$0xf]
    %v9602 = vld [vmem:[%s3 + $0x50] sm:$0xf]
    %v9603 = vld [vmem:[%s3 + $0x54] sm:$0xf]
    %v9604 = vld [vmem:[%s3 + $0x58] sm:$0xf]
    %v9605 = vld [vmem:[%s3 + $0x5c] sm:$0xf]
    %v9606 = vld [vmem:[%s3 + $0x60] sm:$0xf]
    %v9632 = vunpack.c.l.b16 %v9582
    %v9633 = vunpack.c.l.b16 %v9583
    %v9634 = vunpack.c.l.b16 %v9584
    %v9635 = vunpack.c.l.b16 %v9585
    %v9636 = vunpack.c.l.b16 %v9586
    %v9637 = vunpack.c.l.b16 %v9587
    %v9638 = vunpack.c.l.b16 %v9588
    %v9639 = vunpack.c.l.b16 %v9589
    %v9640 = vunpack.c.l.b16 %v9590
    %v9641 = vunpack.c.l.b16 %v9591
    %v9642 = vunpack.c.l.b16 %v9592
    %v9643 = vunpack.c.l.b16 %v9593
    %v9644 = vunpack.c.l.b16 %v9594
    %v9645 = vunpack.c.l.b16 %v9595
    %v9646 = vunpack.c.l.b16 %v9596
    %v9647 = vunpack.c.l.b16 %v9597
    %v9648 = vunpack.c.l.b16 %v9598
    %v9649 = vunpack.c.l.b16 %v9599
    %v9650 = vunpack.c.l.b16 %v9600
    %v9651 = vunpack.c.l.b16 %v9601
    %v9652 = vunpack.c.l.b16 %v9602
    %v9653 = vunpack.c.l.b16 %v9603
    %v9654 = vunpack.c.l.b16 %v9604
    %v9655 = vunpack.c.l.b16 %v9605
    %v9656 = vunpack.c.l.b16 %v9606
    %v9657 = vpack.c.b16 %v9633, %v9632
    %v9658 = vpack.c.b16 %v9635, %v9634
    %v9659 = vpack.c.b16 %v9637, %v9636
    %v9660 = vpack.c.b16 %v9639, %v9638
    %v9661 = vpack.c.b16 %v9641, %v9640
    %v9662 = vpack.c.b16 %v9643, %v9642
    %v9663 = vpack.c.b16 %v9645, %v9644
    %v9664 = vpack.c.b16 %v9647, %v9646
    %v9665 = vpack.c.b16 %v9649, %v9648
    %v9666 = vpack.c.b16 %v9651, %v9650
    %v9667 = vpack.c.b16 %v9653, %v9652
    %v9668 = vpack.c.b16 %v9655, %v9654
    %v9669 = vpack.c.b16 %v9656, %v9656
    %v9683 = vsel %vm8424, %v9567, 0
    %v9686 = vsel %vm8424, %v9569, 0
    %v9689 = vsel %vm8424, %v9571, 0
    %v9692 = vsel %vm8424, %v9573, 0
    %v9695 = vsel %vm8424, %v9575, 0
    %v9698 = vsel %vm8424, %v9577, 0
    %v9701 = vsel %vm8424, %v9579, 0
    %v9704 = vsel %vm8424, %v9581, 0
    %v9707 = vsel %vm3179, %v9669, 0
    %9709 = vmatprep.subr.bf16.mxu0 0
    %9710 = vmatpush1.bf16.msra.mxu0 %v9657
    %9711 = vmatprep.subr.bf16.mxu0 0
    %9712 = vmatpush1.bf16.msra.mxu0 %v9658
    %9713 = vmatprep.subr.bf16.mxu0 0
    %9714 = vmatpush1.bf16.msra.mxu0 %v9659
    %9715 = vmatprep.subr.bf16.mxu0 0
    %9716 = vmatpush1.bf16.msra.mxu0 %v9660
    %9717 = vmatprep.subr.bf16.mxu0 0
    %9718 = vmatpush1.bf16.msra.mxu0 %v9661
    %9719 = vmatprep.subr.bf16.mxu0 0
    %9720 = vmatpush1.bf16.msra.mxu0 %v9662
    %9721 = vmatprep.subr.bf16.mxu0 0
    %9722 = vmatpush1.bf16.msra.mxu0 %v9663
    %9723 = vmatprep.subr.bf16.mxu0 0
    %9724 = vmatpush1.bf16.msra.mxu0 %v9664
    %9725 = vmatprep.subr.bf16.mxu0 0
    %9726 = vmatpush1.bf16.msra.mxu0 %v9665
    %9727 = vmatprep.subr.bf16.mxu0 0
    %9728 = vmatpush1.bf16.msra.mxu0 %v9666
    %9729 = vmatprep.subr.bf16.mxu0 0
    %9730 = vmatpush1.bf16.msra.mxu0 %v9667
    %9731 = vmatprep.subr.bf16.mxu0 0
    %9732 = vmatpush1.bf16.msra.mxu0 %v9668
    %9733 = vmatprep.subr.bf16.mxu0 0
    %9734 = vmatpush1.bf16.msra.mxu0 %v9707
    %9735 = vmatprep.subr.bf16.mxu0 0
    %9736 = vmatpush1.bf16.msra.mxu0 0
    %9737 = vmatprep.subr.bf16.mxu0 0
    %9738 = vmatpush1.bf16.msra.mxu0 0
    %9739 = vmatprep.subr.bf16.mxu0 0
    %9740 = vmatpush1.bf16.msra.mxu0 0
    %9741 = vmatprep.mubr.bf16.mxu0 %v9683
    %9742 = vmatmul.mubr.bf16.gmra.mrb[0].mxu0 %v9566
    %v9743 = vpop.f32.mrb[0].mxu0
    %v9744 = vadd.f32 0.0, %v9743
    %v9745 = vpop.f32.mrb[0].mxu0
    %v9746 = vpop.f32.mrb[0].mxu0
    %v9747 = vadd.f32 0.0, %v9746
    %v9748 = vpop.f32.mrb[0].mxu0
    %9749 = vmatprep.mubr.bf16.mxu0 %v9686
    %9750 = vmatmul.mubr.bf16.gmra.mrb[0].mxu0 %v9568
    %v9751 = vpop.f32.mrb[0].mxu0
    %v9752 = vadd.f32 0.0, %v9751
    %v9753 = vpop.f32.mrb[0].mxu0
    %v9754 = vpop.f32.mrb[0].mxu0
    %v9755 = vadd.f32 0.0, %v9754
    %v9756 = vpop.f32.mrb[0].mxu0
    %9757 = vmatprep.mubr.bf16.mxu0 %v9689
    %9758 = vmatmul.mubr.bf16.gmra.mrb[0].mxu0 %v9570
    %v9759 = vpop.f32.mrb[0].mxu0
    %v9760 = vadd.f32 0.0, %v9759
    %v9761 = vpop.f32.mrb[0].mxu0
    %v9762 = vpop.f32.mrb[0].mxu0
    %v9763 = vadd.f32 0.0, %v9762
    %v9764 = vpop.f32.mrb[0].mxu0
    %9765 = vmatprep.mubr.bf16.mxu0 %v9692
    %9766 = vmatmul.mubr.bf16.gmra.mrb[0].mxu0 %v9572
    %v9767 = vpop.f32.mrb[0].mxu0
    %v9768 = vadd.f32 0.0, %v9767
    %v9769 = vpop.f32.mrb[0].mxu0
    %v9770 = vpop.f32.mrb[0].mxu0
    %v9771 = vadd.f32 0.0, %v9770
    %v9772 = vpop.f32.mrb[0].mxu0
    %9773 = vmatprep.mubr.bf16.mxu0 %v9695
    %9774 = vmatmul.mubr.bf16.gmra.mrb[0].mxu0 %v9574
    %v9775 = vpop.f32.mrb[0].mxu0
    %v9776 = vadd.f32 0.0, %v9775
    %v9777 = vpop.f32.mrb[0].mxu0
    %v9778 = vpop.f32.mrb[0].mxu0
    %v9779 = vadd.f32 0.0, %v9778
    %v9780 = vpop.f32.mrb[0].mxu0
    %9781 = vmatprep.mubr.bf16.mxu0 %v9698
    %9782 = vmatmul.mubr.bf16.gmra.mrb[0].mxu0 %v9576
    %v9783 = vpop.f32.mrb[0].mxu0
    %v9784 = vadd.f32 0.0, %v9783
    %v9785 = vpop.f32.mrb[0].mxu0
    %v9786 = vpop.f32.mrb[0].mxu0
    %v9787 = vadd.f32 0.0, %v9786
    %v9788 = vpop.f32.mrb[0].mxu0
    %9789 = vmatprep.mubr.bf16.mxu0 %v9701
    %9790 = vmatmul.mubr.bf16.gmra.mrb[0].mxu0 %v9578
    %v9791 = vpop.f32.mrb[0].mxu0
    %v9792 = vadd.f32 0.0, %v9791
    %v9793 = vpop.f32.mrb[0].mxu0
    %v9794 = vpop.f32.mrb[0].mxu0
    %v9795 = vadd.f32 0.0, %v9794
    %v9796 = vpop.f32.mrb[0].mxu0
    %9797 = vmatprep.mubr.bf16.mxu0 %v9704
    %9798 = vmatmul.mubr.bf16.gmra.mrb[0].mxu0 %v9580
    %v9799 = vpop.f32.mrb[0].mxu0
    %v9800 = vadd.f32 0.0, %v9799
    %v9801 = vpop.f32.mrb[0].mxu0
    %v9802 = vpop.f32.mrb[0].mxu0
    %v9803 = vadd.f32 0.0, %v9802
    %v9804 = vpop.f32.mrb[0].mxu0
    %9805 = vdwg.mxu0
    %v9806 = vmax.f32 %v9744, %v9747
    %v9807 = vmax.f32 %v9752, %v9755
    %v9808 = vmax.f32 %v9760, %v9763
    %v9809 = vmax.f32 %v9768, %v9771
    %v9810 = vmax.f32 %v9776, %v9779
    %v9811 = vmax.f32 %v9784, %v9787
    %v9812 = vmax.f32 %v9792, %v9795
    %v9813 = vmax.f32 %v9800, %v9803
    %9815 = vrot.lane.b32.xlu0 %v9807, 16
    %v9816 = vpop.permute.xlu0 %9815
    %9819 = vrot.lane.b32.xlu0 %v9808, 32
    %v9820 = vpop.permute.xlu0 %9819
    %9823 = vrot.lane.b32.xlu0 %v9809, 48
    %v9824 = vpop.permute.xlu0 %9823
    %9827 = vrot.lane.b32.xlu0 %v9810, 64
    %v9828 = vpop.permute.xlu0 %9827
    %9831 = vrot.lane.b32.xlu0 %v9811, 80
    %v9832 = vpop.permute.xlu0 %9831
    %9835 = vrot.lane.b32.xlu0 %v9812, 96
    %v9836 = vpop.permute.xlu0 %9835
    %9839 = vrot.lane.b32.xlu0 %v9813, 112
    %v9840 = vpop.permute.xlu0 %9839
    %v9842 = vsel %vm8396, %v9806, %v9816
    %v9843 = vsel %vm8404, %v9842, %v9820
    %v9844 = vsel %vm8412, %v9843, %v9824
    %v9845 = vsel %vm8420, %v9844, %v9828
    %v9846 = vsel %vm8428, %v9845, %v9832
    %v9847 = vsel %vm8436, %v9846, %v9836
    %v9848 = vsel %vm8444, %v9847, %v9840
    %v9849 = vsel %vm8392, %v8566, 0
    %9851 = vmatprep.subr.mxu0 0.0
    %9852 = vmatpush1.msra.mxu0 %v9848
    %9853 = vmatprep.subr.mxu0 0.0
    %9854 = vmatpush1.msra.mxu0 0.0
    %9855 = vmatprep.subr.mxu0 0.0
    %9856 = vmatpush1.msra.mxu0 0.0
    %9857 = vmatprep.subr.mxu0 0.0
    %9858 = vmatpush1.msra.mxu0 0.0
    %9859 = vmatprep.subr.mxu0 0.0
    %9860 = vmatpush1.msra.mxu0 0.0
    %9861 = vmatprep.subr.mxu0 0.0
    %9862 = vmatpush1.msra.mxu0 0.0
    %9863 = vmatprep.subr.mxu0 0.0
    %9864 = vmatpush1.msra.mxu0 0.0
    %9865 = vmatprep.subr.mxu0 0.0
    %9866 = vmatpush1.msra.mxu0 0.0
    %9867 = vmatprep.subr.mxu0 0.0
    %9868 = vmatpush1.msra.mxu0 0.0
    %9869 = vmatprep.subr.mxu0 0.0
    %9870 = vmatpush1.msra.mxu0 0.0
    %9871 = vmatprep.subr.mxu0 0.0
    %9872 = vmatpush1.msra.mxu0 0.0
    %9873 = vmatprep.subr.mxu0 0.0
    %9874 = vmatpush1.msra.mxu0 0.0
    %9875 = vmatprep.subr.mxu0 0.0
    %9876 = vmatpush1.msra.mxu0 0.0
    %9877 = vmatprep.subr.mxu0 0.0
    %9878 = vmatpush1.msra.mxu0 0.0
    %9879 = vmatprep.subr.mxu0 0.0
    %9880 = vmatpush1.msra.mxu0 0.0
    %9881 = vmatprep.subr.mxu0 0.0
    %9882 = vmatpush1.msra.mxu0 0.0
    %9883 = vmatprep.subr.mxu0 0.0
    %9884 = vmatpush1.msra.mxu0 0.0
    %9885 = vmatprep.subr.mxu0 0.0
    %9886 = vmatpush1.msra.mxu0 0.0
    %9887 = vmatprep.subr.mxu0 0.0
    %9888 = vmatpush1.msra.mxu0 0.0
    %9889 = vmatprep.subr.mxu0 0.0
    %9890 = vmatpush1.msra.mxu0 0.0
    %9891 = vmatprep.subr.mxu0 0.0
    %9892 = vmatpush1.msra.mxu0 0.0
    %9893 = vmatprep.subr.mxu0 0.0
    %9894 = vmatpush1.msra.mxu0 0.0
    %9895 = vmatprep.subr.mxu0 0.0
    %9896 = vmatpush1.msra.mxu0 0.0
    %9897 = vmatprep.subr.mxu0 0.0
    %9898 = vmatpush1.msra.mxu0 0.0
    %9899 = vmatprep.subr.mxu0 0.0
    %9900 = vmatpush1.msra.mxu0 0.0
    %9901 = vmatprep.subr.mxu0 0.0
    %9902 = vmatpush1.msra.mxu0 0.0
    %9903 = vmatprep.subr.mxu0 0.0
    %9904 = vmatpush1.msra.mxu0 0.0
    %9905 = vmatprep.subr.mxu0 0.0
    %9906 = vmatpush1.msra.mxu0 0.0
    %9907 = vmatprep.subr.mxu0 0.0
    %9908 = vmatpush1.msra.mxu0 0.0
    %9909 = vmatprep.subr.mxu0 0.0
    %9910 = vmatpush1.msra.mxu0 0.0
    %9911 = vmatprep.subr.mxu0 0.0
    %9912 = vmatpush1.msra.mxu0 0.0
    %9913 = vmatprep.subr.mxu0 0.0
    %9914 = vmatpush1.msra.mxu0 0.0
    %9915 = vmatprep.mubr.f32.mxu0 0.0
    %9916 = vmatmul.mubr.f32.gmra.mrb[0].mxu0 %v9849
    %v9917 = vpop.f32.mrb[0].mxu0
    %v9918 = vadd.f32 0.0, %v9917
    %v9919 = vpop.f32.mrb[0].mxu0
    %9920 = vdwg.mxu0
    %v9921 = vsel %vm8392, %v8572, 0
    %9923 = vmatprep.subr.mxu0 0.0
    %9924 = vmatpush1.msra.mxu0 %v9848
    %9925 = vmatprep.subr.mxu0 0.0
    %9926 = vmatpush1.msra.mxu0 0.0
    %9927 = vmatprep.subr.mxu0 0.0
    %9928 = vmatpush1.msra.mxu0 0.0
    %9929 = vmatprep.subr.mxu0 0.0
    %9930 = vmatpush1.msra.mxu0 0.0
    %9931 = vmatprep.subr.mxu0 0.0
    %9932 = vmatpush1.msra.mxu0 0.0
    %9933 = vmatprep.subr.mxu0 0.0
    %9934 = vmatpush1.msra.mxu0 0.0
    %9935 = vmatprep.subr.mxu0 0.0
    %9936 = vmatpush1.msra.mxu0 0.0
    %9937 = vmatprep.subr.mxu0 0.0
    %9938 = vmatpush1.msra.mxu0 0.0
    %9939 = vmatprep.subr.mxu0 0.0
    %9940 = vmatpush1.msra.mxu0 0.0
    %9941 = vmatprep.subr.mxu0 0.0
    %9942 = vmatpush1.msra.mxu0 0.0
    %9943 = vmatprep.subr.mxu0 0.0
    %9944 = vmatpush1.msra.mxu0 0.0
    %9945 = vmatprep.subr.mxu0 0.0
    %9946 = vmatpush1.msra.mxu0 0.0
    %9947 = vmatprep.subr.mxu0 0.0
    %9948 = vmatpush1.msra.mxu0 0.0
    %9949 = vmatprep.subr.mxu0 0.0
    %9950 = vmatpush1.msra.mxu0 0.0
    %9951 = vmatprep.subr.mxu0 0.0
    %9952 = vmatpush1.msra.mxu0 0.0
    %9953 = vmatprep.subr.mxu0 0.0
    %9954 = vmatpush1.msra.mxu0 0.0
    %9955 = vmatprep.subr.mxu0 0.0
    %9956 = vmatpush1.msra.mxu0 0.0
    %9957 = vmatprep.subr.mxu0 0.0
    %9958 = vmatpush1.msra.mxu0 0.0
    %9959 = vmatprep.subr.mxu0 0.0
    %9960 = vmatpush1.msra.mxu0 0.0
    %9961 = vmatprep.subr.mxu0 0.0
    %9962 = vmatpush1.msra.mxu0 0.0
    %9963 = vmatprep.subr.mxu0 0.0
    %9964 = vmatpush1.msra.mxu0 0.0
    %9965 = vmatprep.subr.mxu0 0.0
    %9966 = vmatpush1.msra.mxu0 0.0
    %9967 = vmatprep.subr.mxu0 0.0
    %9968 = vmatpush1.msra.mxu0 0.0
    %9969 = vmatprep.subr.mxu0 0.0
    %9970 = vmatpush1.msra.mxu0 0.0
    %9971 = vmatprep.subr.mxu0 0.0
    %9972 = vmatpush1.msra.mxu0 0.0
    %9973 = vmatprep.subr.mxu0 0.0
    %9974 = vmatpush1.msra.mxu0 0.0
    %9975 = vmatprep.subr.mxu0 0.0
    %9976 = vmatpush1.msra.mxu0 0.0
    %9977 = vmatprep.subr.mxu0 0.0
    %9978 = vmatpush1.msra.mxu0 0.0
    %9979 = vmatprep.subr.mxu0 0.0
    %9980 = vmatpush1.msra.mxu0 0.0
    %9981 = vmatprep.subr.mxu0 0.0
    %9982 = vmatpush1.msra.mxu0 0.0
    %9983 = vmatprep.subr.mxu0 0.0
    %9984 = vmatpush1.msra.mxu0 0.0
    %9985 = vmatprep.subr.mxu0 0.0
    %9986 = vmatpush1.msra.mxu0 0.0
    %9987 = vmatprep.mubr.f32.mxu0 0.0
    %9988 = vmatmul.mubr.f32.gmra.mrb[0].mxu0 %v9921
    %v9989 = vpop.f32.mrb[0].mxu0
    %v9990 = vadd.f32 0.0, %v9989
    %v9991 = vpop.f32.mrb[0].mxu0
    %9992 = vdwg.mxu0
    %v9993 = vmax.f32 %v9918, %v9990
    %v9994 = vld [vmem:[%s4] sm:$0x1]
    %v9996 = vlaneseq
    %v9997 = vshrl.u32 %v9996, 7
    %v9998 = vsub.s32 0, %v9997
    %v9999 = vrot.slane %v9994, %v9998
    %10000 = vrot.lane.b32.xlu0 %v9999, 16
    %v10001 = vpop.permute.xlu0 %10000
    %10003 = vrot.lane.b32.xlu0 %v9999, 32
    %v10004 = vpop.permute.xlu0 %10003
    %10006 = vrot.lane.b32.xlu0 %v9999, 48
    %v10007 = vpop.permute.xlu0 %10006
    %10009 = vrot.lane.b32.xlu0 %v9999, 64
    %v10010 = vpop.permute.xlu0 %10009
    %10012 = vrot.lane.b32.xlu0 %v9999, 80
    %v10013 = vpop.permute.xlu0 %10012
    %10015 = vrot.lane.b32.xlu0 %v9999, 96
    %v10016 = vpop.permute.xlu0 %10015
    %10018 = vrot.lane.b32.xlu0 %v9999, 112
    %v10019 = vpop.permute.xlu0 %10018
    %v10021 = vsel %vm8396, %v9994, %v10001
    %v10022 = vsel %vm8404, %v10021, %v10004
    %v10023 = vsel %vm8412, %v10022, %v10007
    %v10024 = vsel %vm8420, %v10023, %v10010
    %v10025 = vsel %vm8428, %v10024, %v10013
    %v10026 = vsel %vm8436, %v10025, %v10016
    %v10027 = vsel %vm8444, %v10026, %v10019
    %v10028 = vlaneseq
    %v10029 = vshrl.u32 %v10028, 7
    %v10030 = vsub.s32 0, %v10029
    %v10031 = vrot.slane %v10027, %v10030
    %v10032 = vadd.f32 %v9993, %v10031
    %v10033 = vmax.f32 %v10032, 0.0
    %v10035 = vrot.slane %v10033, 1
    %10036 = vrot.lane.b32.xlu0 %v10035, 16
    %v10037 = vpop.permute.xlu0 %10036
    %v10039 = vrot.slane %v10033, 2
    %10040 = vrot.lane.b32.xlu0 %v10039, 32
    %v10041 = vpop.permute.xlu0 %10040
    %v10043 = vrot.slane %v10033, 3
    %10044 = vrot.lane.b32.xlu0 %v10043, 48
    %v10045 = vpop.permute.xlu0 %10044
    %10047 = vrot.lane.b32.xlu0 %v10033, 48
    %v10048 = vpop.permute.xlu0 %10047
    %10050 = vrot.lane.b32.xlu0 %v10035, 64
    %v10051 = vpop.permute.xlu0 %10050
    %10053 = vrot.lane.b32.xlu0 %v10039, 80
    %v10054 = vpop.permute.xlu0 %10053
    %10056 = vrot.lane.b32.xlu0 %v10043, 96
    %v10057 = vpop.permute.xlu0 %10056
    %10059 = vrot.lane.b32.xlu0 %v10033, 96
    %v10060 = vpop.permute.xlu0 %10059
    %10062 = vrot.lane.b32.xlu0 %v10035, 112
    %v10063 = vpop.permute.xlu0 %10062
    %10066 = vrot.lane.b32.xlu0 %v10043, 16
    %v10067 = vpop.permute.xlu0 %10066
    %10069 = vrot.lane.b32.xlu0 %v10033, 16
    %v10070 = vpop.permute.xlu0 %10069
    %10072 = vrot.lane.b32.xlu0 %v10035, 32
    %v10073 = vpop.permute.xlu0 %10072
    %10075 = vrot.lane.b32.xlu0 %v10039, 48
    %v10076 = vpop.permute.xlu0 %10075
    %10078 = vrot.lane.b32.xlu0 %v10043, 64
    %v10079 = vpop.permute.xlu0 %10078
    %v10081 = vsel %vm8396, %v10033, %v10037
    %v10082 = vsel %vm8404, %v10081, %v10041
    %v10083 = vsel %vm8412, %v10082, %v10045
    %v10084 = vsel %vm8420, %v10083, %v10048
    %v10085 = vsel %vm8428, %v10084, %v10051
    %v10086 = vsel %vm8436, %v10085, %v10054
    %v10087 = vsel %vm8444, %v10086, %v10057
    %v10088 = vsel %vm8396, %v10060, %v10063
    %v10089 = vsel %vm8404, %v10088, %v10039
    %v10090 = vsel %vm8412, %v10089, %v10067
    %v10091 = vsel %vm8420, %v10090, %v10070
    %v10092 = vsel %vm8428, %v10091, %v10073
    %v10093 = vsel %vm8436, %v10092, %v10076
    %v10094 = vsel %vm8444, %v10093, %v10079
    %10095 = vrot.lane.b32.xlu0 %v10033, 64
    %v10096 = vpop.permute.xlu0 %10095
    %10098 = vrot.lane.b32.xlu0 %v10035, 80
    %v10099 = vpop.permute.xlu0 %10098
    %10101 = vrot.lane.b32.xlu0 %v10039, 96
    %v10102 = vpop.permute.xlu0 %10101
    %10104 = vrot.lane.b32.xlu0 %v10043, 112
    %v10105 = vpop.permute.xlu0 %10104
    %10107 = vrot.lane.b32.xlu0 %v10033, 112
    %v10108 = vpop.permute.xlu0 %10107
    %10111 = vrot.lane.b32.xlu0 %v10039, 16
    %v10112 = vpop.permute.xlu0 %10111
    %10114 = vrot.lane.b32.xlu0 %v10043, 32
    %v10115 = vpop.permute.xlu0 %10114
    %10117 = vrot.lane.b32.xlu0 %v10033, 32
    %v10118 = vpop.permute.xlu0 %10117
    %10120 = vrot.lane.b32.xlu0 %v10035, 48
    %v10121 = vpop.permute.xlu0 %10120
    %10123 = vrot.lane.b32.xlu0 %v10039, 64
    %v10124 = vpop.permute.xlu0 %10123
    %10126 = vrot.lane.b32.xlu0 %v10043, 80
    %v10127 = vpop.permute.xlu0 %10126
    %10129 = vrot.lane.b32.xlu0 %v10033, 80
    %v10130 = vpop.permute.xlu0 %10129
    %10132 = vrot.lane.b32.xlu0 %v10035, 96
    %v10133 = vpop.permute.xlu0 %10132
    %10135 = vrot.lane.b32.xlu0 %v10039, 112
    %v10136 = vpop.permute.xlu0 %10135
    %v10139 = vsel %vm8396, %v10096, %v10099
    %v10140 = vsel %vm8404, %v10139, %v10102
    %v10141 = vsel %vm8412, %v10140, %v10105
    %v10142 = vsel %vm8420, %v10141, %v10108
    %v10143 = vsel %vm8428, %v10142, %v10035
    %v10144 = vsel %vm8436, %v10143, %v10112
    %v10145 = vsel %vm8444, %v10144, %v10115
    %v10146 = vsel %vm8396, %v10118, %v10121
    %v10147 = vsel %vm8404, %v10146, %v10124
    %v10148 = vsel %vm8412, %v10147, %v10127
    %v10149 = vsel %vm8420, %v10148, %v10130
    %v10150 = vsel %vm8428, %v10149, %v10133
    %v10151 = vsel %vm8436, %v10150, %v10136
    %v10152 = vsel %vm8444, %v10151, %v10043
    %v10155 = vrot.slane %v10145, 7
    %v10156 = vrot.slane %v10152, 7
    %vm10159 = vcmask 1040384
    %v10160 = vsel %vm10159, %v10087, %v10155
    %v10161 = vsel %vm10159, %v10094, %v10156
    %v10162 = vpack.c.bf16 %v10160, %v10160
    %v10163 = vpack.c.bf16 %v10161, %v10161
    %v10164 = vld [vmem:[%s5] sm:$0xf]
    %v10165 = vld [vmem:[%s5 + $0x4] sm:$0xf]
    %v10166 = vld [vmem:[%s5 + $0x8] sm:$0xf]
    %v10167 = vld [vmem:[%s5 + $0xc] sm:$0xf]
    %v10168 = vld [vmem:[%s5 + $0x10] sm:$0xf]
    %v10169 = vld [vmem:[%s5 + $0x14] sm:$0xf]
    %v10170 = vld [vmem:[%s5 + $0x18] sm:$0xf]
    %v10171 = vld [vmem:[%s5 + $0x1c] sm:$0xf]
    %v10172 = vld [vmem:[%s5 + $0x20] sm:$0xf]
    %v10173 = vld [vmem:[%s5 + $0x24] sm:$0xf]
    %v10174 = vld [vmem:[%s5 + $0x28] sm:$0xf]
    %v10175 = vld [vmem:[%s5 + $0x2c] sm:$0xf]
    %v10176 = vld [vmem:[%s5 + $0x30] sm:$0xf]
    %v10177 = vld [vmem:[%s5 + $0x34] sm:$0xf]
    %v10178 = vld [vmem:[%s5 + $0x38] sm:$0xf]
    %v10179 = vld [vmem:[%s5 + $0x3c] sm:$0xf]
    %v10180 = vld [vmem:[%s5 + $0x40] sm:$0xf]
    %v10181 = vld [vmem:[%s5 + $0x44] sm:$0xf]
    %v10182 = vld [vmem:[%s5 + $0x48] sm:$0xf]
    %v10183 = vld [vmem:[%s5 + $0x4c] sm:$0xf]
    %v10184 = vld [vmem:[%s5 + $0x50] sm:$0xf]
    %v10185 = vld [vmem:[%s5 + $0x54] sm:$0xf]
    %v10186 = vld [vmem:[%s5 + $0x58] sm:$0xf]
    %v10187 = vld [vmem:[%s5 + $0x5c] sm:$0xf]
    %v10188 = vld [vmem:[%s5 + $0x60] sm:$0xf]
    %v10189 = vld [vmem:[%s5 + $0x64] sm:$0xf]
    %v10190 = vld [vmem:[%s5 + $0x68] sm:$0xf]
    %v10191 = vld [vmem:[%s5 + $0x6c] sm:$0xf]
    %v10192 = vld [vmem:[%s5 + $0x70] sm:$0xf]
    %v10193 = vld [vmem:[%s5 + $0x74] sm:$0xf]
    %v10194 = vld [vmem:[%s5 + $0x78] sm:$0xf]
    %v10195 = vld [vmem:[%s5 + $0x7c] sm:$0xf]
    %v10196 = vld [vmem:[%s6] sm:$0x1]
    %v10198 = vlaneseq
    %v10199 = vshrl.u32 %v10198, 7
    %v10200 = vsub.s32 0, %v10199
    %v10201 = vrot.slane %v10196, %v10200
    %v10235 = vunpack.c.l.b16 %v10164
    %v10236 = vunpack.c.l.b16 %v10165
    %v10237 = vunpack.c.l.b16 %v10166
    %v10238 = vunpack.c.l.b16 %v10167
    %v10239 = vunpack.c.l.b16 %v10168
    %v10240 = vunpack.c.l.b16 %v10169
    %v10241 = vunpack.c.l.b16 %v10170
    %v10242 = vunpack.c.l.b16 %v10171
    %v10243 = vunpack.c.l.b16 %v10172
    %v10244 = vunpack.c.l.b16 %v10173
    %v10245 = vunpack.c.l.b16 %v10174
    %v10246 = vunpack.c.l.b16 %v10175
    %v10247 = vunpack.c.l.b16 %v10176
    %v10248 = vunpack.c.l.b16 %v10177
    %v10249 = vunpack.c.l.b16 %v10178
    %v10250 = vunpack.c.l.b16 %v10179
    %v10251 = vunpack.c.l.b16 %v10180
    %v10252 = vunpack.c.l.b16 %v10181
    %v10253 = vunpack.c.l.b16 %v10182
    %v10254 = vunpack.c.l.b16 %v10183
    %v10255 = vunpack.c.l.b16 %v10184
    %v10256 = vunpack.c.l.b16 %v10185
    %v10257 = vunpack.c.l.b16 %v10186
    %v10258 = vunpack.c.l.b16 %v10187
    %v10259 = vunpack.c.l.b16 %v10188
    %v10260 = vunpack.c.l.b16 %v10189
    %v10261 = vunpack.c.l.b16 %v10190
    %v10262 = vunpack.c.l.b16 %v10191
    %v10263 = vunpack.c.l.b16 %v10192
    %v10264 = vunpack.c.l.b16 %v10193
    %v10265 = vunpack.c.l.b16 %v10194
    %v10266 = vunpack.c.l.b16 %v10195
    %v10267 = vpack.c.b16 %v10236, %v10235
    %v10268 = vpack.c.b16 %v10238, %v10237
    %v10269 = vpack.c.b16 %v10240, %v10239
    %v10270 = vpack.c.b16 %v10242, %v10241
    %v10271 = vpack.c.b16 %v10244, %v10243
    %v10272 = vpack.c.b16 %v10246, %v10245
    %v10273 = vpack.c.b16 %v10248, %v10247
    %v10274 = vpack.c.b16 %v10250, %v10249
    %v10275 = vpack.c.b16 %v10252, %v10251
    %v10276 = vpack.c.b16 %v10254, %v10253
    %v10277 = vpack.c.b16 %v10256, %v10255
    %v10278 = vpack.c.b16 %v10258, %v10257
    %v10279 = vpack.c.b16 %v10260, %v10259
    %v10280 = vpack.c.b16 %v10262, %v10261
    %v10281 = vpack.c.b16 %v10264, %v10263
    %v10282 = vpack.c.b16 %v10266, %v10265
    %10299 = vmatprep.subr.bf16.mxu0 0
    %10300 = vmatpush1.bf16.msra.mxu0 %v10267
    %10301 = vmatprep.subr.bf16.mxu0 0
    %10302 = vmatpush1.bf16.msra.mxu0 %v10268
    %10303 = vmatprep.subr.bf16.mxu0 0
    %10304 = vmatpush1.bf16.msra.mxu0 %v10269
    %10305 = vmatprep.subr.bf16.mxu0 0
    %10306 = vmatpush1.bf16.msra.mxu0 %v10270
    %10307 = vmatprep.subr.bf16.mxu0 0
    %10308 = vmatpush1.bf16.msra.mxu0 %v10271
    %10309 = vmatprep.subr.bf16.mxu0 0
    %10310 = vmatpush1.bf16.msra.mxu0 %v10272
    %10311 = vmatprep.subr.bf16.mxu0 0
    %10312 = vmatpush1.bf16.msra.mxu0 %v10273
    %10313 = vmatprep.subr.bf16.mxu0 0
    %10314 = vmatpush1.bf16.msra.mxu0 %v10274
    %10315 = vmatprep.subr.bf16.mxu0 0
    %10316 = vmatpush1.bf16.msra.mxu0 %v10275
    %10317 = vmatprep.subr.bf16.mxu0 0
    %10318 = vmatpush1.bf16.msra.mxu0 %v10276
    %10319 = vmatprep.subr.bf16.mxu0 0
    %10320 = vmatpush1.bf16.msra.mxu0 %v10277
    %10321 = vmatprep.subr.bf16.mxu0 0
    %10322 = vmatpush1.bf16.msra.mxu0 %v10278
    %10323 = vmatprep.subr.bf16.mxu0 0
    %10324 = vmatpush1.bf16.msra.mxu0 %v10279
    %10325 = vmatprep.subr.bf16.mxu0 0
    %10326 = vmatpush1.bf16.msra.mxu0 %v10280
    %10327 = vmatprep.subr.bf16.mxu0 0
    %10328 = vmatpush1.bf16.msra.mxu0 %v10281
    %10329 = vmatprep.subr.bf16.mxu0 0
    %10330 = vmatpush1.bf16.msra.mxu0 %v10282
    %10331 = vmatprep.mubr.bf16.mxu0 %v10163
    %10332 = vmatmul.mubr.bf16.gmra.mrb[0].mxu0 %v10162
    %v10333 = vpop.f32.mrb[0].mxu0
    %v10334 = vadd.f32 %v10201, %v10333
    %v10335 = vpop.f32.mrb[0].mxu0
    %v10336 = vpop.f32.mrb[0].mxu0
    %v10337 = vpop.f32.mrb[0].mxu0
    %10338 = vdwg.mxu0
    %v10339 = vmax.f32 %v10334, 0.0
    %v10340 = vpack.c.bf16 %v10339, %v10339
    %v10341 = vld [vmem:[%s7] sm:$0xf]
    %v10342 = vld [vmem:[%s7 + $0x4] sm:$0xf]
    %v10343 = vld [vmem:[%s7 + $0x8] sm:$0xf]
    %v10344 = vld [vmem:[%s7 + $0xc] sm:$0xf]
    %v10345 = vld [vmem:[%s7 + $0x10] sm:$0xf]
    %v10346 = vld [vmem:[%s7 + $0x14] sm:$0xf]
    %v10347 = vld [vmem:[%s7 + $0x18] sm:$0xf]
    %v10348 = vld [vmem:[%s7 + $0x1c] sm:$0xf]
    %v10349 = vld [vmem:[%s7 + $0x20] sm:$0xf]
    %v10350 = vld [vmem:[%s7 + $0x24] sm:$0xf]
    %v10351 = vld [vmem:[%s7 + $0x28] sm:$0xf]
    %v10352 = vld [vmem:[%s7 + $0x2c] sm:$0xf]
    %v10353 = vld [vmem:[%s7 + $0x30] sm:$0xf]
    %v10354 = vld [vmem:[%s7 + $0x34] sm:$0xf]
    %v10355 = vld [vmem:[%s7 + $0x38] sm:$0xf]
    %v10356 = vld [vmem:[%s8] sm:$0x1]
    %v10358 = vlaneseq
    %v10359 = vshrl.u32 %v10358, 7
    %v10360 = vsub.s32 0, %v10359
    %v10361 = vrot.slane %v10356, %v10360
    %v10378 = vunpack.c.l.b16 %v10341
    %v10379 = vunpack.c.l.b16 %v10342
    %v10380 = vunpack.c.l.b16 %v10343
    %v10381 = vunpack.c.l.b16 %v10344
    %v10382 = vunpack.c.l.b16 %v10345
    %v10383 = vunpack.c.l.b16 %v10346
    %v10384 = vunpack.c.l.b16 %v10347
    %v10385 = vunpack.c.l.b16 %v10348
    %v10386 = vunpack.c.l.b16 %v10349
    %v10387 = vunpack.c.l.b16 %v10350
    %v10388 = vunpack.c.l.b16 %v10351
    %v10389 = vunpack.c.l.b16 %v10352
    %v10390 = vunpack.c.l.b16 %v10353
    %v10391 = vunpack.c.l.b16 %v10354
    %v10392 = vunpack.c.l.b16 %v10355
    %v10393 = vpack.c.b16 %v10379, %v10378
    %v10394 = vpack.c.b16 %v10381, %v10380
    %v10395 = vpack.c.b16 %v10383, %v10382
    %v10396 = vpack.c.b16 %v10385, %v10384
    %v10397 = vpack.c.b16 %v10387, %v10386
    %v10398 = vpack.c.b16 %v10389, %v10388
    %v10399 = vpack.c.b16 %v10391, %v10390
    %v10400 = vpack.c.b16 %v10392, %v10392
    %v10409 = vsel %vm8448, %v10340, 0
    %v10412 = vsel %vm3179, %v10400, 0
    %10414 = vmatprep.subr.bf16.mxu0 0
    %10415 = vmatpush1.bf16.msra.mxu0 %v10393
    %10416 = vmatprep.subr.bf16.mxu0 0
    %10417 = vmatpush1.bf16.msra.mxu0 %v10394
    %10418 = vmatprep.subr.bf16.mxu0 0
    %10419 = vmatpush1.bf16.msra.mxu0 %v10395
    %10420 = vmatprep.subr.bf16.mxu0 0
    %10421 = vmatpush1.bf16.msra.mxu0 %v10396
    %10422 = vmatprep.subr.bf16.mxu0 0
    %10423 = vmatpush1.bf16.msra.mxu0 %v10397
    %10424 = vmatprep.subr.bf16.mxu0 0
    %10425 = vmatpush1.bf16.msra.mxu0 %v10398
    %10426 = vmatprep.subr.bf16.mxu0 0
    %10427 = vmatpush1.bf16.msra.mxu0 %v10399
    %10428 = vmatprep.subr.bf16.mxu0 0
    %10429 = vmatpush1.bf16.msra.mxu0 %v10412
    %10430 = vmatprep.subr.bf16.mxu0 0
    %10431 = vmatpush1.bf16.msra.mxu0 0
    %10432 = vmatprep.subr.bf16.mxu0 0
    %10433 = vmatpush1.bf16.msra.mxu0 0
    %10434 = vmatprep.subr.bf16.mxu0 0
    %10435 = vmatpush1.bf16.msra.mxu0 0
    %10436 = vmatprep.subr.bf16.mxu0 0
    %10437 = vmatpush1.bf16.msra.mxu0 0
    %10438 = vmatprep.subr.bf16.mxu0 0
    %10439 = vmatpush1.bf16.msra.mxu0 0
    %10440 = vmatprep.subr.bf16.mxu0 0
    %10441 = vmatpush1.bf16.msra.mxu0 0
    %10442 = vmatprep.subr.bf16.mxu0 0
    %10443 = vmatpush1.bf16.msra.mxu0 0
    %10444 = vmatprep.subr.bf16.mxu0 0
    %10445 = vmatpush1.bf16.msra.mxu0 0
    %10446 = vmatprep.mubr.bf16.mxu0 0
    %10447 = vmatmul.mubr.bf16.gmra.mrb[0].mxu0 %v10409
    %v10448 = vpop.f32.mrb[0].mxu0
    %v10449 = vadd.f32 %v10361, %v10448
    %v10450 = vpop.f32.mrb[0].mxu0
    %v10451 = vpop.f32.mrb[0].mxu0
    %v10452 = vpop.f32.mrb[0].mxu0
    %10453 = vdwg.mxu0
    %v10454 = vmax.f32 %v10449, 0.0
    %v10455 = vpack.c.bf16 %v10454, %v10454
    %v10456 = vld [vmem:[%s9] sm:$0xf]
    %v10457 = vld [vmem:[%s9 + $0x4] sm:$0xf]
    %v10458 = vld [vmem:[%s9 + $0x8] sm:$0xf]
    %v10459 = vld [vmem:[%s9 + $0xc] sm:$0xf]
    %v10460 = vld [vmem:[%s9 + $0x10] sm:$0xf]
    %v10461 = vld [vmem:[%s9 + $0x14] sm:$0xf]
    %v10462 = vld [vmem:[%s9 + $0x18] sm:$0xf]
    %v10463 = vld [vmem:[%s9 + $0x1c] sm:$0xf]
    %v10464 = vld [vmem:[%s9 + $0x20] sm:$0xf]
    %v10465 = vld [vmem:[%s9 + $0x24] sm:$0xf]
    %v10466 = vld [vmem:[%s9 + $0x28] sm:$0x3]
    %v10467 = vld [vmem:[%s10] sm:$0x1]
    %v10469 = vlaneseq
    %v10470 = vshrl.u32 %v10469, 7
    %v10471 = vsub.s32 0, %v10470
    %v10472 = vrot.slane %v10467, %v10471
    %v10485 = vunpack.c.l.b16 %v10456
    %v10486 = vunpack.c.l.b16 %v10457
    %v10487 = vunpack.c.l.b16 %v10458
    %v10488 = vunpack.c.l.b16 %v10459
    %v10489 = vunpack.c.l.b16 %v10460
    %v10490 = vunpack.c.l.b16 %v10461
    %v10491 = vunpack.c.l.b16 %v10462
    %v10492 = vunpack.c.l.b16 %v10463
    %v10493 = vunpack.c.l.b16 %v10464
    %v10494 = vunpack.c.l.b16 %v10465
    %v10495 = vunpack.c.l.b16 %v10466
    %v10496 = vpack.c.b16 %v10486, %v10485
    %v10497 = vpack.c.b16 %v10488, %v10487
    %v10498 = vpack.c.b16 %v10490, %v10489
    %v10499 = vpack.c.b16 %v10492, %v10491
    %v10500 = vpack.c.b16 %v10494, %v10493
    %v10501 = vpack.c.b16 %v10495, %v10495
    %vm10507 = vcmask 687104
    %v10509 = vsel %vm10507, %v10455, 0
    %vm10511 = vcmask 1041408
    %v10513 = vsel %vm10511, %v10501, 0
    %10515 = vmatprep.subr.bf16.mxu0 0
    %10516 = vmatpush1.bf16.msra.mxu0 %v10496
    %10517 = vmatprep.subr.bf16.mxu0 0
    %10518 = vmatpush1.bf16.msra.mxu0 %v10497
    %10519 = vmatprep.subr.bf16.mxu0 0
    %10520 = vmatpush1.bf16.msra.mxu0 %v10498
    %10521 = vmatprep.subr.bf16.mxu0 0
    %10522 = vmatpush1.bf16.msra.mxu0 %v10499
    %10523 = vmatprep.subr.bf16.mxu0 0
    %10524 = vmatpush1.bf16.msra.mxu0 %v10500
    %10525 = vmatprep.subr.bf16.mxu0 0
    %10526 = vmatpush1.bf16.msra.mxu0 %v10513
    %10527 = vmatprep.subr.bf16.mxu0 0
    %10528 = vmatpush1.bf16.msra.mxu0 0
    %10529 = vmatprep.subr.bf16.mxu0 0
    %10530 = vmatpush1.bf16.msra.mxu0 0
    %10531 = vmatprep.subr.bf16.mxu0 0
    %10532 = vmatpush1.bf16.msra.mxu0 0
    %10533 = vmatprep.subr.bf16.mxu0 0
    %10534 = vmatpush1.bf16.msra.mxu0 0
    %10535 = vmatprep.subr.bf16.mxu0 0
    %10536 = vmatpush1.bf16.msra.mxu0 0
    %10537 = vmatprep.subr.bf16.mxu0 0
    %10538 = vmatpush1.bf16.msra.mxu0 0
    %10539 = vmatprep.subr.bf16.mxu0 0
    %10540 = vmatpush1.bf16.msra.mxu0 0
    %10541 = vmatprep.subr.bf16.mxu0 0
    %10542 = vmatpush1.bf16.msra.mxu0 0
    %10543 = vmatprep.subr.bf16.mxu0 0
    %10544 = vmatpush1.bf16.msra.mxu0 0
    %10545 = vmatprep.subr.bf16.mxu0 0
    %10546 = vmatpush1.bf16.msra.mxu0 0
    %10547 = vmatprep.mubr.bf16.mxu0 0
    %10548 = vmatmul.mubr.bf16.gmra.mrb[0].mxu0 %v10509
    %v10549 = vpop.f32.mrb[0].mxu0
    %v10550 = vadd.f32 %v10472, %v10549
    %v10551 = vpop.f32.mrb[0].mxu0
    %v10552 = vpop.f32.mrb[0].mxu0
    %v10553 = vpop.f32.mrb[0].mxu0
    %10554 = vdwg.mxu0
    %vm10555 = vcmask 74752
    %10556 = vst.msk [vmem:[#allocation2] sm:$0x3] %vm10555, %v10550
    // Predicated region
    $region46: #{net_forward.1} parent=1 // pred_check
      _
    $region47: #{net_forward.1} parent=1 // pred_check_branch
      %10558 = sbr.rel (0) target = $region49
    $region48: #{net_forward.1} parent=1 // pred_region
      %s10560 = ssub.s32 32, 32
      %10561 = vsyncadd [#allocation3], %s10560
      %s10563 = sshll.u32 [#allocation2], 4
      %s10564 = int_to_ptr.vmem [resolvable:$true] %s10563
      %10566 = dma.vmem_to_hbm [thread:$0]  %s10564, 32, %s11, [#allocation3]
    $region49: #{net_forward.1} parent=1 // pred_fallthru
      _
    // Predicated region
    $region50: #{net_forward.1} parent=1 // pred_check
      _
    $region51: #{net_forward.1} parent=1 // pred_check_branch
      %10568 = sbr.rel (0) target = $region53
    $region52: #{net_forward.1} parent=1 // pred_region
      %10569 = dma.done [#allocation3], 32
    $region53: #{net_forward.1} parent=1 // pred_fallthru
      _
    %10570 = vsyncpa [#allocation3], 1

</llo_original>
